<compile_context>
chip_gen: v5e
topology: v5e:2x2
jax: 0.10.0
libtpu: 0.0.40
codegen_flags: <defaults>
</compile_context>

<pallas_src>
import functools
import math

import jax
import jax.numpy as jnp
from jax.experimental import pallas as pl
from jax.experimental.pallas import tpu as pltpu


def _round_up(x, m):
    return (x + m - 1) // m * m


def _prep_gate_param(p, H, H_pad):
    """Reorder PyTorch gate blocks (i,f,g,o) -> (i,f,o,g) and zero-pad each
    gate span from H to H_pad along axis 0 (keeps gate spans lane-aligned)."""
    i_p, f_p, g_p, o_p = jnp.split(p, 4, axis=0)
    pads = [(0, H_pad - H)] + [(0, 0)] * (p.ndim - 1)
    return jnp.concatenate([jnp.pad(b, pads) for b in (i_p, f_p, o_p, g_p)],
                           axis=0)


def _lstm_recurrent_kernel(gx_ref, w_hh_ref, out_ref, hn_ref, cn_ref,
                           h_scr, c_scr, *, hidden_pad, block_t, num_t_blocks,
                           tail_valid_steps):
    """Recurrent part of the LSTM; runs block_t timesteps per grid step.

    gx_ref  : (block_b, T, 4Hp) f32 precomputed x @ W_ih^T + b (batch-first)
    w_hh_ref: (Hp, 4Hp)             recurrent weight (transposed), compute dtype
    out_ref : (block_b, T, Hp)      per-step hidden outputs (batch-first)
    hn_ref  : (block_b, Hp)         final hidden state
    cn_ref  : (block_b, Hp)         final cell state
    h_scr/c_scr: (block_b, Hp) f32  state carried across time blocks

    NOTE: correctness of the h/c scratch carry requires the time axis to be
    the INNERMOST grid axis and marked "arbitrary" (serial); the batch-block
    axis is the outer "parallel" axis.  Do not reorder the grid.
    """
    tb = pl.program_id(1)
    H = hidden_pad
    T = block_t

    @pl.when(tb == 0)
    def _():
        h_scr[...] = jnp.zeros_like(h_scr)
        c_scr[...] = jnp.zeros_like(c_scr)

    h = h_scr[...]
    c = c_scr[...]
    w = w_hh_ref[...]                      # loaded once per grid step

    for tt in range(T):                    # static unroll -> static slices/stores
        gates = (jnp.dot(h.astype(w.dtype), w,
                         preferred_element_type=jnp.float32)
                 + gx_ref[:, tt, :])                          # (block_b, 4Hp) f32

        # Gates ordered (i, f, o, g): one sigmoid over the contiguous first
        # 3H lanes, tanh only over the last H lanes (no wasted EUP work).
        sg = jax.nn.sigmoid(gates[:, :3 * H])
        i_g = sg[:, 0 * H:1 * H]
        f_g = sg[:, 1 * H:2 * H]
        o_g = sg[:, 2 * H:3 * H]
        g_g = jnp.tanh(gates[:, 3 * H:4 * H])

        c_new = f_g * c + i_g * g_g
        h_new = o_g * jnp.tanh(c_new)

        # Tail specialization: masking only exists for the statically-known
        # padded steps; full blocks pay nothing.
        if tail_valid_steps is not None and tt >= tail_valid_steps:
            valid = tb < num_t_blocks - 1
            c_new = jnp.where(valid, c_new, c)
            h_new = jnp.where(valid, h_new, h)

        out_ref[:, tt, :] = h_new.astype(out_ref.dtype)
        h, c = h_new, c_new

    h_scr[...] = h
    c_scr[...] = c

    @pl.when(tb == num_t_blocks - 1)
    def _():
        hn_ref[...] = h.astype(hn_ref.dtype)
        cn_ref[...] = c.astype(cn_ref.dtype)


def lstm_forward(x, w_ih, w_hh, b_ih, b_hh, *, block_t=16, block_b=None,
                 compute_dtype=jnp.bfloat16, single_buffer_weight=True):
    """Single-layer batch-first LSTM forward (PyTorch nn.LSTM semantics).

    x: (B, S, I). Returns (output (B,S,H), (h_n (1,B,H), c_n (1,B,H))).
    compute_dtype: dtype of MXU matmul operands (bf16 default, f32 for strict
    validation).  Accumulation, gate math and the recurrent state stay f32;
    the hoisted input projection (incl. bias) is kept f32 so it is never
    rounded before entering the recurrence.
    """
    B, S, I = x.shape
    H = w_hh.shape[1]
    cd = compute_dtype
    H_pad = _round_up(H, 128)       # lane-dense gate spans & unmasked stores

    # ---- Gate reorder (i,f,g,o) -> (i,f,o,g) + pad each gate span to H_pad.
    w_ih_p = _prep_gate_param(w_ih, H, H_pad)                         # (4Hp, I)
    w_hh_p = _prep_gate_param(w_hh, H, H_pad)                         # (4Hp, H)
    w_hh_p = jnp.pad(w_hh_p, ((0, 0), (0, H_pad - H)))                # (4Hp, Hp)
    bias_p = _prep_gate_param((b_ih + b_hh).astype(jnp.float32), H, H_pad)

    # ---- Hoisted input projection: ONE big batch-first MXU matmul over all
    # timesteps (no layout transposes), result kept in f32.
    prec = (jax.lax.Precision.HIGHEST if cd == jnp.float32
            else jax.lax.Precision.DEFAULT)
    gates_x = jnp.einsum('bsi,gi->bsg', x.astype(cd), w_ih_p.astype(cd),
                         preferred_element_type=jnp.float32,
                         precision=prec) + bias_p                     # (B,S,4Hp) f32

    # ---- Time blocking: prefer a block that divides S exactly (no tail mask).
    if S <= block_t:
        T = S
    else:
        T = 0
        for cand in range(block_t - block_t % 8, 7, -8):   # multiples of 8
            if S % cand == 0:
                T = cand
                break
        if T == 0:
            T = max(8, block_t - block_t % 8)               # pad + tail mask
    nt = pl.cdiv(S, T)
    S_pad = nt * T
    if S_pad != S:
        gates_x = jnp.pad(gates_x, ((0, 0), (0, S_pad - S), (0, 0)))
        tail_valid_steps = S - (nt - 1) * T
    else:
        tail_valid_steps = None
    # TODO(synk): for block_t > 16 switch the in-kernel static unroll to a
    # chunked partial unroll to bound code size / vreg live ranges.

    # ---- Batch blocking: keep a single batch block on v5e/v6e (one TC);
    # on v7x pass block_b = B // 2 so the "parallel" axis shards the 2 TCs.
    if block_b is None:
        block_b = B
    assert B % block_b == 0, "block_b must divide the batch size"
    assert block_b == B or block_b % 8 == 0, "block_b must be a multiple of 8"
    nb = B // block_b

    w_hh_t = jnp.transpose(w_hh_p, (1, 0)).astype(cd)                 # (Hp, 4Hp)

    # ---- Explicit VMEM budget -> vmem_limit_bytes (the default scoped limit
    # of 16/32 MiB binds long before physical VMEM at realistic H).
    x_bytes = jnp.dtype(x.dtype).itemsize
    cd_bytes = jnp.dtype(cd).itemsize
    w_bufs = 1 if single_buffer_weight else 2
    vmem_budget = (2 * block_b * T * 4 * H_pad * 4          # gx blocks (f32)
                   + 2 * block_b * T * H_pad * x_bytes      # out blocks
                   + 2 * 2 * block_b * H_pad * x_bytes      # hn / cn blocks
                   + w_bufs * H_pad * 4 * H_pad * cd_bytes  # resident weight
                   + 2 * block_b * H_pad * 4)               # h/c scratch
    vmem_limit = int(min(100 * 2 ** 20,
                         max(16 * 2 ** 20, vmem_budget * 5 // 4)))

    w_spec_kwargs = {}
    if single_buffer_weight:
        # Loop-invariant weight (constant index_map): single-buffer it to
        # halve its VMEM footprint.
        w_spec_kwargs = dict(pipeline_mode=pl.Buffered(1))

    kernel = functools.partial(
        _lstm_recurrent_kernel,
        hidden_pad=H_pad, block_t=T, num_t_blocks=nt,
        tail_valid_steps=tail_valid_steps)

    out_full, h_n, c_n = pl.pallas_call(
        kernel,
        out_shape=(
            jax.ShapeDtypeStruct((B, S_pad, H_pad), x.dtype),
            jax.ShapeDtypeStruct((B, H_pad), x.dtype),
            jax.ShapeDtypeStruct((B, H_pad), x.dtype),
        ),
        grid_spec=pltpu.PrefetchScalarGridSpec(
            num_scalar_prefetch=0,
            grid=(nb, nt),            # time MUST stay the inner, serial axis
            in_specs=[
                # Precomputed input projection, batch-first, f32.
                pl.BlockSpec((block_b, T, 4 * H_pad), lambda b, t: (b, t, 0)),
                # Loop-invariant recurrent weight (DMA'd once, single-buffered).
                pl.BlockSpec((H_pad, 4 * H_pad), lambda b, t: (0, 0),
                             **w_spec_kwargs),
            ],
            out_specs=[
                pl.BlockSpec((block_b, T, H_pad), lambda b, t: (b, t, 0)),
                pl.BlockSpec((block_b, H_pad), lambda b, t: (b, 0)),
                pl.BlockSpec((block_b, H_pad), lambda b, t: (b, 0)),
            ],
            scratch_shapes=[
                pltpu.VMEM((block_b, H_pad), jnp.float32),   # h state
                pltpu.VMEM((block_b, H_pad), jnp.float32),   # c state
            ],
        ),
        compiler_params=pltpu.CompilerParams(
            dimension_semantics=("parallel", "arbitrary"),
            vmem_limit_bytes=vmem_limit,
        ),
    )(gates_x, w_hh_t)

    output = out_full[:, :S, :H]                             # (B, S, H)
    return output, (h_n[:, :H][None, ...], c_n[:, :H][None, ...])


def _reference_lstm(x, w_ih, w_hh, b_ih, b_hh):
    """Pure-JAX reference (PyTorch nn.LSTM semantics, gate order i,f,g,o)."""
    B, S, I = x.shape
    H = w_hh.shape[1]
    h = jnp.zeros((B, H), jnp.float32)
    c = jnp.zeros((B, H), jnp.float32)
    outs = []
    for t in range(S):
        gates = x[:, t, :] @ w_ih.T + h @ w_hh.T + b_ih + b_hh
        i_g = jax.nn.sigmoid(gates[:, 0 * H:1 * H])
        f_g = jax.nn.sigmoid(gates[:, 1 * H:2 * H])
        g_g = jnp.tanh(gates[:, 2 * H:3 * H])
        o_g = jax.nn.sigmoid(gates[:, 3 * H:4 * H])
        c = f_g * c + i_g * g_g
        h = o_g * jnp.tanh(c)
        outs.append(h)
    out = jnp.stack(outs, axis=1)
    return out, (h[None], c[None])


if __name__ == "__main__":
    # B >= 8 so the recurrent matmul fills at least one f32 sublane group.
    B, S, I, H = 8, 16, 8, 32

    key = jax.random.PRNGKey(0)
    kx, k1, k2, k3, k4 = jax.random.split(key, 5)

    # PyTorch-style init: U(-1/sqrt(H), 1/sqrt(H))
    bound = 1.0 / math.sqrt(H)
    w_ih = jax.random.uniform(k1, (4 * H, I), jnp.float32, -bound, bound)
    w_hh = jax.random.uniform(k2, (4 * H, H), jnp.float32, -bound, bound)
    b_ih = jax.random.uniform(k3, (4 * H,), jnp.float32, -bound, bound)
    b_hh = jax.random.uniform(k4, (4 * H,), jnp.float32, -bound, bound)
    x = jax.random.normal(kx, (B, S, I), jnp.float32)

    ref_out, (ref_h, ref_c) = _reference_lstm(x, w_ih, w_hh, b_ih, b_hh)

    def make_fwd(cd, sb):
        return jax.jit(functools.partial(
            lstm_forward, compute_dtype=cd, single_buffer_weight=sb))

    # --- strict f32 validation path ---
    single_buffer = True
    try:
        fwd_f32 = make_fwd(jnp.float32, single_buffer)
        out, (h_n, c_n) = fwd_f32(x, w_ih, w_hh, b_ih, b_hh)
        jax.block_until_ready((out, h_n, c_n))
    except Exception:
        # TODO(synk): drop this fallback once pl.Buffered(1) single-buffering
        # is confirmed on every deployed JAX rev; double-buffering the weight
        # is only a VMEM-footprint regression, never a correctness one.
        single_buffer = False
        fwd_f32 = make_fwd(jnp.float32, single_buffer)
        out, (h_n, c_n) = fwd_f32(x, w_ih, w_hh, b_ih, b_hh)
        jax.block_until_ready((out, h_n, c_n))

    assert out.shape == (B, S, H) and h_n.shape == (1, B, H) and c_n.shape == (1, B, H)
    assert jnp.allclose(out, ref_out, atol=1e-4, rtol=1e-4), "f32 output mismatch"
    assert jnp.allclose(h_n, ref_h, atol=1e-4, rtol=1e-4), "f32 h_n mismatch"
    assert jnp.allclose(c_n, ref_c, atol=1e-4, rtol=1e-4), "f32 c_n mismatch"

    # --- bf16 MXU-operand path (default; f32 accumulation & gate math) ---
    fwd_bf16 = make_fwd(jnp.bfloat16, single_buffer)
    out_b, (h_b, c_b) = fwd_bf16(x, w_ih, w_hh, b_ih, b_hh)
    jax.block_until_ready((out_b, h_b, c_b))
    assert jnp.allclose(out_b, ref_out, atol=5e-2, rtol=5e-2), "bf16 output mismatch"
    assert jnp.allclose(h_b, ref_h, atol=5e-2, rtol=5e-2), "bf16 h_n mismatch"
    assert jnp.allclose(c_b, ref_c, atol=5e-2, rtol=5e-2), "bf16 c_n mismatch"

    print("KERNEL_OK")
</pallas_src>

<mosaic_0001>
module attributes {stable_mosaic.version = 11 : i64} {
  func.func @_lstm_recurrent_kernel(%arg0: i32, %arg1: i32, %arg2: memref<8x16x512xf32, #tpu.memory_space<vmem>>, %arg3: memref<128x512xf32, #tpu.memory_space<vmem>>, %arg4: memref<8x16x128xf32, #tpu.memory_space<vmem>>, %arg5: memref<8x128xf32, #tpu.memory_space<vmem>>, %arg6: memref<8x128xf32, #tpu.memory_space<vmem>>, %arg7: memref<8x128xf32, #tpu.memory_space<vmem>>, %arg8: memref<8x128xf32, #tpu.memory_space<vmem>>) attributes {dimension_semantics = [#tpu.dimension_semantics<parallel>, #tpu.dimension_semantics<arbitrary>], iteration_bounds = array<i64: 1, 1>, scalar_prefetch = 0 : i64, scratch_operands = 2 : i64, tpu.core_type = #tpu.core_type<tc>, window_params = [{transform_indices = @transform_0, window_bounds = array<i64: 8, 16, 512>}, {pipeline_mode = #tpu.pipeline_mode<synchronous>, transform_indices = @transform_1, window_bounds = array<i64: 128, 512>}, {transform_indices = @transform_2, window_bounds = array<i64: 8, 16, 128>}, {transform_indices = @transform_3, window_bounds = array<i64: 8, 128>}, {transform_indices = @transform_4, window_bounds = array<i64: 8, 128>}]} {
    %c0_i32 = arith.constant 0 : i32
    %0 = arith.cmpi eq, %arg1, %c0_i32 : i32
    %1 = arith.extui %0 : i1 to i32
    %c0_i32_0 = arith.constant 0 : i32
    %2 = arith.cmpi ne, %1, %c0_i32_0 : i32
    scf.if %2 {
      %cst_124 = arith.constant 0.000000e+00 : f32
      %379 = vector.broadcast %cst_124 : f32 to vector<8x128xf32>
      %c0_125 = arith.constant 0 : index
      %c0_126 = arith.constant 0 : index
      %380 = vector.load %arg7[%c0_125, %c0_126] : memref<8x128xf32, #tpu.memory_space<vmem>>, vector<8x128xf32>
      tpu.vector_store %arg7[%c0_125, %c0_126], %379 {strides = array<i32>} : memref<8x128xf32, #tpu.memory_space<vmem>>, vector<8x128xf32>,
      %cst_127 = arith.constant 0.000000e+00 : f32
      %381 = vector.broadcast %cst_127 : f32 to vector<8x128xf32>
      %c0_128 = arith.constant 0 : index
      %c0_129 = arith.constant 0 : index
      %382 = vector.load %arg8[%c0_128, %c0_129] : memref<8x128xf32, #tpu.memory_space<vmem>>, vector<8x128xf32>
      tpu.vector_store %arg8[%c0_128, %c0_129], %381 {strides = array<i32>} : memref<8x128xf32, #tpu.memory_space<vmem>>, vector<8x128xf32>,
    } else {
    }
    %c0 = arith.constant 0 : index
    %c0_1 = arith.constant 0 : index
    %3 = vector.load %arg7[%c0, %c0_1] : memref<8x128xf32, #tpu.memory_space<vmem>>, vector<8x128xf32>
    %c0_2 = arith.constant 0 : index
    %c0_3 = arith.constant 0 : index
    %4 = vector.load %arg8[%c0_2, %c0_3] : memref<8x128xf32, #tpu.memory_space<vmem>>, vector<8x128xf32>
    %c0_4 = arith.constant 0 : index
    %c0_5 = arith.constant 0 : index
    %5 = vector.load %arg3[%c0_4, %c0_5] : memref<128x512xf32, #tpu.memory_space<vmem>>, vector<128x512xf32>
    %cst = arith.constant dense<0.000000e+00> : vector<8x512xf32>
    %6 = tpu.matmul %3, %5, %cst {dimension_numbers = #tpu.dot_dimension_numbers<[1], [0], [0], [1], [0, 0, 1, 1], [], []>} : vector<8x128xf32>, vector<128x512xf32>, vector<8x512xf32> -> vector<8x512xf32>
    %c0_6 = arith.constant 0 : index
    %c0_7 = arith.constant 0 : index
    %c0_8 = arith.constant 0 : index
    %7 = vector.load %arg2[%c0_6, %c0_7, %c0_8] : memref<8x16x512xf32, #tpu.memory_space<vmem>>, vector<8x1x512xf32>
    %8 = vector.shape_cast %7 : vector<8x1x512xf32> to vector<8x512xf32>
    %9 = arith.addf %6, %8 : vector<8x512xf32>
    %10 = vector.extract_strided_slice %9 {offsets = [0, 0], sizes = [8, 384], strides = [1, 1]} : vector<8x512xf32> to vector<8x384xf32>
    %11 = arith.negf %10 : vector<8x384xf32>
    %12 = math.exp %11 : vector<8x384xf32>
    %cst_9 = arith.constant 1.000000e+00 : f32
    %13 = vector.broadcast %cst_9 : f32 to vector<8x384xf32>
    %14 = arith.addf %13, %12 : vector<8x384xf32>
    %15 = arith.divf %13, %14 : vector<8x384xf32>
    %16 = vector.extract_strided_slice %15 {offsets = [0, 0], sizes = [8, 128], strides = [1, 1]} : vector<8x384xf32> to vector<8x128xf32>
    %17 = vector.extract_strided_slice %15 {offsets = [0, 128], sizes = [8, 128], strides = [1, 1]} : vector<8x384xf32> to vector<8x128xf32>
    %18 = vector.extract_strided_slice %15 {offsets = [0, 256], sizes = [8, 128], strides = [1, 1]} : vector<8x384xf32> to vector<8x128xf32>
    %19 = vector.extract_strided_slice %9 {offsets = [0, 384], sizes = [8, 128], strides = [1, 1]} : vector<8x512xf32> to vector<8x128xf32>
    %20 = math.tanh %19 : vector<8x128xf32>
    %21 = arith.mulf %17, %4 : vector<8x128xf32>
    %22 = arith.mulf %16, %20 : vector<8x128xf32>
    %23 = arith.addf %21, %22 : vector<8x128xf32>
    %24 = math.tanh %23 : vector<8x128xf32>
    %25 = arith.mulf %18, %24 : vector<8x128xf32>
    %c0_10 = arith.constant 0 : index
    %c0_11 = arith.constant 0 : index
    %c0_12 = arith.constant 0 : index
    %26 = vector.load %arg4[%c0_10, %c0_11, %c0_12] : memref<8x16x128xf32, #tpu.memory_space<vmem>>, vector<8x1x128xf32>
    %27 = vector.shape_cast %26 : vector<8x1x128xf32> to vector<8x128xf32>
    %28 = vector.shape_cast %25 : vector<8x128xf32> to vector<8x1x128xf32>
    tpu.vector_store %arg4[%c0_10, %c0_11, %c0_12], %28 {strides = array<i32>} : memref<8x16x128xf32, #tpu.memory_space<vmem>>, vector<8x1x128xf32>,
    %cst_13 = arith.constant dense<0.000000e+00> : vector<8x512xf32>
    %29 = tpu.matmul %25, %5, %cst_13 {dimension_numbers = #tpu.dot_dimension_numbers<[1], [0], [0], [1], [0, 0, 1, 1], [], []>} : vector<8x128xf32>, vector<128x512xf32>, vector<8x512xf32> -> vector<8x512xf32>
    %c0_14 = arith.constant 0 : index
    %c1 = arith.constant 1 : index
    %c0_15 = arith.constant 0 : index
    %30 = vector.load %arg2[%c0_14, %c1, %c0_15] : memref<8x16x512xf32, #tpu.memory_space<vmem>>, vector<8x1x512xf32>
    %31 = vector.shape_cast %30 : vector<8x1x512xf32> to vector<8x512xf32>
    %32 = arith.addf %29, %31 : vector<8x512xf32>
    %33 = vector.extract_strided_slice %32 {offsets = [0, 0], sizes = [8, 384], strides = [1, 1]} : vector<8x512xf32> to vector<8x384xf32>
    %34 = arith.negf %33 : vector<8x384xf32>
    %35 = math.exp %34 : vector<8x384xf32>
    %cst_16 = arith.constant 1.000000e+00 : f32
    %36 = vector.broadcast %cst_16 : f32 to vector<8x384xf32>
    %37 = arith.addf %36, %35 : vector<8x384xf32>
    %38 = arith.divf %36, %37 : vector<8x384xf32>
    %39 = vector.extract_strided_slice %38 {offsets = [0, 0], sizes = [8, 128], strides = [1, 1]} : vector<8x384xf32> to vector<8x128xf32>
    %40 = vector.extract_strided_slice %38 {offsets = [0, 128], sizes = [8, 128], strides = [1, 1]} : vector<8x384xf32> to vector<8x128xf32>
    %41 = vector.extract_strided_slice %38 {offsets = [0, 256], sizes = [8, 128], strides = [1, 1]} : vector<8x384xf32> to vector<8x128xf32>
    %42 = vector.extract_strided_slice %32 {offsets = [0, 384], sizes = [8, 128], strides = [1, 1]} : vector<8x512xf32> to vector<8x128xf32>
    %43 = math.tanh %42 : vector<8x128xf32>
    %44 = arith.mulf %40, %23 : vector<8x128xf32>
    %45 = arith.mulf %39, %43 : vector<8x128xf32>
    %46 = arith.addf %44, %45 : vector<8x128xf32>
    %47 = math.tanh %46 : vector<8x128xf32>
    %48 = arith.mulf %41, %47 : vector<8x128xf32>
    %c0_17 = arith.constant 0 : index
    %c1_18 = arith.constant 1 : index
    %c0_19 = arith.constant 0 : index
    %49 = vector.load %arg4[%c0_17, %c1_18, %c0_19] : memref<8x16x128xf32, #tpu.memory_space<vmem>>, vector<8x1x128xf32>
    %50 = vector.shape_cast %49 : vector<8x1x128xf32> to vector<8x128xf32>
    %51 = vector.shape_cast %48 : vector<8x128xf32> to vector<8x1x128xf32>
    tpu.vector_store %arg4[%c0_17, %c1_18, %c0_19], %51 {strides = array<i32>} : memref<8x16x128xf32, #tpu.memory_space<vmem>>, vector<8x1x128xf32>,
    %cst_20 = arith.constant dense<0.000000e+00> : vector<8x512xf32>
    %52 = tpu.matmul %48, %5, %cst_20 {dimension_numbers = #tpu.dot_dimension_numbers<[1], [0], [0], [1], [0, 0, 1, 1], [], []>} : vector<8x128xf32>, vector<128x512xf32>, vector<8x512xf32> -> vector<8x512xf32>
    %c0_21 = arith.constant 0 : index
    %c2 = arith.constant 2 : index
    %c0_22 = arith.constant 0 : index
    %53 = vector.load %arg2[%c0_21, %c2, %c0_22] : memref<8x16x512xf32, #tpu.memory_space<vmem>>, vector<8x1x512xf32>
    %54 = vector.shape_cast %53 : vector<8x1x512xf32> to vector<8x512xf32>
    %55 = arith.addf %52, %54 : vector<8x512xf32>
    %56 = vector.extract_strided_slice %55 {offsets = [0, 0], sizes = [8, 384], strides = [1, 1]} : vector<8x512xf32> to vector<8x384xf32>
    %57 = arith.negf %56 : vector<8x384xf32>
    %58 = math.exp %57 : vector<8x384xf32>
    %cst_23 = arith.constant 1.000000e+00 : f32
    %59 = vector.broadcast %cst_23 : f32 to vector<8x384xf32>
    %60 = arith.addf %59, %58 : vector<8x384xf32>
    %61 = arith.divf %59, %60 : vector<8x384xf32>
    %62 = vector.extract_strided_slice %61 {offsets = [0, 0], sizes = [8, 128], strides = [1, 1]} : vector<8x384xf32> to vector<8x128xf32>
    %63 = vector.extract_strided_slice %61 {offsets = [0, 128], sizes = [8, 128], strides = [1, 1]} : vector<8x384xf32> to vector<8x128xf32>
    %64 = vector.extract_strided_slice %61 {offsets = [0, 256], sizes = [8, 128], strides = [1, 1]} : vector<8x384xf32> to vector<8x128xf32>
    %65 = vector.extract_strided_slice %55 {offsets = [0, 384], sizes = [8, 128], strides = [1, 1]} : vector<8x512xf32> to vector<8x128xf32>
    %66 = math.tanh %65 : vector<8x128xf32>
    %67 = arith.mulf %63, %46 : vector<8x128xf32>
    %68 = arith.mulf %62, %66 : vector<8x128xf32>
    %69 = arith.addf %67, %68 : vector<8x128xf32>
    %70 = math.tanh %69 : vector<8x128xf32>
    %71 = arith.mulf %64, %70 : vector<8x128xf32>
    %c0_24 = arith.constant 0 : index
    %c2_25 = arith.constant 2 : index
    %c0_26 = arith.constant 0 : index
    %72 = vector.load %arg4[%c0_24, %c2_25, %c0_26] : memref<8x16x128xf32, #tpu.memory_space<vmem>>, vector<8x1x128xf32>
    %73 = vector.shape_cast %72 : vector<8x1x128xf32> to vector<8x128xf32>
    %74 = vector.shape_cast %71 : vector<8x128xf32> to vector<8x1x128xf32>
    tpu.vector_store %arg4[%c0_24, %c2_25, %c0_26], %74 {strides = array<i32>} : memref<8x16x128xf32, #tpu.memory_space<vmem>>, vector<8x1x128xf32>,
    %cst_27 = arith.constant dense<0.000000e+00> : vector<8x512xf32>
    %75 = tpu.matmul %71, %5, %cst_27 {dimension_numbers = #tpu.dot_dimension_numbers<[1], [0], [0], [1], [0, 0, 1, 1], [], []>} : vector<8x128xf32>, vector<128x512xf32>, vector<8x512xf32> -> vector<8x512xf32>
    %c0_28 = arith.constant 0 : index
    %c3 = arith.constant 3 : index
    %c0_29 = arith.constant 0 : index
    %76 = vector.load %arg2[%c0_28, %c3, %c0_29] : memref<8x16x512xf32, #tpu.memory_space<vmem>>, vector<8x1x512xf32>
    %77 = vector.shape_cast %76 : vector<8x1x512xf32> to vector<8x512xf32>
    %78 = arith.addf %75, %77 : vector<8x512xf32>
    %79 = vector.extract_strided_slice %78 {offsets = [0, 0], sizes = [8, 384], strides = [1, 1]} : vector<8x512xf32> to vector<8x384xf32>
    %80 = arith.negf %79 : vector<8x384xf32>
    %81 = math.exp %80 : vector<8x384xf32>
    %cst_30 = arith.constant 1.000000e+00 : f32
    %82 = vector.broadcast %cst_30 : f32 to vector<8x384xf32>
    %83 = arith.addf %82, %81 : vector<8x384xf32>
    %84 = arith.divf %82, %83 : vector<8x384xf32>
    %85 = vector.extract_strided_slice %84 {offsets = [0, 0], sizes = [8, 128], strides = [1, 1]} : vector<8x384xf32> to vector<8x128xf32>
    %86 = vector.extract_strided_slice %84 {offsets = [0, 128], sizes = [8, 128], strides = [1, 1]} : vector<8x384xf32> to vector<8x128xf32>
    %87 = vector.extract_strided_slice %84 {offsets = [0, 256], sizes = [8, 128], strides = [1, 1]} : vector<8x384xf32> to vector<8x128xf32>
    %88 = vector.extract_strided_slice %78 {offsets = [0, 384], sizes = [8, 128], strides = [1, 1]} : vector<8x512xf32> to vector<8x128xf32>
    %89 = math.tanh %88 : vector<8x128xf32>
    %90 = arith.mulf %86, %69 : vector<8x128xf32>
    %91 = arith.mulf %85, %89 : vector<8x128xf32>
    %92 = arith.addf %90, %91 : vector<8x128xf32>
    %93 = math.tanh %92 : vector<8x128xf32>
    %94 = arith.mulf %87, %93 : vector<8x128xf32>
    %c0_31 = arith.constant 0 : index
    %c3_32 = arith.constant 3 : index
    %c0_33 = arith.constant 0 : index
    %95 = vector.load %arg4[%c0_31, %c3_32, %c0_33] : memref<8x16x128xf32, #tpu.memory_space<vmem>>, vector<8x1x128xf32>
    %96 = vector.shape_cast %95 : vector<8x1x128xf32> to vector<8x128xf32>
    %97 = vector.shape_cast %94 : vector<8x128xf32> to vector<8x1x128xf32>
    tpu.vector_store %arg4[%c0_31, %c3_32, %c0_33], %97 {strides = array<i32>} : memref<8x16x128xf32, #tpu.memory_space<vmem>>, vector<8x1x128xf32>,
    %cst_34 = arith.constant dense<0.000000e+00> : vector<8x512xf32>
    %98 = tpu.matmul %94, %5, %cst_34 {dimension_numbers = #tpu.dot_dimension_numbers<[1], [0], [0], [1], [0, 0, 1, 1], [], []>} : vector<8x128xf32>, vector<128x512xf32>, vector<8x512xf32> -> vector<8x512xf32>
    %c0_35 = arith.constant 0 : index
    %c4 = arith.constant 4 : index
    %c0_36 = arith.constant 0 : index
    %99 = vector.load %arg2[%c0_35, %c4, %c0_36] : memref<8x16x512xf32, #tpu.memory_space<vmem>>, vector<8x1x512xf32>
    %100 = vector.shape_cast %99 : vector<8x1x512xf32> to vector<8x512xf32>
    %101 = arith.addf %98, %100 : vector<8x512xf32>
    %102 = vector.extract_strided_slice %101 {offsets = [0, 0], sizes = [8, 384], strides = [1, 1]} : vector<8x512xf32> to vector<8x384xf32>
    %103 = arith.negf %102 : vector<8x384xf32>
    %104 = math.exp %103 : vector<8x384xf32>
    %cst_37 = arith.constant 1.000000e+00 : f32
    %105 = vector.broadcast %cst_37 : f32 to vector<8x384xf32>
    %106 = arith.addf %105, %104 : vector<8x384xf32>
    %107 = arith.divf %105, %106 : vector<8x384xf32>
    %108 = vector.extract_strided_slice %107 {offsets = [0, 0], sizes = [8, 128], strides = [1, 1]} : vector<8x384xf32> to vector<8x128xf32>
    %109 = vector.extract_strided_slice %107 {offsets = [0, 128], sizes = [8, 128], strides = [1, 1]} : vector<8x384xf32> to vector<8x128xf32>
    %110 = vector.extract_strided_slice %107 {offsets = [0, 256], sizes = [8, 128], strides = [1, 1]} : vector<8x384xf32> to vector<8x128xf32>
    %111 = vector.extract_strided_slice %101 {offsets = [0, 384], sizes = [8, 128], strides = [1, 1]} : vector<8x512xf32> to vector<8x128xf32>
    %112 = math.tanh %111 : vector<8x128xf32>
    %113 = arith.mulf %109, %92 : vector<8x128xf32>
    %114 = arith.mulf %108, %112 : vector<8x128xf32>
    %115 = arith.addf %113, %114 : vector<8x128xf32>
    %116 = math.tanh %115 : vector<8x128xf32>
    %117 = arith.mulf %110, %116 : vector<8x128xf32>
    %c0_38 = arith.constant 0 : index
    %c4_39 = arith.constant 4 : index
    %c0_40 = arith.constant 0 : index
    %118 = vector.load %arg4[%c0_38, %c4_39, %c0_40] : memref<8x16x128xf32, #tpu.memory_space<vmem>>, vector<8x1x128xf32>
    %119 = vector.shape_cast %118 : vector<8x1x128xf32> to vector<8x128xf32>
    %120 = vector.shape_cast %117 : vector<8x128xf32> to vector<8x1x128xf32>
    tpu.vector_store %arg4[%c0_38, %c4_39, %c0_40], %120 {strides = array<i32>} : memref<8x16x128xf32, #tpu.memory_space<vmem>>, vector<8x1x128xf32>,
    %cst_41 = arith.constant dense<0.000000e+00> : vector<8x512xf32>
    %121 = tpu.matmul %117, %5, %cst_41 {dimension_numbers = #tpu.dot_dimension_numbers<[1], [0], [0], [1], [0, 0, 1, 1], [], []>} : vector<8x128xf32>, vector<128x512xf32>, vector<8x512xf32> -> vector<8x512xf32>
    %c0_42 = arith.constant 0 : index
    %c5 = arith.constant 5 : index
    %c0_43 = arith.constant 0 : index
    %122 = vector.load %arg2[%c0_42, %c5, %c0_43] : memref<8x16x512xf32, #tpu.memory_space<vmem>>, vector<8x1x512xf32>
    %123 = vector.shape_cast %122 : vector<8x1x512xf32> to vector<8x512xf32>
    %124 = arith.addf %121, %123 : vector<8x512xf32>
    %125 = vector.extract_strided_slice %124 {offsets = [0, 0], sizes = [8, 384], strides = [1, 1]} : vector<8x512xf32> to vector<8x384xf32>
    %126 = arith.negf %125 : vector<8x384xf32>
    %127 = math.exp %126 : vector<8x384xf32>
    %cst_44 = arith.constant 1.000000e+00 : f32
    %128 = vector.broadcast %cst_44 : f32 to vector<8x384xf32>
    %129 = arith.addf %128, %127 : vector<8x384xf32>
    %130 = arith.divf %128, %129 : vector<8x384xf32>
    %131 = vector.extract_strided_slice %130 {offsets = [0, 0], sizes = [8, 128], strides = [1, 1]} : vector<8x384xf32> to vector<8x128xf32>
    %132 = vector.extract_strided_slice %130 {offsets = [0, 128], sizes = [8, 128], strides = [1, 1]} : vector<8x384xf32> to vector<8x128xf32>
    %133 = vector.extract_strided_slice %130 {offsets = [0, 256], sizes = [8, 128], strides = [1, 1]} : vector<8x384xf32> to vector<8x128xf32>
    %134 = vector.extract_strided_slice %124 {offsets = [0, 384], sizes = [8, 128], strides = [1, 1]} : vector<8x512xf32> to vector<8x128xf32>
    %135 = math.tanh %134 : vector<8x128xf32>
    %136 = arith.mulf %132, %115 : vector<8x128xf32>
    %137 = arith.mulf %131, %135 : vector<8x128xf32>
    %138 = arith.addf %136, %137 : vector<8x128xf32>
    %139 = math.tanh %138 : vector<8x128xf32>
    %140 = arith.mulf %133, %139 : vector<8x128xf32>
    %c0_45 = arith.constant 0 : index
    %c5_46 = arith.constant 5 : index
    %c0_47 = arith.constant 0 : index
    %141 = vector.load %arg4[%c0_45, %c5_46, %c0_47] : memref<8x16x128xf32, #tpu.memory_space<vmem>>, vector<8x1x128xf32>
    %142 = vector.shape_cast %141 : vector<8x1x128xf32> to vector<8x128xf32>
    %143 = vector.shape_cast %140 : vector<8x128xf32> to vector<8x1x128xf32>
    tpu.vector_store %arg4[%c0_45, %c5_46, %c0_47], %143 {strides = array<i32>} : memref<8x16x128xf32, #tpu.memory_space<vmem>>, vector<8x1x128xf32>,
    %cst_48 = arith.constant dense<0.000000e+00> : vector<8x512xf32>
    %144 = tpu.matmul %140, %5, %cst_48 {dimension_numbers = #tpu.dot_dimension_numbers<[1], [0], [0], [1], [0, 0, 1, 1], [], []>} : vector<8x128xf32>, vector<128x512xf32>, vector<8x512xf32> -> vector<8x512xf32>
    %c0_49 = arith.constant 0 : index
    %c6 = arith.constant 6 : index
    %c0_50 = arith.constant 0 : index
    %145 = vector.load %arg2[%c0_49, %c6, %c0_50] : memref<8x16x512xf32, #tpu.memory_space<vmem>>, vector<8x1x512xf32>
    %146 = vector.shape_cast %145 : vector<8x1x512xf32> to vector<8x512xf32>
    %147 = arith.addf %144, %146 : vector<8x512xf32>
    %148 = vector.extract_strided_slice %147 {offsets = [0, 0], sizes = [8, 384], strides = [1, 1]} : vector<8x512xf32> to vector<8x384xf32>
    %149 = arith.negf %148 : vector<8x384xf32>
    %150 = math.exp %149 : vector<8x384xf32>
    %cst_51 = arith.constant 1.000000e+00 : f32
    %151 = vector.broadcast %cst_51 : f32 to vector<8x384xf32>
    %152 = arith.addf %151, %150 : vector<8x384xf32>
    %153 = arith.divf %151, %152 : vector<8x384xf32>
    %154 = vector.extract_strided_slice %153 {offsets = [0, 0], sizes = [8, 128], strides = [1, 1]} : vector<8x384xf32> to vector<8x128xf32>
    %155 = vector.extract_strided_slice %153 {offsets = [0, 128], sizes = [8, 128], strides = [1, 1]} : vector<8x384xf32> to vector<8x128xf32>
    %156 = vector.extract_strided_slice %153 {offsets = [0, 256], sizes = [8, 128], strides = [1, 1]} : vector<8x384xf32> to vector<8x128xf32>
    %157 = vector.extract_strided_slice %147 {offsets = [0, 384], sizes = [8, 128], strides = [1, 1]} : vector<8x512xf32> to vector<8x128xf32>
    %158 = math.tanh %157 : vector<8x128xf32>
    %159 = arith.mulf %155, %138 : vector<8x128xf32>
    %160 = arith.mulf %154, %158 : vector<8x128xf32>
    %161 = arith.addf %159, %160 : vector<8x128xf32>
    %162 = math.tanh %161 : vector<8x128xf32>
    %163 = arith.mulf %156, %162 : vector<8x128xf32>
    %c0_52 = arith.constant 0 : index
    %c6_53 = arith.constant 6 : index
    %c0_54 = arith.constant 0 : index
    %164 = vector.load %arg4[%c0_52, %c6_53, %c0_54] : memref<8x16x128xf32, #tpu.memory_space<vmem>>, vector<8x1x128xf32>
    %165 = vector.shape_cast %164 : vector<8x1x128xf32> to vector<8x128xf32>
    %166 = vector.shape_cast %163 : vector<8x128xf32> to vector<8x1x128xf32>
    tpu.vector_store %arg4[%c0_52, %c6_53, %c0_54], %166 {strides = array<i32>} : memref<8x16x128xf32, #tpu.memory_space<vmem>>, vector<8x1x128xf32>,
    %cst_55 = arith.constant dense<0.000000e+00> : vector<8x512xf32>
    %167 = tpu.matmul %163, %5, %cst_55 {dimension_numbers = #tpu.dot_dimension_numbers<[1], [0], [0], [1], [0, 0, 1, 1], [], []>} : vector<8x128xf32>, vector<128x512xf32>, vector<8x512xf32> -> vector<8x512xf32>
    %c0_56 = arith.constant 0 : index
    %c7 = arith.constant 7 : index
    %c0_57 = arith.constant 0 : index
    %168 = vector.load %arg2[%c0_56, %c7, %c0_57] : memref<8x16x512xf32, #tpu.memory_space<vmem>>, vector<8x1x512xf32>
    %169 = vector.shape_cast %168 : vector<8x1x512xf32> to vector<8x512xf32>
    %170 = arith.addf %167, %169 : vector<8x512xf32>
    %171 = vector.extract_strided_slice %170 {offsets = [0, 0], sizes = [8, 384], strides = [1, 1]} : vector<8x512xf32> to vector<8x384xf32>
    %172 = arith.negf %171 : vector<8x384xf32>
    %173 = math.exp %172 : vector<8x384xf32>
    %cst_58 = arith.constant 1.000000e+00 : f32
    %174 = vector.broadcast %cst_58 : f32 to vector<8x384xf32>
    %175 = arith.addf %174, %173 : vector<8x384xf32>
    %176 = arith.divf %174, %175 : vector<8x384xf32>
    %177 = vector.extract_strided_slice %176 {offsets = [0, 0], sizes = [8, 128], strides = [1, 1]} : vector<8x384xf32> to vector<8x128xf32>
    %178 = vector.extract_strided_slice %176 {offsets = [0, 128], sizes = [8, 128], strides = [1, 1]} : vector<8x384xf32> to vector<8x128xf32>
    %179 = vector.extract_strided_slice %176 {offsets = [0, 256], sizes = [8, 128], strides = [1, 1]} : vector<8x384xf32> to vector<8x128xf32>
    %180 = vector.extract_strided_slice %170 {offsets = [0, 384], sizes = [8, 128], strides = [1, 1]} : vector<8x512xf32> to vector<8x128xf32>
    %181 = math.tanh %180 : vector<8x128xf32>
    %182 = arith.mulf %178, %161 : vector<8x128xf32>
    %183 = arith.mulf %177, %181 : vector<8x128xf32>
    %184 = arith.addf %182, %183 : vector<8x128xf32>
    %185 = math.tanh %184 : vector<8x128xf32>
    %186 = arith.mulf %179, %185 : vector<8x128xf32>
    %c0_59 = arith.constant 0 : index
    %c7_60 = arith.constant 7 : index
    %c0_61 = arith.constant 0 : index
    %187 = vector.load %arg4[%c0_59, %c7_60, %c0_61] : memref<8x16x128xf32, #tpu.memory_space<vmem>>, vector<8x1x128xf32>
    %188 = vector.shape_cast %187 : vector<8x1x128xf32> to vector<8x128xf32>
    %189 = vector.shape_cast %186 : vector<8x128xf32> to vector<8x1x128xf32>
    tpu.vector_store %arg4[%c0_59, %c7_60, %c0_61], %189 {strides = array<i32>} : memref<8x16x128xf32, #tpu.memory_space<vmem>>, vector<8x1x128xf32>,
    %cst_62 = arith.constant dense<0.000000e+00> : vector<8x512xf32>
    %190 = tpu.matmul %186, %5, %cst_62 {dimension_numbers = #tpu.dot_dimension_numbers<[1], [0], [0], [1], [0, 0, 1, 1], [], []>} : vector<8x128xf32>, vector<128x512xf32>, vector<8x512xf32> -> vector<8x512xf32>
    %c0_63 = arith.constant 0 : index
    %c8 = arith.constant 8 : index
    %c0_64 = arith.constant 0 : index
    %191 = vector.load %arg2[%c0_63, %c8, %c0_64] : memref<8x16x512xf32, #tpu.memory_space<vmem>>, vector<8x1x512xf32>
    %192 = vector.shape_cast %191 : vector<8x1x512xf32> to vector<8x512xf32>
    %193 = arith.addf %190, %192 : vector<8x512xf32>
    %194 = vector.extract_strided_slice %193 {offsets = [0, 0], sizes = [8, 384], strides = [1, 1]} : vector<8x512xf32> to vector<8x384xf32>
    %195 = arith.negf %194 : vector<8x384xf32>
    %196 = math.exp %195 : vector<8x384xf32>
    %cst_65 = arith.constant 1.000000e+00 : f32
    %197 = vector.broadcast %cst_65 : f32 to vector<8x384xf32>
    %198 = arith.addf %197, %196 : vector<8x384xf32>
    %199 = arith.divf %197, %198 : vector<8x384xf32>
    %200 = vector.extract_strided_slice %199 {offsets = [0, 0], sizes = [8, 128], strides = [1, 1]} : vector<8x384xf32> to vector<8x128xf32>
    %201 = vector.extract_strided_slice %199 {offsets = [0, 128], sizes = [8, 128], strides = [1, 1]} : vector<8x384xf32> to vector<8x128xf32>
    %202 = vector.extract_strided_slice %199 {offsets = [0, 256], sizes = [8, 128], strides = [1, 1]} : vector<8x384xf32> to vector<8x128xf32>
    %203 = vector.extract_strided_slice %193 {offsets = [0, 384], sizes = [8, 128], strides = [1, 1]} : vector<8x512xf32> to vector<8x128xf32>
    %204 = math.tanh %203 : vector<8x128xf32>
    %205 = arith.mulf %201, %184 : vector<8x128xf32>
    %206 = arith.mulf %200, %204 : vector<8x128xf32>
    %207 = arith.addf %205, %206 : vector<8x128xf32>
    %208 = math.tanh %207 : vector<8x128xf32>
    %209 = arith.mulf %202, %208 : vector<8x128xf32>
    %c0_66 = arith.constant 0 : index
    %c8_67 = arith.constant 8 : index
    %c0_68 = arith.constant 0 : index
    %210 = vector.load %arg4[%c0_66, %c8_67, %c0_68] : memref<8x16x128xf32, #tpu.memory_space<vmem>>, vector<8x1x128xf32>
    %211 = vector.shape_cast %210 : vector<8x1x128xf32> to vector<8x128xf32>
    %212 = vector.shape_cast %209 : vector<8x128xf32> to vector<8x1x128xf32>
    tpu.vector_store %arg4[%c0_66, %c8_67, %c0_68], %212 {strides = array<i32>} : memref<8x16x128xf32, #tpu.memory_space<vmem>>, vector<8x1x128xf32>,
    %cst_69 = arith.constant dense<0.000000e+00> : vector<8x512xf32>
    %213 = tpu.matmul %209, %5, %cst_69 {dimension_numbers = #tpu.dot_dimension_numbers<[1], [0], [0], [1], [0, 0, 1, 1], [], []>} : vector<8x128xf32>, vector<128x512xf32>, vector<8x512xf32> -> vector<8x512xf32>
    %c0_70 = arith.constant 0 : index
    %c9 = arith.constant 9 : index
    %c0_71 = arith.constant 0 : index
    %214 = vector.load %arg2[%c0_70, %c9, %c0_71] : memref<8x16x512xf32, #tpu.memory_space<vmem>>, vector<8x1x512xf32>
    %215 = vector.shape_cast %214 : vector<8x1x512xf32> to vector<8x512xf32>
    %216 = arith.addf %213, %215 : vector<8x512xf32>
    %217 = vector.extract_strided_slice %216 {offsets = [0, 0], sizes = [8, 384], strides = [1, 1]} : vector<8x512xf32> to vector<8x384xf32>
    %218 = arith.negf %217 : vector<8x384xf32>
    %219 = math.exp %218 : vector<8x384xf32>
    %cst_72 = arith.constant 1.000000e+00 : f32
    %220 = vector.broadcast %cst_72 : f32 to vector<8x384xf32>
    %221 = arith.addf %220, %219 : vector<8x384xf32>
    %222 = arith.divf %220, %221 : vector<8x384xf32>
    %223 = vector.extract_strided_slice %222 {offsets = [0, 0], sizes = [8, 128], strides = [1, 1]} : vector<8x384xf32> to vector<8x128xf32>
    %224 = vector.extract_strided_slice %222 {offsets = [0, 128], sizes = [8, 128], strides = [1, 1]} : vector<8x384xf32> to vector<8x128xf32>
    %225 = vector.extract_strided_slice %222 {offsets = [0, 256], sizes = [8, 128], strides = [1, 1]} : vector<8x384xf32> to vector<8x128xf32>
    %226 = vector.extract_strided_slice %216 {offsets = [0, 384], sizes = [8, 128], strides = [1, 1]} : vector<8x512xf32> to vector<8x128xf32>
    %227 = math.tanh %226 : vector<8x128xf32>
    %228 = arith.mulf %224, %207 : vector<8x128xf32>
    %229 = arith.mulf %223, %227 : vector<8x128xf32>
    %230 = arith.addf %228, %229 : vector<8x128xf32>
    %231 = math.tanh %230 : vector<8x128xf32>
    %232 = arith.mulf %225, %231 : vector<8x128xf32>
    %c0_73 = arith.constant 0 : index
    %c9_74 = arith.constant 9 : index
    %c0_75 = arith.constant 0 : index
    %233 = vector.load %arg4[%c0_73, %c9_74, %c0_75] : memref<8x16x128xf32, #tpu.memory_space<vmem>>, vector<8x1x128xf32>
    %234 = vector.shape_cast %233 : vector<8x1x128xf32> to vector<8x128xf32>
    %235 = vector.shape_cast %232 : vector<8x128xf32> to vector<8x1x128xf32>
    tpu.vector_store %arg4[%c0_73, %c9_74, %c0_75], %235 {strides = array<i32>} : memref<8x16x128xf32, #tpu.memory_space<vmem>>, vector<8x1x128xf32>,
    %cst_76 = arith.constant dense<0.000000e+00> : vector<8x512xf32>
    %236 = tpu.matmul %232, %5, %cst_76 {dimension_numbers = #tpu.dot_dimension_numbers<[1], [0], [0], [1], [0, 0, 1, 1], [], []>} : vector<8x128xf32>, vector<128x512xf32>, vector<8x512xf32> -> vector<8x512xf32>
    %c0_77 = arith.constant 0 : index
    %c10 = arith.constant 10 : index
    %c0_78 = arith.constant 0 : index
    %237 = vector.load %arg2[%c0_77, %c10, %c0_78] : memref<8x16x512xf32, #tpu.memory_space<vmem>>, vector<8x1x512xf32>
    %238 = vector.shape_cast %237 : vector<8x1x512xf32> to vector<8x512xf32>
    %239 = arith.addf %236, %238 : vector<8x512xf32>
    %240 = vector.extract_strided_slice %239 {offsets = [0, 0], sizes = [8, 384], strides = [1, 1]} : vector<8x512xf32> to vector<8x384xf32>
    %241 = arith.negf %240 : vector<8x384xf32>
    %242 = math.exp %241 : vector<8x384xf32>
    %cst_79 = arith.constant 1.000000e+00 : f32
    %243 = vector.broadcast %cst_79 : f32 to vector<8x384xf32>
    %244 = arith.addf %243, %242 : vector<8x384xf32>
    %245 = arith.divf %243, %244 : vector<8x384xf32>
    %246 = vector.extract_strided_slice %245 {offsets = [0, 0], sizes = [8, 128], strides = [1, 1]} : vector<8x384xf32> to vector<8x128xf32>
    %247 = vector.extract_strided_slice %245 {offsets = [0, 128], sizes = [8, 128], strides = [1, 1]} : vector<8x384xf32> to vector<8x128xf32>
    %248 = vector.extract_strided_slice %245 {offsets = [0, 256], sizes = [8, 128], strides = [1, 1]} : vector<8x384xf32> to vector<8x128xf32>
    %249 = vector.extract_strided_slice %239 {offsets = [0, 384], sizes = [8, 128], strides = [1, 1]} : vector<8x512xf32> to vector<8x128xf32>
    %250 = math.tanh %249 : vector<8x128xf32>
    %251 = arith.mulf %247, %230 : vector<8x128xf32>
    %252 = arith.mulf %246, %250 : vector<8x128xf32>
    %253 = arith.addf %251, %252 : vector<8x128xf32>
    %254 = math.tanh %253 : vector<8x128xf32>
    %255 = arith.mulf %248, %254 : vector<8x128xf32>
    %c0_80 = arith.constant 0 : index
    %c10_81 = arith.constant 10 : index
    %c0_82 = arith.constant 0 : index
    %256 = vector.load %arg4[%c0_80, %c10_81, %c0_82] : memref<8x16x128xf32, #tpu.memory_space<vmem>>, vector<8x1x128xf32>
    %257 = vector.shape_cast %256 : vector<8x1x128xf32> to vector<8x128xf32>
    %258 = vector.shape_cast %255 : vector<8x128xf32> to vector<8x1x128xf32>
    tpu.vector_store %arg4[%c0_80, %c10_81, %c0_82], %258 {strides = array<i32>} : memref<8x16x128xf32, #tpu.memory_space<vmem>>, vector<8x1x128xf32>,
    %cst_83 = arith.constant dense<0.000000e+00> : vector<8x512xf32>
    %259 = tpu.matmul %255, %5, %cst_83 {dimension_numbers = #tpu.dot_dimension_numbers<[1], [0], [0], [1], [0, 0, 1, 1], [], []>} : vector<8x128xf32>, vector<128x512xf32>, vector<8x512xf32> -> vector<8x512xf32>
    %c0_84 = arith.constant 0 : index
    %c11 = arith.constant 11 : index
    %c0_85 = arith.constant 0 : index
    %260 = vector.load %arg2[%c0_84, %c11, %c0_85] : memref<8x16x512xf32, #tpu.memory_space<vmem>>, vector<8x1x512xf32>
    %261 = vector.shape_cast %260 : vector<8x1x512xf32> to vector<8x512xf32>
    %262 = arith.addf %259, %261 : vector<8x512xf32>
    %263 = vector.extract_strided_slice %262 {offsets = [0, 0], sizes = [8, 384], strides = [1, 1]} : vector<8x512xf32> to vector<8x384xf32>
    %264 = arith.negf %263 : vector<8x384xf32>
    %265 = math.exp %264 : vector<8x384xf32>
    %cst_86 = arith.constant 1.000000e+00 : f32
    %266 = vector.broadcast %cst_86 : f32 to vector<8x384xf32>
    %267 = arith.addf %266, %265 : vector<8x384xf32>
    %268 = arith.divf %266, %267 : vector<8x384xf32>
    %269 = vector.extract_strided_slice %268 {offsets = [0, 0], sizes = [8, 128], strides = [1, 1]} : vector<8x384xf32> to vector<8x128xf32>
    %270 = vector.extract_strided_slice %268 {offsets = [0, 128], sizes = [8, 128], strides = [1, 1]} : vector<8x384xf32> to vector<8x128xf32>
    %271 = vector.extract_strided_slice %268 {offsets = [0, 256], sizes = [8, 128], strides = [1, 1]} : vector<8x384xf32> to vector<8x128xf32>
    %272 = vector.extract_strided_slice %262 {offsets = [0, 384], sizes = [8, 128], strides = [1, 1]} : vector<8x512xf32> to vector<8x128xf32>
    %273 = math.tanh %272 : vector<8x128xf32>
    %274 = arith.mulf %270, %253 : vector<8x128xf32>
    %275 = arith.mulf %269, %273 : vector<8x128xf32>
    %276 = arith.addf %274, %275 : vector<8x128xf32>
    %277 = math.tanh %276 : vector<8x128xf32>
    %278 = arith.mulf %271, %277 : vector<8x128xf32>
    %c0_87 = arith.constant 0 : index
    %c11_88 = arith.constant 11 : index
    %c0_89 = arith.constant 0 : index
    %279 = vector.load %arg4[%c0_87, %c11_88, %c0_89] : memref<8x16x128xf32, #tpu.memory_space<vmem>>, vector<8x1x128xf32>
    %280 = vector.shape_cast %279 : vector<8x1x128xf32> to vector<8x128xf32>
    %281 = vector.shape_cast %278 : vector<8x128xf32> to vector<8x1x128xf32>
    tpu.vector_store %arg4[%c0_87, %c11_88, %c0_89], %281 {strides = array<i32>} : memref<8x16x128xf32, #tpu.memory_space<vmem>>, vector<8x1x128xf32>,
    %cst_90 = arith.constant dense<0.000000e+00> : vector<8x512xf32>
    %282 = tpu.matmul %278, %5, %cst_90 {dimension_numbers = #tpu.dot_dimension_numbers<[1], [0], [0], [1], [0, 0, 1, 1], [], []>} : vector<8x128xf32>, vector<128x512xf32>, vector<8x512xf32> -> vector<8x512xf32>
    %c0_91 = arith.constant 0 : index
    %c12 = arith.constant 12 : index
    %c0_92 = arith.constant 0 : index
    %283 = vector.load %arg2[%c0_91, %c12, %c0_92] : memref<8x16x512xf32, #tpu.memory_space<vmem>>, vector<8x1x512xf32>
    %284 = vector.shape_cast %283 : vector<8x1x512xf32> to vector<8x512xf32>
    %285 = arith.addf %282, %284 : vector<8x512xf32>
    %286 = vector.extract_strided_slice %285 {offsets = [0, 0], sizes = [8, 384], strides = [1, 1]} : vector<8x512xf32> to vector<8x384xf32>
    %287 = arith.negf %286 : vector<8x384xf32>
    %288 = math.exp %287 : vector<8x384xf32>
    %cst_93 = arith.constant 1.000000e+00 : f32
    %289 = vector.broadcast %cst_93 : f32 to vector<8x384xf32>
    %290 = arith.addf %289, %288 : vector<8x384xf32>
    %291 = arith.divf %289, %290 : vector<8x384xf32>
    %292 = vector.extract_strided_slice %291 {offsets = [0, 0], sizes = [8, 128], strides = [1, 1]} : vector<8x384xf32> to vector<8x128xf32>
    %293 = vector.extract_strided_slice %291 {offsets = [0, 128], sizes = [8, 128], strides = [1, 1]} : vector<8x384xf32> to vector<8x128xf32>
    %294 = vector.extract_strided_slice %291 {offsets = [0, 256], sizes = [8, 128], strides = [1, 1]} : vector<8x384xf32> to vector<8x128xf32>
    %295 = vector.extract_strided_slice %285 {offsets = [0, 384], sizes = [8, 128], strides = [1, 1]} : vector<8x512xf32> to vector<8x128xf32>
    %296 = math.tanh %295 : vector<8x128xf32>
    %297 = arith.mulf %293, %276 : vector<8x128xf32>
    %298 = arith.mulf %292, %296 : vector<8x128xf32>
    %299 = arith.addf %297, %298 : vector<8x128xf32>
    %300 = math.tanh %299 : vector<8x128xf32>
    %301 = arith.mulf %294, %300 : vector<8x128xf32>
    %c0_94 = arith.constant 0 : index
    %c12_95 = arith.constant 12 : index
    %c0_96 = arith.constant 0 : index
    %302 = vector.load %arg4[%c0_94, %c12_95, %c0_96] : memref<8x16x128xf32, #tpu.memory_space<vmem>>, vector<8x1x128xf32>
    %303 = vector.shape_cast %302 : vector<8x1x128xf32> to vector<8x128xf32>
    %304 = vector.shape_cast %301 : vector<8x128xf32> to vector<8x1x128xf32>
    tpu.vector_store %arg4[%c0_94, %c12_95, %c0_96], %304 {strides = array<i32>} : memref<8x16x128xf32, #tpu.memory_space<vmem>>, vector<8x1x128xf32>,
    %cst_97 = arith.constant dense<0.000000e+00> : vector<8x512xf32>
    %305 = tpu.matmul %301, %5, %cst_97 {dimension_numbers = #tpu.dot_dimension_numbers<[1], [0], [0], [1], [0, 0, 1, 1], [], []>} : vector<8x128xf32>, vector<128x512xf32>, vector<8x512xf32> -> vector<8x512xf32>
    %c0_98 = arith.constant 0 : index
    %c13 = arith.constant 13 : index
    %c0_99 = arith.constant 0 : index
    %306 = vector.load %arg2[%c0_98, %c13, %c0_99] : memref<8x16x512xf32, #tpu.memory_space<vmem>>, vector<8x1x512xf32>
    %307 = vector.shape_cast %306 : vector<8x1x512xf32> to vector<8x512xf32>
    %308 = arith.addf %305, %307 : vector<8x512xf32>
    %309 = vector.extract_strided_slice %308 {offsets = [0, 0], sizes = [8, 384], strides = [1, 1]} : vector<8x512xf32> to vector<8x384xf32>
    %310 = arith.negf %309 : vector<8x384xf32>
    %311 = math.exp %310 : vector<8x384xf32>
    %cst_100 = arith.constant 1.000000e+00 : f32
    %312 = vector.broadcast %cst_100 : f32 to vector<8x384xf32>
    %313 = arith.addf %312, %311 : vector<8x384xf32>
    %314 = arith.divf %312, %313 : vector<8x384xf32>
    %315 = vector.extract_strided_slice %314 {offsets = [0, 0], sizes = [8, 128], strides = [1, 1]} : vector<8x384xf32> to vector<8x128xf32>
    %316 = vector.extract_strided_slice %314 {offsets = [0, 128], sizes = [8, 128], strides = [1, 1]} : vector<8x384xf32> to vector<8x128xf32>
    %317 = vector.extract_strided_slice %314 {offsets = [0, 256], sizes = [8, 128], strides = [1, 1]} : vector<8x384xf32> to vector<8x128xf32>
    %318 = vector.extract_strided_slice %308 {offsets = [0, 384], sizes = [8, 128], strides = [1, 1]} : vector<8x512xf32> to vector<8x128xf32>
    %319 = math.tanh %318 : vector<8x128xf32>
    %320 = arith.mulf %316, %299 : vector<8x128xf32>
    %321 = arith.mulf %315, %319 : vector<8x128xf32>
    %322 = arith.addf %320, %321 : vector<8x128xf32>
    %323 = math.tanh %322 : vector<8x128xf32>
    %324 = arith.mulf %317, %323 : vector<8x128xf32>
    %c0_101 = arith.constant 0 : index
    %c13_102 = arith.constant 13 : index
    %c0_103 = arith.constant 0 : index
    %325 = vector.load %arg4[%c0_101, %c13_102, %c0_103] : memref<8x16x128xf32, #tpu.memory_space<vmem>>, vector<8x1x128xf32>
    %326 = vector.shape_cast %325 : vector<8x1x128xf32> to vector<8x128xf32>
    %327 = vector.shape_cast %324 : vector<8x128xf32> to vector<8x1x128xf32>
    tpu.vector_store %arg4[%c0_101, %c13_102, %c0_103], %327 {strides = array<i32>} : memref<8x16x128xf32, #tpu.memory_space<vmem>>, vector<8x1x128xf32>,
    %cst_104 = arith.constant dense<0.000000e+00> : vector<8x512xf32>
    %328 = tpu.matmul %324, %5, %cst_104 {dimension_numbers = #tpu.dot_dimension_numbers<[1], [0], [0], [1], [0, 0, 1, 1], [], []>} : vector<8x128xf32>, vector<128x512xf32>, vector<8x512xf32> -> vector<8x512xf32>
    %c0_105 = arith.constant 0 : index
    %c14 = arith.constant 14 : index
    %c0_106 = arith.constant 0 : index
    %329 = vector.load %arg2[%c0_105, %c14, %c0_106] : memref<8x16x512xf32, #tpu.memory_space<vmem>>, vector<8x1x512xf32>
    %330 = vector.shape_cast %329 : vector<8x1x512xf32> to vector<8x512xf32>
    %331 = arith.addf %328, %330 : vector<8x512xf32>
    %332 = vector.extract_strided_slice %331 {offsets = [0, 0], sizes = [8, 384], strides = [1, 1]} : vector<8x512xf32> to vector<8x384xf32>
    %333 = arith.negf %332 : vector<8x384xf32>
    %334 = math.exp %333 : vector<8x384xf32>
    %cst_107 = arith.constant 1.000000e+00 : f32
    %335 = vector.broadcast %cst_107 : f32 to vector<8x384xf32>
    %336 = arith.addf %335, %334 : vector<8x384xf32>
    %337 = arith.divf %335, %336 : vector<8x384xf32>
    %338 = vector.extract_strided_slice %337 {offsets = [0, 0], sizes = [8, 128], strides = [1, 1]} : vector<8x384xf32> to vector<8x128xf32>
    %339 = vector.extract_strided_slice %337 {offsets = [0, 128], sizes = [8, 128], strides = [1, 1]} : vector<8x384xf32> to vector<8x128xf32>
    %340 = vector.extract_strided_slice %337 {offsets = [0, 256], sizes = [8, 128], strides = [1, 1]} : vector<8x384xf32> to vector<8x128xf32>
    %341 = vector.extract_strided_slice %331 {offsets = [0, 384], sizes = [8, 128], strides = [1, 1]} : vector<8x512xf32> to vector<8x128xf32>
    %342 = math.tanh %341 : vector<8x128xf32>
    %343 = arith.mulf %339, %322 : vector<8x128xf32>
    %344 = arith.mulf %338, %342 : vector<8x128xf32>
    %345 = arith.addf %343, %344 : vector<8x128xf32>
    %346 = math.tanh %345 : vector<8x128xf32>
    %347 = arith.mulf %340, %346 : vector<8x128xf32>
    %c0_108 = arith.constant 0 : index
    %c14_109 = arith.constant 14 : index
    %c0_110 = arith.constant 0 : index
    %348 = vector.load %arg4[%c0_108, %c14_109, %c0_110] : memref<8x16x128xf32, #tpu.memory_space<vmem>>, vector<8x1x128xf32>
    %349 = vector.shape_cast %348 : vector<8x1x128xf32> to vector<8x128xf32>
    %350 = vector.shape_cast %347 : vector<8x128xf32> to vector<8x1x128xf32>
    tpu.vector_store %arg4[%c0_108, %c14_109, %c0_110], %350 {strides = array<i32>} : memref<8x16x128xf32, #tpu.memory_space<vmem>>, vector<8x1x128xf32>,
    %cst_111 = arith.constant dense<0.000000e+00> : vector<8x512xf32>
    %351 = tpu.matmul %347, %5, %cst_111 {dimension_numbers = #tpu.dot_dimension_numbers<[1], [0], [0], [1], [0, 0, 1, 1], [], []>} : vector<8x128xf32>, vector<128x512xf32>, vector<8x512xf32> -> vector<8x512xf32>
    %c0_112 = arith.constant 0 : index
    %c15 = arith.constant 15 : index
    %c0_113 = arith.constant 0 : index
    %352 = vector.load %arg2[%c0_112, %c15, %c0_113] : memref<8x16x512xf32, #tpu.memory_space<vmem>>, vector<8x1x512xf32>
    %353 = vector.shape_cast %352 : vector<8x1x512xf32> to vector<8x512xf32>
    %354 = arith.addf %351, %353 : vector<8x512xf32>
    %355 = vector.extract_strided_slice %354 {offsets = [0, 0], sizes = [8, 384], strides = [1, 1]} : vector<8x512xf32> to vector<8x384xf32>
    %356 = arith.negf %355 : vector<8x384xf32>
    %357 = math.exp %356 : vector<8x384xf32>
    %cst_114 = arith.constant 1.000000e+00 : f32
    %358 = vector.broadcast %cst_114 : f32 to vector<8x384xf32>
    %359 = arith.addf %358, %357 : vector<8x384xf32>
    %360 = arith.divf %358, %359 : vector<8x384xf32>
    %361 = vector.extract_strided_slice %360 {offsets = [0, 0], sizes = [8, 128], strides = [1, 1]} : vector<8x384xf32> to vector<8x128xf32>
    %362 = vector.extract_strided_slice %360 {offsets = [0, 128], sizes = [8, 128], strides = [1, 1]} : vector<8x384xf32> to vector<8x128xf32>
    %363 = vector.extract_strided_slice %360 {offsets = [0, 256], sizes = [8, 128], strides = [1, 1]} : vector<8x384xf32> to vector<8x128xf32>
    %364 = vector.extract_strided_slice %354 {offsets = [0, 384], sizes = [8, 128], strides = [1, 1]} : vector<8x512xf32> to vector<8x128xf32>
    %365 = math.tanh %364 : vector<8x128xf32>
    %366 = arith.mulf %362, %345 : vector<8x128xf32>
    %367 = arith.mulf %361, %365 : vector<8x128xf32>
    %368 = arith.addf %366, %367 : vector<8x128xf32>
    %369 = math.tanh %368 : vector<8x128xf32>
    %370 = arith.mulf %363, %369 : vector<8x128xf32>
    %c0_115 = arith.constant 0 : index
    %c15_116 = arith.constant 15 : index
    %c0_117 = arith.constant 0 : index
    %371 = vector.load %arg4[%c0_115, %c15_116, %c0_117] : memref<8x16x128xf32, #tpu.memory_space<vmem>>, vector<8x1x128xf32>
    %372 = vector.shape_cast %371 : vector<8x1x128xf32> to vector<8x128xf32>
    %373 = vector.shape_cast %370 : vector<8x128xf32> to vector<8x1x128xf32>
    tpu.vector_store %arg4[%c0_115, %c15_116, %c0_117], %373 {strides = array<i32>} : memref<8x16x128xf32, #tpu.memory_space<vmem>>, vector<8x1x128xf32>,
    %c0_118 = arith.constant 0 : index
    %c0_119 = arith.constant 0 : index
    %374 = vector.load %arg7[%c0_118, %c0_119] : memref<8x128xf32, #tpu.memory_space<vmem>>, vector<8x128xf32>
    tpu.vector_store %arg7[%c0_118, %c0_119], %370 {strides = array<i32>} : memref<8x128xf32, #tpu.memory_space<vmem>>, vector<8x128xf32>,
    %c0_120 = arith.constant 0 : index
    %c0_121 = arith.constant 0 : index
    %375 = vector.load %arg8[%c0_120, %c0_121] : memref<8x128xf32, #tpu.memory_space<vmem>>, vector<8x128xf32>
    tpu.vector_store %arg8[%c0_120, %c0_121], %368 {strides = array<i32>} : memref<8x128xf32, #tpu.memory_space<vmem>>, vector<8x128xf32>,
    %c0_i32_122 = arith.constant 0 : i32
    %376 = arith.cmpi eq, %arg1, %c0_i32_122 : i32
    %377 = arith.extui %376 : i1 to i32
    %c0_i32_123 = arith.constant 0 : i32
    %378 = arith.cmpi ne, %377, %c0_i32_123 : i32
    scf.if %378 {
      %c0_124 = arith.constant 0 : index
      %c0_125 = arith.constant 0 : index
      %379 = vector.load %arg5[%c0_124, %c0_125] : memref<8x128xf32, #tpu.memory_space<vmem>>, vector<8x128xf32>
      tpu.vector_store %arg5[%c0_124, %c0_125], %370 {strides = array<i32>} : memref<8x128xf32, #tpu.memory_space<vmem>>, vector<8x128xf32>,
      %c0_126 = arith.constant 0 : index
      %c0_127 = arith.constant 0 : index
      %380 = vector.load %arg6[%c0_126, %c0_127] : memref<8x128xf32, #tpu.memory_space<vmem>>, vector<8x128xf32>
      tpu.vector_store %arg6[%c0_126, %c0_127], %368 {strides = array<i32>} : memref<8x128xf32, #tpu.memory_space<vmem>>, vector<8x128xf32>,
    } else {
    }
    return
  }
  func.func @transform_0(%arg0: i32, %arg1: i32) -> (i32, i32, i32) {
    %c0_i32 = arith.constant 0 : i32
    %c0_i32_0 = arith.constant 0 : i32
    return %arg0, %arg1, %c0_i32 : i32, i32, i32
  }
  func.func @transform_1(%arg0: i32, %arg1: i32) -> (i32, i32) {
    %c0_i32 = arith.constant 0 : i32
    %c0_i32_0 = arith.constant 0 : i32
    %c0_i32_1 = arith.constant 0 : i32
    return %c0_i32, %c0_i32_0 : i32, i32
  }
  func.func @transform_2(%arg0: i32, %arg1: i32) -> (i32, i32, i32) {
    %c0_i32 = arith.constant 0 : i32
    %c0_i32_0 = arith.constant 0 : i32
    return %arg0, %arg1, %c0_i32 : i32, i32, i32
  }
  func.func @transform_3(%arg0: i32, %arg1: i32) -> (i32, i32) {
    %c0_i32 = arith.constant 0 : i32
    %c0_i32_0 = arith.constant 0 : i32
    return %arg0, %c0_i32 : i32, i32
  }
  func.func @transform_4(%arg0: i32, %arg1: i32) -> (i32, i32) {
    %c0_i32 = arith.constant 0 : i32
    %c0_i32_0 = arith.constant 0 : i32
    return %arg0, %c0_i32 : i32, i32
  }
}

module attributes {stable_mosaic.version = 11 : i64} {
  func.func @_lstm_recurrent_kernel(%arg0: i32, %arg1: i32, %arg2: memref<8x16x512xf32, #tpu.memory_space<vmem>>, %arg3: memref<128x512xf32, #tpu.memory_space<vmem>>, %arg4: memref<8x16x128xf32, #tpu.memory_space<vmem>>, %arg5: memref<8x128xf32, #tpu.memory_space<vmem>>, %arg6: memref<8x128xf32, #tpu.memory_space<vmem>>, %arg7: memref<8x128xf32, #tpu.memory_space<vmem>>, %arg8: memref<8x128xf32, #tpu.memory_space<vmem>>) attributes {dimension_semantics = [#tpu.dimension_semantics<parallel>, #tpu.dimension_semantics<arbitrary>], iteration_bounds = array<i64: 1, 1>, scalar_prefetch = 0 : i64, scratch_operands = 2 : i64, tpu.core_type = #tpu.core_type<tc>, window_params = [{transform_indices = @transform_0, window_bounds = array<i64: 8, 16, 512>}, {pipeline_mode = #tpu.pipeline_mode<synchronous>, transform_indices = @transform_1, window_bounds = array<i64: 128, 512>}, {transform_indices = @transform_2, window_bounds = array<i64: 8, 16, 128>}, {transform_indices = @transform_3, window_bounds = array<i64: 8, 128>}, {transform_indices = @transform_4, window_bounds = array<i64: 8, 128>}]} {
    %c0_i32 = arith.constant 0 : i32
    %0 = arith.cmpi eq, %arg1, %c0_i32 : i32
    %1 = arith.extui %0 : i1 to i32
    %c0_i32_0 = arith.constant 0 : i32
    %2 = arith.cmpi ne, %1, %c0_i32_0 : i32
    scf.if %2 {
      %cst_124 = arith.constant 0.000000e+00 : f32
      %379 = vector.broadcast %cst_124 : f32 to vector<8x128xf32>
      %c0_125 = arith.constant 0 : index
      %c0_126 = arith.constant 0 : index
      %380 = vector.load %arg7[%c0_125, %c0_126] : memref<8x128xf32, #tpu.memory_space<vmem>>, vector<8x128xf32>
      tpu.vector_store %arg7[%c0_125, %c0_126], %379 {strides = array<i32>} : memref<8x128xf32, #tpu.memory_space<vmem>>, vector<8x128xf32>,
      %cst_127 = arith.constant 0.000000e+00 : f32
      %381 = vector.broadcast %cst_127 : f32 to vector<8x128xf32>
      %c0_128 = arith.constant 0 : index
      %c0_129 = arith.constant 0 : index
      %382 = vector.load %arg8[%c0_128, %c0_129] : memref<8x128xf32, #tpu.memory_space<vmem>>, vector<8x128xf32>
      tpu.vector_store %arg8[%c0_128, %c0_129], %381 {strides = array<i32>} : memref<8x128xf32, #tpu.memory_space<vmem>>, vector<8x128xf32>,
    } else {
    }
    %c0 = arith.constant 0 : index
    %c0_1 = arith.constant 0 : index
    %3 = vector.load %arg7[%c0, %c0_1] : memref<8x128xf32, #tpu.memory_space<vmem>>, vector<8x128xf32>
    %c0_2 = arith.constant 0 : index
    %c0_3 = arith.constant 0 : index
    %4 = vector.load %arg8[%c0_2, %c0_3] : memref<8x128xf32, #tpu.memory_space<vmem>>, vector<8x128xf32>
    %c0_4 = arith.constant 0 : index
    %c0_5 = arith.constant 0 : index
    %5 = vector.load %arg3[%c0_4, %c0_5] : memref<128x512xf32, #tpu.memory_space<vmem>>, vector<128x512xf32>
    %cst = arith.constant dense<0.000000e+00> : vector<8x512xf32>
    %6 = tpu.matmul %3, %5, %cst {dimension_numbers = #tpu.dot_dimension_numbers<[1], [0], [0], [1], [0, 0, 1, 1], [], []>} : vector<8x128xf32>, vector<128x512xf32>, vector<8x512xf32> -> vector<8x512xf32>
    %c0_6 = arith.constant 0 : index
    %c0_7 = arith.constant 0 : index
    %c0_8 = arith.constant 0 : index
    %7 = vector.load %arg2[%c0_6, %c0_7, %c0_8] : memref<8x16x512xf32, #tpu.memory_space<vmem>>, vector<8x1x512xf32>
    %8 = vector.shape_cast %7 : vector<8x1x512xf32> to vector<8x512xf32>
    %9 = arith.addf %6, %8 : vector<8x512xf32>
    %10 = vector.extract_strided_slice %9 {offsets = [0, 0], sizes = [8, 384], strides = [1, 1]} : vector<8x512xf32> to vector<8x384xf32>
    %11 = arith.negf %10 : vector<8x384xf32>
    %12 = math.exp %11 : vector<8x384xf32>
    %cst_9 = arith.constant 1.000000e+00 : f32
    %13 = vector.broadcast %cst_9 : f32 to vector<8x384xf32>
    %14 = arith.addf %13, %12 : vector<8x384xf32>
    %15 = arith.divf %13, %14 : vector<8x384xf32>
    %16 = vector.extract_strided_slice %15 {offsets = [0, 0], sizes = [8, 128], strides = [1, 1]} : vector<8x384xf32> to vector<8x128xf32>
    %17 = vector.extract_strided_slice %15 {offsets = [0, 128], sizes = [8, 128], strides = [1, 1]} : vector<8x384xf32> to vector<8x128xf32>
    %18 = vector.extract_strided_slice %15 {offsets = [0, 256], sizes = [8, 128], strides = [1, 1]} : vector<8x384xf32> to vector<8x128xf32>
    %19 = vector.extract_strided_slice %9 {offsets = [0, 384], sizes = [8, 128], strides = [1, 1]} : vector<8x512xf32> to vector<8x128xf32>
    %20 = math.tanh %19 : vector<8x128xf32>
    %21 = arith.mulf %17, %4 : vector<8x128xf32>
    %22 = arith.mulf %16, %20 : vector<8x128xf32>
    %23 = arith.addf %21, %22 : vector<8x128xf32>
    %24 = math.tanh %23 : vector<8x128xf32>
    %25 = arith.mulf %18, %24 : vector<8x128xf32>
    %c0_10 = arith.constant 0 : index
    %c0_11 = arith.constant 0 : index
    %c0_12 = arith.constant 0 : index
    %26 = vector.load %arg4[%c0_10, %c0_11, %c0_12] : memref<8x16x128xf32, #tpu.memory_space<vmem>>, vector<8x1x128xf32>
    %27 = vector.shape_cast %26 : vector<8x1x128xf32> to vector<8x128xf32>
    %28 = vector.shape_cast %25 : vector<8x128xf32> to vector<8x1x128xf32>
    tpu.vector_store %arg4[%c0_10, %c0_11, %c0_12], %28 {strides = array<i32>} : memref<8x16x128xf32, #tpu.memory_space<vmem>>, vector<8x1x128xf32>,
    %cst_13 = arith.constant dense<0.000000e+00> : vector<8x512xf32>
    %29 = tpu.matmul %25, %5, %cst_13 {dimension_numbers = #tpu.dot_dimension_numbers<[1], [0], [0], [1], [0, 0, 1, 1], [], []>} : vector<8x128xf32>, vector<128x512xf32>, vector<8x512xf32> -> vector<8x512xf32>
    %c0_14 = arith.constant 0 : index
    %c1 = arith.constant 1 : index
    %c0_15 = arith.constant 0 : index
    %30 = vector.load %arg2[%c0_14, %c1, %c0_15] : memref<8x16x512xf32, #tpu.memory_space<vmem>>, vector<8x1x512xf32>
    %31 = vector.shape_cast %30 : vector<8x1x512xf32> to vector<8x512xf32>
    %32 = arith.addf %29, %31 : vector<8x512xf32>
    %33 = vector.extract_strided_slice %32 {offsets = [0, 0], sizes = [8, 384], strides = [1, 1]} : vector<8x512xf32> to vector<8x384xf32>
    %34 = arith.negf %33 : vector<8x384xf32>
    %35 = math.exp %34 : vector<8x384xf32>
    %cst_16 = arith.constant 1.000000e+00 : f32
    %36 = vector.broadcast %cst_16 : f32 to vector<8x384xf32>
    %37 = arith.addf %36, %35 : vector<8x384xf32>
    %38 = arith.divf %36, %37 : vector<8x384xf32>
    %39 = vector.extract_strided_slice %38 {offsets = [0, 0], sizes = [8, 128], strides = [1, 1]} : vector<8x384xf32> to vector<8x128xf32>
    %40 = vector.extract_strided_slice %38 {offsets = [0, 128], sizes = [8, 128], strides = [1, 1]} : vector<8x384xf32> to vector<8x128xf32>
    %41 = vector.extract_strided_slice %38 {offsets = [0, 256], sizes = [8, 128], strides = [1, 1]} : vector<8x384xf32> to vector<8x128xf32>
    %42 = vector.extract_strided_slice %32 {offsets = [0, 384], sizes = [8, 128], strides = [1, 1]} : vector<8x512xf32> to vector<8x128xf32>
    %43 = math.tanh %42 : vector<8x128xf32>
    %44 = arith.mulf %40, %23 : vector<8x128xf32>
    %45 = arith.mulf %39, %43 : vector<8x128xf32>
    %46 = arith.addf %44, %45 : vector<8x128xf32>
    %47 = math.tanh %46 : vector<8x128xf32>
    %48 = arith.mulf %41, %47 : vector<8x128xf32>
    %c0_17 = arith.constant 0 : index
    %c1_18 = arith.constant 1 : index
    %c0_19 = arith.constant 0 : index
    %49 = vector.load %arg4[%c0_17, %c1_18, %c0_19] : memref<8x16x128xf32, #tpu.memory_space<vmem>>, vector<8x1x128xf32>
    %50 = vector.shape_cast %49 : vector<8x1x128xf32> to vector<8x128xf32>
    %51 = vector.shape_cast %48 : vector<8x128xf32> to vector<8x1x128xf32>
    tpu.vector_store %arg4[%c0_17, %c1_18, %c0_19], %51 {strides = array<i32>} : memref<8x16x128xf32, #tpu.memory_space<vmem>>, vector<8x1x128xf32>,
    %cst_20 = arith.constant dense<0.000000e+00> : vector<8x512xf32>
    %52 = tpu.matmul %48, %5, %cst_20 {dimension_numbers = #tpu.dot_dimension_numbers<[1], [0], [0], [1], [0, 0, 1, 1], [], []>} : vector<8x128xf32>, vector<128x512xf32>, vector<8x512xf32> -> vector<8x512xf32>
    %c0_21 = arith.constant 0 : index
    %c2 = arith.constant 2 : index
    %c0_22 = arith.constant 0 : index
    %53 = vector.load %arg2[%c0_21, %c2, %c0_22] : memref<8x16x512xf32, #tpu.memory_space<vmem>>, vector<8x1x512xf32>
    %54 = vector.shape_cast %53 : vector<8x1x512xf32> to vector<8x512xf32>
    %55 = arith.addf %52, %54 : vector<8x512xf32>
    %56 = vector.extract_strided_slice %55 {offsets = [0, 0], sizes = [8, 384], strides = [1, 1]} : vector<8x512xf32> to vector<8x384xf32>
    %57 = arith.negf %56 : vector<8x384xf32>
    %58 = math.exp %57 : vector<8x384xf32>
    %cst_23 = arith.constant 1.000000e+00 : f32
    %59 = vector.broadcast %cst_23 : f32 to vector<8x384xf32>
    %60 = arith.addf %59, %58 : vector<8x384xf32>
    %61 = arith.divf %59, %60 : vector<8x384xf32>
    %62 = vector.extract_strided_slice %61 {offsets = [0, 0], sizes = [8, 128], strides = [1, 1]} : vector<8x384xf32> to vector<8x128xf32>
    %63 = vector.extract_strided_slice %61 {offsets = [0, 128], sizes = [8, 128], strides = [1, 1]} : vector<8x384xf32> to vector<8x128xf32>
    %64 = vector.extract_strided_slice %61 {offsets = [0, 256], sizes = [8, 128], strides = [1, 1]} : vector<8x384xf32> to vector<8x128xf32>
    %65 = vector.extract_strided_slice %55 {offsets = [0, 384], sizes = [8, 128], strides = [1, 1]} : vector<8x512xf32> to vector<8x128xf32>
    %66 = math.tanh %65 : vector<8x128xf32>
    %67 = arith.mulf %63, %46 : vector<8x128xf32>
    %68 = arith.mulf %62, %66 : vector<8x128xf32>
    %69 = arith.addf %67, %68 : vector<8x128xf32>
    %70 = math.tanh %69 : vector<8x128xf32>
    %71 = arith.mulf %64, %70 : vector<8x128xf32>
    %c0_24 = arith.constant 0 : index
    %c2_25 = arith.constant 2 : index
    %c0_26 = arith.constant 0 : index
    %72 = vector.load %arg4[%c0_24, %c2_25, %c0_26] : memref<8x16x128xf32, #tpu.memory_space<vmem>>, vector<8x1x128xf32>
    %73 = vector.shape_cast %72 : vector<8x1x128xf32> to vector<8x128xf32>
    %74 = vector.shape_cast %71 : vector<8x128xf32> to vector<8x1x128xf32>
    tpu.vector_store %arg4[%c0_24, %c2_25, %c0_26], %74 {strides = array<i32>} : memref<8x16x128xf32, #tpu.memory_space<vmem>>, vector<8x1x128xf32>,
    %cst_27 = arith.constant dense<0.000000e+00> : vector<8x512xf32>
    %75 = tpu.matmul %71, %5, %cst_27 {dimension_numbers = #tpu.dot_dimension_numbers<[1], [0], [0], [1], [0, 0, 1, 1], [], []>} : vector<8x128xf32>, vector<128x512xf32>, vector<8x512xf32> -> vector<8x512xf32>
    %c0_28 = arith.constant 0 : index
    %c3 = arith.constant 3 : index
    %c0_29 = arith.constant 0 : index
    %76 = vector.load %arg2[%c0_28, %c3, %c0_29] : memref<8x16x512xf32, #tpu.memory_space<vmem>>, vector<8x1x512xf32>
    %77 = vector.shape_cast %76 : vector<8x1x512xf32> to vector<8x512xf32>
    %78 = arith.addf %75, %77 : vector<8x512xf32>
    %79 = vector.extract_strided_slice %78 {offsets = [0, 0], sizes = [8, 384], strides = [1, 1]} : vector<8x512xf32> to vector<8x384xf32>
    %80 = arith.negf %79 : vector<8x384xf32>
    %81 = math.exp %80 : vector<8x384xf32>
    %cst_30 = arith.constant 1.000000e+00 : f32
    %82 = vector.broadcast %cst_30 : f32 to vector<8x384xf32>
    %83 = arith.addf %82, %81 : vector<8x384xf32>
    %84 = arith.divf %82, %83 : vector<8x384xf32>
    %85 = vector.extract_strided_slice %84 {offsets = [0, 0], sizes = [8, 128], strides = [1, 1]} : vector<8x384xf32> to vector<8x128xf32>
    %86 = vector.extract_strided_slice %84 {offsets = [0, 128], sizes = [8, 128], strides = [1, 1]} : vector<8x384xf32> to vector<8x128xf32>
    %87 = vector.extract_strided_slice %84 {offsets = [0, 256], sizes = [8, 128], strides = [1, 1]} : vector<8x384xf32> to vector<8x128xf32>
    %88 = vector.extract_strided_slice %78 {offsets = [0, 384], sizes = [8, 128], strides = [1, 1]} : vector<8x512xf32> to vector<8x128xf32>
    %89 = math.tanh %88 : vector<8x128xf32>
    %90 = arith.mulf %86, %69 : vector<8x128xf32>
    %91 = arith.mulf %85, %89 : vector<8x128xf32>
    %92 = arith.addf %90, %91 : vector<8x128xf32>
    %93 = math.tanh %92 : vector<8x128xf32>
    %94 = arith.mulf %87, %93 : vector<8x128xf32>
    %c0_31 = arith.constant 0 : index
    %c3_32 = arith.constant 3 : index
    %c0_33 = arith.constant 0 : index
    %95 = vector.load %arg4[%c0_31, %c3_32, %c0_33] : memref<8x16x128xf32, #tpu.memory_space<vmem>>, vector<8x1x128xf32>
    %96 = vector.shape_cast %95 : vector<8x1x128xf32> to vector<8x128xf32>
    %97 = vector.shape_cast %94 : vector<8x128xf32> to vector<8x1x128xf32>
    tpu.vector_store %arg4[%c0_31, %c3_32, %c0_33], %97 {strides = array<i32>} : memref<8x16x128xf32, #tpu.memory_space<vmem>>, vector<8x1x128xf32>,
    %cst_34 = arith.constant dense<0.000000e+00> : vector<8x512xf32>
    %98 = tpu.matmul %94, %5, %cst_34 {dimension_numbers = #tpu.dot_dimension_numbers<[1], [0], [0], [1], [0, 0, 1, 1], [], []>} : vector<8x128xf32>, vector<128x512xf32>, vector<8x512xf32> -> vector<8x512xf32>
    %c0_35 = arith.constant 0 : index
    %c4 = arith.constant 4 : index
    %c0_36 = arith.constant 0 : index
    %99 = vector.load %arg2[%c0_35, %c4, %c0_36] : memref<8x16x512xf32, #tpu.memory_space<vmem>>, vector<8x1x512xf32>
    %100 = vector.shape_cast %99 : vector<8x1x512xf32> to vector<8x512xf32>
    %101 = arith.addf %98, %100 : vector<8x512xf32>
    %102 = vector.extract_strided_slice %101 {offsets = [0, 0], sizes = [8, 384], strides = [1, 1]} : vector<8x512xf32> to vector<8x384xf32>
    %103 = arith.negf %102 : vector<8x384xf32>
    %104 = math.exp %103 : vector<8x384xf32>
    %cst_37 = arith.constant 1.000000e+00 : f32
    %105 = vector.broadcast %cst_37 : f32 to vector<8x384xf32>
    %106 = arith.addf %105, %104 : vector<8x384xf32>
    %107 = arith.divf %105, %106 : vector<8x384xf32>
    %108 = vector.extract_strided_slice %107 {offsets = [0, 0], sizes = [8, 128], strides = [1, 1]} : vector<8x384xf32> to vector<8x128xf32>
    %109 = vector.extract_strided_slice %107 {offsets = [0, 128], sizes = [8, 128], strides = [1, 1]} : vector<8x384xf32> to vector<8x128xf32>
    %110 = vector.extract_strided_slice %107 {offsets = [0, 256], sizes = [8, 128], strides = [1, 1]} : vector<8x384xf32> to vector<8x128xf32>
    %111 = vector.extract_strided_slice %101 {offsets = [0, 384], sizes = [8, 128], strides = [1, 1]} : vector<8x512xf32> to vector<8x128xf32>
    %112 = math.tanh %111 : vector<8x128xf32>
    %113 = arith.mulf %109, %92 : vector<8x128xf32>
    %114 = arith.mulf %108, %112 : vector<8x128xf32>
    %115 = arith.addf %113, %114 : vector<8x128xf32>
    %116 = math.tanh %115 : vector<8x128xf32>
    %117 = arith.mulf %110, %116 : vector<8x128xf32>
    %c0_38 = arith.constant 0 : index
    %c4_39 = arith.constant 4 : index
    %c0_40 = arith.constant 0 : index
    %118 = vector.load %arg4[%c0_38, %c4_39, %c0_40] : memref<8x16x128xf32, #tpu.memory_space<vmem>>, vector<8x1x128xf32>
    %119 = vector.shape_cast %118 : vector<8x1x128xf32> to vector<8x128xf32>
    %120 = vector.shape_cast %117 : vector<8x128xf32> to vector<8x1x128xf32>
    tpu.vector_store %arg4[%c0_38, %c4_39, %c0_40], %120 {strides = array<i32>} : memref<8x16x128xf32, #tpu.memory_space<vmem>>, vector<8x1x128xf32>,
    %cst_41 = arith.constant dense<0.000000e+00> : vector<8x512xf32>
    %121 = tpu.matmul %117, %5, %cst_41 {dimension_numbers = #tpu.dot_dimension_numbers<[1], [0], [0], [1], [0, 0, 1, 1], [], []>} : vector<8x128xf32>, vector<128x512xf32>, vector<8x512xf32> -> vector<8x512xf32>
    %c0_42 = arith.constant 0 : index
    %c5 = arith.constant 5 : index
    %c0_43 = arith.constant 0 : index
    %122 = vector.load %arg2[%c0_42, %c5, %c0_43] : memref<8x16x512xf32, #tpu.memory_space<vmem>>, vector<8x1x512xf32>
    %123 = vector.shape_cast %122 : vector<8x1x512xf32> to vector<8x512xf32>
    %124 = arith.addf %121, %123 : vector<8x512xf32>
    %125 = vector.extract_strided_slice %124 {offsets = [0, 0], sizes = [8, 384], strides = [1, 1]} : vector<8x512xf32> to vector<8x384xf32>
    %126 = arith.negf %125 : vector<8x384xf32>
    %127 = math.exp %126 : vector<8x384xf32>
    %cst_44 = arith.constant 1.000000e+00 : f32
    %128 = vector.broadcast %cst_44 : f32 to vector<8x384xf32>
    %129 = arith.addf %128, %127 : vector<8x384xf32>
    %130 = arith.divf %128, %129 : vector<8x384xf32>
    %131 = vector.extract_strided_slice %130 {offsets = [0, 0], sizes = [8, 128], strides = [1, 1]} : vector<8x384xf32> to vector<8x128xf32>
    %132 = vector.extract_strided_slice %130 {offsets = [0, 128], sizes = [8, 128], strides = [1, 1]} : vector<8x384xf32> to vector<8x128xf32>
    %133 = vector.extract_strided_slice %130 {offsets = [0, 256], sizes = [8, 128], strides = [1, 1]} : vector<8x384xf32> to vector<8x128xf32>
    %134 = vector.extract_strided_slice %124 {offsets = [0, 384], sizes = [8, 128], strides = [1, 1]} : vector<8x512xf32> to vector<8x128xf32>
    %135 = math.tanh %134 : vector<8x128xf32>
    %136 = arith.mulf %132, %115 : vector<8x128xf32>
    %137 = arith.mulf %131, %135 : vector<8x128xf32>
    %138 = arith.addf %136, %137 : vector<8x128xf32>
    %139 = math.tanh %138 : vector<8x128xf32>
    %140 = arith.mulf %133, %139 : vector<8x128xf32>
    %c0_45 = arith.constant 0 : index
    %c5_46 = arith.constant 5 : index
    %c0_47 = arith.constant 0 : index
    %141 = vector.load %arg4[%c0_45, %c5_46, %c0_47] : memref<8x16x128xf32, #tpu.memory_space<vmem>>, vector<8x1x128xf32>
    %142 = vector.shape_cast %141 : vector<8x1x128xf32> to vector<8x128xf32>
    %143 = vector.shape_cast %140 : vector<8x128xf32> to vector<8x1x128xf32>
    tpu.vector_store %arg4[%c0_45, %c5_46, %c0_47], %143 {strides = array<i32>} : memref<8x16x128xf32, #tpu.memory_space<vmem>>, vector<8x1x128xf32>,
    %cst_48 = arith.constant dense<0.000000e+00> : vector<8x512xf32>
    %144 = tpu.matmul %140, %5, %cst_48 {dimension_numbers = #tpu.dot_dimension_numbers<[1], [0], [0], [1], [0, 0, 1, 1], [], []>} : vector<8x128xf32>, vector<128x512xf32>, vector<8x512xf32> -> vector<8x512xf32>
    %c0_49 = arith.constant 0 : index
    %c6 = arith.constant 6 : index
    %c0_50 = arith.constant 0 : index
    %145 = vector.load %arg2[%c0_49, %c6, %c0_50] : memref<8x16x512xf32, #tpu.memory_space<vmem>>, vector<8x1x512xf32>
    %146 = vector.shape_cast %145 : vector<8x1x512xf32> to vector<8x512xf32>
    %147 = arith.addf %144, %146 : vector<8x512xf32>
    %148 = vector.extract_strided_slice %147 {offsets = [0, 0], sizes = [8, 384], strides = [1, 1]} : vector<8x512xf32> to vector<8x384xf32>
    %149 = arith.negf %148 : vector<8x384xf32>
    %150 = math.exp %149 : vector<8x384xf32>
    %cst_51 = arith.constant 1.000000e+00 : f32
    %151 = vector.broadcast %cst_51 : f32 to vector<8x384xf32>
    %152 = arith.addf %151, %150 : vector<8x384xf32>
    %153 = arith.divf %151, %152 : vector<8x384xf32>
    %154 = vector.extract_strided_slice %153 {offsets = [0, 0], sizes = [8, 128], strides = [1, 1]} : vector<8x384xf32> to vector<8x128xf32>
    %155 = vector.extract_strided_slice %153 {offsets = [0, 128], sizes = [8, 128], strides = [1, 1]} : vector<8x384xf32> to vector<8x128xf32>
    %156 = vector.extract_strided_slice %153 {offsets = [0, 256], sizes = [8, 128], strides = [1, 1]} : vector<8x384xf32> to vector<8x128xf32>
    %157 = vector.extract_strided_slice %147 {offsets = [0, 384], sizes = [8, 128], strides = [1, 1]} : vector<8x512xf32> to vector<8x128xf32>
    %158 = math.tanh %157 : vector<8x128xf32>
    %159 = arith.mulf %155, %138 : vector<8x128xf32>
    %160 = arith.mulf %154, %158 : vector<8x128xf32>
    %161 = arith.addf %159, %160 : vector<8x128xf32>
    %162 = math.tanh %161 : vector<8x128xf32>
    %163 = arith.mulf %156, %162 : vector<8x128xf32>
    %c0_52 = arith.constant 0 : index
    %c6_53 = arith.constant 6 : index
    %c0_54 = arith.constant 0 : index
    %164 = vector.load %arg4[%c0_52, %c6_53, %c0_54] : memref<8x16x128xf32, #tpu.memory_space<vmem>>, vector<8x1x128xf32>
    %165 = vector.shape_cast %164 : vector<8x1x128xf32> to vector<8x128xf32>
    %166 = vector.shape_cast %163 : vector<8x128xf32> to vector<8x1x128xf32>
    tpu.vector_store %arg4[%c0_52, %c6_53, %c0_54], %166 {strides = array<i32>} : memref<8x16x128xf32, #tpu.memory_space<vmem>>, vector<8x1x128xf32>,
    %cst_55 = arith.constant dense<0.000000e+00> : vector<8x512xf32>
    %167 = tpu.matmul %163, %5, %cst_55 {dimension_numbers = #tpu.dot_dimension_numbers<[1], [0], [0], [1], [0, 0, 1, 1], [], []>} : vector<8x128xf32>, vector<128x512xf32>, vector<8x512xf32> -> vector<8x512xf32>
    %c0_56 = arith.constant 0 : index
    %c7 = arith.constant 7 : index
    %c0_57 = arith.constant 0 : index
    %168 = vector.load %arg2[%c0_56, %c7, %c0_57] : memref<8x16x512xf32, #tpu.memory_space<vmem>>, vector<8x1x512xf32>
    %169 = vector.shape_cast %168 : vector<8x1x512xf32> to vector<8x512xf32>
    %170 = arith.addf %167, %169 : vector<8x512xf32>
    %171 = vector.extract_strided_slice %170 {offsets = [0, 0], sizes = [8, 384], strides = [1, 1]} : vector<8x512xf32> to vector<8x384xf32>
    %172 = arith.negf %171 : vector<8x384xf32>
    %173 = math.exp %172 : vector<8x384xf32>
    %cst_58 = arith.constant 1.000000e+00 : f32
    %174 = vector.broadcast %cst_58 : f32 to vector<8x384xf32>
    %175 = arith.addf %174, %173 : vector<8x384xf32>
    %176 = arith.divf %174, %175 : vector<8x384xf32>
    %177 = vector.extract_strided_slice %176 {offsets = [0, 0], sizes = [8, 128], strides = [1, 1]} : vector<8x384xf32> to vector<8x128xf32>
    %178 = vector.extract_strided_slice %176 {offsets = [0, 128], sizes = [8, 128], strides = [1, 1]} : vector<8x384xf32> to vector<8x128xf32>
    %179 = vector.extract_strided_slice %176 {offsets = [0, 256], sizes = [8, 128], strides = [1, 1]} : vector<8x384xf32> to vector<8x128xf32>
    %180 = vector.extract_strided_slice %170 {offsets = [0, 384], sizes = [8, 128], strides = [1, 1]} : vector<8x512xf32> to vector<8x128xf32>
    %181 = math.tanh %180 : vector<8x128xf32>
    %182 = arith.mulf %178, %161 : vector<8x128xf32>
    %183 = arith.mulf %177, %181 : vector<8x128xf32>
    %184 = arith.addf %182, %183 : vector<8x128xf32>
    %185 = math.tanh %184 : vector<8x128xf32>
    %186 = arith.mulf %179, %185 : vector<8x128xf32>
    %c0_59 = arith.constant 0 : index
    %c7_60 = arith.constant 7 : index
    %c0_61 = arith.constant 0 : index
    %187 = vector.load %arg4[%c0_59, %c7_60, %c0_61] : memref<8x16x128xf32, #tpu.memory_space<vmem>>, vector<8x1x128xf32>
    %188 = vector.shape_cast %187 : vector<8x1x128xf32> to vector<8x128xf32>
    %189 = vector.shape_cast %186 : vector<8x128xf32> to vector<8x1x128xf32>
    tpu.vector_store %arg4[%c0_59, %c7_60, %c0_61], %189 {strides = array<i32>} : memref<8x16x128xf32, #tpu.memory_space<vmem>>, vector<8x1x128xf32>,
    %cst_62 = arith.constant dense<0.000000e+00> : vector<8x512xf32>
    %190 = tpu.matmul %186, %5, %cst_62 {dimension_numbers = #tpu.dot_dimension_numbers<[1], [0], [0], [1], [0, 0, 1, 1], [], []>} : vector<8x128xf32>, vector<128x512xf32>, vector<8x512xf32> -> vector<8x512xf32>
    %c0_63 = arith.constant 0 : index
    %c8 = arith.constant 8 : index
    %c0_64 = arith.constant 0 : index
    %191 = vector.load %arg2[%c0_63, %c8, %c0_64] : memref<8x16x512xf32, #tpu.memory_space<vmem>>, vector<8x1x512xf32>
    %192 = vector.shape_cast %191 : vector<8x1x512xf32> to vector<8x512xf32>
    %193 = arith.addf %190, %192 : vector<8x512xf32>
    %194 = vector.extract_strided_slice %193 {offsets = [0, 0], sizes = [8, 384], strides = [1, 1]} : vector<8x512xf32> to vector<8x384xf32>
    %195 = arith.negf %194 : vector<8x384xf32>
    %196 = math.exp %195 : vector<8x384xf32>
    %cst_65 = arith.constant 1.000000e+00 : f32
    %197 = vector.broadcast %cst_65 : f32 to vector<8x384xf32>
    %198 = arith.addf %197, %196 : vector<8x384xf32>
    %199 = arith.divf %197, %198 : vector<8x384xf32>
    %200 = vector.extract_strided_slice %199 {offsets = [0, 0], sizes = [8, 128], strides = [1, 1]} : vector<8x384xf32> to vector<8x128xf32>
    %201 = vector.extract_strided_slice %199 {offsets = [0, 128], sizes = [8, 128], strides = [1, 1]} : vector<8x384xf32> to vector<8x128xf32>
    %202 = vector.extract_strided_slice %199 {offsets = [0, 256], sizes = [8, 128], strides = [1, 1]} : vector<8x384xf32> to vector<8x128xf32>
    %203 = vector.extract_strided_slice %193 {offsets = [0, 384], sizes = [8, 128], strides = [1, 1]} : vector<8x512xf32> to vector<8x128xf32>
    %204 = math.tanh %203 : vector<8x128xf32>
    %205 = arith.mulf %201, %184 : vector<8x128xf32>
    %206 = arith.mulf %200, %204 : vector<8x128xf32>
    %207 = arith.addf %205, %206 : vector<8x128xf32>
    %208 = math.tanh %207 : vector<8x128xf32>
    %209 = arith.mulf %202, %208 : vector<8x128xf32>
    %c0_66 = arith.constant 0 : index
    %c8_67 = arith.constant 8 : index
    %c0_68 = arith.constant 0 : index
    %210 = vector.load %arg4[%c0_66, %c8_67, %c0_68] : memref<8x16x128xf32, #tpu.memory_space<vmem>>, vector<8x1x128xf32>
    %211 = vector.shape_cast %210 : vector<8x1x128xf32> to vector<8x128xf32>
    %212 = vector.shape_cast %209 : vector<8x128xf32> to vector<8x1x128xf32>
    tpu.vector_store %arg4[%c0_66, %c8_67, %c0_68], %212 {strides = array<i32>} : memref<8x16x128xf32, #tpu.memory_space<vmem>>, vector<8x1x128xf32>,
    %cst_69 = arith.constant dense<0.000000e+00> : vector<8x512xf32>
    %213 = tpu.matmul %209, %5, %cst_69 {dimension_numbers = #tpu.dot_dimension_numbers<[1], [0], [0], [1], [0, 0, 1, 1], [], []>} : vector<8x128xf32>, vector<128x512xf32>, vector<8x512xf32> -> vector<8x512xf32>
    %c0_70 = arith.constant 0 : index
    %c9 = arith.constant 9 : index
    %c0_71 = arith.constant 0 : index
    %214 = vector.load %arg2[%c0_70, %c9, %c0_71] : memref<8x16x512xf32, #tpu.memory_space<vmem>>, vector<8x1x512xf32>
    %215 = vector.shape_cast %214 : vector<8x1x512xf32> to vector<8x512xf32>
    %216 = arith.addf %213, %215 : vector<8x512xf32>
    %217 = vector.extract_strided_slice %216 {offsets = [0, 0], sizes = [8, 384], strides = [1, 1]} : vector<8x512xf32> to vector<8x384xf32>
    %218 = arith.negf %217 : vector<8x384xf32>
    %219 = math.exp %218 : vector<8x384xf32>
    %cst_72 = arith.constant 1.000000e+00 : f32
    %220 = vector.broadcast %cst_72 : f32 to vector<8x384xf32>
    %221 = arith.addf %220, %219 : vector<8x384xf32>
    %222 = arith.divf %220, %221 : vector<8x384xf32>
    %223 = vector.extract_strided_slice %222 {offsets = [0, 0], sizes = [8, 128], strides = [1, 1]} : vector<8x384xf32> to vector<8x128xf32>
    %224 = vector.extract_strided_slice %222 {offsets = [0, 128], sizes = [8, 128], strides = [1, 1]} : vector<8x384xf32> to vector<8x128xf32>
    %225 = vector.extract_strided_slice %222 {offsets = [0, 256], sizes = [8, 128], strides = [1, 1]} : vector<8x384xf32> to vector<8x128xf32>
    %226 = vector.extract_strided_slice %216 {offsets = [0, 384], sizes = [8, 128], strides = [1, 1]} : vector<8x512xf32> to vector<8x128xf32>
    %227 = math.tanh %226 : vector<8x128xf32>
    %228 = arith.mulf %224, %207 : vector<8x128xf32>
    %229 = arith.mulf %223, %227 : vector<8x128xf32>
    %230 = arith.addf %228, %229 : vector<8x128xf32>
    %231 = math.tanh %230 : vector<8x128xf32>
    %232 = arith.mulf %225, %231 : vector<8x128xf32>
    %c0_73 = arith.constant 0 : index
    %c9_74 = arith.constant 9 : index
    %c0_75 = arith.constant 0 : index
    %233 = vector.load %arg4[%c0_73, %c9_74, %c0_75] : memref<8x16x128xf32, #tpu.memory_space<vmem>>, vector<8x1x128xf32>
    %234 = vector.shape_cast %233 : vector<8x1x128xf32> to vector<8x128xf32>
    %235 = vector.shape_cast %232 : vector<8x128xf32> to vector<8x1x128xf32>
    tpu.vector_store %arg4[%c0_73, %c9_74, %c0_75], %235 {strides = array<i32>} : memref<8x16x128xf32, #tpu.memory_space<vmem>>, vector<8x1x128xf32>,
    %cst_76 = arith.constant dense<0.000000e+00> : vector<8x512xf32>
    %236 = tpu.matmul %232, %5, %cst_76 {dimension_numbers = #tpu.dot_dimension_numbers<[1], [0], [0], [1], [0, 0, 1, 1], [], []>} : vector<8x128xf32>, vector<128x512xf32>, vector<8x512xf32> -> vector<8x512xf32>
    %c0_77 = arith.constant 0 : index
    %c10 = arith.constant 10 : index
    %c0_78 = arith.constant 0 : index
    %237 = vector.load %arg2[%c0_77, %c10, %c0_78] : memref<8x16x512xf32, #tpu.memory_space<vmem>>, vector<8x1x512xf32>
    %238 = vector.shape_cast %237 : vector<8x1x512xf32> to vector<8x512xf32>
    %239 = arith.addf %236, %238 : vector<8x512xf32>
    %240 = vector.extract_strided_slice %239 {offsets = [0, 0], sizes = [8, 384], strides = [1, 1]} : vector<8x512xf32> to vector<8x384xf32>
    %241 = arith.negf %240 : vector<8x384xf32>
    %242 = math.exp %241 : vector<8x384xf32>
    %cst_79 = arith.constant 1.000000e+00 : f32
    %243 = vector.broadcast %cst_79 : f32 to vector<8x384xf32>
    %244 = arith.addf %243, %242 : vector<8x384xf32>
    %245 = arith.divf %243, %244 : vector<8x384xf32>
    %246 = vector.extract_strided_slice %245 {offsets = [0, 0], sizes = [8, 128], strides = [1, 1]} : vector<8x384xf32> to vector<8x128xf32>
    %247 = vector.extract_strided_slice %245 {offsets = [0, 128], sizes = [8, 128], strides = [1, 1]} : vector<8x384xf32> to vector<8x128xf32>
    %248 = vector.extract_strided_slice %245 {offsets = [0, 256], sizes = [8, 128], strides = [1, 1]} : vector<8x384xf32> to vector<8x128xf32>
    %249 = vector.extract_strided_slice %239 {offsets = [0, 384], sizes = [8, 128], strides = [1, 1]} : vector<8x512xf32> to vector<8x128xf32>
    %250 = math.tanh %249 : vector<8x128xf32>
    %251 = arith.mulf %247, %230 : vector<8x128xf32>
    %252 = arith.mulf %246, %250 : vector<8x128xf32>
    %253 = arith.addf %251, %252 : vector<8x128xf32>
    %254 = math.tanh %253 : vector<8x128xf32>
    %255 = arith.mulf %248, %254 : vector<8x128xf32>
    %c0_80 = arith.constant 0 : index
    %c10_81 = arith.constant 10 : index
    %c0_82 = arith.constant 0 : index
    %256 = vector.load %arg4[%c0_80, %c10_81, %c0_82] : memref<8x16x128xf32, #tpu.memory_space<vmem>>, vector<8x1x128xf32>
    %257 = vector.shape_cast %256 : vector<8x1x128xf32> to vector<8x128xf32>
    %258 = vector.shape_cast %255 : vector<8x128xf32> to vector<8x1x128xf32>
    tpu.vector_store %arg4[%c0_80, %c10_81, %c0_82], %258 {strides = array<i32>} : memref<8x16x128xf32, #tpu.memory_space<vmem>>, vector<8x1x128xf32>,
    %cst_83 = arith.constant dense<0.000000e+00> : vector<8x512xf32>
    %259 = tpu.matmul %255, %5, %cst_83 {dimension_numbers = #tpu.dot_dimension_numbers<[1], [0], [0], [1], [0, 0, 1, 1], [], []>} : vector<8x128xf32>, vector<128x512xf32>, vector<8x512xf32> -> vector<8x512xf32>
    %c0_84 = arith.constant 0 : index
    %c11 = arith.constant 11 : index
    %c0_85 = arith.constant 0 : index
    %260 = vector.load %arg2[%c0_84, %c11, %c0_85] : memref<8x16x512xf32, #tpu.memory_space<vmem>>, vector<8x1x512xf32>
    %261 = vector.shape_cast %260 : vector<8x1x512xf32> to vector<8x512xf32>
    %262 = arith.addf %259, %261 : vector<8x512xf32>
    %263 = vector.extract_strided_slice %262 {offsets = [0, 0], sizes = [8, 384], strides = [1, 1]} : vector<8x512xf32> to vector<8x384xf32>
    %264 = arith.negf %263 : vector<8x384xf32>
    %265 = math.exp %264 : vector<8x384xf32>
    %cst_86 = arith.constant 1.000000e+00 : f32
    %266 = vector.broadcast %cst_86 : f32 to vector<8x384xf32>
    %267 = arith.addf %266, %265 : vector<8x384xf32>
    %268 = arith.divf %266, %267 : vector<8x384xf32>
    %269 = vector.extract_strided_slice %268 {offsets = [0, 0], sizes = [8, 128], strides = [1, 1]} : vector<8x384xf32> to vector<8x128xf32>
    %270 = vector.extract_strided_slice %268 {offsets = [0, 128], sizes = [8, 128], strides = [1, 1]} : vector<8x384xf32> to vector<8x128xf32>
    %271 = vector.extract_strided_slice %268 {offsets = [0, 256], sizes = [8, 128], strides = [1, 1]} : vector<8x384xf32> to vector<8x128xf32>
    %272 = vector.extract_strided_slice %262 {offsets = [0, 384], sizes = [8, 128], strides = [1, 1]} : vector<8x512xf32> to vector<8x128xf32>
    %273 = math.tanh %272 : vector<8x128xf32>
    %274 = arith.mulf %270, %253 : vector<8x128xf32>
    %275 = arith.mulf %269, %273 : vector<8x128xf32>
    %276 = arith.addf %274, %275 : vector<8x128xf32>
    %277 = math.tanh %276 : vector<8x128xf32>
    %278 = arith.mulf %271, %277 : vector<8x128xf32>
    %c0_87 = arith.constant 0 : index
    %c11_88 = arith.constant 11 : index
    %c0_89 = arith.constant 0 : index
    %279 = vector.load %arg4[%c0_87, %c11_88, %c0_89] : memref<8x16x128xf32, #tpu.memory_space<vmem>>, vector<8x1x128xf32>
    %280 = vector.shape_cast %279 : vector<8x1x128xf32> to vector<8x128xf32>
    %281 = vector.shape_cast %278 : vector<8x128xf32> to vector<8x1x128xf32>
    tpu.vector_store %arg4[%c0_87, %c11_88, %c0_89], %281 {strides = array<i32>} : memref<8x16x128xf32, #tpu.memory_space<vmem>>, vector<8x1x128xf32>,
    %cst_90 = arith.constant dense<0.000000e+00> : vector<8x512xf32>
    %282 = tpu.matmul %278, %5, %cst_90 {dimension_numbers = #tpu.dot_dimension_numbers<[1], [0], [0], [1], [0, 0, 1, 1], [], []>} : vector<8x128xf32>, vector<128x512xf32>, vector<8x512xf32> -> vector<8x512xf32>
    %c0_91 = arith.constant 0 : index
    %c12 = arith.constant 12 : index
    %c0_92 = arith.constant 0 : index
    %283 = vector.load %arg2[%c0_91, %c12, %c0_92] : memref<8x16x512xf32, #tpu.memory_space<vmem>>, vector<8x1x512xf32>
    %284 = vector.shape_cast %283 : vector<8x1x512xf32> to vector<8x512xf32>
    %285 = arith.addf %282, %284 : vector<8x512xf32>
    %286 = vector.extract_strided_slice %285 {offsets = [0, 0], sizes = [8, 384], strides = [1, 1]} : vector<8x512xf32> to vector<8x384xf32>
    %287 = arith.negf %286 : vector<8x384xf32>
    %288 = math.exp %287 : vector<8x384xf32>
    %cst_93 = arith.constant 1.000000e+00 : f32
    %289 = vector.broadcast %cst_93 : f32 to vector<8x384xf32>
    %290 = arith.addf %289, %288 : vector<8x384xf32>
    %291 = arith.divf %289, %290 : vector<8x384xf32>
    %292 = vector.extract_strided_slice %291 {offsets = [0, 0], sizes = [8, 128], strides = [1, 1]} : vector<8x384xf32> to vector<8x128xf32>
    %293 = vector.extract_strided_slice %291 {offsets = [0, 128], sizes = [8, 128], strides = [1, 1]} : vector<8x384xf32> to vector<8x128xf32>
    %294 = vector.extract_strided_slice %291 {offsets = [0, 256], sizes = [8, 128], strides = [1, 1]} : vector<8x384xf32> to vector<8x128xf32>
    %295 = vector.extract_strided_slice %285 {offsets = [0, 384], sizes = [8, 128], strides = [1, 1]} : vector<8x512xf32> to vector<8x128xf32>
    %296 = math.tanh %295 : vector<8x128xf32>
    %297 = arith.mulf %293, %276 : vector<8x128xf32>
    %298 = arith.mulf %292, %296 : vector<8x128xf32>
    %299 = arith.addf %297, %298 : vector<8x128xf32>
    %300 = math.tanh %299 : vector<8x128xf32>
    %301 = arith.mulf %294, %300 : vector<8x128xf32>
    %c0_94 = arith.constant 0 : index
    %c12_95 = arith.constant 12 : index
    %c0_96 = arith.constant 0 : index
    %302 = vector.load %arg4[%c0_94, %c12_95, %c0_96] : memref<8x16x128xf32, #tpu.memory_space<vmem>>, vector<8x1x128xf32>
    %303 = vector.shape_cast %302 : vector<8x1x128xf32> to vector<8x128xf32>
    %304 = vector.shape_cast %301 : vector<8x128xf32> to vector<8x1x128xf32>
    tpu.vector_store %arg4[%c0_94, %c12_95, %c0_96], %304 {strides = array<i32>} : memref<8x16x128xf32, #tpu.memory_space<vmem>>, vector<8x1x128xf32>,
    %cst_97 = arith.constant dense<0.000000e+00> : vector<8x512xf32>
    %305 = tpu.matmul %301, %5, %cst_97 {dimension_numbers = #tpu.dot_dimension_numbers<[1], [0], [0], [1], [0, 0, 1, 1], [], []>} : vector<8x128xf32>, vector<128x512xf32>, vector<8x512xf32> -> vector<8x512xf32>
    %c0_98 = arith.constant 0 : index
    %c13 = arith.constant 13 : index
    %c0_99 = arith.constant 0 : index
    %306 = vector.load %arg2[%c0_98, %c13, %c0_99] : memref<8x16x512xf32, #tpu.memory_space<vmem>>, vector<8x1x512xf32>
    %307 = vector.shape_cast %306 : vector<8x1x512xf32> to vector<8x512xf32>
    %308 = arith.addf %305, %307 : vector<8x512xf32>
    %309 = vector.extract_strided_slice %308 {offsets = [0, 0], sizes = [8, 384], strides = [1, 1]} : vector<8x512xf32> to vector<8x384xf32>
    %310 = arith.negf %309 : vector<8x384xf32>
    %311 = math.exp %310 : vector<8x384xf32>
    %cst_100 = arith.constant 1.000000e+00 : f32
    %312 = vector.broadcast %cst_100 : f32 to vector<8x384xf32>
    %313 = arith.addf %312, %311 : vector<8x384xf32>
    %314 = arith.divf %312, %313 : vector<8x384xf32>
    %315 = vector.extract_strided_slice %314 {offsets = [0, 0], sizes = [8, 128], strides = [1, 1]} : vector<8x384xf32> to vector<8x128xf32>
    %316 = vector.extract_strided_slice %314 {offsets = [0, 128], sizes = [8, 128], strides = [1, 1]} : vector<8x384xf32> to vector<8x128xf32>
    %317 = vector.extract_strided_slice %314 {offsets = [0, 256], sizes = [8, 128], strides = [1, 1]} : vector<8x384xf32> to vector<8x128xf32>
    %318 = vector.extract_strided_slice %308 {offsets = [0, 384], sizes = [8, 128], strides = [1, 1]} : vector<8x512xf32> to vector<8x128xf32>
    %319 = math.tanh %318 : vector<8x128xf32>
    %320 = arith.mulf %316, %299 : vector<8x128xf32>
    %321 = arith.mulf %315, %319 : vector<8x128xf32>
    %322 = arith.addf %320, %321 : vector<8x128xf32>
    %323 = math.tanh %322 : vector<8x128xf32>
    %324 = arith.mulf %317, %323 : vector<8x128xf32>
    %c0_101 = arith.constant 0 : index
    %c13_102 = arith.constant 13 : index
    %c0_103 = arith.constant 0 : index
    %325 = vector.load %arg4[%c0_101, %c13_102, %c0_103] : memref<8x16x128xf32, #tpu.memory_space<vmem>>, vector<8x1x128xf32>
    %326 = vector.shape_cast %325 : vector<8x1x128xf32> to vector<8x128xf32>
    %327 = vector.shape_cast %324 : vector<8x128xf32> to vector<8x1x128xf32>
    tpu.vector_store %arg4[%c0_101, %c13_102, %c0_103], %327 {strides = array<i32>} : memref<8x16x128xf32, #tpu.memory_space<vmem>>, vector<8x1x128xf32>,
    %cst_104 = arith.constant dense<0.000000e+00> : vector<8x512xf32>
    %328 = tpu.matmul %324, %5, %cst_104 {dimension_numbers = #tpu.dot_dimension_numbers<[1], [0], [0], [1], [0, 0, 1, 1], [], []>} : vector<8x128xf32>, vector<128x512xf32>, vector<8x512xf32> -> vector<8x512xf32>
    %c0_105 = arith.constant 0 : index
    %c14 = arith.constant 14 : index
    %c0_106 = arith.constant 0 : index
    %329 = vector.load %arg2[%c0_105, %c14, %c0_106] : memref<8x16x512xf32, #tpu.memory_space<vmem>>, vector<8x1x512xf32>
    %330 = vector.shape_cast %329 : vector<8x1x512xf32> to vector<8x512xf32>
    %331 = arith.addf %328, %330 : vector<8x512xf32>
    %332 = vector.extract_strided_slice %331 {offsets = [0, 0], sizes = [8, 384], strides = [1, 1]} : vector<8x512xf32> to vector<8x384xf32>
    %333 = arith.negf %332 : vector<8x384xf32>
    %334 = math.exp %333 : vector<8x384xf32>
    %cst_107 = arith.constant 1.000000e+00 : f32
    %335 = vector.broadcast %cst_107 : f32 to vector<8x384xf32>
    %336 = arith.addf %335, %334 : vector<8x384xf32>
    %337 = arith.divf %335, %336 : vector<8x384xf32>
    %338 = vector.extract_strided_slice %337 {offsets = [0, 0], sizes = [8, 128], strides = [1, 1]} : vector<8x384xf32> to vector<8x128xf32>
    %339 = vector.extract_strided_slice %337 {offsets = [0, 128], sizes = [8, 128], strides = [1, 1]} : vector<8x384xf32> to vector<8x128xf32>
    %340 = vector.extract_strided_slice %337 {offsets = [0, 256], sizes = [8, 128], strides = [1, 1]} : vector<8x384xf32> to vector<8x128xf32>
    %341 = vector.extract_strided_slice %331 {offsets = [0, 384], sizes = [8, 128], strides = [1, 1]} : vector<8x512xf32> to vector<8x128xf32>
    %342 = math.tanh %341 : vector<8x128xf32>
    %343 = arith.mulf %339, %322 : vector<8x128xf32>
    %344 = arith.mulf %338, %342 : vector<8x128xf32>
    %345 = arith.addf %343, %344 : vector<8x128xf32>
    %346 = math.tanh %345 : vector<8x128xf32>
    %347 = arith.mulf %340, %346 : vector<8x128xf32>
    %c0_108 = arith.constant 0 : index
    %c14_109 = arith.constant 14 : index
    %c0_110 = arith.constant 0 : index
    %348 = vector.load %arg4[%c0_108, %c14_109, %c0_110] : memref<8x16x128xf32, #tpu.memory_space<vmem>>, vector<8x1x128xf32>
    %349 = vector.shape_cast %348 : vector<8x1x128xf32> to vector<8x128xf32>
    %350 = vector.shape_cast %347 : vector<8x128xf32> to vector<8x1x128xf32>
    tpu.vector_store %arg4[%c0_108, %c14_109, %c0_110], %350 {strides = array<i32>} : memref<8x16x128xf32, #tpu.memory_space<vmem>>, vector<8x1x128xf32>,
    %cst_111 = arith.constant dense<0.000000e+00> : vector<8x512xf32>
    %351 = tpu.matmul %347, %5, %cst_111 {dimension_numbers = #tpu.dot_dimension_numbers<[1], [0], [0], [1], [0, 0, 1, 1], [], []>} : vector<8x128xf32>, vector<128x512xf32>, vector<8x512xf32> -> vector<8x512xf32>
    %c0_112 = arith.constant 0 : index
    %c15 = arith.constant 15 : index
    %c0_113 = arith.constant 0 : index
    %352 = vector.load %arg2[%c0_112, %c15, %c0_113] : memref<8x16x512xf32, #tpu.memory_space<vmem>>, vector<8x1x512xf32>
    %353 = vector.shape_cast %352 : vector<8x1x512xf32> to vector<8x512xf32>
    %354 = arith.addf %351, %353 : vector<8x512xf32>
    %355 = vector.extract_strided_slice %354 {offsets = [0, 0], sizes = [8, 384], strides = [1, 1]} : vector<8x512xf32> to vector<8x384xf32>
    %356 = arith.negf %355 : vector<8x384xf32>
    %357 = math.exp %356 : vector<8x384xf32>
    %cst_114 = arith.constant 1.000000e+00 : f32
    %358 = vector.broadcast %cst_114 : f32 to vector<8x384xf32>
    %359 = arith.addf %358, %357 : vector<8x384xf32>
    %360 = arith.divf %358, %359 : vector<8x384xf32>
    %361 = vector.extract_strided_slice %360 {offsets = [0, 0], sizes = [8, 128], strides = [1, 1]} : vector<8x384xf32> to vector<8x128xf32>
    %362 = vector.extract_strided_slice %360 {offsets = [0, 128], sizes = [8, 128], strides = [1, 1]} : vector<8x384xf32> to vector<8x128xf32>
    %363 = vector.extract_strided_slice %360 {offsets = [0, 256], sizes = [8, 128], strides = [1, 1]} : vector<8x384xf32> to vector<8x128xf32>
    %364 = vector.extract_strided_slice %354 {offsets = [0, 384], sizes = [8, 128], strides = [1, 1]} : vector<8x512xf32> to vector<8x128xf32>
    %365 = math.tanh %364 : vector<8x128xf32>
    %366 = arith.mulf %362, %345 : vector<8x128xf32>
    %367 = arith.mulf %361, %365 : vector<8x128xf32>
    %368 = arith.addf %366, %367 : vector<8x128xf32>
    %369 = math.tanh %368 : vector<8x128xf32>
    %370 = arith.mulf %363, %369 : vector<8x128xf32>
    %c0_115 = arith.constant 0 : index
    %c15_116 = arith.constant 15 : index
    %c0_117 = arith.constant 0 : index
    %371 = vector.load %arg4[%c0_115, %c15_116, %c0_117] : memref<8x16x128xf32, #tpu.memory_space<vmem>>, vector<8x1x128xf32>
    %372 = vector.shape_cast %371 : vector<8x1x128xf32> to vector<8x128xf32>
    %373 = vector.shape_cast %370 : vector<8x128xf32> to vector<8x1x128xf32>
    tpu.vector_store %arg4[%c0_115, %c15_116, %c0_117], %373 {strides = array<i32>} : memref<8x16x128xf32, #tpu.memory_space<vmem>>, vector<8x1x128xf32>,
    %c0_118 = arith.constant 0 : index
    %c0_119 = arith.constant 0 : index
    %374 = vector.load %arg7[%c0_118, %c0_119] : memref<8x128xf32, #tpu.memory_space<vmem>>, vector<8x128xf32>
    tpu.vector_store %arg7[%c0_118, %c0_119], %370 {strides = array<i32>} : memref<8x128xf32, #tpu.memory_space<vmem>>, vector<8x128xf32>,
    %c0_120 = arith.constant 0 : index
    %c0_121 = arith.constant 0 : index
    %375 = vector.load %arg8[%c0_120, %c0_121] : memref<8x128xf32, #tpu.memory_space<vmem>>, vector<8x128xf32>
    tpu.vector_store %arg8[%c0_120, %c0_121], %368 {strides = array<i32>} : memref<8x128xf32, #tpu.memory_space<vmem>>, vector<8x128xf32>,
    %c0_i32_122 = arith.constant 0 : i32
    %376 = arith.cmpi eq, %arg1, %c0_i32_122 : i32
    %377 = arith.extui %376 : i1 to i32
    %c0_i32_123 = arith.constant 0 : i32
    %378 = arith.cmpi ne, %377, %c0_i32_123 : i32
    scf.if %378 {
      %c0_124 = arith.constant 0 : index
      %c0_125 = arith.constant 0 : index
      %379 = vector.load %arg5[%c0_124, %c0_125] : memref<8x128xf32, #tpu.memory_space<vmem>>, vector<8x128xf32>
      tpu.vector_store %arg5[%c0_124, %c0_125], %370 {strides = array<i32>} : memref<8x128xf32, #tpu.memory_space<vmem>>, vector<8x128xf32>,
      %c0_126 = arith.constant 0 : index
      %c0_127 = arith.constant 0 : index
      %380 = vector.load %arg6[%c0_126, %c0_127] : memref<8x128xf32, #tpu.memory_space<vmem>>, vector<8x128xf32>
      tpu.vector_store %arg6[%c0_126, %c0_127], %368 {strides = array<i32>} : memref<8x128xf32, #tpu.memory_space<vmem>>, vector<8x128xf32>,
    } else {
    }
    return
  }
  func.func @transform_0(%arg0: i32, %arg1: i32) -> (i32, i32, i32) {
    %c0_i32 = arith.constant 0 : i32
    %c0_i32_0 = arith.constant 0 : i32
    return %arg0, %arg1, %c0_i32 : i32, i32, i32
  }
  func.func @transform_1(%arg0: i32, %arg1: i32) -> (i32, i32) {
    %c0_i32 = arith.constant 0 : i32
    %c0_i32_0 = arith.constant 0 : i32
    %c0_i32_1 = arith.constant 0 : i32
    return %c0_i32, %c0_i32_0 : i32, i32
  }
  func.func @transform_2(%arg0: i32, %arg1: i32) -> (i32, i32, i32) {
    %c0_i32 = arith.constant 0 : i32
    %c0_i32_0 = arith.constant 0 : i32
    return %arg0, %arg1, %c0_i32 : i32, i32, i32
  }
  func.func @transform_3(%arg0: i32, %arg1: i32) -> (i32, i32) {
    %c0_i32 = arith.constant 0 : i32
    %c0_i32_0 = arith.constant 0 : i32
    return %arg0, %c0_i32 : i32, i32
  }
  func.func @transform_4(%arg0: i32, %arg1: i32) -> (i32, i32) {
    %c0_i32 = arith.constant 0 : i32
    %c0_i32_0 = arith.constant 0 : i32
    return %arg0, %c0_i32 : i32, i32
  }
}

</mosaic_0001>

<llo_original>
// kernel: lstm_forward.1
$region0: #{lstm_forward.1}
  #allocation0 [shape = 'u32[]', space=smem, size = 0x4, offset = 0x4, fixed_abs, tag = 'smem constant byte address 0x4 - core index']
  #allocation1 [shape = 'u32[72,128]{1,0:T(1,128)}', space=vmem, size = 0x9000, scoped, tag = 'internal scratch']
  #allocation2 [shape = 'f32[8,128]{1,0:T(8,128)}', space=vmem, size = 0x1000, scoped, tag = 'scratch operand']
  #allocation3 [shape = 'f32[8,128]{1,0:T(8,128)}', space=vmem, size = 0x1000, scoped, tag = 'scratch operand']
  %s0 = inlined_call_operand.vmem [shape: f32[8,16,512], index: 0, kind: input, shape index: {}]
  %s1 = inlined_call_operand.vmem [shape: f32[128,512], index: 1, kind: input, shape index: {}]
  %s2 = inlined_call_operand.hbm [shape: f32[8,16,128], index: 2, kind: output, shape index: {0}]
  %s3 = inlined_call_operand.vmem [shape: f32[8,128], index: 3, kind: output, shape index: {1}]
  %s4 = inlined_call_operand.vmem [shape: f32[8,128], index: 4, kind: output, shape index: {2}]
  %5 = xla_tuple %s2, %s3, %s4
  %s6 = sld [smem:[#allocation0]]
  $region42: #{lstm_forward.1} parent=0
    _
  %s8 = ssub.s32 1, %s6
  %s9 = scalar_select 0, %s8, %s6
  $region1: #{lstm_forward.1} parent=0
    #allocation4 [shape = 'u8[65536]{0}', space=vmem, size = 0x10000, scoped, tag = 'output window, operand 0, single buffered']
    #allocation5 [shape = 's32[1]{0}', space=sflag, size = 0x4, scoped, tag = 'scoped memory for lstm_forward.1']
    %10 = vsyncpa [#allocation5], 0
    // Predicated region
    $region2: #{lstm_forward.1} parent=1 // pred_check
      _
    $region3: #{lstm_forward.1} parent=1 // pred_check_branch
      %12 = sbr.rel (0) target = $region5
    $region4: #{lstm_forward.1} parent=1 // pred_region
      _
    $region5: #{lstm_forward.1} parent=1 // pred_fallthru
      _
    // Predicated region
    $region6: #{lstm_forward.1} parent=1 // pred_check
      _
    $region7: #{lstm_forward.1} parent=1 // pred_check_branch
      %14 = sbr.rel (0) target = $region9
    $region8: #{lstm_forward.1} parent=1 // pred_region
      _
    $region9: #{lstm_forward.1} parent=1 // pred_fallthru
      _
    %p15 = scmp.eq.s32.totalorder 0, 0
    // Predicated region
    $region10: #{lstm_forward.1} parent=1 // pred_check
      %p16 = pneg %p15
    $region11: #{lstm_forward.1} parent=1 // pred_check_branch
      %18 = sbr.rel (%p16) target = $region13
    $region12: #{lstm_forward.1} parent=1 // pred_region
      %19 = vst [vmem:[#allocation2] sm:$0xff] 0.0
      %20 = vst [vmem:[#allocation3] sm:$0xff] 0.0
    $region13: #{lstm_forward.1} parent=1 // pred_fallthru
      _
    %v21 = vld [vmem:[#allocation2] sm:$0xff]
    %v22 = vld [vmem:[#allocation3] sm:$0xff]
    %v23 = vld [vmem:[%s1] sm:$0xff]
    %v24 = vld [vmem:[%s1 + $0x8] sm:$0xff]
    %v25 = vld [vmem:[%s1 + $0x10] sm:$0xff]
    %v26 = vld [vmem:[%s1 + $0x18] sm:$0xff]
    %v27 = vld [vmem:[%s1 + $0x20] sm:$0xff]
    %v28 = vld [vmem:[%s1 + $0x28] sm:$0xff]
    %v29 = vld [vmem:[%s1 + $0x30] sm:$0xff]
    %v30 = vld [vmem:[%s1 + $0x38] sm:$0xff]
    %v31 = vld [vmem:[%s1 + $0x40] sm:$0xff]
    %v32 = vld [vmem:[%s1 + $0x48] sm:$0xff]
    %v33 = vld [vmem:[%s1 + $0x50] sm:$0xff]
    %v34 = vld [vmem:[%s1 + $0x58] sm:$0xff]
    %v35 = vld [vmem:[%s1 + $0x60] sm:$0xff]
    %v36 = vld [vmem:[%s1 + $0x68] sm:$0xff]
    %v37 = vld [vmem:[%s1 + $0x70] sm:$0xff]
    %v38 = vld [vmem:[%s1 + $0x78] sm:$0xff]
    %v39 = vld [vmem:[%s1 + $0x80] sm:$0xff]
    %v40 = vld [vmem:[%s1 + $0x88] sm:$0xff]
    %v41 = vld [vmem:[%s1 + $0x90] sm:$0xff]
    %v42 = vld [vmem:[%s1 + $0x98] sm:$0xff]
    %v43 = vld [vmem:[%s1 + $0xa0] sm:$0xff]
    %v44 = vld [vmem:[%s1 + $0xa8] sm:$0xff]
    %v45 = vld [vmem:[%s1 + $0xb0] sm:$0xff]
    %v46 = vld [vmem:[%s1 + $0xb8] sm:$0xff]
    %v47 = vld [vmem:[%s1 + $0xc0] sm:$0xff]
    %v48 = vld [vmem:[%s1 + $0xc8] sm:$0xff]
    %v49 = vld [vmem:[%s1 + $0xd0] sm:$0xff]
    %v50 = vld [vmem:[%s1 + $0xd8] sm:$0xff]
    %v51 = vld [vmem:[%s1 + $0xe0] sm:$0xff]
    %v52 = vld [vmem:[%s1 + $0xe8] sm:$0xff]
    %v53 = vld [vmem:[%s1 + $0xf0] sm:$0xff]
    %v54 = vld [vmem:[%s1 + $0xf8] sm:$0xff]
    %v55 = vld [vmem:[%s1 + $0x100] sm:$0xff]
    %v56 = vld [vmem:[%s1 + $0x108] sm:$0xff]
    %v57 = vld [vmem:[%s1 + $0x110] sm:$0xff]
    %v58 = vld [vmem:[%s1 + $0x118] sm:$0xff]
    %v59 = vld [vmem:[%s1 + $0x120] sm:$0xff]
    %v60 = vld [vmem:[%s1 + $0x128] sm:$0xff]
    %v61 = vld [vmem:[%s1 + $0x130] sm:$0xff]
    %v62 = vld [vmem:[%s1 + $0x138] sm:$0xff]
    %v63 = vld [vmem:[%s1 + $0x140] sm:$0xff]
    %v64 = vld [vmem:[%s1 + $0x148] sm:$0xff]
    %v65 = vld [vmem:[%s1 + $0x150] sm:$0xff]
    %v66 = vld [vmem:[%s1 + $0x158] sm:$0xff]
    %v67 = vld [vmem:[%s1 + $0x160] sm:$0xff]
    %v68 = vld [vmem:[%s1 + $0x168] sm:$0xff]
    %v69 = vld [vmem:[%s1 + $0x170] sm:$0xff]
    %v70 = vld [vmem:[%s1 + $0x178] sm:$0xff]
    %v71 = vld [vmem:[%s1 + $0x180] sm:$0xff]
    %v72 = vld [vmem:[%s1 + $0x188] sm:$0xff]
    %v73 = vld [vmem:[%s1 + $0x190] sm:$0xff]
    %v74 = vld [vmem:[%s1 + $0x198] sm:$0xff]
    %v75 = vld [vmem:[%s1 + $0x1a0] sm:$0xff]
    %v76 = vld [vmem:[%s1 + $0x1a8] sm:$0xff]
    %v77 = vld [vmem:[%s1 + $0x1b0] sm:$0xff]
    %v78 = vld [vmem:[%s1 + $0x1b8] sm:$0xff]
    %v79 = vld [vmem:[%s1 + $0x1c0] sm:$0xff]
    %v80 = vld [vmem:[%s1 + $0x1c8] sm:$0xff]
    %v81 = vld [vmem:[%s1 + $0x1d0] sm:$0xff]
    %v82 = vld [vmem:[%s1 + $0x1d8] sm:$0xff]
    %v83 = vld [vmem:[%s1 + $0x1e0] sm:$0xff]
    %v84 = vld [vmem:[%s1 + $0x1e8] sm:$0xff]
    %v85 = vld [vmem:[%s1 + $0x1f0] sm:$0xff]
    %v86 = vld [vmem:[%s1 + $0x1f8] sm:$0xff]
    %v87 = vld [vmem:[%s0] ss:$8 sm:$0xf]
    %s88 = scalar_lea.vmem %s0, 64
    %v89 = vld [vmem:[%s88] ss:$8 sm:$0xf]
    %s90 = scalar_lea.vmem %s0, 128
    %v91 = vld [vmem:[%s90] ss:$8 sm:$0xf]
    %s92 = scalar_lea.vmem %s0, 192
    %v93 = vld [vmem:[%s92] ss:$8 sm:$0xf]
    %s94 = scalar_lea.vmem %s0, 256
    %v95 = vld [vmem:[%s94] ss:$8 sm:$0xf]
    %s96 = scalar_lea.vmem %s0, 320
    %v97 = vld [vmem:[%s96] ss:$8 sm:$0xf]
    %s98 = scalar_lea.vmem %s0, 384
    %v99 = vld [vmem:[%s98] ss:$8 sm:$0xf]
    %s100 = scalar_lea.vmem %s0, 448
    %v101 = vld [vmem:[%s100] ss:$8 sm:$0xf]
    %110 = vst [vmem:[#allocation1] ss:$9 sm:$0xff] %v87
    %s111 = scalar_lea.vmem [#allocation1], 1
    %112 = vst [vmem:[%s111] ss:$9 sm:$0xff] %v89
    %s113 = scalar_lea.vmem [#allocation1], 2
    %114 = vst [vmem:[%s113] ss:$9 sm:$0xff] %v91
    %s115 = scalar_lea.vmem [#allocation1], 3
    %116 = vst [vmem:[%s115] ss:$9 sm:$0xff] %v93
    %s117 = scalar_lea.vmem [#allocation1], 4
    %118 = vst [vmem:[%s117] ss:$9 sm:$0xff] %v95
    %s119 = scalar_lea.vmem [#allocation1], 5
    %120 = vst [vmem:[%s119] ss:$9 sm:$0xff] %v97
    %s121 = scalar_lea.vmem [#allocation1], 6
    %122 = vst [vmem:[%s121] ss:$9 sm:$0xff] %v99
    %s123 = scalar_lea.vmem [#allocation1], 7
    %124 = vst [vmem:[%s123] ss:$9 sm:$0xff] %v101
    %v125 = vld [vmem:[#allocation1] sm:$0xff]
    %v126 = vld [vmem:[#allocation1 + $0x9] sm:$0xff]
    %v127 = vld [vmem:[#allocation1 + $0x12] sm:$0xff]
    %v128 = vld [vmem:[#allocation1 + $0x1b] sm:$0xff]
    %133 = vmatpush.msra.mxu0 %v83
    %134 = vmatpush.msra.mxu0 %v79
    %135 = vmatpush.msra.mxu0 %v75
    %136 = vmatpush.msra.mxu0 %v71
    %137 = vmatpush.msra.mxu0 %v67
    %138 = vmatpush.msra.mxu0 %v63
    %139 = vmatpush.msra.mxu0 %v59
    %140 = vmatpush.msra.mxu0 %v55
    %141 = vmatpush.msra.mxu0 %v51
    %142 = vmatpush.msra.mxu0 %v47
    %143 = vmatpush.msra.mxu0 %v43
    %144 = vmatpush.msra.mxu0 %v39
    %145 = vmatpush.msra.mxu0 %v35
    %146 = vmatpush.msra.mxu0 %v31
    %147 = vmatpush.msra.mxu0 %v27
    %148 = vmatpush.msra.mxu0 %v23
    %149 = vmatmul.f32.gmra.mxu0 %v21
    %v150 = vpop.f32.mrf.mxu0
    %v151 = vadd.f32 %v125, %v150
    %152 = vdwg.mxu0
    %153 = vmatpush.msra.mxu0 %v84
    %154 = vmatpush.msra.mxu0 %v80
    %155 = vmatpush.msra.mxu0 %v76
    %156 = vmatpush.msra.mxu0 %v72
    %157 = vmatpush.msra.mxu0 %v68
    %158 = vmatpush.msra.mxu0 %v64
    %159 = vmatpush.msra.mxu0 %v60
    %160 = vmatpush.msra.mxu0 %v56
    %161 = vmatpush.msra.mxu0 %v52
    %162 = vmatpush.msra.mxu0 %v48
    %163 = vmatpush.msra.mxu0 %v44
    %164 = vmatpush.msra.mxu0 %v40
    %165 = vmatpush.msra.mxu0 %v36
    %166 = vmatpush.msra.mxu0 %v32
    %167 = vmatpush.msra.mxu0 %v28
    %168 = vmatpush.msra.mxu0 %v24
    %169 = vmatmul.f32.gmra.mxu0 %v21
    %v170 = vpop.f32.mrf.mxu0
    %v171 = vadd.f32 %v126, %v170
    %172 = vdwg.mxu0
    %173 = vmatpush.msra.mxu0 %v85
    %174 = vmatpush.msra.mxu0 %v81
    %175 = vmatpush.msra.mxu0 %v77
    %176 = vmatpush.msra.mxu0 %v73
    %177 = vmatpush.msra.mxu0 %v69
    %178 = vmatpush.msra.mxu0 %v65
    %179 = vmatpush.msra.mxu0 %v61
    %180 = vmatpush.msra.mxu0 %v57
    %181 = vmatpush.msra.mxu0 %v53
    %182 = vmatpush.msra.mxu0 %v49
    %183 = vmatpush.msra.mxu0 %v45
    %184 = vmatpush.msra.mxu0 %v41
    %185 = vmatpush.msra.mxu0 %v37
    %186 = vmatpush.msra.mxu0 %v33
    %187 = vmatpush.msra.mxu0 %v29
    %188 = vmatpush.msra.mxu0 %v25
    %189 = vmatmul.f32.gmra.mxu0 %v21
    %v190 = vpop.f32.mrf.mxu0
    %v191 = vadd.f32 %v127, %v190
    %192 = vdwg.mxu0
    %193 = vmatpush.msra.mxu0 %v86
    %194 = vmatpush.msra.mxu0 %v82
    %195 = vmatpush.msra.mxu0 %v78
    %196 = vmatpush.msra.mxu0 %v74
    %197 = vmatpush.msra.mxu0 %v70
    %198 = vmatpush.msra.mxu0 %v66
    %199 = vmatpush.msra.mxu0 %v62
    %200 = vmatpush.msra.mxu0 %v58
    %201 = vmatpush.msra.mxu0 %v54
    %202 = vmatpush.msra.mxu0 %v50
    %203 = vmatpush.msra.mxu0 %v46
    %204 = vmatpush.msra.mxu0 %v42
    %205 = vmatpush.msra.mxu0 %v38
    %206 = vmatpush.msra.mxu0 %v34
    %207 = vmatpush.msra.mxu0 %v30
    %208 = vmatpush.msra.mxu0 %v26
    %209 = vmatmul.f32.gmra.mxu0 %v21
    %v210 = vpop.f32.mrf.mxu0
    %v211 = vadd.f32 %v128, %v210
    %212 = vdwg.mxu0
    %v213 = vxor.u32 %v151, 2147483648
    %v214 = vxor.u32 %v171, 2147483648
    %v215 = vxor.u32 %v191, 2147483648
    %v216 = vmul.f32 %v213, 1.442695
    %v217 = vpow.pop %v216
    %v218 = vmul.f32 %v214, 1.442695
    %v219 = vpow.pop %v218
    %v220 = vmul.f32 %v215, 1.442695
    %v221 = vpow.pop %v220
    %v222 = vadd.f32 %v217, 1.0
    %v223 = vadd.f32 %v219, 1.0
    %v224 = vadd.f32 %v221, 1.0
    %v225 = vrcp.pop %v222
    %v226 = vmul.f32 %v222, %v225
    %v227 = vsub.f32 1.0, %v226
    %v228 = vmul.f32 %v225, %v227
    %v229 = vadd.f32 %v225, %v228
    %vm230 = vweird.f32 %v222
    %vm231 = vweird.f32 %v225
    %vm232 = vmor %vm230, %vm231
    %v233 = vsel %vm232, %v225, %v229
    %v234 = vand.u32 2147483647, %v222
    %vm235 = vcmp.eq.f32.partialorder %v234, 8.507059e+37
    %v236 = vand.u32 %v222, 2147483648
    %v237 = vor.u32 1.1754944e-38, %v236
    %v238 = vsel %vm235, %v237, %v233
    %v239 = vmul.f32 1.0, %v238
    %v240 = vrcp.pop %v223
    %v241 = vmul.f32 %v223, %v240
    %v242 = vsub.f32 1.0, %v241
    %v243 = vmul.f32 %v240, %v242
    %v244 = vadd.f32 %v240, %v243
    %vm245 = vweird.f32 %v223
    %vm246 = vweird.f32 %v240
    %vm247 = vmor %vm245, %vm246
    %v248 = vsel %vm247, %v240, %v244
    %v249 = vand.u32 2147483647, %v223
    %vm250 = vcmp.eq.f32.partialorder %v249, 8.507059e+37
    %v251 = vand.u32 %v223, 2147483648
    %v252 = vor.u32 1.1754944e-38, %v251
    %v253 = vsel %vm250, %v252, %v248
    %v254 = vmul.f32 1.0, %v253
    %v255 = vrcp.pop %v224
    %v256 = vmul.f32 %v224, %v255
    %v257 = vsub.f32 1.0, %v256
    %v258 = vmul.f32 %v255, %v257
    %v259 = vadd.f32 %v255, %v258
    %vm260 = vweird.f32 %v224
    %vm261 = vweird.f32 %v255
    %vm262 = vmor %vm260, %vm261
    %v263 = vsel %vm262, %v255, %v259
    %v264 = vand.u32 2147483647, %v224
    %vm265 = vcmp.eq.f32.partialorder %v264, 8.507059e+37
    %v266 = vand.u32 %v224, 2147483648
    %v267 = vor.u32 1.1754944e-38, %v266
    %v268 = vsel %vm265, %v267, %v263
    %v269 = vmul.f32 1.0, %v268
    %v270 = vtanh.pop %v211
    %v271 = vmul.f32 %v254, %v22
    %v272 = vmul.f32 %v239, %v270
    %v273 = vadd.f32 %v271, %v272
    %v274 = vtanh.pop %v273
    %v275 = vmul.f32 %v269, %v274
    %v277 = vrot.slane %v275, 1
    %v278 = vrot.slane %v275, 2
    %v279 = vrot.slane %v275, 3
    %v280 = vrot.slane %v275, 4
    %v281 = vrot.slane %v275, 5
    %v282 = vrot.slane %v275, 6
    %v283 = vrot.slane %v275, 7
    %291 = vst [vmem:[#allocation4] sm:$0x1] %v275
    %292 = vst [vmem:[#allocation4 + $0x10] sm:$0x1] %v277
    %293 = vst [vmem:[#allocation4 + $0x20] sm:$0x1] %v278
    %294 = vst [vmem:[#allocation4 + $0x30] sm:$0x1] %v279
    %295 = vst [vmem:[#allocation4 + $0x40] sm:$0x1] %v280
    %296 = vst [vmem:[#allocation4 + $0x50] sm:$0x1] %v281
    %297 = vst [vmem:[#allocation4 + $0x60] sm:$0x1] %v282
    %298 = vst [vmem:[#allocation4 + $0x70] sm:$0x1] %v283
    %s299 = scalar_lea.vmem %s0, 1
    %v300 = vld [vmem:[%s299] ss:$8 sm:$0xf]
    %s301 = scalar_lea.vmem %s0, 65
    %v302 = vld [vmem:[%s301] ss:$8 sm:$0xf]
    %s303 = scalar_lea.vmem %s0, 129
    %v304 = vld [vmem:[%s303] ss:$8 sm:$0xf]
    %s305 = scalar_lea.vmem %s0, 193
    %v306 = vld [vmem:[%s305] ss:$8 sm:$0xf]
    %s307 = scalar_lea.vmem %s0, 257
    %v308 = vld [vmem:[%s307] ss:$8 sm:$0xf]
    %s309 = scalar_lea.vmem %s0, 321
    %v310 = vld [vmem:[%s309] ss:$8 sm:$0xf]
    %s311 = scalar_lea.vmem %s0, 385
    %v312 = vld [vmem:[%s311] ss:$8 sm:$0xf]
    %s313 = scalar_lea.vmem %s0, 449
    %v314 = vld [vmem:[%s313] ss:$8 sm:$0xf]
    %323 = vst [vmem:[#allocation1] ss:$9 sm:$0xff] %v300
    %s324 = scalar_lea.vmem [#allocation1], 1
    %325 = vst [vmem:[%s324] ss:$9 sm:$0xff] %v302
    %s326 = scalar_lea.vmem [#allocation1], 2
    %327 = vst [vmem:[%s326] ss:$9 sm:$0xff] %v304
    %s328 = scalar_lea.vmem [#allocation1], 3
    %329 = vst [vmem:[%s328] ss:$9 sm:$0xff] %v306
    %s330 = scalar_lea.vmem [#allocation1], 4
    %331 = vst [vmem:[%s330] ss:$9 sm:$0xff] %v308
    %s332 = scalar_lea.vmem [#allocation1], 5
    %333 = vst [vmem:[%s332] ss:$9 sm:$0xff] %v310
    %s334 = scalar_lea.vmem [#allocation1], 6
    %335 = vst [vmem:[%s334] ss:$9 sm:$0xff] %v312
    %s336 = scalar_lea.vmem [#allocation1], 7
    %337 = vst [vmem:[%s336] ss:$9 sm:$0xff] %v314
    %v338 = vld [vmem:[#allocation1] sm:$0xff]
    %v339 = vld [vmem:[#allocation1 + $0x9] sm:$0xff]
    %v340 = vld [vmem:[#allocation1 + $0x12] sm:$0xff]
    %v341 = vld [vmem:[#allocation1 + $0x1b] sm:$0xff]
    %346 = vmatpush.msra.mxu0 %v83
    %347 = vmatpush.msra.mxu0 %v79
    %348 = vmatpush.msra.mxu0 %v75
    %349 = vmatpush.msra.mxu0 %v71
    %350 = vmatpush.msra.mxu0 %v67
    %351 = vmatpush.msra.mxu0 %v63
    %352 = vmatpush.msra.mxu0 %v59
    %353 = vmatpush.msra.mxu0 %v55
    %354 = vmatpush.msra.mxu0 %v51
    %355 = vmatpush.msra.mxu0 %v47
    %356 = vmatpush.msra.mxu0 %v43
    %357 = vmatpush.msra.mxu0 %v39
    %358 = vmatpush.msra.mxu0 %v35
    %359 = vmatpush.msra.mxu0 %v31
    %360 = vmatpush.msra.mxu0 %v27
    %361 = vmatpush.msra.mxu0 %v23
    %362 = vmatmul.f32.gmra.mxu0 %v275
    %v363 = vpop.f32.mrf.mxu0
    %v364 = vadd.f32 %v338, %v363
    %365 = vdwg.mxu0
    %366 = vmatpush.msra.mxu0 %v84
    %367 = vmatpush.msra.mxu0 %v80
    %368 = vmatpush.msra.mxu0 %v76
    %369 = vmatpush.msra.mxu0 %v72
    %370 = vmatpush.msra.mxu0 %v68
    %371 = vmatpush.msra.mxu0 %v64
    %372 = vmatpush.msra.mxu0 %v60
    %373 = vmatpush.msra.mxu0 %v56
    %374 = vmatpush.msra.mxu0 %v52
    %375 = vmatpush.msra.mxu0 %v48
    %376 = vmatpush.msra.mxu0 %v44
    %377 = vmatpush.msra.mxu0 %v40
    %378 = vmatpush.msra.mxu0 %v36
    %379 = vmatpush.msra.mxu0 %v32
    %380 = vmatpush.msra.mxu0 %v28
    %381 = vmatpush.msra.mxu0 %v24
    %382 = vmatmul.f32.gmra.mxu0 %v275
    %v383 = vpop.f32.mrf.mxu0
    %v384 = vadd.f32 %v339, %v383
    %385 = vdwg.mxu0
    %386 = vmatpush.msra.mxu0 %v85
    %387 = vmatpush.msra.mxu0 %v81
    %388 = vmatpush.msra.mxu0 %v77
    %389 = vmatpush.msra.mxu0 %v73
    %390 = vmatpush.msra.mxu0 %v69
    %391 = vmatpush.msra.mxu0 %v65
    %392 = vmatpush.msra.mxu0 %v61
    %393 = vmatpush.msra.mxu0 %v57
    %394 = vmatpush.msra.mxu0 %v53
    %395 = vmatpush.msra.mxu0 %v49
    %396 = vmatpush.msra.mxu0 %v45
    %397 = vmatpush.msra.mxu0 %v41
    %398 = vmatpush.msra.mxu0 %v37
    %399 = vmatpush.msra.mxu0 %v33
    %400 = vmatpush.msra.mxu0 %v29
    %401 = vmatpush.msra.mxu0 %v25
    %402 = vmatmul.f32.gmra.mxu0 %v275
    %v403 = vpop.f32.mrf.mxu0
    %v404 = vadd.f32 %v340, %v403
    %405 = vdwg.mxu0
    %406 = vmatpush.msra.mxu0 %v86
    %407 = vmatpush.msra.mxu0 %v82
    %408 = vmatpush.msra.mxu0 %v78
    %409 = vmatpush.msra.mxu0 %v74
    %410 = vmatpush.msra.mxu0 %v70
    %411 = vmatpush.msra.mxu0 %v66
    %412 = vmatpush.msra.mxu0 %v62
    %413 = vmatpush.msra.mxu0 %v58
    %414 = vmatpush.msra.mxu0 %v54
    %415 = vmatpush.msra.mxu0 %v50
    %416 = vmatpush.msra.mxu0 %v46
    %417 = vmatpush.msra.mxu0 %v42
    %418 = vmatpush.msra.mxu0 %v38
    %419 = vmatpush.msra.mxu0 %v34
    %420 = vmatpush.msra.mxu0 %v30
    %421 = vmatpush.msra.mxu0 %v26
    %422 = vmatmul.f32.gmra.mxu0 %v275
    %v423 = vpop.f32.mrf.mxu0
    %v424 = vadd.f32 %v341, %v423
    %425 = vdwg.mxu0
    %v426 = vxor.u32 %v364, 2147483648
    %v427 = vxor.u32 %v384, 2147483648
    %v428 = vxor.u32 %v404, 2147483648
    %v429 = vmul.f32 %v426, 1.442695
    %v430 = vpow.pop %v429
    %v431 = vmul.f32 %v427, 1.442695
    %v432 = vpow.pop %v431
    %v433 = vmul.f32 %v428, 1.442695
    %v434 = vpow.pop %v433
    %v435 = vadd.f32 %v430, 1.0
    %v436 = vadd.f32 %v432, 1.0
    %v437 = vadd.f32 %v434, 1.0
    %v438 = vrcp.pop %v435
    %v439 = vmul.f32 %v435, %v438
    %v440 = vsub.f32 1.0, %v439
    %v441 = vmul.f32 %v438, %v440
    %v442 = vadd.f32 %v438, %v441
    %vm443 = vweird.f32 %v435
    %vm444 = vweird.f32 %v438
    %vm445 = vmor %vm443, %vm444
    %v446 = vsel %vm445, %v438, %v442
    %v447 = vand.u32 2147483647, %v435
    %vm448 = vcmp.eq.f32.partialorder %v447, 8.507059e+37
    %v449 = vand.u32 %v435, 2147483648
    %v450 = vor.u32 1.1754944e-38, %v449
    %v451 = vsel %vm448, %v450, %v446
    %v452 = vmul.f32 1.0, %v451
    %v453 = vrcp.pop %v436
    %v454 = vmul.f32 %v436, %v453
    %v455 = vsub.f32 1.0, %v454
    %v456 = vmul.f32 %v453, %v455
    %v457 = vadd.f32 %v453, %v456
    %vm458 = vweird.f32 %v436
    %vm459 = vweird.f32 %v453
    %vm460 = vmor %vm458, %vm459
    %v461 = vsel %vm460, %v453, %v457
    %v462 = vand.u32 2147483647, %v436
    %vm463 = vcmp.eq.f32.partialorder %v462, 8.507059e+37
    %v464 = vand.u32 %v436, 2147483648
    %v465 = vor.u32 1.1754944e-38, %v464
    %v466 = vsel %vm463, %v465, %v461
    %v467 = vmul.f32 1.0, %v466
    %v468 = vrcp.pop %v437
    %v469 = vmul.f32 %v437, %v468
    %v470 = vsub.f32 1.0, %v469
    %v471 = vmul.f32 %v468, %v470
    %v472 = vadd.f32 %v468, %v471
    %vm473 = vweird.f32 %v437
    %vm474 = vweird.f32 %v468
    %vm475 = vmor %vm473, %vm474
    %v476 = vsel %vm475, %v468, %v472
    %v477 = vand.u32 2147483647, %v437
    %vm478 = vcmp.eq.f32.partialorder %v477, 8.507059e+37
    %v479 = vand.u32 %v437, 2147483648
    %v480 = vor.u32 1.1754944e-38, %v479
    %v481 = vsel %vm478, %v480, %v476
    %v482 = vmul.f32 1.0, %v481
    %v483 = vtanh.pop %v424
    %v484 = vmul.f32 %v467, %v273
    %v485 = vmul.f32 %v452, %v483
    %v486 = vadd.f32 %v484, %v485
    %v487 = vtanh.pop %v486
    %v488 = vmul.f32 %v482, %v487
    %v490 = vrot.slane %v488, 1
    %v491 = vrot.slane %v488, 2
    %v492 = vrot.slane %v488, 3
    %v493 = vrot.slane %v488, 4
    %v494 = vrot.slane %v488, 5
    %v495 = vrot.slane %v488, 6
    %v496 = vrot.slane %v488, 7
    %504 = vst [vmem:[#allocation4 + $0x1] sm:$0x1] %v488
    %505 = vst [vmem:[#allocation4 + $0x11] sm:$0x1] %v490
    %506 = vst [vmem:[#allocation4 + $0x21] sm:$0x1] %v491
    %507 = vst [vmem:[#allocation4 + $0x31] sm:$0x1] %v492
    %508 = vst [vmem:[#allocation4 + $0x41] sm:$0x1] %v493
    %509 = vst [vmem:[#allocation4 + $0x51] sm:$0x1] %v494
    %510 = vst [vmem:[#allocation4 + $0x61] sm:$0x1] %v495
    %511 = vst [vmem:[#allocation4 + $0x71] sm:$0x1] %v496
    %s512 = scalar_lea.vmem %s0, 2
    %v513 = vld [vmem:[%s512] ss:$8 sm:$0xf]
    %s514 = scalar_lea.vmem %s0, 66
    %v515 = vld [vmem:[%s514] ss:$8 sm:$0xf]
    %s516 = scalar_lea.vmem %s0, 130
    %v517 = vld [vmem:[%s516] ss:$8 sm:$0xf]
    %s518 = scalar_lea.vmem %s0, 194
    %v519 = vld [vmem:[%s518] ss:$8 sm:$0xf]
    %s520 = scalar_lea.vmem %s0, 258
    %v521 = vld [vmem:[%s520] ss:$8 sm:$0xf]
    %s522 = scalar_lea.vmem %s0, 322
    %v523 = vld [vmem:[%s522] ss:$8 sm:$0xf]
    %s524 = scalar_lea.vmem %s0, 386
    %v525 = vld [vmem:[%s524] ss:$8 sm:$0xf]
    %s526 = scalar_lea.vmem %s0, 450
    %v527 = vld [vmem:[%s526] ss:$8 sm:$0xf]
    %536 = vst [vmem:[#allocation1] ss:$9 sm:$0xff] %v513
    %s537 = scalar_lea.vmem [#allocation1], 1
    %538 = vst [vmem:[%s537] ss:$9 sm:$0xff] %v515
    %s539 = scalar_lea.vmem [#allocation1], 2
    %540 = vst [vmem:[%s539] ss:$9 sm:$0xff] %v517
    %s541 = scalar_lea.vmem [#allocation1], 3
    %542 = vst [vmem:[%s541] ss:$9 sm:$0xff] %v519
    %s543 = scalar_lea.vmem [#allocation1], 4
    %544 = vst [vmem:[%s543] ss:$9 sm:$0xff] %v521
    %s545 = scalar_lea.vmem [#allocation1], 5
    %546 = vst [vmem:[%s545] ss:$9 sm:$0xff] %v523
    %s547 = scalar_lea.vmem [#allocation1], 6
    %548 = vst [vmem:[%s547] ss:$9 sm:$0xff] %v525
    %s549 = scalar_lea.vmem [#allocation1], 7
    %550 = vst [vmem:[%s549] ss:$9 sm:$0xff] %v527
    %v551 = vld [vmem:[#allocation1] sm:$0xff]
    %v552 = vld [vmem:[#allocation1 + $0x9] sm:$0xff]
    %v553 = vld [vmem:[#allocation1 + $0x12] sm:$0xff]
    %v554 = vld [vmem:[#allocation1 + $0x1b] sm:$0xff]
    %559 = vmatpush.msra.mxu0 %v83
    %560 = vmatpush.msra.mxu0 %v79
    %561 = vmatpush.msra.mxu0 %v75
    %562 = vmatpush.msra.mxu0 %v71
    %563 = vmatpush.msra.mxu0 %v67
    %564 = vmatpush.msra.mxu0 %v63
    %565 = vmatpush.msra.mxu0 %v59
    %566 = vmatpush.msra.mxu0 %v55
    %567 = vmatpush.msra.mxu0 %v51
    %568 = vmatpush.msra.mxu0 %v47
    %569 = vmatpush.msra.mxu0 %v43
    %570 = vmatpush.msra.mxu0 %v39
    %571 = vmatpush.msra.mxu0 %v35
    %572 = vmatpush.msra.mxu0 %v31
    %573 = vmatpush.msra.mxu0 %v27
    %574 = vmatpush.msra.mxu0 %v23
    %575 = vmatmul.f32.gmra.mxu0 %v488
    %v576 = vpop.f32.mrf.mxu0
    %v577 = vadd.f32 %v551, %v576
    %578 = vdwg.mxu0
    %579 = vmatpush.msra.mxu0 %v84
    %580 = vmatpush.msra.mxu0 %v80
    %581 = vmatpush.msra.mxu0 %v76
    %582 = vmatpush.msra.mxu0 %v72
    %583 = vmatpush.msra.mxu0 %v68
    %584 = vmatpush.msra.mxu0 %v64
    %585 = vmatpush.msra.mxu0 %v60
    %586 = vmatpush.msra.mxu0 %v56
    %587 = vmatpush.msra.mxu0 %v52
    %588 = vmatpush.msra.mxu0 %v48
    %589 = vmatpush.msra.mxu0 %v44
    %590 = vmatpush.msra.mxu0 %v40
    %591 = vmatpush.msra.mxu0 %v36
    %592 = vmatpush.msra.mxu0 %v32
    %593 = vmatpush.msra.mxu0 %v28
    %594 = vmatpush.msra.mxu0 %v24
    %595 = vmatmul.f32.gmra.mxu0 %v488
    %v596 = vpop.f32.mrf.mxu0
    %v597 = vadd.f32 %v552, %v596
    %598 = vdwg.mxu0
    %599 = vmatpush.msra.mxu0 %v85
    %600 = vmatpush.msra.mxu0 %v81
    %601 = vmatpush.msra.mxu0 %v77
    %602 = vmatpush.msra.mxu0 %v73
    %603 = vmatpush.msra.mxu0 %v69
    %604 = vmatpush.msra.mxu0 %v65
    %605 = vmatpush.msra.mxu0 %v61
    %606 = vmatpush.msra.mxu0 %v57
    %607 = vmatpush.msra.mxu0 %v53
    %608 = vmatpush.msra.mxu0 %v49
    %609 = vmatpush.msra.mxu0 %v45
    %610 = vmatpush.msra.mxu0 %v41
    %611 = vmatpush.msra.mxu0 %v37
    %612 = vmatpush.msra.mxu0 %v33
    %613 = vmatpush.msra.mxu0 %v29
    %614 = vmatpush.msra.mxu0 %v25
    %615 = vmatmul.f32.gmra.mxu0 %v488
    %v616 = vpop.f32.mrf.mxu0
    %v617 = vadd.f32 %v553, %v616
    %618 = vdwg.mxu0
    %619 = vmatpush.msra.mxu0 %v86
    %620 = vmatpush.msra.mxu0 %v82
    %621 = vmatpush.msra.mxu0 %v78
    %622 = vmatpush.msra.mxu0 %v74
    %623 = vmatpush.msra.mxu0 %v70
    %624 = vmatpush.msra.mxu0 %v66
    %625 = vmatpush.msra.mxu0 %v62
    %626 = vmatpush.msra.mxu0 %v58
    %627 = vmatpush.msra.mxu0 %v54
    %628 = vmatpush.msra.mxu0 %v50
    %629 = vmatpush.msra.mxu0 %v46
    %630 = vmatpush.msra.mxu0 %v42
    %631 = vmatpush.msra.mxu0 %v38
    %632 = vmatpush.msra.mxu0 %v34
    %633 = vmatpush.msra.mxu0 %v30
    %634 = vmatpush.msra.mxu0 %v26
    %635 = vmatmul.f32.gmra.mxu0 %v488
    %v636 = vpop.f32.mrf.mxu0
    %v637 = vadd.f32 %v554, %v636
    %638 = vdwg.mxu0
    %v639 = vxor.u32 %v577, 2147483648
    %v640 = vxor.u32 %v597, 2147483648
    %v641 = vxor.u32 %v617, 2147483648
    %v642 = vmul.f32 %v639, 1.442695
    %v643 = vpow.pop %v642
    %v644 = vmul.f32 %v640, 1.442695
    %v645 = vpow.pop %v644
    %v646 = vmul.f32 %v641, 1.442695
    %v647 = vpow.pop %v646
    %v648 = vadd.f32 %v643, 1.0
    %v649 = vadd.f32 %v645, 1.0
    %v650 = vadd.f32 %v647, 1.0
    %v651 = vrcp.pop %v648
    %v652 = vmul.f32 %v648, %v651
    %v653 = vsub.f32 1.0, %v652
    %v654 = vmul.f32 %v651, %v653
    %v655 = vadd.f32 %v651, %v654
    %vm656 = vweird.f32 %v648
    %vm657 = vweird.f32 %v651
    %vm658 = vmor %vm656, %vm657
    %v659 = vsel %vm658, %v651, %v655
    %v660 = vand.u32 2147483647, %v648
    %vm661 = vcmp.eq.f32.partialorder %v660, 8.507059e+37
    %v662 = vand.u32 %v648, 2147483648
    %v663 = vor.u32 1.1754944e-38, %v662
    %v664 = vsel %vm661, %v663, %v659
    %v665 = vmul.f32 1.0, %v664
    %v666 = vrcp.pop %v649
    %v667 = vmul.f32 %v649, %v666
    %v668 = vsub.f32 1.0, %v667
    %v669 = vmul.f32 %v666, %v668
    %v670 = vadd.f32 %v666, %v669
    %vm671 = vweird.f32 %v649
    %vm672 = vweird.f32 %v666
    %vm673 = vmor %vm671, %vm672
    %v674 = vsel %vm673, %v666, %v670
    %v675 = vand.u32 2147483647, %v649
    %vm676 = vcmp.eq.f32.partialorder %v675, 8.507059e+37
    %v677 = vand.u32 %v649, 2147483648
    %v678 = vor.u32 1.1754944e-38, %v677
    %v679 = vsel %vm676, %v678, %v674
    %v680 = vmul.f32 1.0, %v679
    %v681 = vrcp.pop %v650
    %v682 = vmul.f32 %v650, %v681
    %v683 = vsub.f32 1.0, %v682
    %v684 = vmul.f32 %v681, %v683
    %v685 = vadd.f32 %v681, %v684
    %vm686 = vweird.f32 %v650
    %vm687 = vweird.f32 %v681
    %vm688 = vmor %vm686, %vm687
    %v689 = vsel %vm688, %v681, %v685
    %v690 = vand.u32 2147483647, %v650
    %vm691 = vcmp.eq.f32.partialorder %v690, 8.507059e+37
    %v692 = vand.u32 %v650, 2147483648
    %v693 = vor.u32 1.1754944e-38, %v692
    %v694 = vsel %vm691, %v693, %v689
    %v695 = vmul.f32 1.0, %v694
    %v696 = vtanh.pop %v637
    %v697 = vmul.f32 %v680, %v486
    %v698 = vmul.f32 %v665, %v696
    %v699 = vadd.f32 %v697, %v698
    %v700 = vtanh.pop %v699
    %v701 = vmul.f32 %v695, %v700
    %v703 = vrot.slane %v701, 1
    %v704 = vrot.slane %v701, 2
    %v705 = vrot.slane %v701, 3
    %v706 = vrot.slane %v701, 4
    %v707 = vrot.slane %v701, 5
    %v708 = vrot.slane %v701, 6
    %v709 = vrot.slane %v701, 7
    %717 = vst [vmem:[#allocation4 + $0x2] sm:$0x1] %v701
    %718 = vst [vmem:[#allocation4 + $0x12] sm:$0x1] %v703
    %719 = vst [vmem:[#allocation4 + $0x22] sm:$0x1] %v704
    %720 = vst [vmem:[#allocation4 + $0x32] sm:$0x1] %v705
    %721 = vst [vmem:[#allocation4 + $0x42] sm:$0x1] %v706
    %722 = vst [vmem:[#allocation4 + $0x52] sm:$0x1] %v707
    %723 = vst [vmem:[#allocation4 + $0x62] sm:$0x1] %v708
    %724 = vst [vmem:[#allocation4 + $0x72] sm:$0x1] %v709
    %s725 = scalar_lea.vmem %s0, 3
    %v726 = vld [vmem:[%s725] ss:$8 sm:$0xf]
    %s727 = scalar_lea.vmem %s0, 67
    %v728 = vld [vmem:[%s727] ss:$8 sm:$0xf]
    %s729 = scalar_lea.vmem %s0, 131
    %v730 = vld [vmem:[%s729] ss:$8 sm:$0xf]
    %s731 = scalar_lea.vmem %s0, 195
    %v732 = vld [vmem:[%s731] ss:$8 sm:$0xf]
    %s733 = scalar_lea.vmem %s0, 259
    %v734 = vld [vmem:[%s733] ss:$8 sm:$0xf]
    %s735 = scalar_lea.vmem %s0, 323
    %v736 = vld [vmem:[%s735] ss:$8 sm:$0xf]
    %s737 = scalar_lea.vmem %s0, 387
    %v738 = vld [vmem:[%s737] ss:$8 sm:$0xf]
    %s739 = scalar_lea.vmem %s0, 451
    %v740 = vld [vmem:[%s739] ss:$8 sm:$0xf]
    %749 = vst [vmem:[#allocation1] ss:$9 sm:$0xff] %v726
    %s750 = scalar_lea.vmem [#allocation1], 1
    %751 = vst [vmem:[%s750] ss:$9 sm:$0xff] %v728
    %s752 = scalar_lea.vmem [#allocation1], 2
    %753 = vst [vmem:[%s752] ss:$9 sm:$0xff] %v730
    %s754 = scalar_lea.vmem [#allocation1], 3
    %755 = vst [vmem:[%s754] ss:$9 sm:$0xff] %v732
    %s756 = scalar_lea.vmem [#allocation1], 4
    %757 = vst [vmem:[%s756] ss:$9 sm:$0xff] %v734
    %s758 = scalar_lea.vmem [#allocation1], 5
    %759 = vst [vmem:[%s758] ss:$9 sm:$0xff] %v736
    %s760 = scalar_lea.vmem [#allocation1], 6
    %761 = vst [vmem:[%s760] ss:$9 sm:$0xff] %v738
    %s762 = scalar_lea.vmem [#allocation1], 7
    %763 = vst [vmem:[%s762] ss:$9 sm:$0xff] %v740
    %v764 = vld [vmem:[#allocation1] sm:$0xff]
    %v765 = vld [vmem:[#allocation1 + $0x9] sm:$0xff]
    %v766 = vld [vmem:[#allocation1 + $0x12] sm:$0xff]
    %v767 = vld [vmem:[#allocation1 + $0x1b] sm:$0xff]
    %772 = vmatpush.msra.mxu0 %v83
    %773 = vmatpush.msra.mxu0 %v79
    %774 = vmatpush.msra.mxu0 %v75
    %775 = vmatpush.msra.mxu0 %v71
    %776 = vmatpush.msra.mxu0 %v67
    %777 = vmatpush.msra.mxu0 %v63
    %778 = vmatpush.msra.mxu0 %v59
    %779 = vmatpush.msra.mxu0 %v55
    %780 = vmatpush.msra.mxu0 %v51
    %781 = vmatpush.msra.mxu0 %v47
    %782 = vmatpush.msra.mxu0 %v43
    %783 = vmatpush.msra.mxu0 %v39
    %784 = vmatpush.msra.mxu0 %v35
    %785 = vmatpush.msra.mxu0 %v31
    %786 = vmatpush.msra.mxu0 %v27
    %787 = vmatpush.msra.mxu0 %v23
    %788 = vmatmul.f32.gmra.mxu0 %v701
    %v789 = vpop.f32.mrf.mxu0
    %v790 = vadd.f32 %v764, %v789
    %791 = vdwg.mxu0
    %792 = vmatpush.msra.mxu0 %v84
    %793 = vmatpush.msra.mxu0 %v80
    %794 = vmatpush.msra.mxu0 %v76
    %795 = vmatpush.msra.mxu0 %v72
    %796 = vmatpush.msra.mxu0 %v68
    %797 = vmatpush.msra.mxu0 %v64
    %798 = vmatpush.msra.mxu0 %v60
    %799 = vmatpush.msra.mxu0 %v56
    %800 = vmatpush.msra.mxu0 %v52
    %801 = vmatpush.msra.mxu0 %v48
    %802 = vmatpush.msra.mxu0 %v44
    %803 = vmatpush.msra.mxu0 %v40
    %804 = vmatpush.msra.mxu0 %v36
    %805 = vmatpush.msra.mxu0 %v32
    %806 = vmatpush.msra.mxu0 %v28
    %807 = vmatpush.msra.mxu0 %v24
    %808 = vmatmul.f32.gmra.mxu0 %v701
    %v809 = vpop.f32.mrf.mxu0
    %v810 = vadd.f32 %v765, %v809
    %811 = vdwg.mxu0
    %812 = vmatpush.msra.mxu0 %v85
    %813 = vmatpush.msra.mxu0 %v81
    %814 = vmatpush.msra.mxu0 %v77
    %815 = vmatpush.msra.mxu0 %v73
    %816 = vmatpush.msra.mxu0 %v69
    %817 = vmatpush.msra.mxu0 %v65
    %818 = vmatpush.msra.mxu0 %v61
    %819 = vmatpush.msra.mxu0 %v57
    %820 = vmatpush.msra.mxu0 %v53
    %821 = vmatpush.msra.mxu0 %v49
    %822 = vmatpush.msra.mxu0 %v45
    %823 = vmatpush.msra.mxu0 %v41
    %824 = vmatpush.msra.mxu0 %v37
    %825 = vmatpush.msra.mxu0 %v33
    %826 = vmatpush.msra.mxu0 %v29
    %827 = vmatpush.msra.mxu0 %v25
    %828 = vmatmul.f32.gmra.mxu0 %v701
    %v829 = vpop.f32.mrf.mxu0
    %v830 = vadd.f32 %v766, %v829
    %831 = vdwg.mxu0
    %832 = vmatpush.msra.mxu0 %v86
    %833 = vmatpush.msra.mxu0 %v82
    %834 = vmatpush.msra.mxu0 %v78
    %835 = vmatpush.msra.mxu0 %v74
    %836 = vmatpush.msra.mxu0 %v70
    %837 = vmatpush.msra.mxu0 %v66
    %838 = vmatpush.msra.mxu0 %v62
    %839 = vmatpush.msra.mxu0 %v58
    %840 = vmatpush.msra.mxu0 %v54
    %841 = vmatpush.msra.mxu0 %v50
    %842 = vmatpush.msra.mxu0 %v46
    %843 = vmatpush.msra.mxu0 %v42
    %844 = vmatpush.msra.mxu0 %v38
    %845 = vmatpush.msra.mxu0 %v34
    %846 = vmatpush.msra.mxu0 %v30
    %847 = vmatpush.msra.mxu0 %v26
    %848 = vmatmul.f32.gmra.mxu0 %v701
    %v849 = vpop.f32.mrf.mxu0
    %v850 = vadd.f32 %v767, %v849
    %851 = vdwg.mxu0
    %v852 = vxor.u32 %v790, 2147483648
    %v853 = vxor.u32 %v810, 2147483648
    %v854 = vxor.u32 %v830, 2147483648
    %v855 = vmul.f32 %v852, 1.442695
    %v856 = vpow.pop %v855
    %v857 = vmul.f32 %v853, 1.442695
    %v858 = vpow.pop %v857
    %v859 = vmul.f32 %v854, 1.442695
    %v860 = vpow.pop %v859
    %v861 = vadd.f32 %v856, 1.0
    %v862 = vadd.f32 %v858, 1.0
    %v863 = vadd.f32 %v860, 1.0
    %v864 = vrcp.pop %v861
    %v865 = vmul.f32 %v861, %v864
    %v866 = vsub.f32 1.0, %v865
    %v867 = vmul.f32 %v864, %v866
    %v868 = vadd.f32 %v864, %v867
    %vm869 = vweird.f32 %v861
    %vm870 = vweird.f32 %v864
    %vm871 = vmor %vm869, %vm870
    %v872 = vsel %vm871, %v864, %v868
    %v873 = vand.u32 2147483647, %v861
    %vm874 = vcmp.eq.f32.partialorder %v873, 8.507059e+37
    %v875 = vand.u32 %v861, 2147483648
    %v876 = vor.u32 1.1754944e-38, %v875
    %v877 = vsel %vm874, %v876, %v872
    %v878 = vmul.f32 1.0, %v877
    %v879 = vrcp.pop %v862
    %v880 = vmul.f32 %v862, %v879
    %v881 = vsub.f32 1.0, %v880
    %v882 = vmul.f32 %v879, %v881
    %v883 = vadd.f32 %v879, %v882
    %vm884 = vweird.f32 %v862
    %vm885 = vweird.f32 %v879
    %vm886 = vmor %vm884, %vm885
    %v887 = vsel %vm886, %v879, %v883
    %v888 = vand.u32 2147483647, %v862
    %vm889 = vcmp.eq.f32.partialorder %v888, 8.507059e+37
    %v890 = vand.u32 %v862, 2147483648
    %v891 = vor.u32 1.1754944e-38, %v890
    %v892 = vsel %vm889, %v891, %v887
    %v893 = vmul.f32 1.0, %v892
    %v894 = vrcp.pop %v863
    %v895 = vmul.f32 %v863, %v894
    %v896 = vsub.f32 1.0, %v895
    %v897 = vmul.f32 %v894, %v896
    %v898 = vadd.f32 %v894, %v897
    %vm899 = vweird.f32 %v863
    %vm900 = vweird.f32 %v894
    %vm901 = vmor %vm899, %vm900
    %v902 = vsel %vm901, %v894, %v898
    %v903 = vand.u32 2147483647, %v863
    %vm904 = vcmp.eq.f32.partialorder %v903, 8.507059e+37
    %v905 = vand.u32 %v863, 2147483648
    %v906 = vor.u32 1.1754944e-38, %v905
    %v907 = vsel %vm904, %v906, %v902
    %v908 = vmul.f32 1.0, %v907
    %v909 = vtanh.pop %v850
    %v910 = vmul.f32 %v893, %v699
    %v911 = vmul.f32 %v878, %v909
    %v912 = vadd.f32 %v910, %v911
    %v913 = vtanh.pop %v912
    %v914 = vmul.f32 %v908, %v913
    %v916 = vrot.slane %v914, 1
    %v917 = vrot.slane %v914, 2
    %v918 = vrot.slane %v914, 3
    %v919 = vrot.slane %v914, 4
    %v920 = vrot.slane %v914, 5
    %v921 = vrot.slane %v914, 6
    %v922 = vrot.slane %v914, 7
    %930 = vst [vmem:[#allocation4 + $0x3] sm:$0x1] %v914
    %931 = vst [vmem:[#allocation4 + $0x13] sm:$0x1] %v916
    %932 = vst [vmem:[#allocation4 + $0x23] sm:$0x1] %v917
    %933 = vst [vmem:[#allocation4 + $0x33] sm:$0x1] %v918
    %934 = vst [vmem:[#allocation4 + $0x43] sm:$0x1] %v919
    %935 = vst [vmem:[#allocation4 + $0x53] sm:$0x1] %v920
    %936 = vst [vmem:[#allocation4 + $0x63] sm:$0x1] %v921
    %937 = vst [vmem:[#allocation4 + $0x73] sm:$0x1] %v922
    %s938 = scalar_lea.vmem %s0, 4
    %v939 = vld [vmem:[%s938] ss:$8 sm:$0xf]
    %s940 = scalar_lea.vmem %s0, 68
    %v941 = vld [vmem:[%s940] ss:$8 sm:$0xf]
    %s942 = scalar_lea.vmem %s0, 132
    %v943 = vld [vmem:[%s942] ss:$8 sm:$0xf]
    %s944 = scalar_lea.vmem %s0, 196
    %v945 = vld [vmem:[%s944] ss:$8 sm:$0xf]
    %s946 = scalar_lea.vmem %s0, 260
    %v947 = vld [vmem:[%s946] ss:$8 sm:$0xf]
    %s948 = scalar_lea.vmem %s0, 324
    %v949 = vld [vmem:[%s948] ss:$8 sm:$0xf]
    %s950 = scalar_lea.vmem %s0, 388
    %v951 = vld [vmem:[%s950] ss:$8 sm:$0xf]
    %s952 = scalar_lea.vmem %s0, 452
    %v953 = vld [vmem:[%s952] ss:$8 sm:$0xf]
    %962 = vst [vmem:[#allocation1] ss:$9 sm:$0xff] %v939
    %s963 = scalar_lea.vmem [#allocation1], 1
    %964 = vst [vmem:[%s963] ss:$9 sm:$0xff] %v941
    %s965 = scalar_lea.vmem [#allocation1], 2
    %966 = vst [vmem:[%s965] ss:$9 sm:$0xff] %v943
    %s967 = scalar_lea.vmem [#allocation1], 3
    %968 = vst [vmem:[%s967] ss:$9 sm:$0xff] %v945
    %s969 = scalar_lea.vmem [#allocation1], 4
    %970 = vst [vmem:[%s969] ss:$9 sm:$0xff] %v947
    %s971 = scalar_lea.vmem [#allocation1], 5
    %972 = vst [vmem:[%s971] ss:$9 sm:$0xff] %v949
    %s973 = scalar_lea.vmem [#allocation1], 6
    %974 = vst [vmem:[%s973] ss:$9 sm:$0xff] %v951
    %s975 = scalar_lea.vmem [#allocation1], 7
    %976 = vst [vmem:[%s975] ss:$9 sm:$0xff] %v953
    %v977 = vld [vmem:[#allocation1] sm:$0xff]
    %v978 = vld [vmem:[#allocation1 + $0x9] sm:$0xff]
    %v979 = vld [vmem:[#allocation1 + $0x12] sm:$0xff]
    %v980 = vld [vmem:[#allocation1 + $0x1b] sm:$0xff]
    %985 = vmatpush.msra.mxu0 %v83
    %986 = vmatpush.msra.mxu0 %v79
    %987 = vmatpush.msra.mxu0 %v75
    %988 = vmatpush.msra.mxu0 %v71
    %989 = vmatpush.msra.mxu0 %v67
    %990 = vmatpush.msra.mxu0 %v63
    %991 = vmatpush.msra.mxu0 %v59
    %992 = vmatpush.msra.mxu0 %v55
    %993 = vmatpush.msra.mxu0 %v51
    %994 = vmatpush.msra.mxu0 %v47
    %995 = vmatpush.msra.mxu0 %v43
    %996 = vmatpush.msra.mxu0 %v39
    %997 = vmatpush.msra.mxu0 %v35
    %998 = vmatpush.msra.mxu0 %v31
    %999 = vmatpush.msra.mxu0 %v27
    %1000 = vmatpush.msra.mxu0 %v23
    %1001 = vmatmul.f32.gmra.mxu0 %v914
    %v1002 = vpop.f32.mrf.mxu0
    %v1003 = vadd.f32 %v977, %v1002
    %1004 = vdwg.mxu0
    %1005 = vmatpush.msra.mxu0 %v84
    %1006 = vmatpush.msra.mxu0 %v80
    %1007 = vmatpush.msra.mxu0 %v76
    %1008 = vmatpush.msra.mxu0 %v72
    %1009 = vmatpush.msra.mxu0 %v68
    %1010 = vmatpush.msra.mxu0 %v64
    %1011 = vmatpush.msra.mxu0 %v60
    %1012 = vmatpush.msra.mxu0 %v56
    %1013 = vmatpush.msra.mxu0 %v52
    %1014 = vmatpush.msra.mxu0 %v48
    %1015 = vmatpush.msra.mxu0 %v44
    %1016 = vmatpush.msra.mxu0 %v40
    %1017 = vmatpush.msra.mxu0 %v36
    %1018 = vmatpush.msra.mxu0 %v32
    %1019 = vmatpush.msra.mxu0 %v28
    %1020 = vmatpush.msra.mxu0 %v24
    %1021 = vmatmul.f32.gmra.mxu0 %v914
    %v1022 = vpop.f32.mrf.mxu0
    %v1023 = vadd.f32 %v978, %v1022
    %1024 = vdwg.mxu0
    %1025 = vmatpush.msra.mxu0 %v85
    %1026 = vmatpush.msra.mxu0 %v81
    %1027 = vmatpush.msra.mxu0 %v77
    %1028 = vmatpush.msra.mxu0 %v73
    %1029 = vmatpush.msra.mxu0 %v69
    %1030 = vmatpush.msra.mxu0 %v65
    %1031 = vmatpush.msra.mxu0 %v61
    %1032 = vmatpush.msra.mxu0 %v57
    %1033 = vmatpush.msra.mxu0 %v53
    %1034 = vmatpush.msra.mxu0 %v49
    %1035 = vmatpush.msra.mxu0 %v45
    %1036 = vmatpush.msra.mxu0 %v41
    %1037 = vmatpush.msra.mxu0 %v37
    %1038 = vmatpush.msra.mxu0 %v33
    %1039 = vmatpush.msra.mxu0 %v29
    %1040 = vmatpush.msra.mxu0 %v25
    %1041 = vmatmul.f32.gmra.mxu0 %v914
    %v1042 = vpop.f32.mrf.mxu0
    %v1043 = vadd.f32 %v979, %v1042
    %1044 = vdwg.mxu0
    %1045 = vmatpush.msra.mxu0 %v86
    %1046 = vmatpush.msra.mxu0 %v82
    %1047 = vmatpush.msra.mxu0 %v78
    %1048 = vmatpush.msra.mxu0 %v74
    %1049 = vmatpush.msra.mxu0 %v70
    %1050 = vmatpush.msra.mxu0 %v66
    %1051 = vmatpush.msra.mxu0 %v62
    %1052 = vmatpush.msra.mxu0 %v58
    %1053 = vmatpush.msra.mxu0 %v54
    %1054 = vmatpush.msra.mxu0 %v50
    %1055 = vmatpush.msra.mxu0 %v46
    %1056 = vmatpush.msra.mxu0 %v42
    %1057 = vmatpush.msra.mxu0 %v38
    %1058 = vmatpush.msra.mxu0 %v34
    %1059 = vmatpush.msra.mxu0 %v30
    %1060 = vmatpush.msra.mxu0 %v26
    %1061 = vmatmul.f32.gmra.mxu0 %v914
    %v1062 = vpop.f32.mrf.mxu0
    %v1063 = vadd.f32 %v980, %v1062
    %1064 = vdwg.mxu0
    %v1065 = vxor.u32 %v1003, 2147483648
    %v1066 = vxor.u32 %v1023, 2147483648
    %v1067 = vxor.u32 %v1043, 2147483648
    %v1068 = vmul.f32 %v1065, 1.442695
    %v1069 = vpow.pop %v1068
    %v1070 = vmul.f32 %v1066, 1.442695
    %v1071 = vpow.pop %v1070
    %v1072 = vmul.f32 %v1067, 1.442695
    %v1073 = vpow.pop %v1072
    %v1074 = vadd.f32 %v1069, 1.0
    %v1075 = vadd.f32 %v1071, 1.0
    %v1076 = vadd.f32 %v1073, 1.0
    %v1077 = vrcp.pop %v1074
    %v1078 = vmul.f32 %v1074, %v1077
    %v1079 = vsub.f32 1.0, %v1078
    %v1080 = vmul.f32 %v1077, %v1079
    %v1081 = vadd.f32 %v1077, %v1080
    %vm1082 = vweird.f32 %v1074
    %vm1083 = vweird.f32 %v1077
    %vm1084 = vmor %vm1082, %vm1083
    %v1085 = vsel %vm1084, %v1077, %v1081
    %v1086 = vand.u32 2147483647, %v1074
    %vm1087 = vcmp.eq.f32.partialorder %v1086, 8.507059e+37
    %v1088 = vand.u32 %v1074, 2147483648
    %v1089 = vor.u32 1.1754944e-38, %v1088
    %v1090 = vsel %vm1087, %v1089, %v1085
    %v1091 = vmul.f32 1.0, %v1090
    %v1092 = vrcp.pop %v1075
    %v1093 = vmul.f32 %v1075, %v1092
    %v1094 = vsub.f32 1.0, %v1093
    %v1095 = vmul.f32 %v1092, %v1094
    %v1096 = vadd.f32 %v1092, %v1095
    %vm1097 = vweird.f32 %v1075
    %vm1098 = vweird.f32 %v1092
    %vm1099 = vmor %vm1097, %vm1098
    %v1100 = vsel %vm1099, %v1092, %v1096
    %v1101 = vand.u32 2147483647, %v1075
    %vm1102 = vcmp.eq.f32.partialorder %v1101, 8.507059e+37
    %v1103 = vand.u32 %v1075, 2147483648
    %v1104 = vor.u32 1.1754944e-38, %v1103
    %v1105 = vsel %vm1102, %v1104, %v1100
    %v1106 = vmul.f32 1.0, %v1105
    %v1107 = vrcp.pop %v1076
    %v1108 = vmul.f32 %v1076, %v1107
    %v1109 = vsub.f32 1.0, %v1108
    %v1110 = vmul.f32 %v1107, %v1109
    %v1111 = vadd.f32 %v1107, %v1110
    %vm1112 = vweird.f32 %v1076
    %vm1113 = vweird.f32 %v1107
    %vm1114 = vmor %vm1112, %vm1113
    %v1115 = vsel %vm1114, %v1107, %v1111
    %v1116 = vand.u32 2147483647, %v1076
    %vm1117 = vcmp.eq.f32.partialorder %v1116, 8.507059e+37
    %v1118 = vand.u32 %v1076, 2147483648
    %v1119 = vor.u32 1.1754944e-38, %v1118
    %v1120 = vsel %vm1117, %v1119, %v1115
    %v1121 = vmul.f32 1.0, %v1120
    %v1122 = vtanh.pop %v1063
    %v1123 = vmul.f32 %v1106, %v912
    %v1124 = vmul.f32 %v1091, %v1122
    %v1125 = vadd.f32 %v1123, %v1124
    %v1126 = vtanh.pop %v1125
    %v1127 = vmul.f32 %v1121, %v1126
    %v1129 = vrot.slane %v1127, 1
    %v1130 = vrot.slane %v1127, 2
    %v1131 = vrot.slane %v1127, 3
    %v1132 = vrot.slane %v1127, 4
    %v1133 = vrot.slane %v1127, 5
    %v1134 = vrot.slane %v1127, 6
    %v1135 = vrot.slane %v1127, 7
    %1143 = vst [vmem:[#allocation4 + $0x4] sm:$0x1] %v1127
    %1144 = vst [vmem:[#allocation4 + $0x14] sm:$0x1] %v1129
    %1145 = vst [vmem:[#allocation4 + $0x24] sm:$0x1] %v1130
    %1146 = vst [vmem:[#allocation4 + $0x34] sm:$0x1] %v1131
    %1147 = vst [vmem:[#allocation4 + $0x44] sm:$0x1] %v1132
    %1148 = vst [vmem:[#allocation4 + $0x54] sm:$0x1] %v1133
    %1149 = vst [vmem:[#allocation4 + $0x64] sm:$0x1] %v1134
    %1150 = vst [vmem:[#allocation4 + $0x74] sm:$0x1] %v1135
    %s1151 = scalar_lea.vmem %s0, 5
    %v1152 = vld [vmem:[%s1151] ss:$8 sm:$0xf]
    %s1153 = scalar_lea.vmem %s0, 69
    %v1154 = vld [vmem:[%s1153] ss:$8 sm:$0xf]
    %s1155 = scalar_lea.vmem %s0, 133
    %v1156 = vld [vmem:[%s1155] ss:$8 sm:$0xf]
    %s1157 = scalar_lea.vmem %s0, 197
    %v1158 = vld [vmem:[%s1157] ss:$8 sm:$0xf]
    %s1159 = scalar_lea.vmem %s0, 261
    %v1160 = vld [vmem:[%s1159] ss:$8 sm:$0xf]
    %s1161 = scalar_lea.vmem %s0, 325
    %v1162 = vld [vmem:[%s1161] ss:$8 sm:$0xf]
    %s1163 = scalar_lea.vmem %s0, 389
    %v1164 = vld [vmem:[%s1163] ss:$8 sm:$0xf]
    %s1165 = scalar_lea.vmem %s0, 453
    %v1166 = vld [vmem:[%s1165] ss:$8 sm:$0xf]
    %1175 = vst [vmem:[#allocation1] ss:$9 sm:$0xff] %v1152
    %s1176 = scalar_lea.vmem [#allocation1], 1
    %1177 = vst [vmem:[%s1176] ss:$9 sm:$0xff] %v1154
    %s1178 = scalar_lea.vmem [#allocation1], 2
    %1179 = vst [vmem:[%s1178] ss:$9 sm:$0xff] %v1156
    %s1180 = scalar_lea.vmem [#allocation1], 3
    %1181 = vst [vmem:[%s1180] ss:$9 sm:$0xff] %v1158
    %s1182 = scalar_lea.vmem [#allocation1], 4
    %1183 = vst [vmem:[%s1182] ss:$9 sm:$0xff] %v1160
    %s1184 = scalar_lea.vmem [#allocation1], 5
    %1185 = vst [vmem:[%s1184] ss:$9 sm:$0xff] %v1162
    %s1186 = scalar_lea.vmem [#allocation1], 6
    %1187 = vst [vmem:[%s1186] ss:$9 sm:$0xff] %v1164
    %s1188 = scalar_lea.vmem [#allocation1], 7
    %1189 = vst [vmem:[%s1188] ss:$9 sm:$0xff] %v1166
    %v1190 = vld [vmem:[#allocation1] sm:$0xff]
    %v1191 = vld [vmem:[#allocation1 + $0x9] sm:$0xff]
    %v1192 = vld [vmem:[#allocation1 + $0x12] sm:$0xff]
    %v1193 = vld [vmem:[#allocation1 + $0x1b] sm:$0xff]
    %1198 = vmatpush.msra.mxu0 %v83
    %1199 = vmatpush.msra.mxu0 %v79
    %1200 = vmatpush.msra.mxu0 %v75
    %1201 = vmatpush.msra.mxu0 %v71
    %1202 = vmatpush.msra.mxu0 %v67
    %1203 = vmatpush.msra.mxu0 %v63
    %1204 = vmatpush.msra.mxu0 %v59
    %1205 = vmatpush.msra.mxu0 %v55
    %1206 = vmatpush.msra.mxu0 %v51
    %1207 = vmatpush.msra.mxu0 %v47
    %1208 = vmatpush.msra.mxu0 %v43
    %1209 = vmatpush.msra.mxu0 %v39
    %1210 = vmatpush.msra.mxu0 %v35
    %1211 = vmatpush.msra.mxu0 %v31
    %1212 = vmatpush.msra.mxu0 %v27
    %1213 = vmatpush.msra.mxu0 %v23
    %1214 = vmatmul.f32.gmra.mxu0 %v1127
    %v1215 = vpop.f32.mrf.mxu0
    %v1216 = vadd.f32 %v1190, %v1215
    %1217 = vdwg.mxu0
    %1218 = vmatpush.msra.mxu0 %v84
    %1219 = vmatpush.msra.mxu0 %v80
    %1220 = vmatpush.msra.mxu0 %v76
    %1221 = vmatpush.msra.mxu0 %v72
    %1222 = vmatpush.msra.mxu0 %v68
    %1223 = vmatpush.msra.mxu0 %v64
    %1224 = vmatpush.msra.mxu0 %v60
    %1225 = vmatpush.msra.mxu0 %v56
    %1226 = vmatpush.msra.mxu0 %v52
    %1227 = vmatpush.msra.mxu0 %v48
    %1228 = vmatpush.msra.mxu0 %v44
    %1229 = vmatpush.msra.mxu0 %v40
    %1230 = vmatpush.msra.mxu0 %v36
    %1231 = vmatpush.msra.mxu0 %v32
    %1232 = vmatpush.msra.mxu0 %v28
    %1233 = vmatpush.msra.mxu0 %v24
    %1234 = vmatmul.f32.gmra.mxu0 %v1127
    %v1235 = vpop.f32.mrf.mxu0
    %v1236 = vadd.f32 %v1191, %v1235
    %1237 = vdwg.mxu0
    %1238 = vmatpush.msra.mxu0 %v85
    %1239 = vmatpush.msra.mxu0 %v81
    %1240 = vmatpush.msra.mxu0 %v77
    %1241 = vmatpush.msra.mxu0 %v73
    %1242 = vmatpush.msra.mxu0 %v69
    %1243 = vmatpush.msra.mxu0 %v65
    %1244 = vmatpush.msra.mxu0 %v61
    %1245 = vmatpush.msra.mxu0 %v57
    %1246 = vmatpush.msra.mxu0 %v53
    %1247 = vmatpush.msra.mxu0 %v49
    %1248 = vmatpush.msra.mxu0 %v45
    %1249 = vmatpush.msra.mxu0 %v41
    %1250 = vmatpush.msra.mxu0 %v37
    %1251 = vmatpush.msra.mxu0 %v33
    %1252 = vmatpush.msra.mxu0 %v29
    %1253 = vmatpush.msra.mxu0 %v25
    %1254 = vmatmul.f32.gmra.mxu0 %v1127
    %v1255 = vpop.f32.mrf.mxu0
    %v1256 = vadd.f32 %v1192, %v1255
    %1257 = vdwg.mxu0
    %1258 = vmatpush.msra.mxu0 %v86
    %1259 = vmatpush.msra.mxu0 %v82
    %1260 = vmatpush.msra.mxu0 %v78
    %1261 = vmatpush.msra.mxu0 %v74
    %1262 = vmatpush.msra.mxu0 %v70
    %1263 = vmatpush.msra.mxu0 %v66
    %1264 = vmatpush.msra.mxu0 %v62
    %1265 = vmatpush.msra.mxu0 %v58
    %1266 = vmatpush.msra.mxu0 %v54
    %1267 = vmatpush.msra.mxu0 %v50
    %1268 = vmatpush.msra.mxu0 %v46
    %1269 = vmatpush.msra.mxu0 %v42
    %1270 = vmatpush.msra.mxu0 %v38
    %1271 = vmatpush.msra.mxu0 %v34
    %1272 = vmatpush.msra.mxu0 %v30
    %1273 = vmatpush.msra.mxu0 %v26
    %1274 = vmatmul.f32.gmra.mxu0 %v1127
    %v1275 = vpop.f32.mrf.mxu0
    %v1276 = vadd.f32 %v1193, %v1275
    %1277 = vdwg.mxu0
    %v1278 = vxor.u32 %v1216, 2147483648
    %v1279 = vxor.u32 %v1236, 2147483648
    %v1280 = vxor.u32 %v1256, 2147483648
    %v1281 = vmul.f32 %v1278, 1.442695
    %v1282 = vpow.pop %v1281
    %v1283 = vmul.f32 %v1279, 1.442695
    %v1284 = vpow.pop %v1283
    %v1285 = vmul.f32 %v1280, 1.442695
    %v1286 = vpow.pop %v1285
    %v1287 = vadd.f32 %v1282, 1.0
    %v1288 = vadd.f32 %v1284, 1.0
    %v1289 = vadd.f32 %v1286, 1.0
    %v1290 = vrcp.pop %v1287
    %v1291 = vmul.f32 %v1287, %v1290
    %v1292 = vsub.f32 1.0, %v1291
    %v1293 = vmul.f32 %v1290, %v1292
    %v1294 = vadd.f32 %v1290, %v1293
    %vm1295 = vweird.f32 %v1287
    %vm1296 = vweird.f32 %v1290
    %vm1297 = vmor %vm1295, %vm1296
    %v1298 = vsel %vm1297, %v1290, %v1294
    %v1299 = vand.u32 2147483647, %v1287
    %vm1300 = vcmp.eq.f32.partialorder %v1299, 8.507059e+37
    %v1301 = vand.u32 %v1287, 2147483648
    %v1302 = vor.u32 1.1754944e-38, %v1301
    %v1303 = vsel %vm1300, %v1302, %v1298
    %v1304 = vmul.f32 1.0, %v1303
    %v1305 = vrcp.pop %v1288
    %v1306 = vmul.f32 %v1288, %v1305
    %v1307 = vsub.f32 1.0, %v1306
    %v1308 = vmul.f32 %v1305, %v1307
    %v1309 = vadd.f32 %v1305, %v1308
    %vm1310 = vweird.f32 %v1288
    %vm1311 = vweird.f32 %v1305
    %vm1312 = vmor %vm1310, %vm1311
    %v1313 = vsel %vm1312, %v1305, %v1309
    %v1314 = vand.u32 2147483647, %v1288
    %vm1315 = vcmp.eq.f32.partialorder %v1314, 8.507059e+37
    %v1316 = vand.u32 %v1288, 2147483648
    %v1317 = vor.u32 1.1754944e-38, %v1316
    %v1318 = vsel %vm1315, %v1317, %v1313
    %v1319 = vmul.f32 1.0, %v1318
    %v1320 = vrcp.pop %v1289
    %v1321 = vmul.f32 %v1289, %v1320
    %v1322 = vsub.f32 1.0, %v1321
    %v1323 = vmul.f32 %v1320, %v1322
    %v1324 = vadd.f32 %v1320, %v1323
    %vm1325 = vweird.f32 %v1289
    %vm1326 = vweird.f32 %v1320
    %vm1327 = vmor %vm1325, %vm1326
    %v1328 = vsel %vm1327, %v1320, %v1324
    %v1329 = vand.u32 2147483647, %v1289
    %vm1330 = vcmp.eq.f32.partialorder %v1329, 8.507059e+37
    %v1331 = vand.u32 %v1289, 2147483648
    %v1332 = vor.u32 1.1754944e-38, %v1331
    %v1333 = vsel %vm1330, %v1332, %v1328
    %v1334 = vmul.f32 1.0, %v1333
    %v1335 = vtanh.pop %v1276
    %v1336 = vmul.f32 %v1319, %v1125
    %v1337 = vmul.f32 %v1304, %v1335
    %v1338 = vadd.f32 %v1336, %v1337
    %v1339 = vtanh.pop %v1338
    %v1340 = vmul.f32 %v1334, %v1339
    %v1342 = vrot.slane %v1340, 1
    %v1343 = vrot.slane %v1340, 2
    %v1344 = vrot.slane %v1340, 3
    %v1345 = vrot.slane %v1340, 4
    %v1346 = vrot.slane %v1340, 5
    %v1347 = vrot.slane %v1340, 6
    %v1348 = vrot.slane %v1340, 7
    %1356 = vst [vmem:[#allocation4 + $0x5] sm:$0x1] %v1340
    %1357 = vst [vmem:[#allocation4 + $0x15] sm:$0x1] %v1342
    %1358 = vst [vmem:[#allocation4 + $0x25] sm:$0x1] %v1343
    %1359 = vst [vmem:[#allocation4 + $0x35] sm:$0x1] %v1344
    %1360 = vst [vmem:[#allocation4 + $0x45] sm:$0x1] %v1345
    %1361 = vst [vmem:[#allocation4 + $0x55] sm:$0x1] %v1346
    %1362 = vst [vmem:[#allocation4 + $0x65] sm:$0x1] %v1347
    %1363 = vst [vmem:[#allocation4 + $0x75] sm:$0x1] %v1348
    %s1364 = scalar_lea.vmem %s0, 6
    %v1365 = vld [vmem:[%s1364] ss:$8 sm:$0xf]
    %s1366 = scalar_lea.vmem %s0, 70
    %v1367 = vld [vmem:[%s1366] ss:$8 sm:$0xf]
    %s1368 = scalar_lea.vmem %s0, 134
    %v1369 = vld [vmem:[%s1368] ss:$8 sm:$0xf]
    %s1370 = scalar_lea.vmem %s0, 198
    %v1371 = vld [vmem:[%s1370] ss:$8 sm:$0xf]
    %s1372 = scalar_lea.vmem %s0, 262
    %v1373 = vld [vmem:[%s1372] ss:$8 sm:$0xf]
    %s1374 = scalar_lea.vmem %s0, 326
    %v1375 = vld [vmem:[%s1374] ss:$8 sm:$0xf]
    %s1376 = scalar_lea.vmem %s0, 390
    %v1377 = vld [vmem:[%s1376] ss:$8 sm:$0xf]
    %s1378 = scalar_lea.vmem %s0, 454
    %v1379 = vld [vmem:[%s1378] ss:$8 sm:$0xf]
    %1388 = vst [vmem:[#allocation1] ss:$9 sm:$0xff] %v1365
    %s1389 = scalar_lea.vmem [#allocation1], 1
    %1390 = vst [vmem:[%s1389] ss:$9 sm:$0xff] %v1367
    %s1391 = scalar_lea.vmem [#allocation1], 2
    %1392 = vst [vmem:[%s1391] ss:$9 sm:$0xff] %v1369
    %s1393 = scalar_lea.vmem [#allocation1], 3
    %1394 = vst [vmem:[%s1393] ss:$9 sm:$0xff] %v1371
    %s1395 = scalar_lea.vmem [#allocation1], 4
    %1396 = vst [vmem:[%s1395] ss:$9 sm:$0xff] %v1373
    %s1397 = scalar_lea.vmem [#allocation1], 5
    %1398 = vst [vmem:[%s1397] ss:$9 sm:$0xff] %v1375
    %s1399 = scalar_lea.vmem [#allocation1], 6
    %1400 = vst [vmem:[%s1399] ss:$9 sm:$0xff] %v1377
    %s1401 = scalar_lea.vmem [#allocation1], 7
    %1402 = vst [vmem:[%s1401] ss:$9 sm:$0xff] %v1379
    %v1403 = vld [vmem:[#allocation1] sm:$0xff]
    %v1404 = vld [vmem:[#allocation1 + $0x9] sm:$0xff]
    %v1405 = vld [vmem:[#allocation1 + $0x12] sm:$0xff]
    %v1406 = vld [vmem:[#allocation1 + $0x1b] sm:$0xff]
    %1411 = vmatpush.msra.mxu0 %v83
    %1412 = vmatpush.msra.mxu0 %v79
    %1413 = vmatpush.msra.mxu0 %v75
    %1414 = vmatpush.msra.mxu0 %v71
    %1415 = vmatpush.msra.mxu0 %v67
    %1416 = vmatpush.msra.mxu0 %v63
    %1417 = vmatpush.msra.mxu0 %v59
    %1418 = vmatpush.msra.mxu0 %v55
    %1419 = vmatpush.msra.mxu0 %v51
    %1420 = vmatpush.msra.mxu0 %v47
    %1421 = vmatpush.msra.mxu0 %v43
    %1422 = vmatpush.msra.mxu0 %v39
    %1423 = vmatpush.msra.mxu0 %v35
    %1424 = vmatpush.msra.mxu0 %v31
    %1425 = vmatpush.msra.mxu0 %v27
    %1426 = vmatpush.msra.mxu0 %v23
    %1427 = vmatmul.f32.gmra.mxu0 %v1340
    %v1428 = vpop.f32.mrf.mxu0
    %v1429 = vadd.f32 %v1403, %v1428
    %1430 = vdwg.mxu0
    %1431 = vmatpush.msra.mxu0 %v84
    %1432 = vmatpush.msra.mxu0 %v80
    %1433 = vmatpush.msra.mxu0 %v76
    %1434 = vmatpush.msra.mxu0 %v72
    %1435 = vmatpush.msra.mxu0 %v68
    %1436 = vmatpush.msra.mxu0 %v64
    %1437 = vmatpush.msra.mxu0 %v60
    %1438 = vmatpush.msra.mxu0 %v56
    %1439 = vmatpush.msra.mxu0 %v52
    %1440 = vmatpush.msra.mxu0 %v48
    %1441 = vmatpush.msra.mxu0 %v44
    %1442 = vmatpush.msra.mxu0 %v40
    %1443 = vmatpush.msra.mxu0 %v36
    %1444 = vmatpush.msra.mxu0 %v32
    %1445 = vmatpush.msra.mxu0 %v28
    %1446 = vmatpush.msra.mxu0 %v24
    %1447 = vmatmul.f32.gmra.mxu0 %v1340
    %v1448 = vpop.f32.mrf.mxu0
    %v1449 = vadd.f32 %v1404, %v1448
    %1450 = vdwg.mxu0
    %1451 = vmatpush.msra.mxu0 %v85
    %1452 = vmatpush.msra.mxu0 %v81
    %1453 = vmatpush.msra.mxu0 %v77
    %1454 = vmatpush.msra.mxu0 %v73
    %1455 = vmatpush.msra.mxu0 %v69
    %1456 = vmatpush.msra.mxu0 %v65
    %1457 = vmatpush.msra.mxu0 %v61
    %1458 = vmatpush.msra.mxu0 %v57
    %1459 = vmatpush.msra.mxu0 %v53
    %1460 = vmatpush.msra.mxu0 %v49
    %1461 = vmatpush.msra.mxu0 %v45
    %1462 = vmatpush.msra.mxu0 %v41
    %1463 = vmatpush.msra.mxu0 %v37
    %1464 = vmatpush.msra.mxu0 %v33
    %1465 = vmatpush.msra.mxu0 %v29
    %1466 = vmatpush.msra.mxu0 %v25
    %1467 = vmatmul.f32.gmra.mxu0 %v1340
    %v1468 = vpop.f32.mrf.mxu0
    %v1469 = vadd.f32 %v1405, %v1468
    %1470 = vdwg.mxu0
    %1471 = vmatpush.msra.mxu0 %v86
    %1472 = vmatpush.msra.mxu0 %v82
    %1473 = vmatpush.msra.mxu0 %v78
    %1474 = vmatpush.msra.mxu0 %v74
    %1475 = vmatpush.msra.mxu0 %v70
    %1476 = vmatpush.msra.mxu0 %v66
    %1477 = vmatpush.msra.mxu0 %v62
    %1478 = vmatpush.msra.mxu0 %v58
    %1479 = vmatpush.msra.mxu0 %v54
    %1480 = vmatpush.msra.mxu0 %v50
    %1481 = vmatpush.msra.mxu0 %v46
    %1482 = vmatpush.msra.mxu0 %v42
    %1483 = vmatpush.msra.mxu0 %v38
    %1484 = vmatpush.msra.mxu0 %v34
    %1485 = vmatpush.msra.mxu0 %v30
    %1486 = vmatpush.msra.mxu0 %v26
    %1487 = vmatmul.f32.gmra.mxu0 %v1340
    %v1488 = vpop.f32.mrf.mxu0
    %v1489 = vadd.f32 %v1406, %v1488
    %1490 = vdwg.mxu0
    %v1491 = vxor.u32 %v1429, 2147483648
    %v1492 = vxor.u32 %v1449, 2147483648
    %v1493 = vxor.u32 %v1469, 2147483648
    %v1494 = vmul.f32 %v1491, 1.442695
    %v1495 = vpow.pop %v1494
    %v1496 = vmul.f32 %v1492, 1.442695
    %v1497 = vpow.pop %v1496
    %v1498 = vmul.f32 %v1493, 1.442695
    %v1499 = vpow.pop %v1498
    %v1500 = vadd.f32 %v1495, 1.0
    %v1501 = vadd.f32 %v1497, 1.0
    %v1502 = vadd.f32 %v1499, 1.0
    %v1503 = vrcp.pop %v1500
    %v1504 = vmul.f32 %v1500, %v1503
    %v1505 = vsub.f32 1.0, %v1504
    %v1506 = vmul.f32 %v1503, %v1505
    %v1507 = vadd.f32 %v1503, %v1506
    %vm1508 = vweird.f32 %v1500
    %vm1509 = vweird.f32 %v1503
    %vm1510 = vmor %vm1508, %vm1509
    %v1511 = vsel %vm1510, %v1503, %v1507
    %v1512 = vand.u32 2147483647, %v1500
    %vm1513 = vcmp.eq.f32.partialorder %v1512, 8.507059e+37
    %v1514 = vand.u32 %v1500, 2147483648
    %v1515 = vor.u32 1.1754944e-38, %v1514
    %v1516 = vsel %vm1513, %v1515, %v1511
    %v1517 = vmul.f32 1.0, %v1516
    %v1518 = vrcp.pop %v1501
    %v1519 = vmul.f32 %v1501, %v1518
    %v1520 = vsub.f32 1.0, %v1519
    %v1521 = vmul.f32 %v1518, %v1520
    %v1522 = vadd.f32 %v1518, %v1521
    %vm1523 = vweird.f32 %v1501
    %vm1524 = vweird.f32 %v1518
    %vm1525 = vmor %vm1523, %vm1524
    %v1526 = vsel %vm1525, %v1518, %v1522
    %v1527 = vand.u32 2147483647, %v1501
    %vm1528 = vcmp.eq.f32.partialorder %v1527, 8.507059e+37
    %v1529 = vand.u32 %v1501, 2147483648
    %v1530 = vor.u32 1.1754944e-38, %v1529
    %v1531 = vsel %vm1528, %v1530, %v1526
    %v1532 = vmul.f32 1.0, %v1531
    %v1533 = vrcp.pop %v1502
    %v1534 = vmul.f32 %v1502, %v1533
    %v1535 = vsub.f32 1.0, %v1534
    %v1536 = vmul.f32 %v1533, %v1535
    %v1537 = vadd.f32 %v1533, %v1536
    %vm1538 = vweird.f32 %v1502
    %vm1539 = vweird.f32 %v1533
    %vm1540 = vmor %vm1538, %vm1539
    %v1541 = vsel %vm1540, %v1533, %v1537
    %v1542 = vand.u32 2147483647, %v1502
    %vm1543 = vcmp.eq.f32.partialorder %v1542, 8.507059e+37
    %v1544 = vand.u32 %v1502, 2147483648
    %v1545 = vor.u32 1.1754944e-38, %v1544
    %v1546 = vsel %vm1543, %v1545, %v1541
    %v1547 = vmul.f32 1.0, %v1546
    %v1548 = vtanh.pop %v1489
    %v1549 = vmul.f32 %v1532, %v1338
    %v1550 = vmul.f32 %v1517, %v1548
    %v1551 = vadd.f32 %v1549, %v1550
    %v1552 = vtanh.pop %v1551
    %v1553 = vmul.f32 %v1547, %v1552
    %v1555 = vrot.slane %v1553, 1
    %v1556 = vrot.slane %v1553, 2
    %v1557 = vrot.slane %v1553, 3
    %v1558 = vrot.slane %v1553, 4
    %v1559 = vrot.slane %v1553, 5
    %v1560 = vrot.slane %v1553, 6
    %v1561 = vrot.slane %v1553, 7
    %1569 = vst [vmem:[#allocation4 + $0x6] sm:$0x1] %v1553
    %1570 = vst [vmem:[#allocation4 + $0x16] sm:$0x1] %v1555
    %1571 = vst [vmem:[#allocation4 + $0x26] sm:$0x1] %v1556
    %1572 = vst [vmem:[#allocation4 + $0x36] sm:$0x1] %v1557
    %1573 = vst [vmem:[#allocation4 + $0x46] sm:$0x1] %v1558
    %1574 = vst [vmem:[#allocation4 + $0x56] sm:$0x1] %v1559
    %1575 = vst [vmem:[#allocation4 + $0x66] sm:$0x1] %v1560
    %1576 = vst [vmem:[#allocation4 + $0x76] sm:$0x1] %v1561
    %s1577 = scalar_lea.vmem %s0, 7
    %v1578 = vld [vmem:[%s1577] ss:$8 sm:$0xf]
    %s1579 = scalar_lea.vmem %s0, 71
    %v1580 = vld [vmem:[%s1579] ss:$8 sm:$0xf]
    %s1581 = scalar_lea.vmem %s0, 135
    %v1582 = vld [vmem:[%s1581] ss:$8 sm:$0xf]
    %s1583 = scalar_lea.vmem %s0, 199
    %v1584 = vld [vmem:[%s1583] ss:$8 sm:$0xf]
    %s1585 = scalar_lea.vmem %s0, 263
    %v1586 = vld [vmem:[%s1585] ss:$8 sm:$0xf]
    %s1587 = scalar_lea.vmem %s0, 327
    %v1588 = vld [vmem:[%s1587] ss:$8 sm:$0xf]
    %s1589 = scalar_lea.vmem %s0, 391
    %v1590 = vld [vmem:[%s1589] ss:$8 sm:$0xf]
    %s1591 = scalar_lea.vmem %s0, 455
    %v1592 = vld [vmem:[%s1591] ss:$8 sm:$0xf]
    %1601 = vst [vmem:[#allocation1] ss:$9 sm:$0xff] %v1578
    %s1602 = scalar_lea.vmem [#allocation1], 1
    %1603 = vst [vmem:[%s1602] ss:$9 sm:$0xff] %v1580
    %s1604 = scalar_lea.vmem [#allocation1], 2
    %1605 = vst [vmem:[%s1604] ss:$9 sm:$0xff] %v1582
    %s1606 = scalar_lea.vmem [#allocation1], 3
    %1607 = vst [vmem:[%s1606] ss:$9 sm:$0xff] %v1584
    %s1608 = scalar_lea.vmem [#allocation1], 4
    %1609 = vst [vmem:[%s1608] ss:$9 sm:$0xff] %v1586
    %s1610 = scalar_lea.vmem [#allocation1], 5
    %1611 = vst [vmem:[%s1610] ss:$9 sm:$0xff] %v1588
    %s1612 = scalar_lea.vmem [#allocation1], 6
    %1613 = vst [vmem:[%s1612] ss:$9 sm:$0xff] %v1590
    %s1614 = scalar_lea.vmem [#allocation1], 7
    %1615 = vst [vmem:[%s1614] ss:$9 sm:$0xff] %v1592
    %v1616 = vld [vmem:[#allocation1] sm:$0xff]
    %v1617 = vld [vmem:[#allocation1 + $0x9] sm:$0xff]
    %v1618 = vld [vmem:[#allocation1 + $0x12] sm:$0xff]
    %v1619 = vld [vmem:[#allocation1 + $0x1b] sm:$0xff]
    %1624 = vmatpush.msra.mxu0 %v83
    %1625 = vmatpush.msra.mxu0 %v79
    %1626 = vmatpush.msra.mxu0 %v75
    %1627 = vmatpush.msra.mxu0 %v71
    %1628 = vmatpush.msra.mxu0 %v67
    %1629 = vmatpush.msra.mxu0 %v63
    %1630 = vmatpush.msra.mxu0 %v59
    %1631 = vmatpush.msra.mxu0 %v55
    %1632 = vmatpush.msra.mxu0 %v51
    %1633 = vmatpush.msra.mxu0 %v47
    %1634 = vmatpush.msra.mxu0 %v43
    %1635 = vmatpush.msra.mxu0 %v39
    %1636 = vmatpush.msra.mxu0 %v35
    %1637 = vmatpush.msra.mxu0 %v31
    %1638 = vmatpush.msra.mxu0 %v27
    %1639 = vmatpush.msra.mxu0 %v23
    %1640 = vmatmul.f32.gmra.mxu0 %v1553
    %v1641 = vpop.f32.mrf.mxu0
    %v1642 = vadd.f32 %v1616, %v1641
    %1643 = vdwg.mxu0
    %1644 = vmatpush.msra.mxu0 %v84
    %1645 = vmatpush.msra.mxu0 %v80
    %1646 = vmatpush.msra.mxu0 %v76
    %1647 = vmatpush.msra.mxu0 %v72
    %1648 = vmatpush.msra.mxu0 %v68
    %1649 = vmatpush.msra.mxu0 %v64
    %1650 = vmatpush.msra.mxu0 %v60
    %1651 = vmatpush.msra.mxu0 %v56
    %1652 = vmatpush.msra.mxu0 %v52
    %1653 = vmatpush.msra.mxu0 %v48
    %1654 = vmatpush.msra.mxu0 %v44
    %1655 = vmatpush.msra.mxu0 %v40
    %1656 = vmatpush.msra.mxu0 %v36
    %1657 = vmatpush.msra.mxu0 %v32
    %1658 = vmatpush.msra.mxu0 %v28
    %1659 = vmatpush.msra.mxu0 %v24
    %1660 = vmatmul.f32.gmra.mxu0 %v1553
    %v1661 = vpop.f32.mrf.mxu0
    %v1662 = vadd.f32 %v1617, %v1661
    %1663 = vdwg.mxu0
    %1664 = vmatpush.msra.mxu0 %v85
    %1665 = vmatpush.msra.mxu0 %v81
    %1666 = vmatpush.msra.mxu0 %v77
    %1667 = vmatpush.msra.mxu0 %v73
    %1668 = vmatpush.msra.mxu0 %v69
    %1669 = vmatpush.msra.mxu0 %v65
    %1670 = vmatpush.msra.mxu0 %v61
    %1671 = vmatpush.msra.mxu0 %v57
    %1672 = vmatpush.msra.mxu0 %v53
    %1673 = vmatpush.msra.mxu0 %v49
    %1674 = vmatpush.msra.mxu0 %v45
    %1675 = vmatpush.msra.mxu0 %v41
    %1676 = vmatpush.msra.mxu0 %v37
    %1677 = vmatpush.msra.mxu0 %v33
    %1678 = vmatpush.msra.mxu0 %v29
    %1679 = vmatpush.msra.mxu0 %v25
    %1680 = vmatmul.f32.gmra.mxu0 %v1553
    %v1681 = vpop.f32.mrf.mxu0
    %v1682 = vadd.f32 %v1618, %v1681
    %1683 = vdwg.mxu0
    %1684 = vmatpush.msra.mxu0 %v86
    %1685 = vmatpush.msra.mxu0 %v82
    %1686 = vmatpush.msra.mxu0 %v78
    %1687 = vmatpush.msra.mxu0 %v74
    %1688 = vmatpush.msra.mxu0 %v70
    %1689 = vmatpush.msra.mxu0 %v66
    %1690 = vmatpush.msra.mxu0 %v62
    %1691 = vmatpush.msra.mxu0 %v58
    %1692 = vmatpush.msra.mxu0 %v54
    %1693 = vmatpush.msra.mxu0 %v50
    %1694 = vmatpush.msra.mxu0 %v46
    %1695 = vmatpush.msra.mxu0 %v42
    %1696 = vmatpush.msra.mxu0 %v38
    %1697 = vmatpush.msra.mxu0 %v34
    %1698 = vmatpush.msra.mxu0 %v30
    %1699 = vmatpush.msra.mxu0 %v26
    %1700 = vmatmul.f32.gmra.mxu0 %v1553
    %v1701 = vpop.f32.mrf.mxu0
    %v1702 = vadd.f32 %v1619, %v1701
    %1703 = vdwg.mxu0
    %v1704 = vxor.u32 %v1642, 2147483648
    %v1705 = vxor.u32 %v1662, 2147483648
    %v1706 = vxor.u32 %v1682, 2147483648
    %v1707 = vmul.f32 %v1704, 1.442695
    %v1708 = vpow.pop %v1707
    %v1709 = vmul.f32 %v1705, 1.442695
    %v1710 = vpow.pop %v1709
    %v1711 = vmul.f32 %v1706, 1.442695
    %v1712 = vpow.pop %v1711
    %v1713 = vadd.f32 %v1708, 1.0
    %v1714 = vadd.f32 %v1710, 1.0
    %v1715 = vadd.f32 %v1712, 1.0
    %v1716 = vrcp.pop %v1713
    %v1717 = vmul.f32 %v1713, %v1716
    %v1718 = vsub.f32 1.0, %v1717
    %v1719 = vmul.f32 %v1716, %v1718
    %v1720 = vadd.f32 %v1716, %v1719
    %vm1721 = vweird.f32 %v1713
    %vm1722 = vweird.f32 %v1716
    %vm1723 = vmor %vm1721, %vm1722
    %v1724 = vsel %vm1723, %v1716, %v1720
    %v1725 = vand.u32 2147483647, %v1713
    %vm1726 = vcmp.eq.f32.partialorder %v1725, 8.507059e+37
    %v1727 = vand.u32 %v1713, 2147483648
    %v1728 = vor.u32 1.1754944e-38, %v1727
    %v1729 = vsel %vm1726, %v1728, %v1724
    %v1730 = vmul.f32 1.0, %v1729
    %v1731 = vrcp.pop %v1714
    %v1732 = vmul.f32 %v1714, %v1731
    %v1733 = vsub.f32 1.0, %v1732
    %v1734 = vmul.f32 %v1731, %v1733
    %v1735 = vadd.f32 %v1731, %v1734
    %vm1736 = vweird.f32 %v1714
    %vm1737 = vweird.f32 %v1731
    %vm1738 = vmor %vm1736, %vm1737
    %v1739 = vsel %vm1738, %v1731, %v1735
    %v1740 = vand.u32 2147483647, %v1714
    %vm1741 = vcmp.eq.f32.partialorder %v1740, 8.507059e+37
    %v1742 = vand.u32 %v1714, 2147483648
    %v1743 = vor.u32 1.1754944e-38, %v1742
    %v1744 = vsel %vm1741, %v1743, %v1739
    %v1745 = vmul.f32 1.0, %v1744
    %v1746 = vrcp.pop %v1715
    %v1747 = vmul.f32 %v1715, %v1746
    %v1748 = vsub.f32 1.0, %v1747
    %v1749 = vmul.f32 %v1746, %v1748
    %v1750 = vadd.f32 %v1746, %v1749
    %vm1751 = vweird.f32 %v1715
    %vm1752 = vweird.f32 %v1746
    %vm1753 = vmor %vm1751, %vm1752
    %v1754 = vsel %vm1753, %v1746, %v1750
    %v1755 = vand.u32 2147483647, %v1715
    %vm1756 = vcmp.eq.f32.partialorder %v1755, 8.507059e+37
    %v1757 = vand.u32 %v1715, 2147483648
    %v1758 = vor.u32 1.1754944e-38, %v1757
    %v1759 = vsel %vm1756, %v1758, %v1754
    %v1760 = vmul.f32 1.0, %v1759
    %v1761 = vtanh.pop %v1702
    %v1762 = vmul.f32 %v1745, %v1551
    %v1763 = vmul.f32 %v1730, %v1761
    %v1764 = vadd.f32 %v1762, %v1763
    %v1765 = vtanh.pop %v1764
    %v1766 = vmul.f32 %v1760, %v1765
    %v1768 = vrot.slane %v1766, 1
    %v1769 = vrot.slane %v1766, 2
    %v1770 = vrot.slane %v1766, 3
    %v1771 = vrot.slane %v1766, 4
    %v1772 = vrot.slane %v1766, 5
    %v1773 = vrot.slane %v1766, 6
    %v1774 = vrot.slane %v1766, 7
    %1782 = vst [vmem:[#allocation4 + $0x7] sm:$0x1] %v1766
    %1783 = vst [vmem:[#allocation4 + $0x17] sm:$0x1] %v1768
    %1784 = vst [vmem:[#allocation4 + $0x27] sm:$0x1] %v1769
    %1785 = vst [vmem:[#allocation4 + $0x37] sm:$0x1] %v1770
    %1786 = vst [vmem:[#allocation4 + $0x47] sm:$0x1] %v1771
    %1787 = vst [vmem:[#allocation4 + $0x57] sm:$0x1] %v1772
    %1788 = vst [vmem:[#allocation4 + $0x67] sm:$0x1] %v1773
    %1789 = vst [vmem:[#allocation4 + $0x77] sm:$0x1] %v1774
    %s1790 = scalar_lea.vmem %s0, 32
    %v1791 = vld [vmem:[%s1790] ss:$8 sm:$0xf]
    %s1792 = scalar_lea.vmem %s0, 96
    %v1793 = vld [vmem:[%s1792] ss:$8 sm:$0xf]
    %s1794 = scalar_lea.vmem %s0, 160
    %v1795 = vld [vmem:[%s1794] ss:$8 sm:$0xf]
    %s1796 = scalar_lea.vmem %s0, 224
    %v1797 = vld [vmem:[%s1796] ss:$8 sm:$0xf]
    %s1798 = scalar_lea.vmem %s0, 288
    %v1799 = vld [vmem:[%s1798] ss:$8 sm:$0xf]
    %s1800 = scalar_lea.vmem %s0, 352
    %v1801 = vld [vmem:[%s1800] ss:$8 sm:$0xf]
    %s1802 = scalar_lea.vmem %s0, 416
    %v1803 = vld [vmem:[%s1802] ss:$8 sm:$0xf]
    %s1804 = scalar_lea.vmem %s0, 480
    %v1805 = vld [vmem:[%s1804] ss:$8 sm:$0xf]
    %1814 = vst [vmem:[#allocation1] ss:$9 sm:$0xff] %v1791
    %s1815 = scalar_lea.vmem [#allocation1], 1
    %1816 = vst [vmem:[%s1815] ss:$9 sm:$0xff] %v1793
    %s1817 = scalar_lea.vmem [#allocation1], 2
    %1818 = vst [vmem:[%s1817] ss:$9 sm:$0xff] %v1795
    %s1819 = scalar_lea.vmem [#allocation1], 3
    %1820 = vst [vmem:[%s1819] ss:$9 sm:$0xff] %v1797
    %s1821 = scalar_lea.vmem [#allocation1], 4
    %1822 = vst [vmem:[%s1821] ss:$9 sm:$0xff] %v1799
    %s1823 = scalar_lea.vmem [#allocation1], 5
    %1824 = vst [vmem:[%s1823] ss:$9 sm:$0xff] %v1801
    %s1825 = scalar_lea.vmem [#allocation1], 6
    %1826 = vst [vmem:[%s1825] ss:$9 sm:$0xff] %v1803
    %s1827 = scalar_lea.vmem [#allocation1], 7
    %1828 = vst [vmem:[%s1827] ss:$9 sm:$0xff] %v1805
    %v1829 = vld [vmem:[#allocation1] sm:$0xff]
    %v1830 = vld [vmem:[#allocation1 + $0x9] sm:$0xff]
    %v1831 = vld [vmem:[#allocation1 + $0x12] sm:$0xff]
    %v1832 = vld [vmem:[#allocation1 + $0x1b] sm:$0xff]
    %1837 = vmatpush.msra.mxu0 %v83
    %1838 = vmatpush.msra.mxu0 %v79
    %1839 = vmatpush.msra.mxu0 %v75
    %1840 = vmatpush.msra.mxu0 %v71
    %1841 = vmatpush.msra.mxu0 %v67
    %1842 = vmatpush.msra.mxu0 %v63
    %1843 = vmatpush.msra.mxu0 %v59
    %1844 = vmatpush.msra.mxu0 %v55
    %1845 = vmatpush.msra.mxu0 %v51
    %1846 = vmatpush.msra.mxu0 %v47
    %1847 = vmatpush.msra.mxu0 %v43
    %1848 = vmatpush.msra.mxu0 %v39
    %1849 = vmatpush.msra.mxu0 %v35
    %1850 = vmatpush.msra.mxu0 %v31
    %1851 = vmatpush.msra.mxu0 %v27
    %1852 = vmatpush.msra.mxu0 %v23
    %1853 = vmatmul.f32.gmra.mxu0 %v1766
    %v1854 = vpop.f32.mrf.mxu0
    %v1855 = vadd.f32 %v1829, %v1854
    %1856 = vdwg.mxu0
    %1857 = vmatpush.msra.mxu0 %v84
    %1858 = vmatpush.msra.mxu0 %v80
    %1859 = vmatpush.msra.mxu0 %v76
    %1860 = vmatpush.msra.mxu0 %v72
    %1861 = vmatpush.msra.mxu0 %v68
    %1862 = vmatpush.msra.mxu0 %v64
    %1863 = vmatpush.msra.mxu0 %v60
    %1864 = vmatpush.msra.mxu0 %v56
    %1865 = vmatpush.msra.mxu0 %v52
    %1866 = vmatpush.msra.mxu0 %v48
    %1867 = vmatpush.msra.mxu0 %v44
    %1868 = vmatpush.msra.mxu0 %v40
    %1869 = vmatpush.msra.mxu0 %v36
    %1870 = vmatpush.msra.mxu0 %v32
    %1871 = vmatpush.msra.mxu0 %v28
    %1872 = vmatpush.msra.mxu0 %v24
    %1873 = vmatmul.f32.gmra.mxu0 %v1766
    %v1874 = vpop.f32.mrf.mxu0
    %v1875 = vadd.f32 %v1830, %v1874
    %1876 = vdwg.mxu0
    %1877 = vmatpush.msra.mxu0 %v85
    %1878 = vmatpush.msra.mxu0 %v81
    %1879 = vmatpush.msra.mxu0 %v77
    %1880 = vmatpush.msra.mxu0 %v73
    %1881 = vmatpush.msra.mxu0 %v69
    %1882 = vmatpush.msra.mxu0 %v65
    %1883 = vmatpush.msra.mxu0 %v61
    %1884 = vmatpush.msra.mxu0 %v57
    %1885 = vmatpush.msra.mxu0 %v53
    %1886 = vmatpush.msra.mxu0 %v49
    %1887 = vmatpush.msra.mxu0 %v45
    %1888 = vmatpush.msra.mxu0 %v41
    %1889 = vmatpush.msra.mxu0 %v37
    %1890 = vmatpush.msra.mxu0 %v33
    %1891 = vmatpush.msra.mxu0 %v29
    %1892 = vmatpush.msra.mxu0 %v25
    %1893 = vmatmul.f32.gmra.mxu0 %v1766
    %v1894 = vpop.f32.mrf.mxu0
    %v1895 = vadd.f32 %v1831, %v1894
    %1896 = vdwg.mxu0
    %1897 = vmatpush.msra.mxu0 %v86
    %1898 = vmatpush.msra.mxu0 %v82
    %1899 = vmatpush.msra.mxu0 %v78
    %1900 = vmatpush.msra.mxu0 %v74
    %1901 = vmatpush.msra.mxu0 %v70
    %1902 = vmatpush.msra.mxu0 %v66
    %1903 = vmatpush.msra.mxu0 %v62
    %1904 = vmatpush.msra.mxu0 %v58
    %1905 = vmatpush.msra.mxu0 %v54
    %1906 = vmatpush.msra.mxu0 %v50
    %1907 = vmatpush.msra.mxu0 %v46
    %1908 = vmatpush.msra.mxu0 %v42
    %1909 = vmatpush.msra.mxu0 %v38
    %1910 = vmatpush.msra.mxu0 %v34
    %1911 = vmatpush.msra.mxu0 %v30
    %1912 = vmatpush.msra.mxu0 %v26
    %1913 = vmatmul.f32.gmra.mxu0 %v1766
    %v1914 = vpop.f32.mrf.mxu0
    %v1915 = vadd.f32 %v1832, %v1914
    %1916 = vdwg.mxu0
    %v1917 = vxor.u32 %v1855, 2147483648
    %v1918 = vxor.u32 %v1875, 2147483648
    %v1919 = vxor.u32 %v1895, 2147483648
    %v1920 = vmul.f32 %v1917, 1.442695
    %v1921 = vpow.pop %v1920
    %v1922 = vmul.f32 %v1918, 1.442695
    %v1923 = vpow.pop %v1922
    %v1924 = vmul.f32 %v1919, 1.442695
    %v1925 = vpow.pop %v1924
    %v1926 = vadd.f32 %v1921, 1.0
    %v1927 = vadd.f32 %v1923, 1.0
    %v1928 = vadd.f32 %v1925, 1.0
    %v1929 = vrcp.pop %v1926
    %v1930 = vmul.f32 %v1926, %v1929
    %v1931 = vsub.f32 1.0, %v1930
    %v1932 = vmul.f32 %v1929, %v1931
    %v1933 = vadd.f32 %v1929, %v1932
    %vm1934 = vweird.f32 %v1926
    %vm1935 = vweird.f32 %v1929
    %vm1936 = vmor %vm1934, %vm1935
    %v1937 = vsel %vm1936, %v1929, %v1933
    %v1938 = vand.u32 2147483647, %v1926
    %vm1939 = vcmp.eq.f32.partialorder %v1938, 8.507059e+37
    %v1940 = vand.u32 %v1926, 2147483648
    %v1941 = vor.u32 1.1754944e-38, %v1940
    %v1942 = vsel %vm1939, %v1941, %v1937
    %v1943 = vmul.f32 1.0, %v1942
    %v1944 = vrcp.pop %v1927
    %v1945 = vmul.f32 %v1927, %v1944
    %v1946 = vsub.f32 1.0, %v1945
    %v1947 = vmul.f32 %v1944, %v1946
    %v1948 = vadd.f32 %v1944, %v1947
    %vm1949 = vweird.f32 %v1927
    %vm1950 = vweird.f32 %v1944
    %vm1951 = vmor %vm1949, %vm1950
    %v1952 = vsel %vm1951, %v1944, %v1948
    %v1953 = vand.u32 2147483647, %v1927
    %vm1954 = vcmp.eq.f32.partialorder %v1953, 8.507059e+37
    %v1955 = vand.u32 %v1927, 2147483648
    %v1956 = vor.u32 1.1754944e-38, %v1955
    %v1957 = vsel %vm1954, %v1956, %v1952
    %v1958 = vmul.f32 1.0, %v1957
    %v1959 = vrcp.pop %v1928
    %v1960 = vmul.f32 %v1928, %v1959
    %v1961 = vsub.f32 1.0, %v1960
    %v1962 = vmul.f32 %v1959, %v1961
    %v1963 = vadd.f32 %v1959, %v1962
    %vm1964 = vweird.f32 %v1928
    %vm1965 = vweird.f32 %v1959
    %vm1966 = vmor %vm1964, %vm1965
    %v1967 = vsel %vm1966, %v1959, %v1963
    %v1968 = vand.u32 2147483647, %v1928
    %vm1969 = vcmp.eq.f32.partialorder %v1968, 8.507059e+37
    %v1970 = vand.u32 %v1928, 2147483648
    %v1971 = vor.u32 1.1754944e-38, %v1970
    %v1972 = vsel %vm1969, %v1971, %v1967
    %v1973 = vmul.f32 1.0, %v1972
    %v1974 = vtanh.pop %v1915
    %v1975 = vmul.f32 %v1958, %v1764
    %v1976 = vmul.f32 %v1943, %v1974
    %v1977 = vadd.f32 %v1975, %v1976
    %v1978 = vtanh.pop %v1977
    %v1979 = vmul.f32 %v1973, %v1978
    %v1981 = vrot.slane %v1979, 1
    %v1982 = vrot.slane %v1979, 2
    %v1983 = vrot.slane %v1979, 3
    %v1984 = vrot.slane %v1979, 4
    %v1985 = vrot.slane %v1979, 5
    %v1986 = vrot.slane %v1979, 6
    %v1987 = vrot.slane %v1979, 7
    %1995 = vst [vmem:[#allocation4 + $0x8] sm:$0x1] %v1979
    %1996 = vst [vmem:[#allocation4 + $0x18] sm:$0x1] %v1981
    %1997 = vst [vmem:[#allocation4 + $0x28] sm:$0x1] %v1982
    %1998 = vst [vmem:[#allocation4 + $0x38] sm:$0x1] %v1983
    %1999 = vst [vmem:[#allocation4 + $0x48] sm:$0x1] %v1984
    %2000 = vst [vmem:[#allocation4 + $0x58] sm:$0x1] %v1985
    %2001 = vst [vmem:[#allocation4 + $0x68] sm:$0x1] %v1986
    %2002 = vst [vmem:[#allocation4 + $0x78] sm:$0x1] %v1987
    %s2003 = scalar_lea.vmem %s0, 33
    %v2004 = vld [vmem:[%s2003] ss:$8 sm:$0xf]
    %s2005 = scalar_lea.vmem %s0, 97
    %v2006 = vld [vmem:[%s2005] ss:$8 sm:$0xf]
    %s2007 = scalar_lea.vmem %s0, 161
    %v2008 = vld [vmem:[%s2007] ss:$8 sm:$0xf]
    %s2009 = scalar_lea.vmem %s0, 225
    %v2010 = vld [vmem:[%s2009] ss:$8 sm:$0xf]
    %s2011 = scalar_lea.vmem %s0, 289
    %v2012 = vld [vmem:[%s2011] ss:$8 sm:$0xf]
    %s2013 = scalar_lea.vmem %s0, 353
    %v2014 = vld [vmem:[%s2013] ss:$8 sm:$0xf]
    %s2015 = scalar_lea.vmem %s0, 417
    %v2016 = vld [vmem:[%s2015] ss:$8 sm:$0xf]
    %s2017 = scalar_lea.vmem %s0, 481
    %v2018 = vld [vmem:[%s2017] ss:$8 sm:$0xf]
    %2027 = vst [vmem:[#allocation1] ss:$9 sm:$0xff] %v2004
    %s2028 = scalar_lea.vmem [#allocation1], 1
    %2029 = vst [vmem:[%s2028] ss:$9 sm:$0xff] %v2006
    %s2030 = scalar_lea.vmem [#allocation1], 2
    %2031 = vst [vmem:[%s2030] ss:$9 sm:$0xff] %v2008
    %s2032 = scalar_lea.vmem [#allocation1], 3
    %2033 = vst [vmem:[%s2032] ss:$9 sm:$0xff] %v2010
    %s2034 = scalar_lea.vmem [#allocation1], 4
    %2035 = vst [vmem:[%s2034] ss:$9 sm:$0xff] %v2012
    %s2036 = scalar_lea.vmem [#allocation1], 5
    %2037 = vst [vmem:[%s2036] ss:$9 sm:$0xff] %v2014
    %s2038 = scalar_lea.vmem [#allocation1], 6
    %2039 = vst [vmem:[%s2038] ss:$9 sm:$0xff] %v2016
    %s2040 = scalar_lea.vmem [#allocation1], 7
    %2041 = vst [vmem:[%s2040] ss:$9 sm:$0xff] %v2018
    %v2042 = vld [vmem:[#allocation1] sm:$0xff]
    %v2043 = vld [vmem:[#allocation1 + $0x9] sm:$0xff]
    %v2044 = vld [vmem:[#allocation1 + $0x12] sm:$0xff]
    %v2045 = vld [vmem:[#allocation1 + $0x1b] sm:$0xff]
    %2050 = vmatpush.msra.mxu0 %v83
    %2051 = vmatpush.msra.mxu0 %v79
    %2052 = vmatpush.msra.mxu0 %v75
    %2053 = vmatpush.msra.mxu0 %v71
    %2054 = vmatpush.msra.mxu0 %v67
    %2055 = vmatpush.msra.mxu0 %v63
    %2056 = vmatpush.msra.mxu0 %v59
    %2057 = vmatpush.msra.mxu0 %v55
    %2058 = vmatpush.msra.mxu0 %v51
    %2059 = vmatpush.msra.mxu0 %v47
    %2060 = vmatpush.msra.mxu0 %v43
    %2061 = vmatpush.msra.mxu0 %v39
    %2062 = vmatpush.msra.mxu0 %v35
    %2063 = vmatpush.msra.mxu0 %v31
    %2064 = vmatpush.msra.mxu0 %v27
    %2065 = vmatpush.msra.mxu0 %v23
    %2066 = vmatmul.f32.gmra.mxu0 %v1979
    %v2067 = vpop.f32.mrf.mxu0
    %v2068 = vadd.f32 %v2042, %v2067
    %2069 = vdwg.mxu0
    %2070 = vmatpush.msra.mxu0 %v84
    %2071 = vmatpush.msra.mxu0 %v80
    %2072 = vmatpush.msra.mxu0 %v76
    %2073 = vmatpush.msra.mxu0 %v72
    %2074 = vmatpush.msra.mxu0 %v68
    %2075 = vmatpush.msra.mxu0 %v64
    %2076 = vmatpush.msra.mxu0 %v60
    %2077 = vmatpush.msra.mxu0 %v56
    %2078 = vmatpush.msra.mxu0 %v52
    %2079 = vmatpush.msra.mxu0 %v48
    %2080 = vmatpush.msra.mxu0 %v44
    %2081 = vmatpush.msra.mxu0 %v40
    %2082 = vmatpush.msra.mxu0 %v36
    %2083 = vmatpush.msra.mxu0 %v32
    %2084 = vmatpush.msra.mxu0 %v28
    %2085 = vmatpush.msra.mxu0 %v24
    %2086 = vmatmul.f32.gmra.mxu0 %v1979
    %v2087 = vpop.f32.mrf.mxu0
    %v2088 = vadd.f32 %v2043, %v2087
    %2089 = vdwg.mxu0
    %2090 = vmatpush.msra.mxu0 %v85
    %2091 = vmatpush.msra.mxu0 %v81
    %2092 = vmatpush.msra.mxu0 %v77
    %2093 = vmatpush.msra.mxu0 %v73
    %2094 = vmatpush.msra.mxu0 %v69
    %2095 = vmatpush.msra.mxu0 %v65
    %2096 = vmatpush.msra.mxu0 %v61
    %2097 = vmatpush.msra.mxu0 %v57
    %2098 = vmatpush.msra.mxu0 %v53
    %2099 = vmatpush.msra.mxu0 %v49
    %2100 = vmatpush.msra.mxu0 %v45
    %2101 = vmatpush.msra.mxu0 %v41
    %2102 = vmatpush.msra.mxu0 %v37
    %2103 = vmatpush.msra.mxu0 %v33
    %2104 = vmatpush.msra.mxu0 %v29
    %2105 = vmatpush.msra.mxu0 %v25
    %2106 = vmatmul.f32.gmra.mxu0 %v1979
    %v2107 = vpop.f32.mrf.mxu0
    %v2108 = vadd.f32 %v2044, %v2107
    %2109 = vdwg.mxu0
    %2110 = vmatpush.msra.mxu0 %v86
    %2111 = vmatpush.msra.mxu0 %v82
    %2112 = vmatpush.msra.mxu0 %v78
    %2113 = vmatpush.msra.mxu0 %v74
    %2114 = vmatpush.msra.mxu0 %v70
    %2115 = vmatpush.msra.mxu0 %v66
    %2116 = vmatpush.msra.mxu0 %v62
    %2117 = vmatpush.msra.mxu0 %v58
    %2118 = vmatpush.msra.mxu0 %v54
    %2119 = vmatpush.msra.mxu0 %v50
    %2120 = vmatpush.msra.mxu0 %v46
    %2121 = vmatpush.msra.mxu0 %v42
    %2122 = vmatpush.msra.mxu0 %v38
    %2123 = vmatpush.msra.mxu0 %v34
    %2124 = vmatpush.msra.mxu0 %v30
    %2125 = vmatpush.msra.mxu0 %v26
    %2126 = vmatmul.f32.gmra.mxu0 %v1979
    %v2127 = vpop.f32.mrf.mxu0
    %v2128 = vadd.f32 %v2045, %v2127
    %2129 = vdwg.mxu0
    %v2130 = vxor.u32 %v2068, 2147483648
    %v2131 = vxor.u32 %v2088, 2147483648
    %v2132 = vxor.u32 %v2108, 2147483648
    %v2133 = vmul.f32 %v2130, 1.442695
    %v2134 = vpow.pop %v2133
    %v2135 = vmul.f32 %v2131, 1.442695
    %v2136 = vpow.pop %v2135
    %v2137 = vmul.f32 %v2132, 1.442695
    %v2138 = vpow.pop %v2137
    %v2139 = vadd.f32 %v2134, 1.0
    %v2140 = vadd.f32 %v2136, 1.0
    %v2141 = vadd.f32 %v2138, 1.0
    %v2142 = vrcp.pop %v2139
    %v2143 = vmul.f32 %v2139, %v2142
    %v2144 = vsub.f32 1.0, %v2143
    %v2145 = vmul.f32 %v2142, %v2144
    %v2146 = vadd.f32 %v2142, %v2145
    %vm2147 = vweird.f32 %v2139
    %vm2148 = vweird.f32 %v2142
    %vm2149 = vmor %vm2147, %vm2148
    %v2150 = vsel %vm2149, %v2142, %v2146
    %v2151 = vand.u32 2147483647, %v2139
    %vm2152 = vcmp.eq.f32.partialorder %v2151, 8.507059e+37
    %v2153 = vand.u32 %v2139, 2147483648
    %v2154 = vor.u32 1.1754944e-38, %v2153
    %v2155 = vsel %vm2152, %v2154, %v2150
    %v2156 = vmul.f32 1.0, %v2155
    %v2157 = vrcp.pop %v2140
    %v2158 = vmul.f32 %v2140, %v2157
    %v2159 = vsub.f32 1.0, %v2158
    %v2160 = vmul.f32 %v2157, %v2159
    %v2161 = vadd.f32 %v2157, %v2160
    %vm2162 = vweird.f32 %v2140
    %vm2163 = vweird.f32 %v2157
    %vm2164 = vmor %vm2162, %vm2163
    %v2165 = vsel %vm2164, %v2157, %v2161
    %v2166 = vand.u32 2147483647, %v2140
    %vm2167 = vcmp.eq.f32.partialorder %v2166, 8.507059e+37
    %v2168 = vand.u32 %v2140, 2147483648
    %v2169 = vor.u32 1.1754944e-38, %v2168
    %v2170 = vsel %vm2167, %v2169, %v2165
    %v2171 = vmul.f32 1.0, %v2170
    %v2172 = vrcp.pop %v2141
    %v2173 = vmul.f32 %v2141, %v2172
    %v2174 = vsub.f32 1.0, %v2173
    %v2175 = vmul.f32 %v2172, %v2174
    %v2176 = vadd.f32 %v2172, %v2175
    %vm2177 = vweird.f32 %v2141
    %vm2178 = vweird.f32 %v2172
    %vm2179 = vmor %vm2177, %vm2178
    %v2180 = vsel %vm2179, %v2172, %v2176
    %v2181 = vand.u32 2147483647, %v2141
    %vm2182 = vcmp.eq.f32.partialorder %v2181, 8.507059e+37
    %v2183 = vand.u32 %v2141, 2147483648
    %v2184 = vor.u32 1.1754944e-38, %v2183
    %v2185 = vsel %vm2182, %v2184, %v2180
    %v2186 = vmul.f32 1.0, %v2185
    %v2187 = vtanh.pop %v2128
    %v2188 = vmul.f32 %v2171, %v1977
    %v2189 = vmul.f32 %v2156, %v2187
    %v2190 = vadd.f32 %v2188, %v2189
    %v2191 = vtanh.pop %v2190
    %v2192 = vmul.f32 %v2186, %v2191
    %v2194 = vrot.slane %v2192, 1
    %v2195 = vrot.slane %v2192, 2
    %v2196 = vrot.slane %v2192, 3
    %v2197 = vrot.slane %v2192, 4
    %v2198 = vrot.slane %v2192, 5
    %v2199 = vrot.slane %v2192, 6
    %v2200 = vrot.slane %v2192, 7
    %2208 = vst [vmem:[#allocation4 + $0x9] sm:$0x1] %v2192
    %2209 = vst [vmem:[#allocation4 + $0x19] sm:$0x1] %v2194
    %2210 = vst [vmem:[#allocation4 + $0x29] sm:$0x1] %v2195
    %2211 = vst [vmem:[#allocation4 + $0x39] sm:$0x1] %v2196
    %2212 = vst [vmem:[#allocation4 + $0x49] sm:$0x1] %v2197
    %2213 = vst [vmem:[#allocation4 + $0x59] sm:$0x1] %v2198
    %2214 = vst [vmem:[#allocation4 + $0x69] sm:$0x1] %v2199
    %2215 = vst [vmem:[#allocation4 + $0x79] sm:$0x1] %v2200
    %s2216 = scalar_lea.vmem %s0, 34
    %v2217 = vld [vmem:[%s2216] ss:$8 sm:$0xf]
    %s2218 = scalar_lea.vmem %s0, 98
    %v2219 = vld [vmem:[%s2218] ss:$8 sm:$0xf]
    %s2220 = scalar_lea.vmem %s0, 162
    %v2221 = vld [vmem:[%s2220] ss:$8 sm:$0xf]
    %s2222 = scalar_lea.vmem %s0, 226
    %v2223 = vld [vmem:[%s2222] ss:$8 sm:$0xf]
    %s2224 = scalar_lea.vmem %s0, 290
    %v2225 = vld [vmem:[%s2224] ss:$8 sm:$0xf]
    %s2226 = scalar_lea.vmem %s0, 354
    %v2227 = vld [vmem:[%s2226] ss:$8 sm:$0xf]
    %s2228 = scalar_lea.vmem %s0, 418
    %v2229 = vld [vmem:[%s2228] ss:$8 sm:$0xf]
    %s2230 = scalar_lea.vmem %s0, 482
    %v2231 = vld [vmem:[%s2230] ss:$8 sm:$0xf]
    %2240 = vst [vmem:[#allocation1] ss:$9 sm:$0xff] %v2217
    %s2241 = scalar_lea.vmem [#allocation1], 1
    %2242 = vst [vmem:[%s2241] ss:$9 sm:$0xff] %v2219
    %s2243 = scalar_lea.vmem [#allocation1], 2
    %2244 = vst [vmem:[%s2243] ss:$9 sm:$0xff] %v2221
    %s2245 = scalar_lea.vmem [#allocation1], 3
    %2246 = vst [vmem:[%s2245] ss:$9 sm:$0xff] %v2223
    %s2247 = scalar_lea.vmem [#allocation1], 4
    %2248 = vst [vmem:[%s2247] ss:$9 sm:$0xff] %v2225
    %s2249 = scalar_lea.vmem [#allocation1], 5
    %2250 = vst [vmem:[%s2249] ss:$9 sm:$0xff] %v2227
    %s2251 = scalar_lea.vmem [#allocation1], 6
    %2252 = vst [vmem:[%s2251] ss:$9 sm:$0xff] %v2229
    %s2253 = scalar_lea.vmem [#allocation1], 7
    %2254 = vst [vmem:[%s2253] ss:$9 sm:$0xff] %v2231
    %v2255 = vld [vmem:[#allocation1] sm:$0xff]
    %v2256 = vld [vmem:[#allocation1 + $0x9] sm:$0xff]
    %v2257 = vld [vmem:[#allocation1 + $0x12] sm:$0xff]
    %v2258 = vld [vmem:[#allocation1 + $0x1b] sm:$0xff]
    %2263 = vmatpush.msra.mxu0 %v83
    %2264 = vmatpush.msra.mxu0 %v79
    %2265 = vmatpush.msra.mxu0 %v75
    %2266 = vmatpush.msra.mxu0 %v71
    %2267 = vmatpush.msra.mxu0 %v67
    %2268 = vmatpush.msra.mxu0 %v63
    %2269 = vmatpush.msra.mxu0 %v59
    %2270 = vmatpush.msra.mxu0 %v55
    %2271 = vmatpush.msra.mxu0 %v51
    %2272 = vmatpush.msra.mxu0 %v47
    %2273 = vmatpush.msra.mxu0 %v43
    %2274 = vmatpush.msra.mxu0 %v39
    %2275 = vmatpush.msra.mxu0 %v35
    %2276 = vmatpush.msra.mxu0 %v31
    %2277 = vmatpush.msra.mxu0 %v27
    %2278 = vmatpush.msra.mxu0 %v23
    %2279 = vmatmul.f32.gmra.mxu0 %v2192
    %v2280 = vpop.f32.mrf.mxu0
    %v2281 = vadd.f32 %v2255, %v2280
    %2282 = vdwg.mxu0
    %2283 = vmatpush.msra.mxu0 %v84
    %2284 = vmatpush.msra.mxu0 %v80
    %2285 = vmatpush.msra.mxu0 %v76
    %2286 = vmatpush.msra.mxu0 %v72
    %2287 = vmatpush.msra.mxu0 %v68
    %2288 = vmatpush.msra.mxu0 %v64
    %2289 = vmatpush.msra.mxu0 %v60
    %2290 = vmatpush.msra.mxu0 %v56
    %2291 = vmatpush.msra.mxu0 %v52
    %2292 = vmatpush.msra.mxu0 %v48
    %2293 = vmatpush.msra.mxu0 %v44
    %2294 = vmatpush.msra.mxu0 %v40
    %2295 = vmatpush.msra.mxu0 %v36
    %2296 = vmatpush.msra.mxu0 %v32
    %2297 = vmatpush.msra.mxu0 %v28
    %2298 = vmatpush.msra.mxu0 %v24
    %2299 = vmatmul.f32.gmra.mxu0 %v2192
    %v2300 = vpop.f32.mrf.mxu0
    %v2301 = vadd.f32 %v2256, %v2300
    %2302 = vdwg.mxu0
    %2303 = vmatpush.msra.mxu0 %v85
    %2304 = vmatpush.msra.mxu0 %v81
    %2305 = vmatpush.msra.mxu0 %v77
    %2306 = vmatpush.msra.mxu0 %v73
    %2307 = vmatpush.msra.mxu0 %v69
    %2308 = vmatpush.msra.mxu0 %v65
    %2309 = vmatpush.msra.mxu0 %v61
    %2310 = vmatpush.msra.mxu0 %v57
    %2311 = vmatpush.msra.mxu0 %v53
    %2312 = vmatpush.msra.mxu0 %v49
    %2313 = vmatpush.msra.mxu0 %v45
    %2314 = vmatpush.msra.mxu0 %v41
    %2315 = vmatpush.msra.mxu0 %v37
    %2316 = vmatpush.msra.mxu0 %v33
    %2317 = vmatpush.msra.mxu0 %v29
    %2318 = vmatpush.msra.mxu0 %v25
    %2319 = vmatmul.f32.gmra.mxu0 %v2192
    %v2320 = vpop.f32.mrf.mxu0
    %v2321 = vadd.f32 %v2257, %v2320
    %2322 = vdwg.mxu0
    %2323 = vmatpush.msra.mxu0 %v86
    %2324 = vmatpush.msra.mxu0 %v82
    %2325 = vmatpush.msra.mxu0 %v78
    %2326 = vmatpush.msra.mxu0 %v74
    %2327 = vmatpush.msra.mxu0 %v70
    %2328 = vmatpush.msra.mxu0 %v66
    %2329 = vmatpush.msra.mxu0 %v62
    %2330 = vmatpush.msra.mxu0 %v58
    %2331 = vmatpush.msra.mxu0 %v54
    %2332 = vmatpush.msra.mxu0 %v50
    %2333 = vmatpush.msra.mxu0 %v46
    %2334 = vmatpush.msra.mxu0 %v42
    %2335 = vmatpush.msra.mxu0 %v38
    %2336 = vmatpush.msra.mxu0 %v34
    %2337 = vmatpush.msra.mxu0 %v30
    %2338 = vmatpush.msra.mxu0 %v26
    %2339 = vmatmul.f32.gmra.mxu0 %v2192
    %v2340 = vpop.f32.mrf.mxu0
    %v2341 = vadd.f32 %v2258, %v2340
    %2342 = vdwg.mxu0
    %v2343 = vxor.u32 %v2281, 2147483648
    %v2344 = vxor.u32 %v2301, 2147483648
    %v2345 = vxor.u32 %v2321, 2147483648
    %v2346 = vmul.f32 %v2343, 1.442695
    %v2347 = vpow.pop %v2346
    %v2348 = vmul.f32 %v2344, 1.442695
    %v2349 = vpow.pop %v2348
    %v2350 = vmul.f32 %v2345, 1.442695
    %v2351 = vpow.pop %v2350
    %v2352 = vadd.f32 %v2347, 1.0
    %v2353 = vadd.f32 %v2349, 1.0
    %v2354 = vadd.f32 %v2351, 1.0
    %v2355 = vrcp.pop %v2352
    %v2356 = vmul.f32 %v2352, %v2355
    %v2357 = vsub.f32 1.0, %v2356
    %v2358 = vmul.f32 %v2355, %v2357
    %v2359 = vadd.f32 %v2355, %v2358
    %vm2360 = vweird.f32 %v2352
    %vm2361 = vweird.f32 %v2355
    %vm2362 = vmor %vm2360, %vm2361
    %v2363 = vsel %vm2362, %v2355, %v2359
    %v2364 = vand.u32 2147483647, %v2352
    %vm2365 = vcmp.eq.f32.partialorder %v2364, 8.507059e+37
    %v2366 = vand.u32 %v2352, 2147483648
    %v2367 = vor.u32 1.1754944e-38, %v2366
    %v2368 = vsel %vm2365, %v2367, %v2363
    %v2369 = vmul.f32 1.0, %v2368
    %v2370 = vrcp.pop %v2353
    %v2371 = vmul.f32 %v2353, %v2370
    %v2372 = vsub.f32 1.0, %v2371
    %v2373 = vmul.f32 %v2370, %v2372
    %v2374 = vadd.f32 %v2370, %v2373
    %vm2375 = vweird.f32 %v2353
    %vm2376 = vweird.f32 %v2370
    %vm2377 = vmor %vm2375, %vm2376
    %v2378 = vsel %vm2377, %v2370, %v2374
    %v2379 = vand.u32 2147483647, %v2353
    %vm2380 = vcmp.eq.f32.partialorder %v2379, 8.507059e+37
    %v2381 = vand.u32 %v2353, 2147483648
    %v2382 = vor.u32 1.1754944e-38, %v2381
    %v2383 = vsel %vm2380, %v2382, %v2378
    %v2384 = vmul.f32 1.0, %v2383
    %v2385 = vrcp.pop %v2354
    %v2386 = vmul.f32 %v2354, %v2385
    %v2387 = vsub.f32 1.0, %v2386
    %v2388 = vmul.f32 %v2385, %v2387
    %v2389 = vadd.f32 %v2385, %v2388
    %vm2390 = vweird.f32 %v2354
    %vm2391 = vweird.f32 %v2385
    %vm2392 = vmor %vm2390, %vm2391
    %v2393 = vsel %vm2392, %v2385, %v2389
    %v2394 = vand.u32 2147483647, %v2354
    %vm2395 = vcmp.eq.f32.partialorder %v2394, 8.507059e+37
    %v2396 = vand.u32 %v2354, 2147483648
    %v2397 = vor.u32 1.1754944e-38, %v2396
    %v2398 = vsel %vm2395, %v2397, %v2393
    %v2399 = vmul.f32 1.0, %v2398
    %v2400 = vtanh.pop %v2341
    %v2401 = vmul.f32 %v2384, %v2190
    %v2402 = vmul.f32 %v2369, %v2400
    %v2403 = vadd.f32 %v2401, %v2402
    %v2404 = vtanh.pop %v2403
    %v2405 = vmul.f32 %v2399, %v2404
    %v2407 = vrot.slane %v2405, 1
    %v2408 = vrot.slane %v2405, 2
    %v2409 = vrot.slane %v2405, 3
    %v2410 = vrot.slane %v2405, 4
    %v2411 = vrot.slane %v2405, 5
    %v2412 = vrot.slane %v2405, 6
    %v2413 = vrot.slane %v2405, 7
    %2421 = vst [vmem:[#allocation4 + $0xa] sm:$0x1] %v2405
    %2422 = vst [vmem:[#allocation4 + $0x1a] sm:$0x1] %v2407
    %2423 = vst [vmem:[#allocation4 + $0x2a] sm:$0x1] %v2408
    %2424 = vst [vmem:[#allocation4 + $0x3a] sm:$0x1] %v2409
    %2425 = vst [vmem:[#allocation4 + $0x4a] sm:$0x1] %v2410
    %2426 = vst [vmem:[#allocation4 + $0x5a] sm:$0x1] %v2411
    %2427 = vst [vmem:[#allocation4 + $0x6a] sm:$0x1] %v2412
    %2428 = vst [vmem:[#allocation4 + $0x7a] sm:$0x1] %v2413
    %s2429 = scalar_lea.vmem %s0, 35
    %v2430 = vld [vmem:[%s2429] ss:$8 sm:$0xf]
    %s2431 = scalar_lea.vmem %s0, 99
    %v2432 = vld [vmem:[%s2431] ss:$8 sm:$0xf]
    %s2433 = scalar_lea.vmem %s0, 163
    %v2434 = vld [vmem:[%s2433] ss:$8 sm:$0xf]
    %s2435 = scalar_lea.vmem %s0, 227
    %v2436 = vld [vmem:[%s2435] ss:$8 sm:$0xf]
    %s2437 = scalar_lea.vmem %s0, 291
    %v2438 = vld [vmem:[%s2437] ss:$8 sm:$0xf]
    %s2439 = scalar_lea.vmem %s0, 355
    %v2440 = vld [vmem:[%s2439] ss:$8 sm:$0xf]
    %s2441 = scalar_lea.vmem %s0, 419
    %v2442 = vld [vmem:[%s2441] ss:$8 sm:$0xf]
    %s2443 = scalar_lea.vmem %s0, 483
    %v2444 = vld [vmem:[%s2443] ss:$8 sm:$0xf]
    %2453 = vst [vmem:[#allocation1] ss:$9 sm:$0xff] %v2430
    %s2454 = scalar_lea.vmem [#allocation1], 1
    %2455 = vst [vmem:[%s2454] ss:$9 sm:$0xff] %v2432
    %s2456 = scalar_lea.vmem [#allocation1], 2
    %2457 = vst [vmem:[%s2456] ss:$9 sm:$0xff] %v2434
    %s2458 = scalar_lea.vmem [#allocation1], 3
    %2459 = vst [vmem:[%s2458] ss:$9 sm:$0xff] %v2436
    %s2460 = scalar_lea.vmem [#allocation1], 4
    %2461 = vst [vmem:[%s2460] ss:$9 sm:$0xff] %v2438
    %s2462 = scalar_lea.vmem [#allocation1], 5
    %2463 = vst [vmem:[%s2462] ss:$9 sm:$0xff] %v2440
    %s2464 = scalar_lea.vmem [#allocation1], 6
    %2465 = vst [vmem:[%s2464] ss:$9 sm:$0xff] %v2442
    %s2466 = scalar_lea.vmem [#allocation1], 7
    %2467 = vst [vmem:[%s2466] ss:$9 sm:$0xff] %v2444
    %v2468 = vld [vmem:[#allocation1] sm:$0xff]
    %v2469 = vld [vmem:[#allocation1 + $0x9] sm:$0xff]
    %v2470 = vld [vmem:[#allocation1 + $0x12] sm:$0xff]
    %v2471 = vld [vmem:[#allocation1 + $0x1b] sm:$0xff]
    %2476 = vmatpush.msra.mxu0 %v83
    %2477 = vmatpush.msra.mxu0 %v79
    %2478 = vmatpush.msra.mxu0 %v75
    %2479 = vmatpush.msra.mxu0 %v71
    %2480 = vmatpush.msra.mxu0 %v67
    %2481 = vmatpush.msra.mxu0 %v63
    %2482 = vmatpush.msra.mxu0 %v59
    %2483 = vmatpush.msra.mxu0 %v55
    %2484 = vmatpush.msra.mxu0 %v51
    %2485 = vmatpush.msra.mxu0 %v47
    %2486 = vmatpush.msra.mxu0 %v43
    %2487 = vmatpush.msra.mxu0 %v39
    %2488 = vmatpush.msra.mxu0 %v35
    %2489 = vmatpush.msra.mxu0 %v31
    %2490 = vmatpush.msra.mxu0 %v27
    %2491 = vmatpush.msra.mxu0 %v23
    %2492 = vmatmul.f32.gmra.mxu0 %v2405
    %v2493 = vpop.f32.mrf.mxu0
    %v2494 = vadd.f32 %v2468, %v2493
    %2495 = vdwg.mxu0
    %2496 = vmatpush.msra.mxu0 %v84
    %2497 = vmatpush.msra.mxu0 %v80
    %2498 = vmatpush.msra.mxu0 %v76
    %2499 = vmatpush.msra.mxu0 %v72
    %2500 = vmatpush.msra.mxu0 %v68
    %2501 = vmatpush.msra.mxu0 %v64
    %2502 = vmatpush.msra.mxu0 %v60
    %2503 = vmatpush.msra.mxu0 %v56
    %2504 = vmatpush.msra.mxu0 %v52
    %2505 = vmatpush.msra.mxu0 %v48
    %2506 = vmatpush.msra.mxu0 %v44
    %2507 = vmatpush.msra.mxu0 %v40
    %2508 = vmatpush.msra.mxu0 %v36
    %2509 = vmatpush.msra.mxu0 %v32
    %2510 = vmatpush.msra.mxu0 %v28
    %2511 = vmatpush.msra.mxu0 %v24
    %2512 = vmatmul.f32.gmra.mxu0 %v2405
    %v2513 = vpop.f32.mrf.mxu0
    %v2514 = vadd.f32 %v2469, %v2513
    %2515 = vdwg.mxu0
    %2516 = vmatpush.msra.mxu0 %v85
    %2517 = vmatpush.msra.mxu0 %v81
    %2518 = vmatpush.msra.mxu0 %v77
    %2519 = vmatpush.msra.mxu0 %v73
    %2520 = vmatpush.msra.mxu0 %v69
    %2521 = vmatpush.msra.mxu0 %v65
    %2522 = vmatpush.msra.mxu0 %v61
    %2523 = vmatpush.msra.mxu0 %v57
    %2524 = vmatpush.msra.mxu0 %v53
    %2525 = vmatpush.msra.mxu0 %v49
    %2526 = vmatpush.msra.mxu0 %v45
    %2527 = vmatpush.msra.mxu0 %v41
    %2528 = vmatpush.msra.mxu0 %v37
    %2529 = vmatpush.msra.mxu0 %v33
    %2530 = vmatpush.msra.mxu0 %v29
    %2531 = vmatpush.msra.mxu0 %v25
    %2532 = vmatmul.f32.gmra.mxu0 %v2405
    %v2533 = vpop.f32.mrf.mxu0
    %v2534 = vadd.f32 %v2470, %v2533
    %2535 = vdwg.mxu0
    %2536 = vmatpush.msra.mxu0 %v86
    %2537 = vmatpush.msra.mxu0 %v82
    %2538 = vmatpush.msra.mxu0 %v78
    %2539 = vmatpush.msra.mxu0 %v74
    %2540 = vmatpush.msra.mxu0 %v70
    %2541 = vmatpush.msra.mxu0 %v66
    %2542 = vmatpush.msra.mxu0 %v62
    %2543 = vmatpush.msra.mxu0 %v58
    %2544 = vmatpush.msra.mxu0 %v54
    %2545 = vmatpush.msra.mxu0 %v50
    %2546 = vmatpush.msra.mxu0 %v46
    %2547 = vmatpush.msra.mxu0 %v42
    %2548 = vmatpush.msra.mxu0 %v38
    %2549 = vmatpush.msra.mxu0 %v34
    %2550 = vmatpush.msra.mxu0 %v30
    %2551 = vmatpush.msra.mxu0 %v26
    %2552 = vmatmul.f32.gmra.mxu0 %v2405
    %v2553 = vpop.f32.mrf.mxu0
    %v2554 = vadd.f32 %v2471, %v2553
    %2555 = vdwg.mxu0
    %v2556 = vxor.u32 %v2494, 2147483648
    %v2557 = vxor.u32 %v2514, 2147483648
    %v2558 = vxor.u32 %v2534, 2147483648
    %v2559 = vmul.f32 %v2556, 1.442695
    %v2560 = vpow.pop %v2559
    %v2561 = vmul.f32 %v2557, 1.442695
    %v2562 = vpow.pop %v2561
    %v2563 = vmul.f32 %v2558, 1.442695
    %v2564 = vpow.pop %v2563
    %v2565 = vadd.f32 %v2560, 1.0
    %v2566 = vadd.f32 %v2562, 1.0
    %v2567 = vadd.f32 %v2564, 1.0
    %v2568 = vrcp.pop %v2565
    %v2569 = vmul.f32 %v2565, %v2568
    %v2570 = vsub.f32 1.0, %v2569
    %v2571 = vmul.f32 %v2568, %v2570
    %v2572 = vadd.f32 %v2568, %v2571
    %vm2573 = vweird.f32 %v2565
    %vm2574 = vweird.f32 %v2568
    %vm2575 = vmor %vm2573, %vm2574
    %v2576 = vsel %vm2575, %v2568, %v2572
    %v2577 = vand.u32 2147483647, %v2565
    %vm2578 = vcmp.eq.f32.partialorder %v2577, 8.507059e+37
    %v2579 = vand.u32 %v2565, 2147483648
    %v2580 = vor.u32 1.1754944e-38, %v2579
    %v2581 = vsel %vm2578, %v2580, %v2576
    %v2582 = vmul.f32 1.0, %v2581
    %v2583 = vrcp.pop %v2566
    %v2584 = vmul.f32 %v2566, %v2583
    %v2585 = vsub.f32 1.0, %v2584
    %v2586 = vmul.f32 %v2583, %v2585
    %v2587 = vadd.f32 %v2583, %v2586
    %vm2588 = vweird.f32 %v2566
    %vm2589 = vweird.f32 %v2583
    %vm2590 = vmor %vm2588, %vm2589
    %v2591 = vsel %vm2590, %v2583, %v2587
    %v2592 = vand.u32 2147483647, %v2566
    %vm2593 = vcmp.eq.f32.partialorder %v2592, 8.507059e+37
    %v2594 = vand.u32 %v2566, 2147483648
    %v2595 = vor.u32 1.1754944e-38, %v2594
    %v2596 = vsel %vm2593, %v2595, %v2591
    %v2597 = vmul.f32 1.0, %v2596
    %v2598 = vrcp.pop %v2567
    %v2599 = vmul.f32 %v2567, %v2598
    %v2600 = vsub.f32 1.0, %v2599
    %v2601 = vmul.f32 %v2598, %v2600
    %v2602 = vadd.f32 %v2598, %v2601
    %vm2603 = vweird.f32 %v2567
    %vm2604 = vweird.f32 %v2598
    %vm2605 = vmor %vm2603, %vm2604
    %v2606 = vsel %vm2605, %v2598, %v2602
    %v2607 = vand.u32 2147483647, %v2567
    %vm2608 = vcmp.eq.f32.partialorder %v2607, 8.507059e+37
    %v2609 = vand.u32 %v2567, 2147483648
    %v2610 = vor.u32 1.1754944e-38, %v2609
    %v2611 = vsel %vm2608, %v2610, %v2606
    %v2612 = vmul.f32 1.0, %v2611
    %v2613 = vtanh.pop %v2554
    %v2614 = vmul.f32 %v2597, %v2403
    %v2615 = vmul.f32 %v2582, %v2613
    %v2616 = vadd.f32 %v2614, %v2615
    %v2617 = vtanh.pop %v2616
    %v2618 = vmul.f32 %v2612, %v2617
    %v2620 = vrot.slane %v2618, 1
    %v2621 = vrot.slane %v2618, 2
    %v2622 = vrot.slane %v2618, 3
    %v2623 = vrot.slane %v2618, 4
    %v2624 = vrot.slane %v2618, 5
    %v2625 = vrot.slane %v2618, 6
    %v2626 = vrot.slane %v2618, 7
    %2634 = vst [vmem:[#allocation4 + $0xb] sm:$0x1] %v2618
    %2635 = vst [vmem:[#allocation4 + $0x1b] sm:$0x1] %v2620
    %2636 = vst [vmem:[#allocation4 + $0x2b] sm:$0x1] %v2621
    %2637 = vst [vmem:[#allocation4 + $0x3b] sm:$0x1] %v2622
    %2638 = vst [vmem:[#allocation4 + $0x4b] sm:$0x1] %v2623
    %2639 = vst [vmem:[#allocation4 + $0x5b] sm:$0x1] %v2624
    %2640 = vst [vmem:[#allocation4 + $0x6b] sm:$0x1] %v2625
    %2641 = vst [vmem:[#allocation4 + $0x7b] sm:$0x1] %v2626
    %s2642 = scalar_lea.vmem %s0, 36
    %v2643 = vld [vmem:[%s2642] ss:$8 sm:$0xf]
    %s2644 = scalar_lea.vmem %s0, 100
    %v2645 = vld [vmem:[%s2644] ss:$8 sm:$0xf]
    %s2646 = scalar_lea.vmem %s0, 164
    %v2647 = vld [vmem:[%s2646] ss:$8 sm:$0xf]
    %s2648 = scalar_lea.vmem %s0, 228
    %v2649 = vld [vmem:[%s2648] ss:$8 sm:$0xf]
    %s2650 = scalar_lea.vmem %s0, 292
    %v2651 = vld [vmem:[%s2650] ss:$8 sm:$0xf]
    %s2652 = scalar_lea.vmem %s0, 356
    %v2653 = vld [vmem:[%s2652] ss:$8 sm:$0xf]
    %s2654 = scalar_lea.vmem %s0, 420
    %v2655 = vld [vmem:[%s2654] ss:$8 sm:$0xf]
    %s2656 = scalar_lea.vmem %s0, 484
    %v2657 = vld [vmem:[%s2656] ss:$8 sm:$0xf]
    %2666 = vst [vmem:[#allocation1] ss:$9 sm:$0xff] %v2643
    %s2667 = scalar_lea.vmem [#allocation1], 1
    %2668 = vst [vmem:[%s2667] ss:$9 sm:$0xff] %v2645
    %s2669 = scalar_lea.vmem [#allocation1], 2
    %2670 = vst [vmem:[%s2669] ss:$9 sm:$0xff] %v2647
    %s2671 = scalar_lea.vmem [#allocation1], 3
    %2672 = vst [vmem:[%s2671] ss:$9 sm:$0xff] %v2649
    %s2673 = scalar_lea.vmem [#allocation1], 4
    %2674 = vst [vmem:[%s2673] ss:$9 sm:$0xff] %v2651
    %s2675 = scalar_lea.vmem [#allocation1], 5
    %2676 = vst [vmem:[%s2675] ss:$9 sm:$0xff] %v2653
    %s2677 = scalar_lea.vmem [#allocation1], 6
    %2678 = vst [vmem:[%s2677] ss:$9 sm:$0xff] %v2655
    %s2679 = scalar_lea.vmem [#allocation1], 7
    %2680 = vst [vmem:[%s2679] ss:$9 sm:$0xff] %v2657
    %v2681 = vld [vmem:[#allocation1] sm:$0xff]
    %v2682 = vld [vmem:[#allocation1 + $0x9] sm:$0xff]
    %v2683 = vld [vmem:[#allocation1 + $0x12] sm:$0xff]
    %v2684 = vld [vmem:[#allocation1 + $0x1b] sm:$0xff]
    %2689 = vmatpush.msra.mxu0 %v83
    %2690 = vmatpush.msra.mxu0 %v79
    %2691 = vmatpush.msra.mxu0 %v75
    %2692 = vmatpush.msra.mxu0 %v71
    %2693 = vmatpush.msra.mxu0 %v67
    %2694 = vmatpush.msra.mxu0 %v63
    %2695 = vmatpush.msra.mxu0 %v59
    %2696 = vmatpush.msra.mxu0 %v55
    %2697 = vmatpush.msra.mxu0 %v51
    %2698 = vmatpush.msra.mxu0 %v47
    %2699 = vmatpush.msra.mxu0 %v43
    %2700 = vmatpush.msra.mxu0 %v39
    %2701 = vmatpush.msra.mxu0 %v35
    %2702 = vmatpush.msra.mxu0 %v31
    %2703 = vmatpush.msra.mxu0 %v27
    %2704 = vmatpush.msra.mxu0 %v23
    %2705 = vmatmul.f32.gmra.mxu0 %v2618
    %v2706 = vpop.f32.mrf.mxu0
    %v2707 = vadd.f32 %v2681, %v2706
    %2708 = vdwg.mxu0
    %2709 = vmatpush.msra.mxu0 %v84
    %2710 = vmatpush.msra.mxu0 %v80
    %2711 = vmatpush.msra.mxu0 %v76
    %2712 = vmatpush.msra.mxu0 %v72
    %2713 = vmatpush.msra.mxu0 %v68
    %2714 = vmatpush.msra.mxu0 %v64
    %2715 = vmatpush.msra.mxu0 %v60
    %2716 = vmatpush.msra.mxu0 %v56
    %2717 = vmatpush.msra.mxu0 %v52
    %2718 = vmatpush.msra.mxu0 %v48
    %2719 = vmatpush.msra.mxu0 %v44
    %2720 = vmatpush.msra.mxu0 %v40
    %2721 = vmatpush.msra.mxu0 %v36
    %2722 = vmatpush.msra.mxu0 %v32
    %2723 = vmatpush.msra.mxu0 %v28
    %2724 = vmatpush.msra.mxu0 %v24
    %2725 = vmatmul.f32.gmra.mxu0 %v2618
    %v2726 = vpop.f32.mrf.mxu0
    %v2727 = vadd.f32 %v2682, %v2726
    %2728 = vdwg.mxu0
    %2729 = vmatpush.msra.mxu0 %v85
    %2730 = vmatpush.msra.mxu0 %v81
    %2731 = vmatpush.msra.mxu0 %v77
    %2732 = vmatpush.msra.mxu0 %v73
    %2733 = vmatpush.msra.mxu0 %v69
    %2734 = vmatpush.msra.mxu0 %v65
    %2735 = vmatpush.msra.mxu0 %v61
    %2736 = vmatpush.msra.mxu0 %v57
    %2737 = vmatpush.msra.mxu0 %v53
    %2738 = vmatpush.msra.mxu0 %v49
    %2739 = vmatpush.msra.mxu0 %v45
    %2740 = vmatpush.msra.mxu0 %v41
    %2741 = vmatpush.msra.mxu0 %v37
    %2742 = vmatpush.msra.mxu0 %v33
    %2743 = vmatpush.msra.mxu0 %v29
    %2744 = vmatpush.msra.mxu0 %v25
    %2745 = vmatmul.f32.gmra.mxu0 %v2618
    %v2746 = vpop.f32.mrf.mxu0
    %v2747 = vadd.f32 %v2683, %v2746
    %2748 = vdwg.mxu0
    %2749 = vmatpush.msra.mxu0 %v86
    %2750 = vmatpush.msra.mxu0 %v82
    %2751 = vmatpush.msra.mxu0 %v78
    %2752 = vmatpush.msra.mxu0 %v74
    %2753 = vmatpush.msra.mxu0 %v70
    %2754 = vmatpush.msra.mxu0 %v66
    %2755 = vmatpush.msra.mxu0 %v62
    %2756 = vmatpush.msra.mxu0 %v58
    %2757 = vmatpush.msra.mxu0 %v54
    %2758 = vmatpush.msra.mxu0 %v50
    %2759 = vmatpush.msra.mxu0 %v46
    %2760 = vmatpush.msra.mxu0 %v42
    %2761 = vmatpush.msra.mxu0 %v38
    %2762 = vmatpush.msra.mxu0 %v34
    %2763 = vmatpush.msra.mxu0 %v30
    %2764 = vmatpush.msra.mxu0 %v26
    %2765 = vmatmul.f32.gmra.mxu0 %v2618
    %v2766 = vpop.f32.mrf.mxu0
    %v2767 = vadd.f32 %v2684, %v2766
    %2768 = vdwg.mxu0
    %v2769 = vxor.u32 %v2707, 2147483648
    %v2770 = vxor.u32 %v2727, 2147483648
    %v2771 = vxor.u32 %v2747, 2147483648
    %v2772 = vmul.f32 %v2769, 1.442695
    %v2773 = vpow.pop %v2772
    %v2774 = vmul.f32 %v2770, 1.442695
    %v2775 = vpow.pop %v2774
    %v2776 = vmul.f32 %v2771, 1.442695
    %v2777 = vpow.pop %v2776
    %v2778 = vadd.f32 %v2773, 1.0
    %v2779 = vadd.f32 %v2775, 1.0
    %v2780 = vadd.f32 %v2777, 1.0
    %v2781 = vrcp.pop %v2778
    %v2782 = vmul.f32 %v2778, %v2781
    %v2783 = vsub.f32 1.0, %v2782
    %v2784 = vmul.f32 %v2781, %v2783
    %v2785 = vadd.f32 %v2781, %v2784
    %vm2786 = vweird.f32 %v2778
    %vm2787 = vweird.f32 %v2781
    %vm2788 = vmor %vm2786, %vm2787
    %v2789 = vsel %vm2788, %v2781, %v2785
    %v2790 = vand.u32 2147483647, %v2778
    %vm2791 = vcmp.eq.f32.partialorder %v2790, 8.507059e+37
    %v2792 = vand.u32 %v2778, 2147483648
    %v2793 = vor.u32 1.1754944e-38, %v2792
    %v2794 = vsel %vm2791, %v2793, %v2789
    %v2795 = vmul.f32 1.0, %v2794
    %v2796 = vrcp.pop %v2779
    %v2797 = vmul.f32 %v2779, %v2796
    %v2798 = vsub.f32 1.0, %v2797
    %v2799 = vmul.f32 %v2796, %v2798
    %v2800 = vadd.f32 %v2796, %v2799
    %vm2801 = vweird.f32 %v2779
    %vm2802 = vweird.f32 %v2796
    %vm2803 = vmor %vm2801, %vm2802
    %v2804 = vsel %vm2803, %v2796, %v2800
    %v2805 = vand.u32 2147483647, %v2779
    %vm2806 = vcmp.eq.f32.partialorder %v2805, 8.507059e+37
    %v2807 = vand.u32 %v2779, 2147483648
    %v2808 = vor.u32 1.1754944e-38, %v2807
    %v2809 = vsel %vm2806, %v2808, %v2804
    %v2810 = vmul.f32 1.0, %v2809
    %v2811 = vrcp.pop %v2780
    %v2812 = vmul.f32 %v2780, %v2811
    %v2813 = vsub.f32 1.0, %v2812
    %v2814 = vmul.f32 %v2811, %v2813
    %v2815 = vadd.f32 %v2811, %v2814
    %vm2816 = vweird.f32 %v2780
    %vm2817 = vweird.f32 %v2811
    %vm2818 = vmor %vm2816, %vm2817
    %v2819 = vsel %vm2818, %v2811, %v2815
    %v2820 = vand.u32 2147483647, %v2780
    %vm2821 = vcmp.eq.f32.partialorder %v2820, 8.507059e+37
    %v2822 = vand.u32 %v2780, 2147483648
    %v2823 = vor.u32 1.1754944e-38, %v2822
    %v2824 = vsel %vm2821, %v2823, %v2819
    %v2825 = vmul.f32 1.0, %v2824
    %v2826 = vtanh.pop %v2767
    %v2827 = vmul.f32 %v2810, %v2616
    %v2828 = vmul.f32 %v2795, %v2826
    %v2829 = vadd.f32 %v2827, %v2828
    %v2830 = vtanh.pop %v2829
    %v2831 = vmul.f32 %v2825, %v2830
    %v2833 = vrot.slane %v2831, 1
    %v2834 = vrot.slane %v2831, 2
    %v2835 = vrot.slane %v2831, 3
    %v2836 = vrot.slane %v2831, 4
    %v2837 = vrot.slane %v2831, 5
    %v2838 = vrot.slane %v2831, 6
    %v2839 = vrot.slane %v2831, 7
    %2847 = vst [vmem:[#allocation4 + $0xc] sm:$0x1] %v2831
    %2848 = vst [vmem:[#allocation4 + $0x1c] sm:$0x1] %v2833
    %2849 = vst [vmem:[#allocation4 + $0x2c] sm:$0x1] %v2834
    %2850 = vst [vmem:[#allocation4 + $0x3c] sm:$0x1] %v2835
    %2851 = vst [vmem:[#allocation4 + $0x4c] sm:$0x1] %v2836
    %2852 = vst [vmem:[#allocation4 + $0x5c] sm:$0x1] %v2837
    %2853 = vst [vmem:[#allocation4 + $0x6c] sm:$0x1] %v2838
    %2854 = vst [vmem:[#allocation4 + $0x7c] sm:$0x1] %v2839
    %s2855 = scalar_lea.vmem %s0, 37
    %v2856 = vld [vmem:[%s2855] ss:$8 sm:$0xf]
    %s2857 = scalar_lea.vmem %s0, 101
    %v2858 = vld [vmem:[%s2857] ss:$8 sm:$0xf]
    %s2859 = scalar_lea.vmem %s0, 165
    %v2860 = vld [vmem:[%s2859] ss:$8 sm:$0xf]
    %s2861 = scalar_lea.vmem %s0, 229
    %v2862 = vld [vmem:[%s2861] ss:$8 sm:$0xf]
    %s2863 = scalar_lea.vmem %s0, 293
    %v2864 = vld [vmem:[%s2863] ss:$8 sm:$0xf]
    %s2865 = scalar_lea.vmem %s0, 357
    %v2866 = vld [vmem:[%s2865] ss:$8 sm:$0xf]
    %s2867 = scalar_lea.vmem %s0, 421
    %v2868 = vld [vmem:[%s2867] ss:$8 sm:$0xf]
    %s2869 = scalar_lea.vmem %s0, 485
    %v2870 = vld [vmem:[%s2869] ss:$8 sm:$0xf]
    %2879 = vst [vmem:[#allocation1] ss:$9 sm:$0xff] %v2856
    %s2880 = scalar_lea.vmem [#allocation1], 1
    %2881 = vst [vmem:[%s2880] ss:$9 sm:$0xff] %v2858
    %s2882 = scalar_lea.vmem [#allocation1], 2
    %2883 = vst [vmem:[%s2882] ss:$9 sm:$0xff] %v2860
    %s2884 = scalar_lea.vmem [#allocation1], 3
    %2885 = vst [vmem:[%s2884] ss:$9 sm:$0xff] %v2862
    %s2886 = scalar_lea.vmem [#allocation1], 4
    %2887 = vst [vmem:[%s2886] ss:$9 sm:$0xff] %v2864
    %s2888 = scalar_lea.vmem [#allocation1], 5
    %2889 = vst [vmem:[%s2888] ss:$9 sm:$0xff] %v2866
    %s2890 = scalar_lea.vmem [#allocation1], 6
    %2891 = vst [vmem:[%s2890] ss:$9 sm:$0xff] %v2868
    %s2892 = scalar_lea.vmem [#allocation1], 7
    %2893 = vst [vmem:[%s2892] ss:$9 sm:$0xff] %v2870
    %v2894 = vld [vmem:[#allocation1] sm:$0xff]
    %v2895 = vld [vmem:[#allocation1 + $0x9] sm:$0xff]
    %v2896 = vld [vmem:[#allocation1 + $0x12] sm:$0xff]
    %v2897 = vld [vmem:[#allocation1 + $0x1b] sm:$0xff]
    %2902 = vmatpush.msra.mxu0 %v83
    %2903 = vmatpush.msra.mxu0 %v79
    %2904 = vmatpush.msra.mxu0 %v75
    %2905 = vmatpush.msra.mxu0 %v71
    %2906 = vmatpush.msra.mxu0 %v67
    %2907 = vmatpush.msra.mxu0 %v63
    %2908 = vmatpush.msra.mxu0 %v59
    %2909 = vmatpush.msra.mxu0 %v55
    %2910 = vmatpush.msra.mxu0 %v51
    %2911 = vmatpush.msra.mxu0 %v47
    %2912 = vmatpush.msra.mxu0 %v43
    %2913 = vmatpush.msra.mxu0 %v39
    %2914 = vmatpush.msra.mxu0 %v35
    %2915 = vmatpush.msra.mxu0 %v31
    %2916 = vmatpush.msra.mxu0 %v27
    %2917 = vmatpush.msra.mxu0 %v23
    %2918 = vmatmul.f32.gmra.mxu0 %v2831
    %v2919 = vpop.f32.mrf.mxu0
    %v2920 = vadd.f32 %v2894, %v2919
    %2921 = vdwg.mxu0
    %2922 = vmatpush.msra.mxu0 %v84
    %2923 = vmatpush.msra.mxu0 %v80
    %2924 = vmatpush.msra.mxu0 %v76
    %2925 = vmatpush.msra.mxu0 %v72
    %2926 = vmatpush.msra.mxu0 %v68
    %2927 = vmatpush.msra.mxu0 %v64
    %2928 = vmatpush.msra.mxu0 %v60
    %2929 = vmatpush.msra.mxu0 %v56
    %2930 = vmatpush.msra.mxu0 %v52
    %2931 = vmatpush.msra.mxu0 %v48
    %2932 = vmatpush.msra.mxu0 %v44
    %2933 = vmatpush.msra.mxu0 %v40
    %2934 = vmatpush.msra.mxu0 %v36
    %2935 = vmatpush.msra.mxu0 %v32
    %2936 = vmatpush.msra.mxu0 %v28
    %2937 = vmatpush.msra.mxu0 %v24
    %2938 = vmatmul.f32.gmra.mxu0 %v2831
    %v2939 = vpop.f32.mrf.mxu0
    %v2940 = vadd.f32 %v2895, %v2939
    %2941 = vdwg.mxu0
    %2942 = vmatpush.msra.mxu0 %v85
    %2943 = vmatpush.msra.mxu0 %v81
    %2944 = vmatpush.msra.mxu0 %v77
    %2945 = vmatpush.msra.mxu0 %v73
    %2946 = vmatpush.msra.mxu0 %v69
    %2947 = vmatpush.msra.mxu0 %v65
    %2948 = vmatpush.msra.mxu0 %v61
    %2949 = vmatpush.msra.mxu0 %v57
    %2950 = vmatpush.msra.mxu0 %v53
    %2951 = vmatpush.msra.mxu0 %v49
    %2952 = vmatpush.msra.mxu0 %v45
    %2953 = vmatpush.msra.mxu0 %v41
    %2954 = vmatpush.msra.mxu0 %v37
    %2955 = vmatpush.msra.mxu0 %v33
    %2956 = vmatpush.msra.mxu0 %v29
    %2957 = vmatpush.msra.mxu0 %v25
    %2958 = vmatmul.f32.gmra.mxu0 %v2831
    %v2959 = vpop.f32.mrf.mxu0
    %v2960 = vadd.f32 %v2896, %v2959
    %2961 = vdwg.mxu0
    %2962 = vmatpush.msra.mxu0 %v86
    %2963 = vmatpush.msra.mxu0 %v82
    %2964 = vmatpush.msra.mxu0 %v78
    %2965 = vmatpush.msra.mxu0 %v74
    %2966 = vmatpush.msra.mxu0 %v70
    %2967 = vmatpush.msra.mxu0 %v66
    %2968 = vmatpush.msra.mxu0 %v62
    %2969 = vmatpush.msra.mxu0 %v58
    %2970 = vmatpush.msra.mxu0 %v54
    %2971 = vmatpush.msra.mxu0 %v50
    %2972 = vmatpush.msra.mxu0 %v46
    %2973 = vmatpush.msra.mxu0 %v42
    %2974 = vmatpush.msra.mxu0 %v38
    %2975 = vmatpush.msra.mxu0 %v34
    %2976 = vmatpush.msra.mxu0 %v30
    %2977 = vmatpush.msra.mxu0 %v26
    %2978 = vmatmul.f32.gmra.mxu0 %v2831
    %v2979 = vpop.f32.mrf.mxu0
    %v2980 = vadd.f32 %v2897, %v2979
    %2981 = vdwg.mxu0
    %v2982 = vxor.u32 %v2920, 2147483648
    %v2983 = vxor.u32 %v2940, 2147483648
    %v2984 = vxor.u32 %v2960, 2147483648
    %v2985 = vmul.f32 %v2982, 1.442695
    %v2986 = vpow.pop %v2985
    %v2987 = vmul.f32 %v2983, 1.442695
    %v2988 = vpow.pop %v2987
    %v2989 = vmul.f32 %v2984, 1.442695
    %v2990 = vpow.pop %v2989
    %v2991 = vadd.f32 %v2986, 1.0
    %v2992 = vadd.f32 %v2988, 1.0
    %v2993 = vadd.f32 %v2990, 1.0
    %v2994 = vrcp.pop %v2991
    %v2995 = vmul.f32 %v2991, %v2994
    %v2996 = vsub.f32 1.0, %v2995
    %v2997 = vmul.f32 %v2994, %v2996
    %v2998 = vadd.f32 %v2994, %v2997
    %vm2999 = vweird.f32 %v2991
    %vm3000 = vweird.f32 %v2994
    %vm3001 = vmor %vm2999, %vm3000
    %v3002 = vsel %vm3001, %v2994, %v2998
    %v3003 = vand.u32 2147483647, %v2991
    %vm3004 = vcmp.eq.f32.partialorder %v3003, 8.507059e+37
    %v3005 = vand.u32 %v2991, 2147483648
    %v3006 = vor.u32 1.1754944e-38, %v3005
    %v3007 = vsel %vm3004, %v3006, %v3002
    %v3008 = vmul.f32 1.0, %v3007
    %v3009 = vrcp.pop %v2992
    %v3010 = vmul.f32 %v2992, %v3009
    %v3011 = vsub.f32 1.0, %v3010
    %v3012 = vmul.f32 %v3009, %v3011
    %v3013 = vadd.f32 %v3009, %v3012
    %vm3014 = vweird.f32 %v2992
    %vm3015 = vweird.f32 %v3009
    %vm3016 = vmor %vm3014, %vm3015
    %v3017 = vsel %vm3016, %v3009, %v3013
    %v3018 = vand.u32 2147483647, %v2992
    %vm3019 = vcmp.eq.f32.partialorder %v3018, 8.507059e+37
    %v3020 = vand.u32 %v2992, 2147483648
    %v3021 = vor.u32 1.1754944e-38, %v3020
    %v3022 = vsel %vm3019, %v3021, %v3017
    %v3023 = vmul.f32 1.0, %v3022
    %v3024 = vrcp.pop %v2993
    %v3025 = vmul.f32 %v2993, %v3024
    %v3026 = vsub.f32 1.0, %v3025
    %v3027 = vmul.f32 %v3024, %v3026
    %v3028 = vadd.f32 %v3024, %v3027
    %vm3029 = vweird.f32 %v2993
    %vm3030 = vweird.f32 %v3024
    %vm3031 = vmor %vm3029, %vm3030
    %v3032 = vsel %vm3031, %v3024, %v3028
    %v3033 = vand.u32 2147483647, %v2993
    %vm3034 = vcmp.eq.f32.partialorder %v3033, 8.507059e+37
    %v3035 = vand.u32 %v2993, 2147483648
    %v3036 = vor.u32 1.1754944e-38, %v3035
    %v3037 = vsel %vm3034, %v3036, %v3032
    %v3038 = vmul.f32 1.0, %v3037
    %v3039 = vtanh.pop %v2980
    %v3040 = vmul.f32 %v3023, %v2829
    %v3041 = vmul.f32 %v3008, %v3039
    %v3042 = vadd.f32 %v3040, %v3041
    %v3043 = vtanh.pop %v3042
    %v3044 = vmul.f32 %v3038, %v3043
    %v3046 = vrot.slane %v3044, 1
    %v3047 = vrot.slane %v3044, 2
    %v3048 = vrot.slane %v3044, 3
    %v3049 = vrot.slane %v3044, 4
    %v3050 = vrot.slane %v3044, 5
    %v3051 = vrot.slane %v3044, 6
    %v3052 = vrot.slane %v3044, 7
    %3060 = vst [vmem:[#allocation4 + $0xd] sm:$0x1] %v3044
    %3061 = vst [vmem:[#allocation4 + $0x1d] sm:$0x1] %v3046
    %3062 = vst [vmem:[#allocation4 + $0x2d] sm:$0x1] %v3047
    %3063 = vst [vmem:[#allocation4 + $0x3d] sm:$0x1] %v3048
    %3064 = vst [vmem:[#allocation4 + $0x4d] sm:$0x1] %v3049
    %3065 = vst [vmem:[#allocation4 + $0x5d] sm:$0x1] %v3050
    %3066 = vst [vmem:[#allocation4 + $0x6d] sm:$0x1] %v3051
    %3067 = vst [vmem:[#allocation4 + $0x7d] sm:$0x1] %v3052
    %s3068 = scalar_lea.vmem %s0, 38
    %v3069 = vld [vmem:[%s3068] ss:$8 sm:$0xf]
    %s3070 = scalar_lea.vmem %s0, 102
    %v3071 = vld [vmem:[%s3070] ss:$8 sm:$0xf]
    %s3072 = scalar_lea.vmem %s0, 166
    %v3073 = vld [vmem:[%s3072] ss:$8 sm:$0xf]
    %s3074 = scalar_lea.vmem %s0, 230
    %v3075 = vld [vmem:[%s3074] ss:$8 sm:$0xf]
    %s3076 = scalar_lea.vmem %s0, 294
    %v3077 = vld [vmem:[%s3076] ss:$8 sm:$0xf]
    %s3078 = scalar_lea.vmem %s0, 358
    %v3079 = vld [vmem:[%s3078] ss:$8 sm:$0xf]
    %s3080 = scalar_lea.vmem %s0, 422
    %v3081 = vld [vmem:[%s3080] ss:$8 sm:$0xf]
    %s3082 = scalar_lea.vmem %s0, 486
    %v3083 = vld [vmem:[%s3082] ss:$8 sm:$0xf]
    %3092 = vst [vmem:[#allocation1] ss:$9 sm:$0xff] %v3069
    %s3093 = scalar_lea.vmem [#allocation1], 1
    %3094 = vst [vmem:[%s3093] ss:$9 sm:$0xff] %v3071
    %s3095 = scalar_lea.vmem [#allocation1], 2
    %3096 = vst [vmem:[%s3095] ss:$9 sm:$0xff] %v3073
    %s3097 = scalar_lea.vmem [#allocation1], 3
    %3098 = vst [vmem:[%s3097] ss:$9 sm:$0xff] %v3075
    %s3099 = scalar_lea.vmem [#allocation1], 4
    %3100 = vst [vmem:[%s3099] ss:$9 sm:$0xff] %v3077
    %s3101 = scalar_lea.vmem [#allocation1], 5
    %3102 = vst [vmem:[%s3101] ss:$9 sm:$0xff] %v3079
    %s3103 = scalar_lea.vmem [#allocation1], 6
    %3104 = vst [vmem:[%s3103] ss:$9 sm:$0xff] %v3081
    %s3105 = scalar_lea.vmem [#allocation1], 7
    %3106 = vst [vmem:[%s3105] ss:$9 sm:$0xff] %v3083
    %v3107 = vld [vmem:[#allocation1] sm:$0xff]
    %v3108 = vld [vmem:[#allocation1 + $0x9] sm:$0xff]
    %v3109 = vld [vmem:[#allocation1 + $0x12] sm:$0xff]
    %v3110 = vld [vmem:[#allocation1 + $0x1b] sm:$0xff]
    %3115 = vmatpush.msra.mxu0 %v83
    %3116 = vmatpush.msra.mxu0 %v79
    %3117 = vmatpush.msra.mxu0 %v75
    %3118 = vmatpush.msra.mxu0 %v71
    %3119 = vmatpush.msra.mxu0 %v67
    %3120 = vmatpush.msra.mxu0 %v63
    %3121 = vmatpush.msra.mxu0 %v59
    %3122 = vmatpush.msra.mxu0 %v55
    %3123 = vmatpush.msra.mxu0 %v51
    %3124 = vmatpush.msra.mxu0 %v47
    %3125 = vmatpush.msra.mxu0 %v43
    %3126 = vmatpush.msra.mxu0 %v39
    %3127 = vmatpush.msra.mxu0 %v35
    %3128 = vmatpush.msra.mxu0 %v31
    %3129 = vmatpush.msra.mxu0 %v27
    %3130 = vmatpush.msra.mxu0 %v23
    %3131 = vmatmul.f32.gmra.mxu0 %v3044
    %v3132 = vpop.f32.mrf.mxu0
    %v3133 = vadd.f32 %v3107, %v3132
    %3134 = vdwg.mxu0
    %3135 = vmatpush.msra.mxu0 %v84
    %3136 = vmatpush.msra.mxu0 %v80
    %3137 = vmatpush.msra.mxu0 %v76
    %3138 = vmatpush.msra.mxu0 %v72
    %3139 = vmatpush.msra.mxu0 %v68
    %3140 = vmatpush.msra.mxu0 %v64
    %3141 = vmatpush.msra.mxu0 %v60
    %3142 = vmatpush.msra.mxu0 %v56
    %3143 = vmatpush.msra.mxu0 %v52
    %3144 = vmatpush.msra.mxu0 %v48
    %3145 = vmatpush.msra.mxu0 %v44
    %3146 = vmatpush.msra.mxu0 %v40
    %3147 = vmatpush.msra.mxu0 %v36
    %3148 = vmatpush.msra.mxu0 %v32
    %3149 = vmatpush.msra.mxu0 %v28
    %3150 = vmatpush.msra.mxu0 %v24
    %3151 = vmatmul.f32.gmra.mxu0 %v3044
    %v3152 = vpop.f32.mrf.mxu0
    %v3153 = vadd.f32 %v3108, %v3152
    %3154 = vdwg.mxu0
    %3155 = vmatpush.msra.mxu0 %v85
    %3156 = vmatpush.msra.mxu0 %v81
    %3157 = vmatpush.msra.mxu0 %v77
    %3158 = vmatpush.msra.mxu0 %v73
    %3159 = vmatpush.msra.mxu0 %v69
    %3160 = vmatpush.msra.mxu0 %v65
    %3161 = vmatpush.msra.mxu0 %v61
    %3162 = vmatpush.msra.mxu0 %v57
    %3163 = vmatpush.msra.mxu0 %v53
    %3164 = vmatpush.msra.mxu0 %v49
    %3165 = vmatpush.msra.mxu0 %v45
    %3166 = vmatpush.msra.mxu0 %v41
    %3167 = vmatpush.msra.mxu0 %v37
    %3168 = vmatpush.msra.mxu0 %v33
    %3169 = vmatpush.msra.mxu0 %v29
    %3170 = vmatpush.msra.mxu0 %v25
    %3171 = vmatmul.f32.gmra.mxu0 %v3044
    %v3172 = vpop.f32.mrf.mxu0
    %v3173 = vadd.f32 %v3109, %v3172
    %3174 = vdwg.mxu0
    %3175 = vmatpush.msra.mxu0 %v86
    %3176 = vmatpush.msra.mxu0 %v82
    %3177 = vmatpush.msra.mxu0 %v78
    %3178 = vmatpush.msra.mxu0 %v74
    %3179 = vmatpush.msra.mxu0 %v70
    %3180 = vmatpush.msra.mxu0 %v66
    %3181 = vmatpush.msra.mxu0 %v62
    %3182 = vmatpush.msra.mxu0 %v58
    %3183 = vmatpush.msra.mxu0 %v54
    %3184 = vmatpush.msra.mxu0 %v50
    %3185 = vmatpush.msra.mxu0 %v46
    %3186 = vmatpush.msra.mxu0 %v42
    %3187 = vmatpush.msra.mxu0 %v38
    %3188 = vmatpush.msra.mxu0 %v34
    %3189 = vmatpush.msra.mxu0 %v30
    %3190 = vmatpush.msra.mxu0 %v26
    %3191 = vmatmul.f32.gmra.mxu0 %v3044
    %v3192 = vpop.f32.mrf.mxu0
    %v3193 = vadd.f32 %v3110, %v3192
    %3194 = vdwg.mxu0
    %v3195 = vxor.u32 %v3133, 2147483648
    %v3196 = vxor.u32 %v3153, 2147483648
    %v3197 = vxor.u32 %v3173, 2147483648
    %v3198 = vmul.f32 %v3195, 1.442695
    %v3199 = vpow.pop %v3198
    %v3200 = vmul.f32 %v3196, 1.442695
    %v3201 = vpow.pop %v3200
    %v3202 = vmul.f32 %v3197, 1.442695
    %v3203 = vpow.pop %v3202
    %v3204 = vadd.f32 %v3199, 1.0
    %v3205 = vadd.f32 %v3201, 1.0
    %v3206 = vadd.f32 %v3203, 1.0
    %v3207 = vrcp.pop %v3204
    %v3208 = vmul.f32 %v3204, %v3207
    %v3209 = vsub.f32 1.0, %v3208
    %v3210 = vmul.f32 %v3207, %v3209
    %v3211 = vadd.f32 %v3207, %v3210
    %vm3212 = vweird.f32 %v3204
    %vm3213 = vweird.f32 %v3207
    %vm3214 = vmor %vm3212, %vm3213
    %v3215 = vsel %vm3214, %v3207, %v3211
    %v3216 = vand.u32 2147483647, %v3204
    %vm3217 = vcmp.eq.f32.partialorder %v3216, 8.507059e+37
    %v3218 = vand.u32 %v3204, 2147483648
    %v3219 = vor.u32 1.1754944e-38, %v3218
    %v3220 = vsel %vm3217, %v3219, %v3215
    %v3221 = vmul.f32 1.0, %v3220
    %v3222 = vrcp.pop %v3205
    %v3223 = vmul.f32 %v3205, %v3222
    %v3224 = vsub.f32 1.0, %v3223
    %v3225 = vmul.f32 %v3222, %v3224
    %v3226 = vadd.f32 %v3222, %v3225
    %vm3227 = vweird.f32 %v3205
    %vm3228 = vweird.f32 %v3222
    %vm3229 = vmor %vm3227, %vm3228
    %v3230 = vsel %vm3229, %v3222, %v3226
    %v3231 = vand.u32 2147483647, %v3205
    %vm3232 = vcmp.eq.f32.partialorder %v3231, 8.507059e+37
    %v3233 = vand.u32 %v3205, 2147483648
    %v3234 = vor.u32 1.1754944e-38, %v3233
    %v3235 = vsel %vm3232, %v3234, %v3230
    %v3236 = vmul.f32 1.0, %v3235
    %v3237 = vrcp.pop %v3206
    %v3238 = vmul.f32 %v3206, %v3237
    %v3239 = vsub.f32 1.0, %v3238
    %v3240 = vmul.f32 %v3237, %v3239
    %v3241 = vadd.f32 %v3237, %v3240
    %vm3242 = vweird.f32 %v3206
    %vm3243 = vweird.f32 %v3237
    %vm3244 = vmor %vm3242, %vm3243
    %v3245 = vsel %vm3244, %v3237, %v3241
    %v3246 = vand.u32 2147483647, %v3206
    %vm3247 = vcmp.eq.f32.partialorder %v3246, 8.507059e+37
    %v3248 = vand.u32 %v3206, 2147483648
    %v3249 = vor.u32 1.1754944e-38, %v3248
    %v3250 = vsel %vm3247, %v3249, %v3245
    %v3251 = vmul.f32 1.0, %v3250
    %v3252 = vtanh.pop %v3193
    %v3253 = vmul.f32 %v3236, %v3042
    %v3254 = vmul.f32 %v3221, %v3252
    %v3255 = vadd.f32 %v3253, %v3254
    %v3256 = vtanh.pop %v3255
    %v3257 = vmul.f32 %v3251, %v3256
    %v3259 = vrot.slane %v3257, 1
    %v3260 = vrot.slane %v3257, 2
    %v3261 = vrot.slane %v3257, 3
    %v3262 = vrot.slane %v3257, 4
    %v3263 = vrot.slane %v3257, 5
    %v3264 = vrot.slane %v3257, 6
    %v3265 = vrot.slane %v3257, 7
    %3273 = vst [vmem:[#allocation4 + $0xe] sm:$0x1] %v3257
    %3274 = vst [vmem:[#allocation4 + $0x1e] sm:$0x1] %v3259
    %3275 = vst [vmem:[#allocation4 + $0x2e] sm:$0x1] %v3260
    %3276 = vst [vmem:[#allocation4 + $0x3e] sm:$0x1] %v3261
    %3277 = vst [vmem:[#allocation4 + $0x4e] sm:$0x1] %v3262
    %3278 = vst [vmem:[#allocation4 + $0x5e] sm:$0x1] %v3263
    %3279 = vst [vmem:[#allocation4 + $0x6e] sm:$0x1] %v3264
    %3280 = vst [vmem:[#allocation4 + $0x7e] sm:$0x1] %v3265
    %s3281 = scalar_lea.vmem %s0, 39
    %v3282 = vld [vmem:[%s3281] ss:$8 sm:$0xf]
    %s3283 = scalar_lea.vmem %s0, 103
    %v3284 = vld [vmem:[%s3283] ss:$8 sm:$0xf]
    %s3285 = scalar_lea.vmem %s0, 167
    %v3286 = vld [vmem:[%s3285] ss:$8 sm:$0xf]
    %s3287 = scalar_lea.vmem %s0, 231
    %v3288 = vld [vmem:[%s3287] ss:$8 sm:$0xf]
    %s3289 = scalar_lea.vmem %s0, 295
    %v3290 = vld [vmem:[%s3289] ss:$8 sm:$0xf]
    %s3291 = scalar_lea.vmem %s0, 359
    %v3292 = vld [vmem:[%s3291] ss:$8 sm:$0xf]
    %s3293 = scalar_lea.vmem %s0, 423
    %v3294 = vld [vmem:[%s3293] ss:$8 sm:$0xf]
    %s3295 = scalar_lea.vmem %s0, 487
    %v3296 = vld [vmem:[%s3295] ss:$8 sm:$0xf]
    %3305 = vst [vmem:[#allocation1] ss:$9 sm:$0xff] %v3282
    %s3306 = scalar_lea.vmem [#allocation1], 1
    %3307 = vst [vmem:[%s3306] ss:$9 sm:$0xff] %v3284
    %s3308 = scalar_lea.vmem [#allocation1], 2
    %3309 = vst [vmem:[%s3308] ss:$9 sm:$0xff] %v3286
    %s3310 = scalar_lea.vmem [#allocation1], 3
    %3311 = vst [vmem:[%s3310] ss:$9 sm:$0xff] %v3288
    %s3312 = scalar_lea.vmem [#allocation1], 4
    %3313 = vst [vmem:[%s3312] ss:$9 sm:$0xff] %v3290
    %s3314 = scalar_lea.vmem [#allocation1], 5
    %3315 = vst [vmem:[%s3314] ss:$9 sm:$0xff] %v3292
    %s3316 = scalar_lea.vmem [#allocation1], 6
    %3317 = vst [vmem:[%s3316] ss:$9 sm:$0xff] %v3294
    %s3318 = scalar_lea.vmem [#allocation1], 7
    %3319 = vst [vmem:[%s3318] ss:$9 sm:$0xff] %v3296
    %v3320 = vld [vmem:[#allocation1] sm:$0xff]
    %v3321 = vld [vmem:[#allocation1 + $0x9] sm:$0xff]
    %v3322 = vld [vmem:[#allocation1 + $0x12] sm:$0xff]
    %v3323 = vld [vmem:[#allocation1 + $0x1b] sm:$0xff]
    %3328 = vmatpush.msra.mxu0 %v83
    %3329 = vmatpush.msra.mxu0 %v79
    %3330 = vmatpush.msra.mxu0 %v75
    %3331 = vmatpush.msra.mxu0 %v71
    %3332 = vmatpush.msra.mxu0 %v67
    %3333 = vmatpush.msra.mxu0 %v63
    %3334 = vmatpush.msra.mxu0 %v59
    %3335 = vmatpush.msra.mxu0 %v55
    %3336 = vmatpush.msra.mxu0 %v51
    %3337 = vmatpush.msra.mxu0 %v47
    %3338 = vmatpush.msra.mxu0 %v43
    %3339 = vmatpush.msra.mxu0 %v39
    %3340 = vmatpush.msra.mxu0 %v35
    %3341 = vmatpush.msra.mxu0 %v31
    %3342 = vmatpush.msra.mxu0 %v27
    %3343 = vmatpush.msra.mxu0 %v23
    %3344 = vmatmul.f32.gmra.mxu0 %v3257
    %v3345 = vpop.f32.mrf.mxu0
    %v3346 = vadd.f32 %v3320, %v3345
    %3347 = vdwg.mxu0
    %3348 = vmatpush.msra.mxu0 %v84
    %3349 = vmatpush.msra.mxu0 %v80
    %3350 = vmatpush.msra.mxu0 %v76
    %3351 = vmatpush.msra.mxu0 %v72
    %3352 = vmatpush.msra.mxu0 %v68
    %3353 = vmatpush.msra.mxu0 %v64
    %3354 = vmatpush.msra.mxu0 %v60
    %3355 = vmatpush.msra.mxu0 %v56
    %3356 = vmatpush.msra.mxu0 %v52
    %3357 = vmatpush.msra.mxu0 %v48
    %3358 = vmatpush.msra.mxu0 %v44
    %3359 = vmatpush.msra.mxu0 %v40
    %3360 = vmatpush.msra.mxu0 %v36
    %3361 = vmatpush.msra.mxu0 %v32
    %3362 = vmatpush.msra.mxu0 %v28
    %3363 = vmatpush.msra.mxu0 %v24
    %3364 = vmatmul.f32.gmra.mxu0 %v3257
    %v3365 = vpop.f32.mrf.mxu0
    %v3366 = vadd.f32 %v3321, %v3365
    %3367 = vdwg.mxu0
    %3368 = vmatpush.msra.mxu0 %v85
    %3369 = vmatpush.msra.mxu0 %v81
    %3370 = vmatpush.msra.mxu0 %v77
    %3371 = vmatpush.msra.mxu0 %v73
    %3372 = vmatpush.msra.mxu0 %v69
    %3373 = vmatpush.msra.mxu0 %v65
    %3374 = vmatpush.msra.mxu0 %v61
    %3375 = vmatpush.msra.mxu0 %v57
    %3376 = vmatpush.msra.mxu0 %v53
    %3377 = vmatpush.msra.mxu0 %v49
    %3378 = vmatpush.msra.mxu0 %v45
    %3379 = vmatpush.msra.mxu0 %v41
    %3380 = vmatpush.msra.mxu0 %v37
    %3381 = vmatpush.msra.mxu0 %v33
    %3382 = vmatpush.msra.mxu0 %v29
    %3383 = vmatpush.msra.mxu0 %v25
    %3384 = vmatmul.f32.gmra.mxu0 %v3257
    %v3385 = vpop.f32.mrf.mxu0
    %v3386 = vadd.f32 %v3322, %v3385
    %3387 = vdwg.mxu0
    %3388 = vmatpush.msra.mxu0 %v86
    %3389 = vmatpush.msra.mxu0 %v82
    %3390 = vmatpush.msra.mxu0 %v78
    %3391 = vmatpush.msra.mxu0 %v74
    %3392 = vmatpush.msra.mxu0 %v70
    %3393 = vmatpush.msra.mxu0 %v66
    %3394 = vmatpush.msra.mxu0 %v62
    %3395 = vmatpush.msra.mxu0 %v58
    %3396 = vmatpush.msra.mxu0 %v54
    %3397 = vmatpush.msra.mxu0 %v50
    %3398 = vmatpush.msra.mxu0 %v46
    %3399 = vmatpush.msra.mxu0 %v42
    %3400 = vmatpush.msra.mxu0 %v38
    %3401 = vmatpush.msra.mxu0 %v34
    %3402 = vmatpush.msra.mxu0 %v30
    %3403 = vmatpush.msra.mxu0 %v26
    %3404 = vmatmul.f32.gmra.mxu0 %v3257
    %v3405 = vpop.f32.mrf.mxu0
    %v3406 = vadd.f32 %v3323, %v3405
    %3407 = vdwg.mxu0
    %v3408 = vxor.u32 %v3346, 2147483648
    %v3409 = vxor.u32 %v3366, 2147483648
    %v3410 = vxor.u32 %v3386, 2147483648
    %v3411 = vmul.f32 %v3408, 1.442695
    %v3412 = vpow.pop %v3411
    %v3413 = vmul.f32 %v3409, 1.442695
    %v3414 = vpow.pop %v3413
    %v3415 = vmul.f32 %v3410, 1.442695
    %v3416 = vpow.pop %v3415
    %v3417 = vadd.f32 %v3412, 1.0
    %v3418 = vadd.f32 %v3414, 1.0
    %v3419 = vadd.f32 %v3416, 1.0
    %v3420 = vrcp.pop %v3417
    %v3421 = vmul.f32 %v3417, %v3420
    %v3422 = vsub.f32 1.0, %v3421
    %v3423 = vmul.f32 %v3420, %v3422
    %v3424 = vadd.f32 %v3420, %v3423
    %vm3425 = vweird.f32 %v3417
    %vm3426 = vweird.f32 %v3420
    %vm3427 = vmor %vm3425, %vm3426
    %v3428 = vsel %vm3427, %v3420, %v3424
    %v3429 = vand.u32 2147483647, %v3417
    %vm3430 = vcmp.eq.f32.partialorder %v3429, 8.507059e+37
    %v3431 = vand.u32 %v3417, 2147483648
    %v3432 = vor.u32 1.1754944e-38, %v3431
    %v3433 = vsel %vm3430, %v3432, %v3428
    %v3434 = vmul.f32 1.0, %v3433
    %v3435 = vrcp.pop %v3418
    %v3436 = vmul.f32 %v3418, %v3435
    %v3437 = vsub.f32 1.0, %v3436
    %v3438 = vmul.f32 %v3435, %v3437
    %v3439 = vadd.f32 %v3435, %v3438
    %vm3440 = vweird.f32 %v3418
    %vm3441 = vweird.f32 %v3435
    %vm3442 = vmor %vm3440, %vm3441
    %v3443 = vsel %vm3442, %v3435, %v3439
    %v3444 = vand.u32 2147483647, %v3418
    %vm3445 = vcmp.eq.f32.partialorder %v3444, 8.507059e+37
    %v3446 = vand.u32 %v3418, 2147483648
    %v3447 = vor.u32 1.1754944e-38, %v3446
    %v3448 = vsel %vm3445, %v3447, %v3443
    %v3449 = vmul.f32 1.0, %v3448
    %v3450 = vrcp.pop %v3419
    %v3451 = vmul.f32 %v3419, %v3450
    %v3452 = vsub.f32 1.0, %v3451
    %v3453 = vmul.f32 %v3450, %v3452
    %v3454 = vadd.f32 %v3450, %v3453
    %vm3455 = vweird.f32 %v3419
    %vm3456 = vweird.f32 %v3450
    %vm3457 = vmor %vm3455, %vm3456
    %v3458 = vsel %vm3457, %v3450, %v3454
    %v3459 = vand.u32 2147483647, %v3419
    %vm3460 = vcmp.eq.f32.partialorder %v3459, 8.507059e+37
    %v3461 = vand.u32 %v3419, 2147483648
    %v3462 = vor.u32 1.1754944e-38, %v3461
    %v3463 = vsel %vm3460, %v3462, %v3458
    %v3464 = vmul.f32 1.0, %v3463
    %v3465 = vtanh.pop %v3406
    %v3466 = vmul.f32 %v3449, %v3255
    %v3467 = vmul.f32 %v3434, %v3465
    %v3468 = vadd.f32 %v3466, %v3467
    %v3469 = vtanh.pop %v3468
    %v3470 = vmul.f32 %v3464, %v3469
    %v3472 = vrot.slane %v3470, 1
    %v3473 = vrot.slane %v3470, 2
    %v3474 = vrot.slane %v3470, 3
    %v3475 = vrot.slane %v3470, 4
    %v3476 = vrot.slane %v3470, 5
    %v3477 = vrot.slane %v3470, 6
    %v3478 = vrot.slane %v3470, 7
    %3486 = vst [vmem:[#allocation4 + $0xf] sm:$0x1] %v3470
    %3487 = vst [vmem:[#allocation4 + $0x1f] sm:$0x1] %v3472
    %3488 = vst [vmem:[#allocation4 + $0x2f] sm:$0x1] %v3473
    %3489 = vst [vmem:[#allocation4 + $0x3f] sm:$0x1] %v3474
    %3490 = vst [vmem:[#allocation4 + $0x4f] sm:$0x1] %v3475
    %3491 = vst [vmem:[#allocation4 + $0x5f] sm:$0x1] %v3476
    %3492 = vst [vmem:[#allocation4 + $0x6f] sm:$0x1] %v3477
    %3493 = vst [vmem:[#allocation4 + $0x7f] sm:$0x1] %v3478
    %3494 = vst [vmem:[#allocation2] sm:$0xff] %v3470
    %3495 = vst [vmem:[#allocation3] sm:$0xff] %v3468
    // Predicated region
    $region14: #{lstm_forward.1} parent=1 // pred_check
      %p3496 = pneg %p15
    $region15: #{lstm_forward.1} parent=1 // pred_check_branch
      %3498 = sbr.rel (%p3496) target = $region17
    $region16: #{lstm_forward.1} parent=1 // pred_region
      %3499 = vst [vmem:[%s3] sm:$0xff] %v3470
      %3500 = vst [vmem:[%s4] sm:$0xff] %v3468
    $region17: #{lstm_forward.1} parent=1 // pred_fallthru
      _
    // Predicated region
    $region18: #{lstm_forward.1} parent=1 // pred_check
      _
    $region19: #{lstm_forward.1} parent=1 // pred_check_branch
      %3502 = sbr.rel (0) target = $region21
    $region20: #{lstm_forward.1} parent=1 // pred_region
      %3504 = vsyncadd [#allocation5], 0
      %s3505 = sshll.u32 [#allocation4], 4
      %s3506 = int_to_ptr.vmem [resolvable:$true] %s3505
      %s3507 = sshll.u32 %s2, 4
      %s3508 = int_to_ptr.hbm [resolvable:$true] %s3507
      %3513 = dma.vmem_to_hbm [thread:$0]  %s3506, 2048, %s3508, [#allocation5], 128, 128, 8
    $region21: #{lstm_forward.1} parent=1 // pred_fallthru
      _
    // Predicated region
    $region22: #{lstm_forward.1} parent=1 // pred_check
      _
    $region23: #{lstm_forward.1} parent=1 // pred_check_branch
      %3515 = sbr.rel (0) target = $region25
    $region24: #{lstm_forward.1} parent=1 // pred_region
      _
    $region25: #{lstm_forward.1} parent=1 // pred_fallthru
      _
    // Predicated region
    $region26: #{lstm_forward.1} parent=1 // pred_check
      _
    $region27: #{lstm_forward.1} parent=1 // pred_check_branch
      %3517 = sbr.rel (0) target = $region29
    $region28: #{lstm_forward.1} parent=1 // pred_region
      _
    $region29: #{lstm_forward.1} parent=1 // pred_fallthru
      _
    // Predicated region
    $region30: #{lstm_forward.1} parent=1 // pred_check
      _
    $region31: #{lstm_forward.1} parent=1 // pred_check_branch
      %3519 = sbr.rel (0) target = $region33
    $region32: #{lstm_forward.1} parent=1 // pred_region
      %3521 = dma.done [#allocation5], 2048
    $region33: #{lstm_forward.1} parent=1 // pred_fallthru
      _
    // Predicated region
    $region34: #{lstm_forward.1} parent=1 // pred_check
      _
    $region35: #{lstm_forward.1} parent=1 // pred_check_branch
      %3523 = sbr.rel (0) target = $region37
    $region36: #{lstm_forward.1} parent=1 // pred_region
      _
    $region37: #{lstm_forward.1} parent=1 // pred_fallthru
      _
    // Predicated region
    $region38: #{lstm_forward.1} parent=1 // pred_check
      _
    $region39: #{lstm_forward.1} parent=1 // pred_check_branch
      %3525 = sbr.rel (0) target = $region41
    $region40: #{lstm_forward.1} parent=1 // pred_region
      _
    $region41: #{lstm_forward.1} parent=1 // pred_fallthru
      _
    %3526 = vsyncpa [#allocation5], 1

// kernel: lstm_forward.1
$region0: #{lstm_forward.1}
  #allocation0 [shape = 'u32[]', space=smem, size = 0x4, offset = 0x4, fixed_abs, tag = 'smem constant byte address 0x4 - core index']
  #allocation1 [shape = 'u32[72,128]{1,0:T(1,128)}', space=vmem, size = 0x9000, scoped, tag = 'internal scratch']
  #allocation2 [shape = 'f32[8,128]{1,0:T(8,128)}', space=vmem, size = 0x1000, scoped, tag = 'scratch operand']
  #allocation3 [shape = 'f32[8,128]{1,0:T(8,128)}', space=vmem, size = 0x1000, scoped, tag = 'scratch operand']
  %s0 = inlined_call_operand.vmem [shape: f32[8,16,512], index: 0, kind: input, shape index: {}]
  %s1 = inlined_call_operand.vmem [shape: f32[128,512], index: 1, kind: input, shape index: {}]
  %s2 = inlined_call_operand.hbm [shape: f32[8,16,128], index: 2, kind: output, shape index: {0}]
  %s3 = inlined_call_operand.vmem [shape: f32[8,128], index: 3, kind: output, shape index: {1}]
  %s4 = inlined_call_operand.vmem [shape: f32[8,128], index: 4, kind: output, shape index: {2}]
  %5 = xla_tuple %s2, %s3, %s4
  %s6 = sld [smem:[#allocation0]]
  $region42: #{lstm_forward.1} parent=0
    _
  %s8 = ssub.s32 1, %s6
  %s9 = scalar_select 0, %s8, %s6
  $region1: #{lstm_forward.1} parent=0
    #allocation4 [shape = 'u8[65536]{0}', space=vmem, size = 0x10000, scoped, tag = 'output window, operand 0, single buffered']
    #allocation5 [shape = 's32[1]{0}', space=sflag, size = 0x4, scoped, tag = 'scoped memory for lstm_forward.1']
    %10 = vsyncpa [#allocation5], 0
    // Predicated region
    $region2: #{lstm_forward.1} parent=1 // pred_check
      _
    $region3: #{lstm_forward.1} parent=1 // pred_check_branch
      %12 = sbr.rel (0) target = $region5
    $region4: #{lstm_forward.1} parent=1 // pred_region
      _
    $region5: #{lstm_forward.1} parent=1 // pred_fallthru
      _
    // Predicated region
    $region6: #{lstm_forward.1} parent=1 // pred_check
      _
    $region7: #{lstm_forward.1} parent=1 // pred_check_branch
      %14 = sbr.rel (0) target = $region9
    $region8: #{lstm_forward.1} parent=1 // pred_region
      _
    $region9: #{lstm_forward.1} parent=1 // pred_fallthru
      _
    %p15 = scmp.eq.s32.totalorder 0, 0
    // Predicated region
    $region10: #{lstm_forward.1} parent=1 // pred_check
      %p16 = pneg %p15
    $region11: #{lstm_forward.1} parent=1 // pred_check_branch
      %18 = sbr.rel (%p16) target = $region13
    $region12: #{lstm_forward.1} parent=1 // pred_region
      %19 = vst [vmem:[#allocation2] sm:$0xff] 0.0
      %20 = vst [vmem:[#allocation3] sm:$0xff] 0.0
    $region13: #{lstm_forward.1} parent=1 // pred_fallthru
      _
    %v21 = vld [vmem:[#allocation2] sm:$0xff]
    %v22 = vld [vmem:[#allocation3] sm:$0xff]
    %v23 = vld [vmem:[%s1] sm:$0xff]
    %v24 = vld [vmem:[%s1 + $0x8] sm:$0xff]
    %v25 = vld [vmem:[%s1 + $0x10] sm:$0xff]
    %v26 = vld [vmem:[%s1 + $0x18] sm:$0xff]
    %v27 = vld [vmem:[%s1 + $0x20] sm:$0xff]
    %v28 = vld [vmem:[%s1 + $0x28] sm:$0xff]
    %v29 = vld [vmem:[%s1 + $0x30] sm:$0xff]
    %v30 = vld [vmem:[%s1 + $0x38] sm:$0xff]
    %v31 = vld [vmem:[%s1 + $0x40] sm:$0xff]
    %v32 = vld [vmem:[%s1 + $0x48] sm:$0xff]
    %v33 = vld [vmem:[%s1 + $0x50] sm:$0xff]
    %v34 = vld [vmem:[%s1 + $0x58] sm:$0xff]
    %v35 = vld [vmem:[%s1 + $0x60] sm:$0xff]
    %v36 = vld [vmem:[%s1 + $0x68] sm:$0xff]
    %v37 = vld [vmem:[%s1 + $0x70] sm:$0xff]
    %v38 = vld [vmem:[%s1 + $0x78] sm:$0xff]
    %v39 = vld [vmem:[%s1 + $0x80] sm:$0xff]
    %v40 = vld [vmem:[%s1 + $0x88] sm:$0xff]
    %v41 = vld [vmem:[%s1 + $0x90] sm:$0xff]
    %v42 = vld [vmem:[%s1 + $0x98] sm:$0xff]
    %v43 = vld [vmem:[%s1 + $0xa0] sm:$0xff]
    %v44 = vld [vmem:[%s1 + $0xa8] sm:$0xff]
    %v45 = vld [vmem:[%s1 + $0xb0] sm:$0xff]
    %v46 = vld [vmem:[%s1 + $0xb8] sm:$0xff]
    %v47 = vld [vmem:[%s1 + $0xc0] sm:$0xff]
    %v48 = vld [vmem:[%s1 + $0xc8] sm:$0xff]
    %v49 = vld [vmem:[%s1 + $0xd0] sm:$0xff]
    %v50 = vld [vmem:[%s1 + $0xd8] sm:$0xff]
    %v51 = vld [vmem:[%s1 + $0xe0] sm:$0xff]
    %v52 = vld [vmem:[%s1 + $0xe8] sm:$0xff]
    %v53 = vld [vmem:[%s1 + $0xf0] sm:$0xff]
    %v54 = vld [vmem:[%s1 + $0xf8] sm:$0xff]
    %v55 = vld [vmem:[%s1 + $0x100] sm:$0xff]
    %v56 = vld [vmem:[%s1 + $0x108] sm:$0xff]
    %v57 = vld [vmem:[%s1 + $0x110] sm:$0xff]
    %v58 = vld [vmem:[%s1 + $0x118] sm:$0xff]
    %v59 = vld [vmem:[%s1 + $0x120] sm:$0xff]
    %v60 = vld [vmem:[%s1 + $0x128] sm:$0xff]
    %v61 = vld [vmem:[%s1 + $0x130] sm:$0xff]
    %v62 = vld [vmem:[%s1 + $0x138] sm:$0xff]
    %v63 = vld [vmem:[%s1 + $0x140] sm:$0xff]
    %v64 = vld [vmem:[%s1 + $0x148] sm:$0xff]
    %v65 = vld [vmem:[%s1 + $0x150] sm:$0xff]
    %v66 = vld [vmem:[%s1 + $0x158] sm:$0xff]
    %v67 = vld [vmem:[%s1 + $0x160] sm:$0xff]
    %v68 = vld [vmem:[%s1 + $0x168] sm:$0xff]
    %v69 = vld [vmem:[%s1 + $0x170] sm:$0xff]
    %v70 = vld [vmem:[%s1 + $0x178] sm:$0xff]
    %v71 = vld [vmem:[%s1 + $0x180] sm:$0xff]
    %v72 = vld [vmem:[%s1 + $0x188] sm:$0xff]
    %v73 = vld [vmem:[%s1 + $0x190] sm:$0xff]
    %v74 = vld [vmem:[%s1 + $0x198] sm:$0xff]
    %v75 = vld [vmem:[%s1 + $0x1a0] sm:$0xff]
    %v76 = vld [vmem:[%s1 + $0x1a8] sm:$0xff]
    %v77 = vld [vmem:[%s1 + $0x1b0] sm:$0xff]
    %v78 = vld [vmem:[%s1 + $0x1b8] sm:$0xff]
    %v79 = vld [vmem:[%s1 + $0x1c0] sm:$0xff]
    %v80 = vld [vmem:[%s1 + $0x1c8] sm:$0xff]
    %v81 = vld [vmem:[%s1 + $0x1d0] sm:$0xff]
    %v82 = vld [vmem:[%s1 + $0x1d8] sm:$0xff]
    %v83 = vld [vmem:[%s1 + $0x1e0] sm:$0xff]
    %v84 = vld [vmem:[%s1 + $0x1e8] sm:$0xff]
    %v85 = vld [vmem:[%s1 + $0x1f0] sm:$0xff]
    %v86 = vld [vmem:[%s1 + $0x1f8] sm:$0xff]
    %v87 = vld [vmem:[%s0] ss:$8 sm:$0xf]
    %s88 = scalar_lea.vmem %s0, 64
    %v89 = vld [vmem:[%s88] ss:$8 sm:$0xf]
    %s90 = scalar_lea.vmem %s0, 128
    %v91 = vld [vmem:[%s90] ss:$8 sm:$0xf]
    %s92 = scalar_lea.vmem %s0, 192
    %v93 = vld [vmem:[%s92] ss:$8 sm:$0xf]
    %s94 = scalar_lea.vmem %s0, 256
    %v95 = vld [vmem:[%s94] ss:$8 sm:$0xf]
    %s96 = scalar_lea.vmem %s0, 320
    %v97 = vld [vmem:[%s96] ss:$8 sm:$0xf]
    %s98 = scalar_lea.vmem %s0, 384
    %v99 = vld [vmem:[%s98] ss:$8 sm:$0xf]
    %s100 = scalar_lea.vmem %s0, 448
    %v101 = vld [vmem:[%s100] ss:$8 sm:$0xf]
    %110 = vst [vmem:[#allocation1] ss:$9 sm:$0xff] %v87
    %s111 = scalar_lea.vmem [#allocation1], 1
    %112 = vst [vmem:[%s111] ss:$9 sm:$0xff] %v89
    %s113 = scalar_lea.vmem [#allocation1], 2
    %114 = vst [vmem:[%s113] ss:$9 sm:$0xff] %v91
    %s115 = scalar_lea.vmem [#allocation1], 3
    %116 = vst [vmem:[%s115] ss:$9 sm:$0xff] %v93
    %s117 = scalar_lea.vmem [#allocation1], 4
    %118 = vst [vmem:[%s117] ss:$9 sm:$0xff] %v95
    %s119 = scalar_lea.vmem [#allocation1], 5
    %120 = vst [vmem:[%s119] ss:$9 sm:$0xff] %v97
    %s121 = scalar_lea.vmem [#allocation1], 6
    %122 = vst [vmem:[%s121] ss:$9 sm:$0xff] %v99
    %s123 = scalar_lea.vmem [#allocation1], 7
    %124 = vst [vmem:[%s123] ss:$9 sm:$0xff] %v101
    %v125 = vld [vmem:[#allocation1] sm:$0xff]
    %v126 = vld [vmem:[#allocation1 + $0x9] sm:$0xff]
    %v127 = vld [vmem:[#allocation1 + $0x12] sm:$0xff]
    %v128 = vld [vmem:[#allocation1 + $0x1b] sm:$0xff]
    %133 = vmatpush.msra.mxu0 %v83
    %134 = vmatpush.msra.mxu0 %v79
    %135 = vmatpush.msra.mxu0 %v75
    %136 = vmatpush.msra.mxu0 %v71
    %137 = vmatpush.msra.mxu0 %v67
    %138 = vmatpush.msra.mxu0 %v63
    %139 = vmatpush.msra.mxu0 %v59
    %140 = vmatpush.msra.mxu0 %v55
    %141 = vmatpush.msra.mxu0 %v51
    %142 = vmatpush.msra.mxu0 %v47
    %143 = vmatpush.msra.mxu0 %v43
    %144 = vmatpush.msra.mxu0 %v39
    %145 = vmatpush.msra.mxu0 %v35
    %146 = vmatpush.msra.mxu0 %v31
    %147 = vmatpush.msra.mxu0 %v27
    %148 = vmatpush.msra.mxu0 %v23
    %149 = vmatmul.f32.gmra.mxu0 %v21
    %v150 = vpop.f32.mrf.mxu0
    %v151 = vadd.f32 %v125, %v150
    %152 = vdwg.mxu0
    %153 = vmatpush.msra.mxu0 %v84
    %154 = vmatpush.msra.mxu0 %v80
    %155 = vmatpush.msra.mxu0 %v76
    %156 = vmatpush.msra.mxu0 %v72
    %157 = vmatpush.msra.mxu0 %v68
    %158 = vmatpush.msra.mxu0 %v64
    %159 = vmatpush.msra.mxu0 %v60
    %160 = vmatpush.msra.mxu0 %v56
    %161 = vmatpush.msra.mxu0 %v52
    %162 = vmatpush.msra.mxu0 %v48
    %163 = vmatpush.msra.mxu0 %v44
    %164 = vmatpush.msra.mxu0 %v40
    %165 = vmatpush.msra.mxu0 %v36
    %166 = vmatpush.msra.mxu0 %v32
    %167 = vmatpush.msra.mxu0 %v28
    %168 = vmatpush.msra.mxu0 %v24
    %169 = vmatmul.f32.gmra.mxu0 %v21
    %v170 = vpop.f32.mrf.mxu0
    %v171 = vadd.f32 %v126, %v170
    %172 = vdwg.mxu0
    %173 = vmatpush.msra.mxu0 %v85
    %174 = vmatpush.msra.mxu0 %v81
    %175 = vmatpush.msra.mxu0 %v77
    %176 = vmatpush.msra.mxu0 %v73
    %177 = vmatpush.msra.mxu0 %v69
    %178 = vmatpush.msra.mxu0 %v65
    %179 = vmatpush.msra.mxu0 %v61
    %180 = vmatpush.msra.mxu0 %v57
    %181 = vmatpush.msra.mxu0 %v53
    %182 = vmatpush.msra.mxu0 %v49
    %183 = vmatpush.msra.mxu0 %v45
    %184 = vmatpush.msra.mxu0 %v41
    %185 = vmatpush.msra.mxu0 %v37
    %186 = vmatpush.msra.mxu0 %v33
    %187 = vmatpush.msra.mxu0 %v29
    %188 = vmatpush.msra.mxu0 %v25
    %189 = vmatmul.f32.gmra.mxu0 %v21
    %v190 = vpop.f32.mrf.mxu0
    %v191 = vadd.f32 %v127, %v190
    %192 = vdwg.mxu0
    %193 = vmatpush.msra.mxu0 %v86
    %194 = vmatpush.msra.mxu0 %v82
    %195 = vmatpush.msra.mxu0 %v78
    %196 = vmatpush.msra.mxu0 %v74
    %197 = vmatpush.msra.mxu0 %v70
    %198 = vmatpush.msra.mxu0 %v66
    %199 = vmatpush.msra.mxu0 %v62
    %200 = vmatpush.msra.mxu0 %v58
    %201 = vmatpush.msra.mxu0 %v54
    %202 = vmatpush.msra.mxu0 %v50
    %203 = vmatpush.msra.mxu0 %v46
    %204 = vmatpush.msra.mxu0 %v42
    %205 = vmatpush.msra.mxu0 %v38
    %206 = vmatpush.msra.mxu0 %v34
    %207 = vmatpush.msra.mxu0 %v30
    %208 = vmatpush.msra.mxu0 %v26
    %209 = vmatmul.f32.gmra.mxu0 %v21
    %v210 = vpop.f32.mrf.mxu0
    %v211 = vadd.f32 %v128, %v210
    %212 = vdwg.mxu0
    %v213 = vxor.u32 %v151, 2147483648
    %v214 = vxor.u32 %v171, 2147483648
    %v215 = vxor.u32 %v191, 2147483648
    %v216 = vmul.f32 %v213, 1.442695
    %v217 = vpow.pop %v216
    %v218 = vmul.f32 %v214, 1.442695
    %v219 = vpow.pop %v218
    %v220 = vmul.f32 %v215, 1.442695
    %v221 = vpow.pop %v220
    %v222 = vadd.f32 %v217, 1.0
    %v223 = vadd.f32 %v219, 1.0
    %v224 = vadd.f32 %v221, 1.0
    %v225 = vrcp.pop %v222
    %v226 = vmul.f32 %v222, %v225
    %v227 = vsub.f32 1.0, %v226
    %v228 = vmul.f32 %v225, %v227
    %v229 = vadd.f32 %v225, %v228
    %vm230 = vweird.f32 %v222
    %vm231 = vweird.f32 %v225
    %vm232 = vmor %vm230, %vm231
    %v233 = vsel %vm232, %v225, %v229
    %v234 = vand.u32 2147483647, %v222
    %vm235 = vcmp.eq.f32.partialorder %v234, 8.507059e+37
    %v236 = vand.u32 %v222, 2147483648
    %v237 = vor.u32 1.1754944e-38, %v236
    %v238 = vsel %vm235, %v237, %v233
    %v239 = vmul.f32 1.0, %v238
    %v240 = vrcp.pop %v223
    %v241 = vmul.f32 %v223, %v240
    %v242 = vsub.f32 1.0, %v241
    %v243 = vmul.f32 %v240, %v242
    %v244 = vadd.f32 %v240, %v243
    %vm245 = vweird.f32 %v223
    %vm246 = vweird.f32 %v240
    %vm247 = vmor %vm245, %vm246
    %v248 = vsel %vm247, %v240, %v244
    %v249 = vand.u32 2147483647, %v223
    %vm250 = vcmp.eq.f32.partialorder %v249, 8.507059e+37
    %v251 = vand.u32 %v223, 2147483648
    %v252 = vor.u32 1.1754944e-38, %v251
    %v253 = vsel %vm250, %v252, %v248
    %v254 = vmul.f32 1.0, %v253
    %v255 = vrcp.pop %v224
    %v256 = vmul.f32 %v224, %v255
    %v257 = vsub.f32 1.0, %v256
    %v258 = vmul.f32 %v255, %v257
    %v259 = vadd.f32 %v255, %v258
    %vm260 = vweird.f32 %v224
    %vm261 = vweird.f32 %v255
    %vm262 = vmor %vm260, %vm261
    %v263 = vsel %vm262, %v255, %v259
    %v264 = vand.u32 2147483647, %v224
    %vm265 = vcmp.eq.f32.partialorder %v264, 8.507059e+37
    %v266 = vand.u32 %v224, 2147483648
    %v267 = vor.u32 1.1754944e-38, %v266
    %v268 = vsel %vm265, %v267, %v263
    %v269 = vmul.f32 1.0, %v268
    %v270 = vtanh.pop %v211
    %v271 = vmul.f32 %v254, %v22
    %v272 = vmul.f32 %v239, %v270
    %v273 = vadd.f32 %v271, %v272
    %v274 = vtanh.pop %v273
    %v275 = vmul.f32 %v269, %v274
    %v277 = vrot.slane %v275, 1
    %v278 = vrot.slane %v275, 2
    %v279 = vrot.slane %v275, 3
    %v280 = vrot.slane %v275, 4
    %v281 = vrot.slane %v275, 5
    %v282 = vrot.slane %v275, 6
    %v283 = vrot.slane %v275, 7
    %291 = vst [vmem:[#allocation4] sm:$0x1] %v275
    %292 = vst [vmem:[#allocation4 + $0x10] sm:$0x1] %v277
    %293 = vst [vmem:[#allocation4 + $0x20] sm:$0x1] %v278
    %294 = vst [vmem:[#allocation4 + $0x30] sm:$0x1] %v279
    %295 = vst [vmem:[#allocation4 + $0x40] sm:$0x1] %v280
    %296 = vst [vmem:[#allocation4 + $0x50] sm:$0x1] %v281
    %297 = vst [vmem:[#allocation4 + $0x60] sm:$0x1] %v282
    %298 = vst [vmem:[#allocation4 + $0x70] sm:$0x1] %v283
    %s299 = scalar_lea.vmem %s0, 1
    %v300 = vld [vmem:[%s299] ss:$8 sm:$0xf]
    %s301 = scalar_lea.vmem %s0, 65
    %v302 = vld [vmem:[%s301] ss:$8 sm:$0xf]
    %s303 = scalar_lea.vmem %s0, 129
    %v304 = vld [vmem:[%s303] ss:$8 sm:$0xf]
    %s305 = scalar_lea.vmem %s0, 193
    %v306 = vld [vmem:[%s305] ss:$8 sm:$0xf]
    %s307 = scalar_lea.vmem %s0, 257
    %v308 = vld [vmem:[%s307] ss:$8 sm:$0xf]
    %s309 = scalar_lea.vmem %s0, 321
    %v310 = vld [vmem:[%s309] ss:$8 sm:$0xf]
    %s311 = scalar_lea.vmem %s0, 385
    %v312 = vld [vmem:[%s311] ss:$8 sm:$0xf]
    %s313 = scalar_lea.vmem %s0, 449
    %v314 = vld [vmem:[%s313] ss:$8 sm:$0xf]
    %323 = vst [vmem:[#allocation1] ss:$9 sm:$0xff] %v300
    %s324 = scalar_lea.vmem [#allocation1], 1
    %325 = vst [vmem:[%s324] ss:$9 sm:$0xff] %v302
    %s326 = scalar_lea.vmem [#allocation1], 2
    %327 = vst [vmem:[%s326] ss:$9 sm:$0xff] %v304
    %s328 = scalar_lea.vmem [#allocation1], 3
    %329 = vst [vmem:[%s328] ss:$9 sm:$0xff] %v306
    %s330 = scalar_lea.vmem [#allocation1], 4
    %331 = vst [vmem:[%s330] ss:$9 sm:$0xff] %v308
    %s332 = scalar_lea.vmem [#allocation1], 5
    %333 = vst [vmem:[%s332] ss:$9 sm:$0xff] %v310
    %s334 = scalar_lea.vmem [#allocation1], 6
    %335 = vst [vmem:[%s334] ss:$9 sm:$0xff] %v312
    %s336 = scalar_lea.vmem [#allocation1], 7
    %337 = vst [vmem:[%s336] ss:$9 sm:$0xff] %v314
    %v338 = vld [vmem:[#allocation1] sm:$0xff]
    %v339 = vld [vmem:[#allocation1 + $0x9] sm:$0xff]
    %v340 = vld [vmem:[#allocation1 + $0x12] sm:$0xff]
    %v341 = vld [vmem:[#allocation1 + $0x1b] sm:$0xff]
    %346 = vmatpush.msra.mxu0 %v83
    %347 = vmatpush.msra.mxu0 %v79
    %348 = vmatpush.msra.mxu0 %v75
    %349 = vmatpush.msra.mxu0 %v71
    %350 = vmatpush.msra.mxu0 %v67
    %351 = vmatpush.msra.mxu0 %v63
    %352 = vmatpush.msra.mxu0 %v59
    %353 = vmatpush.msra.mxu0 %v55
    %354 = vmatpush.msra.mxu0 %v51
    %355 = vmatpush.msra.mxu0 %v47
    %356 = vmatpush.msra.mxu0 %v43
    %357 = vmatpush.msra.mxu0 %v39
    %358 = vmatpush.msra.mxu0 %v35
    %359 = vmatpush.msra.mxu0 %v31
    %360 = vmatpush.msra.mxu0 %v27
    %361 = vmatpush.msra.mxu0 %v23
    %362 = vmatmul.f32.gmra.mxu0 %v275
    %v363 = vpop.f32.mrf.mxu0
    %v364 = vadd.f32 %v338, %v363
    %365 = vdwg.mxu0
    %366 = vmatpush.msra.mxu0 %v84
    %367 = vmatpush.msra.mxu0 %v80
    %368 = vmatpush.msra.mxu0 %v76
    %369 = vmatpush.msra.mxu0 %v72
    %370 = vmatpush.msra.mxu0 %v68
    %371 = vmatpush.msra.mxu0 %v64
    %372 = vmatpush.msra.mxu0 %v60
    %373 = vmatpush.msra.mxu0 %v56
    %374 = vmatpush.msra.mxu0 %v52
    %375 = vmatpush.msra.mxu0 %v48
    %376 = vmatpush.msra.mxu0 %v44
    %377 = vmatpush.msra.mxu0 %v40
    %378 = vmatpush.msra.mxu0 %v36
    %379 = vmatpush.msra.mxu0 %v32
    %380 = vmatpush.msra.mxu0 %v28
    %381 = vmatpush.msra.mxu0 %v24
    %382 = vmatmul.f32.gmra.mxu0 %v275
    %v383 = vpop.f32.mrf.mxu0
    %v384 = vadd.f32 %v339, %v383
    %385 = vdwg.mxu0
    %386 = vmatpush.msra.mxu0 %v85
    %387 = vmatpush.msra.mxu0 %v81
    %388 = vmatpush.msra.mxu0 %v77
    %389 = vmatpush.msra.mxu0 %v73
    %390 = vmatpush.msra.mxu0 %v69
    %391 = vmatpush.msra.mxu0 %v65
    %392 = vmatpush.msra.mxu0 %v61
    %393 = vmatpush.msra.mxu0 %v57
    %394 = vmatpush.msra.mxu0 %v53
    %395 = vmatpush.msra.mxu0 %v49
    %396 = vmatpush.msra.mxu0 %v45
    %397 = vmatpush.msra.mxu0 %v41
    %398 = vmatpush.msra.mxu0 %v37
    %399 = vmatpush.msra.mxu0 %v33
    %400 = vmatpush.msra.mxu0 %v29
    %401 = vmatpush.msra.mxu0 %v25
    %402 = vmatmul.f32.gmra.mxu0 %v275
    %v403 = vpop.f32.mrf.mxu0
    %v404 = vadd.f32 %v340, %v403
    %405 = vdwg.mxu0
    %406 = vmatpush.msra.mxu0 %v86
    %407 = vmatpush.msra.mxu0 %v82
    %408 = vmatpush.msra.mxu0 %v78
    %409 = vmatpush.msra.mxu0 %v74
    %410 = vmatpush.msra.mxu0 %v70
    %411 = vmatpush.msra.mxu0 %v66
    %412 = vmatpush.msra.mxu0 %v62
    %413 = vmatpush.msra.mxu0 %v58
    %414 = vmatpush.msra.mxu0 %v54
    %415 = vmatpush.msra.mxu0 %v50
    %416 = vmatpush.msra.mxu0 %v46
    %417 = vmatpush.msra.mxu0 %v42
    %418 = vmatpush.msra.mxu0 %v38
    %419 = vmatpush.msra.mxu0 %v34
    %420 = vmatpush.msra.mxu0 %v30
    %421 = vmatpush.msra.mxu0 %v26
    %422 = vmatmul.f32.gmra.mxu0 %v275
    %v423 = vpop.f32.mrf.mxu0
    %v424 = vadd.f32 %v341, %v423
    %425 = vdwg.mxu0
    %v426 = vxor.u32 %v364, 2147483648
    %v427 = vxor.u32 %v384, 2147483648
    %v428 = vxor.u32 %v404, 2147483648
    %v429 = vmul.f32 %v426, 1.442695
    %v430 = vpow.pop %v429
    %v431 = vmul.f32 %v427, 1.442695
    %v432 = vpow.pop %v431
    %v433 = vmul.f32 %v428, 1.442695
    %v434 = vpow.pop %v433
    %v435 = vadd.f32 %v430, 1.0
    %v436 = vadd.f32 %v432, 1.0
    %v437 = vadd.f32 %v434, 1.0
    %v438 = vrcp.pop %v435
    %v439 = vmul.f32 %v435, %v438
    %v440 = vsub.f32 1.0, %v439
    %v441 = vmul.f32 %v438, %v440
    %v442 = vadd.f32 %v438, %v441
    %vm443 = vweird.f32 %v435
    %vm444 = vweird.f32 %v438
    %vm445 = vmor %vm443, %vm444
    %v446 = vsel %vm445, %v438, %v442
    %v447 = vand.u32 2147483647, %v435
    %vm448 = vcmp.eq.f32.partialorder %v447, 8.507059e+37
    %v449 = vand.u32 %v435, 2147483648
    %v450 = vor.u32 1.1754944e-38, %v449
    %v451 = vsel %vm448, %v450, %v446
    %v452 = vmul.f32 1.0, %v451
    %v453 = vrcp.pop %v436
    %v454 = vmul.f32 %v436, %v453
    %v455 = vsub.f32 1.0, %v454
    %v456 = vmul.f32 %v453, %v455
    %v457 = vadd.f32 %v453, %v456
    %vm458 = vweird.f32 %v436
    %vm459 = vweird.f32 %v453
    %vm460 = vmor %vm458, %vm459
    %v461 = vsel %vm460, %v453, %v457
    %v462 = vand.u32 2147483647, %v436
    %vm463 = vcmp.eq.f32.partialorder %v462, 8.507059e+37
    %v464 = vand.u32 %v436, 2147483648
    %v465 = vor.u32 1.1754944e-38, %v464
    %v466 = vsel %vm463, %v465, %v461
    %v467 = vmul.f32 1.0, %v466
    %v468 = vrcp.pop %v437
    %v469 = vmul.f32 %v437, %v468
    %v470 = vsub.f32 1.0, %v469
    %v471 = vmul.f32 %v468, %v470
    %v472 = vadd.f32 %v468, %v471
    %vm473 = vweird.f32 %v437
    %vm474 = vweird.f32 %v468
    %vm475 = vmor %vm473, %vm474
    %v476 = vsel %vm475, %v468, %v472
    %v477 = vand.u32 2147483647, %v437
    %vm478 = vcmp.eq.f32.partialorder %v477, 8.507059e+37
    %v479 = vand.u32 %v437, 2147483648
    %v480 = vor.u32 1.1754944e-38, %v479
    %v481 = vsel %vm478, %v480, %v476
    %v482 = vmul.f32 1.0, %v481
    %v483 = vtanh.pop %v424
    %v484 = vmul.f32 %v467, %v273
    %v485 = vmul.f32 %v452, %v483
    %v486 = vadd.f32 %v484, %v485
    %v487 = vtanh.pop %v486
    %v488 = vmul.f32 %v482, %v487
    %v490 = vrot.slane %v488, 1
    %v491 = vrot.slane %v488, 2
    %v492 = vrot.slane %v488, 3
    %v493 = vrot.slane %v488, 4
    %v494 = vrot.slane %v488, 5
    %v495 = vrot.slane %v488, 6
    %v496 = vrot.slane %v488, 7
    %504 = vst [vmem:[#allocation4 + $0x1] sm:$0x1] %v488
    %505 = vst [vmem:[#allocation4 + $0x11] sm:$0x1] %v490
    %506 = vst [vmem:[#allocation4 + $0x21] sm:$0x1] %v491
    %507 = vst [vmem:[#allocation4 + $0x31] sm:$0x1] %v492
    %508 = vst [vmem:[#allocation4 + $0x41] sm:$0x1] %v493
    %509 = vst [vmem:[#allocation4 + $0x51] sm:$0x1] %v494
    %510 = vst [vmem:[#allocation4 + $0x61] sm:$0x1] %v495
    %511 = vst [vmem:[#allocation4 + $0x71] sm:$0x1] %v496
    %s512 = scalar_lea.vmem %s0, 2
    %v513 = vld [vmem:[%s512] ss:$8 sm:$0xf]
    %s514 = scalar_lea.vmem %s0, 66
    %v515 = vld [vmem:[%s514] ss:$8 sm:$0xf]
    %s516 = scalar_lea.vmem %s0, 130
    %v517 = vld [vmem:[%s516] ss:$8 sm:$0xf]
    %s518 = scalar_lea.vmem %s0, 194
    %v519 = vld [vmem:[%s518] ss:$8 sm:$0xf]
    %s520 = scalar_lea.vmem %s0, 258
    %v521 = vld [vmem:[%s520] ss:$8 sm:$0xf]
    %s522 = scalar_lea.vmem %s0, 322
    %v523 = vld [vmem:[%s522] ss:$8 sm:$0xf]
    %s524 = scalar_lea.vmem %s0, 386
    %v525 = vld [vmem:[%s524] ss:$8 sm:$0xf]
    %s526 = scalar_lea.vmem %s0, 450
    %v527 = vld [vmem:[%s526] ss:$8 sm:$0xf]
    %536 = vst [vmem:[#allocation1] ss:$9 sm:$0xff] %v513
    %s537 = scalar_lea.vmem [#allocation1], 1
    %538 = vst [vmem:[%s537] ss:$9 sm:$0xff] %v515
    %s539 = scalar_lea.vmem [#allocation1], 2
    %540 = vst [vmem:[%s539] ss:$9 sm:$0xff] %v517
    %s541 = scalar_lea.vmem [#allocation1], 3
    %542 = vst [vmem:[%s541] ss:$9 sm:$0xff] %v519
    %s543 = scalar_lea.vmem [#allocation1], 4
    %544 = vst [vmem:[%s543] ss:$9 sm:$0xff] %v521
    %s545 = scalar_lea.vmem [#allocation1], 5
    %546 = vst [vmem:[%s545] ss:$9 sm:$0xff] %v523
    %s547 = scalar_lea.vmem [#allocation1], 6
    %548 = vst [vmem:[%s547] ss:$9 sm:$0xff] %v525
    %s549 = scalar_lea.vmem [#allocation1], 7
    %550 = vst [vmem:[%s549] ss:$9 sm:$0xff] %v527
    %v551 = vld [vmem:[#allocation1] sm:$0xff]
    %v552 = vld [vmem:[#allocation1 + $0x9] sm:$0xff]
    %v553 = vld [vmem:[#allocation1 + $0x12] sm:$0xff]
    %v554 = vld [vmem:[#allocation1 + $0x1b] sm:$0xff]
    %559 = vmatpush.msra.mxu0 %v83
    %560 = vmatpush.msra.mxu0 %v79
    %561 = vmatpush.msra.mxu0 %v75
    %562 = vmatpush.msra.mxu0 %v71
    %563 = vmatpush.msra.mxu0 %v67
    %564 = vmatpush.msra.mxu0 %v63
    %565 = vmatpush.msra.mxu0 %v59
    %566 = vmatpush.msra.mxu0 %v55
    %567 = vmatpush.msra.mxu0 %v51
    %568 = vmatpush.msra.mxu0 %v47
    %569 = vmatpush.msra.mxu0 %v43
    %570 = vmatpush.msra.mxu0 %v39
    %571 = vmatpush.msra.mxu0 %v35
    %572 = vmatpush.msra.mxu0 %v31
    %573 = vmatpush.msra.mxu0 %v27
    %574 = vmatpush.msra.mxu0 %v23
    %575 = vmatmul.f32.gmra.mxu0 %v488
    %v576 = vpop.f32.mrf.mxu0
    %v577 = vadd.f32 %v551, %v576
    %578 = vdwg.mxu0
    %579 = vmatpush.msra.mxu0 %v84
    %580 = vmatpush.msra.mxu0 %v80
    %581 = vmatpush.msra.mxu0 %v76
    %582 = vmatpush.msra.mxu0 %v72
    %583 = vmatpush.msra.mxu0 %v68
    %584 = vmatpush.msra.mxu0 %v64
    %585 = vmatpush.msra.mxu0 %v60
    %586 = vmatpush.msra.mxu0 %v56
    %587 = vmatpush.msra.mxu0 %v52
    %588 = vmatpush.msra.mxu0 %v48
    %589 = vmatpush.msra.mxu0 %v44
    %590 = vmatpush.msra.mxu0 %v40
    %591 = vmatpush.msra.mxu0 %v36
    %592 = vmatpush.msra.mxu0 %v32
    %593 = vmatpush.msra.mxu0 %v28
    %594 = vmatpush.msra.mxu0 %v24
    %595 = vmatmul.f32.gmra.mxu0 %v488
    %v596 = vpop.f32.mrf.mxu0
    %v597 = vadd.f32 %v552, %v596
    %598 = vdwg.mxu0
    %599 = vmatpush.msra.mxu0 %v85
    %600 = vmatpush.msra.mxu0 %v81
    %601 = vmatpush.msra.mxu0 %v77
    %602 = vmatpush.msra.mxu0 %v73
    %603 = vmatpush.msra.mxu0 %v69
    %604 = vmatpush.msra.mxu0 %v65
    %605 = vmatpush.msra.mxu0 %v61
    %606 = vmatpush.msra.mxu0 %v57
    %607 = vmatpush.msra.mxu0 %v53
    %608 = vmatpush.msra.mxu0 %v49
    %609 = vmatpush.msra.mxu0 %v45
    %610 = vmatpush.msra.mxu0 %v41
    %611 = vmatpush.msra.mxu0 %v37
    %612 = vmatpush.msra.mxu0 %v33
    %613 = vmatpush.msra.mxu0 %v29
    %614 = vmatpush.msra.mxu0 %v25
    %615 = vmatmul.f32.gmra.mxu0 %v488
    %v616 = vpop.f32.mrf.mxu0
    %v617 = vadd.f32 %v553, %v616
    %618 = vdwg.mxu0
    %619 = vmatpush.msra.mxu0 %v86
    %620 = vmatpush.msra.mxu0 %v82
    %621 = vmatpush.msra.mxu0 %v78
    %622 = vmatpush.msra.mxu0 %v74
    %623 = vmatpush.msra.mxu0 %v70
    %624 = vmatpush.msra.mxu0 %v66
    %625 = vmatpush.msra.mxu0 %v62
    %626 = vmatpush.msra.mxu0 %v58
    %627 = vmatpush.msra.mxu0 %v54
    %628 = vmatpush.msra.mxu0 %v50
    %629 = vmatpush.msra.mxu0 %v46
    %630 = vmatpush.msra.mxu0 %v42
    %631 = vmatpush.msra.mxu0 %v38
    %632 = vmatpush.msra.mxu0 %v34
    %633 = vmatpush.msra.mxu0 %v30
    %634 = vmatpush.msra.mxu0 %v26
    %635 = vmatmul.f32.gmra.mxu0 %v488
    %v636 = vpop.f32.mrf.mxu0
    %v637 = vadd.f32 %v554, %v636
    %638 = vdwg.mxu0
    %v639 = vxor.u32 %v577, 2147483648
    %v640 = vxor.u32 %v597, 2147483648
    %v641 = vxor.u32 %v617, 2147483648
    %v642 = vmul.f32 %v639, 1.442695
    %v643 = vpow.pop %v642
    %v644 = vmul.f32 %v640, 1.442695
    %v645 = vpow.pop %v644
    %v646 = vmul.f32 %v641, 1.442695
    %v647 = vpow.pop %v646
    %v648 = vadd.f32 %v643, 1.0
    %v649 = vadd.f32 %v645, 1.0
    %v650 = vadd.f32 %v647, 1.0
    %v651 = vrcp.pop %v648
    %v652 = vmul.f32 %v648, %v651
    %v653 = vsub.f32 1.0, %v652
    %v654 = vmul.f32 %v651, %v653
    %v655 = vadd.f32 %v651, %v654
    %vm656 = vweird.f32 %v648
    %vm657 = vweird.f32 %v651
    %vm658 = vmor %vm656, %vm657
    %v659 = vsel %vm658, %v651, %v655
    %v660 = vand.u32 2147483647, %v648
    %vm661 = vcmp.eq.f32.partialorder %v660, 8.507059e+37
    %v662 = vand.u32 %v648, 2147483648
    %v663 = vor.u32 1.1754944e-38, %v662
    %v664 = vsel %vm661, %v663, %v659
    %v665 = vmul.f32 1.0, %v664
    %v666 = vrcp.pop %v649
    %v667 = vmul.f32 %v649, %v666
    %v668 = vsub.f32 1.0, %v667
    %v669 = vmul.f32 %v666, %v668
    %v670 = vadd.f32 %v666, %v669
    %vm671 = vweird.f32 %v649
    %vm672 = vweird.f32 %v666
    %vm673 = vmor %vm671, %vm672
    %v674 = vsel %vm673, %v666, %v670
    %v675 = vand.u32 2147483647, %v649
    %vm676 = vcmp.eq.f32.partialorder %v675, 8.507059e+37
    %v677 = vand.u32 %v649, 2147483648
    %v678 = vor.u32 1.1754944e-38, %v677
    %v679 = vsel %vm676, %v678, %v674
    %v680 = vmul.f32 1.0, %v679
    %v681 = vrcp.pop %v650
    %v682 = vmul.f32 %v650, %v681
    %v683 = vsub.f32 1.0, %v682
    %v684 = vmul.f32 %v681, %v683
    %v685 = vadd.f32 %v681, %v684
    %vm686 = vweird.f32 %v650
    %vm687 = vweird.f32 %v681
    %vm688 = vmor %vm686, %vm687
    %v689 = vsel %vm688, %v681, %v685
    %v690 = vand.u32 2147483647, %v650
    %vm691 = vcmp.eq.f32.partialorder %v690, 8.507059e+37
    %v692 = vand.u32 %v650, 2147483648
    %v693 = vor.u32 1.1754944e-38, %v692
    %v694 = vsel %vm691, %v693, %v689
    %v695 = vmul.f32 1.0, %v694
    %v696 = vtanh.pop %v637
    %v697 = vmul.f32 %v680, %v486
    %v698 = vmul.f32 %v665, %v696
    %v699 = vadd.f32 %v697, %v698
    %v700 = vtanh.pop %v699
    %v701 = vmul.f32 %v695, %v700
    %v703 = vrot.slane %v701, 1
    %v704 = vrot.slane %v701, 2
    %v705 = vrot.slane %v701, 3
    %v706 = vrot.slane %v701, 4
    %v707 = vrot.slane %v701, 5
    %v708 = vrot.slane %v701, 6
    %v709 = vrot.slane %v701, 7
    %717 = vst [vmem:[#allocation4 + $0x2] sm:$0x1] %v701
    %718 = vst [vmem:[#allocation4 + $0x12] sm:$0x1] %v703
    %719 = vst [vmem:[#allocation4 + $0x22] sm:$0x1] %v704
    %720 = vst [vmem:[#allocation4 + $0x32] sm:$0x1] %v705
    %721 = vst [vmem:[#allocation4 + $0x42] sm:$0x1] %v706
    %722 = vst [vmem:[#allocation4 + $0x52] sm:$0x1] %v707
    %723 = vst [vmem:[#allocation4 + $0x62] sm:$0x1] %v708
    %724 = vst [vmem:[#allocation4 + $0x72] sm:$0x1] %v709
    %s725 = scalar_lea.vmem %s0, 3
    %v726 = vld [vmem:[%s725] ss:$8 sm:$0xf]
    %s727 = scalar_lea.vmem %s0, 67
    %v728 = vld [vmem:[%s727] ss:$8 sm:$0xf]
    %s729 = scalar_lea.vmem %s0, 131
    %v730 = vld [vmem:[%s729] ss:$8 sm:$0xf]
    %s731 = scalar_lea.vmem %s0, 195
    %v732 = vld [vmem:[%s731] ss:$8 sm:$0xf]
    %s733 = scalar_lea.vmem %s0, 259
    %v734 = vld [vmem:[%s733] ss:$8 sm:$0xf]
    %s735 = scalar_lea.vmem %s0, 323
    %v736 = vld [vmem:[%s735] ss:$8 sm:$0xf]
    %s737 = scalar_lea.vmem %s0, 387
    %v738 = vld [vmem:[%s737] ss:$8 sm:$0xf]
    %s739 = scalar_lea.vmem %s0, 451
    %v740 = vld [vmem:[%s739] ss:$8 sm:$0xf]
    %749 = vst [vmem:[#allocation1] ss:$9 sm:$0xff] %v726
    %s750 = scalar_lea.vmem [#allocation1], 1
    %751 = vst [vmem:[%s750] ss:$9 sm:$0xff] %v728
    %s752 = scalar_lea.vmem [#allocation1], 2
    %753 = vst [vmem:[%s752] ss:$9 sm:$0xff] %v730
    %s754 = scalar_lea.vmem [#allocation1], 3
    %755 = vst [vmem:[%s754] ss:$9 sm:$0xff] %v732
    %s756 = scalar_lea.vmem [#allocation1], 4
    %757 = vst [vmem:[%s756] ss:$9 sm:$0xff] %v734
    %s758 = scalar_lea.vmem [#allocation1], 5
    %759 = vst [vmem:[%s758] ss:$9 sm:$0xff] %v736
    %s760 = scalar_lea.vmem [#allocation1], 6
    %761 = vst [vmem:[%s760] ss:$9 sm:$0xff] %v738
    %s762 = scalar_lea.vmem [#allocation1], 7
    %763 = vst [vmem:[%s762] ss:$9 sm:$0xff] %v740
    %v764 = vld [vmem:[#allocation1] sm:$0xff]
    %v765 = vld [vmem:[#allocation1 + $0x9] sm:$0xff]
    %v766 = vld [vmem:[#allocation1 + $0x12] sm:$0xff]
    %v767 = vld [vmem:[#allocation1 + $0x1b] sm:$0xff]
    %772 = vmatpush.msra.mxu0 %v83
    %773 = vmatpush.msra.mxu0 %v79
    %774 = vmatpush.msra.mxu0 %v75
    %775 = vmatpush.msra.mxu0 %v71
    %776 = vmatpush.msra.mxu0 %v67
    %777 = vmatpush.msra.mxu0 %v63
    %778 = vmatpush.msra.mxu0 %v59
    %779 = vmatpush.msra.mxu0 %v55
    %780 = vmatpush.msra.mxu0 %v51
    %781 = vmatpush.msra.mxu0 %v47
    %782 = vmatpush.msra.mxu0 %v43
    %783 = vmatpush.msra.mxu0 %v39
    %784 = vmatpush.msra.mxu0 %v35
    %785 = vmatpush.msra.mxu0 %v31
    %786 = vmatpush.msra.mxu0 %v27
    %787 = vmatpush.msra.mxu0 %v23
    %788 = vmatmul.f32.gmra.mxu0 %v701
    %v789 = vpop.f32.mrf.mxu0
    %v790 = vadd.f32 %v764, %v789
    %791 = vdwg.mxu0
    %792 = vmatpush.msra.mxu0 %v84
    %793 = vmatpush.msra.mxu0 %v80
    %794 = vmatpush.msra.mxu0 %v76
    %795 = vmatpush.msra.mxu0 %v72
    %796 = vmatpush.msra.mxu0 %v68
    %797 = vmatpush.msra.mxu0 %v64
    %798 = vmatpush.msra.mxu0 %v60
    %799 = vmatpush.msra.mxu0 %v56
    %800 = vmatpush.msra.mxu0 %v52
    %801 = vmatpush.msra.mxu0 %v48
    %802 = vmatpush.msra.mxu0 %v44
    %803 = vmatpush.msra.mxu0 %v40
    %804 = vmatpush.msra.mxu0 %v36
    %805 = vmatpush.msra.mxu0 %v32
    %806 = vmatpush.msra.mxu0 %v28
    %807 = vmatpush.msra.mxu0 %v24
    %808 = vmatmul.f32.gmra.mxu0 %v701
    %v809 = vpop.f32.mrf.mxu0
    %v810 = vadd.f32 %v765, %v809
    %811 = vdwg.mxu0
    %812 = vmatpush.msra.mxu0 %v85
    %813 = vmatpush.msra.mxu0 %v81
    %814 = vmatpush.msra.mxu0 %v77
    %815 = vmatpush.msra.mxu0 %v73
    %816 = vmatpush.msra.mxu0 %v69
    %817 = vmatpush.msra.mxu0 %v65
    %818 = vmatpush.msra.mxu0 %v61
    %819 = vmatpush.msra.mxu0 %v57
    %820 = vmatpush.msra.mxu0 %v53
    %821 = vmatpush.msra.mxu0 %v49
    %822 = vmatpush.msra.mxu0 %v45
    %823 = vmatpush.msra.mxu0 %v41
    %824 = vmatpush.msra.mxu0 %v37
    %825 = vmatpush.msra.mxu0 %v33
    %826 = vmatpush.msra.mxu0 %v29
    %827 = vmatpush.msra.mxu0 %v25
    %828 = vmatmul.f32.gmra.mxu0 %v701
    %v829 = vpop.f32.mrf.mxu0
    %v830 = vadd.f32 %v766, %v829
    %831 = vdwg.mxu0
    %832 = vmatpush.msra.mxu0 %v86
    %833 = vmatpush.msra.mxu0 %v82
    %834 = vmatpush.msra.mxu0 %v78
    %835 = vmatpush.msra.mxu0 %v74
    %836 = vmatpush.msra.mxu0 %v70
    %837 = vmatpush.msra.mxu0 %v66
    %838 = vmatpush.msra.mxu0 %v62
    %839 = vmatpush.msra.mxu0 %v58
    %840 = vmatpush.msra.mxu0 %v54
    %841 = vmatpush.msra.mxu0 %v50
    %842 = vmatpush.msra.mxu0 %v46
    %843 = vmatpush.msra.mxu0 %v42
    %844 = vmatpush.msra.mxu0 %v38
    %845 = vmatpush.msra.mxu0 %v34
    %846 = vmatpush.msra.mxu0 %v30
    %847 = vmatpush.msra.mxu0 %v26
    %848 = vmatmul.f32.gmra.mxu0 %v701
    %v849 = vpop.f32.mrf.mxu0
    %v850 = vadd.f32 %v767, %v849
    %851 = vdwg.mxu0
    %v852 = vxor.u32 %v790, 2147483648
    %v853 = vxor.u32 %v810, 2147483648
    %v854 = vxor.u32 %v830, 2147483648
    %v855 = vmul.f32 %v852, 1.442695
    %v856 = vpow.pop %v855
    %v857 = vmul.f32 %v853, 1.442695
    %v858 = vpow.pop %v857
    %v859 = vmul.f32 %v854, 1.442695
    %v860 = vpow.pop %v859
    %v861 = vadd.f32 %v856, 1.0
    %v862 = vadd.f32 %v858, 1.0
    %v863 = vadd.f32 %v860, 1.0
    %v864 = vrcp.pop %v861
    %v865 = vmul.f32 %v861, %v864
    %v866 = vsub.f32 1.0, %v865
    %v867 = vmul.f32 %v864, %v866
    %v868 = vadd.f32 %v864, %v867
    %vm869 = vweird.f32 %v861
    %vm870 = vweird.f32 %v864
    %vm871 = vmor %vm869, %vm870
    %v872 = vsel %vm871, %v864, %v868
    %v873 = vand.u32 2147483647, %v861
    %vm874 = vcmp.eq.f32.partialorder %v873, 8.507059e+37
    %v875 = vand.u32 %v861, 2147483648
    %v876 = vor.u32 1.1754944e-38, %v875
    %v877 = vsel %vm874, %v876, %v872
    %v878 = vmul.f32 1.0, %v877
    %v879 = vrcp.pop %v862
    %v880 = vmul.f32 %v862, %v879
    %v881 = vsub.f32 1.0, %v880
    %v882 = vmul.f32 %v879, %v881
    %v883 = vadd.f32 %v879, %v882
    %vm884 = vweird.f32 %v862
    %vm885 = vweird.f32 %v879
    %vm886 = vmor %vm884, %vm885
    %v887 = vsel %vm886, %v879, %v883
    %v888 = vand.u32 2147483647, %v862
    %vm889 = vcmp.eq.f32.partialorder %v888, 8.507059e+37
    %v890 = vand.u32 %v862, 2147483648
    %v891 = vor.u32 1.1754944e-38, %v890
    %v892 = vsel %vm889, %v891, %v887
    %v893 = vmul.f32 1.0, %v892
    %v894 = vrcp.pop %v863
    %v895 = vmul.f32 %v863, %v894
    %v896 = vsub.f32 1.0, %v895
    %v897 = vmul.f32 %v894, %v896
    %v898 = vadd.f32 %v894, %v897
    %vm899 = vweird.f32 %v863
    %vm900 = vweird.f32 %v894
    %vm901 = vmor %vm899, %vm900
    %v902 = vsel %vm901, %v894, %v898
    %v903 = vand.u32 2147483647, %v863
    %vm904 = vcmp.eq.f32.partialorder %v903, 8.507059e+37
    %v905 = vand.u32 %v863, 2147483648
    %v906 = vor.u32 1.1754944e-38, %v905
    %v907 = vsel %vm904, %v906, %v902
    %v908 = vmul.f32 1.0, %v907
    %v909 = vtanh.pop %v850
    %v910 = vmul.f32 %v893, %v699
    %v911 = vmul.f32 %v878, %v909
    %v912 = vadd.f32 %v910, %v911
    %v913 = vtanh.pop %v912
    %v914 = vmul.f32 %v908, %v913
    %v916 = vrot.slane %v914, 1
    %v917 = vrot.slane %v914, 2
    %v918 = vrot.slane %v914, 3
    %v919 = vrot.slane %v914, 4
    %v920 = vrot.slane %v914, 5
    %v921 = vrot.slane %v914, 6
    %v922 = vrot.slane %v914, 7
    %930 = vst [vmem:[#allocation4 + $0x3] sm:$0x1] %v914
    %931 = vst [vmem:[#allocation4 + $0x13] sm:$0x1] %v916
    %932 = vst [vmem:[#allocation4 + $0x23] sm:$0x1] %v917
    %933 = vst [vmem:[#allocation4 + $0x33] sm:$0x1] %v918
    %934 = vst [vmem:[#allocation4 + $0x43] sm:$0x1] %v919
    %935 = vst [vmem:[#allocation4 + $0x53] sm:$0x1] %v920
    %936 = vst [vmem:[#allocation4 + $0x63] sm:$0x1] %v921
    %937 = vst [vmem:[#allocation4 + $0x73] sm:$0x1] %v922
    %s938 = scalar_lea.vmem %s0, 4
    %v939 = vld [vmem:[%s938] ss:$8 sm:$0xf]
    %s940 = scalar_lea.vmem %s0, 68
    %v941 = vld [vmem:[%s940] ss:$8 sm:$0xf]
    %s942 = scalar_lea.vmem %s0, 132
    %v943 = vld [vmem:[%s942] ss:$8 sm:$0xf]
    %s944 = scalar_lea.vmem %s0, 196
    %v945 = vld [vmem:[%s944] ss:$8 sm:$0xf]
    %s946 = scalar_lea.vmem %s0, 260
    %v947 = vld [vmem:[%s946] ss:$8 sm:$0xf]
    %s948 = scalar_lea.vmem %s0, 324
    %v949 = vld [vmem:[%s948] ss:$8 sm:$0xf]
    %s950 = scalar_lea.vmem %s0, 388
    %v951 = vld [vmem:[%s950] ss:$8 sm:$0xf]
    %s952 = scalar_lea.vmem %s0, 452
    %v953 = vld [vmem:[%s952] ss:$8 sm:$0xf]
    %962 = vst [vmem:[#allocation1] ss:$9 sm:$0xff] %v939
    %s963 = scalar_lea.vmem [#allocation1], 1
    %964 = vst [vmem:[%s963] ss:$9 sm:$0xff] %v941
    %s965 = scalar_lea.vmem [#allocation1], 2
    %966 = vst [vmem:[%s965] ss:$9 sm:$0xff] %v943
    %s967 = scalar_lea.vmem [#allocation1], 3
    %968 = vst [vmem:[%s967] ss:$9 sm:$0xff] %v945
    %s969 = scalar_lea.vmem [#allocation1], 4
    %970 = vst [vmem:[%s969] ss:$9 sm:$0xff] %v947
    %s971 = scalar_lea.vmem [#allocation1], 5
    %972 = vst [vmem:[%s971] ss:$9 sm:$0xff] %v949
    %s973 = scalar_lea.vmem [#allocation1], 6
    %974 = vst [vmem:[%s973] ss:$9 sm:$0xff] %v951
    %s975 = scalar_lea.vmem [#allocation1], 7
    %976 = vst [vmem:[%s975] ss:$9 sm:$0xff] %v953
    %v977 = vld [vmem:[#allocation1] sm:$0xff]
    %v978 = vld [vmem:[#allocation1 + $0x9] sm:$0xff]
    %v979 = vld [vmem:[#allocation1 + $0x12] sm:$0xff]
    %v980 = vld [vmem:[#allocation1 + $0x1b] sm:$0xff]
    %985 = vmatpush.msra.mxu0 %v83
    %986 = vmatpush.msra.mxu0 %v79
    %987 = vmatpush.msra.mxu0 %v75
    %988 = vmatpush.msra.mxu0 %v71
    %989 = vmatpush.msra.mxu0 %v67
    %990 = vmatpush.msra.mxu0 %v63
    %991 = vmatpush.msra.mxu0 %v59
    %992 = vmatpush.msra.mxu0 %v55
    %993 = vmatpush.msra.mxu0 %v51
    %994 = vmatpush.msra.mxu0 %v47
    %995 = vmatpush.msra.mxu0 %v43
    %996 = vmatpush.msra.mxu0 %v39
    %997 = vmatpush.msra.mxu0 %v35
    %998 = vmatpush.msra.mxu0 %v31
    %999 = vmatpush.msra.mxu0 %v27
    %1000 = vmatpush.msra.mxu0 %v23
    %1001 = vmatmul.f32.gmra.mxu0 %v914
    %v1002 = vpop.f32.mrf.mxu0
    %v1003 = vadd.f32 %v977, %v1002
    %1004 = vdwg.mxu0
    %1005 = vmatpush.msra.mxu0 %v84
    %1006 = vmatpush.msra.mxu0 %v80
    %1007 = vmatpush.msra.mxu0 %v76
    %1008 = vmatpush.msra.mxu0 %v72
    %1009 = vmatpush.msra.mxu0 %v68
    %1010 = vmatpush.msra.mxu0 %v64
    %1011 = vmatpush.msra.mxu0 %v60
    %1012 = vmatpush.msra.mxu0 %v56
    %1013 = vmatpush.msra.mxu0 %v52
    %1014 = vmatpush.msra.mxu0 %v48
    %1015 = vmatpush.msra.mxu0 %v44
    %1016 = vmatpush.msra.mxu0 %v40
    %1017 = vmatpush.msra.mxu0 %v36
    %1018 = vmatpush.msra.mxu0 %v32
    %1019 = vmatpush.msra.mxu0 %v28
    %1020 = vmatpush.msra.mxu0 %v24
    %1021 = vmatmul.f32.gmra.mxu0 %v914
    %v1022 = vpop.f32.mrf.mxu0
    %v1023 = vadd.f32 %v978, %v1022
    %1024 = vdwg.mxu0
    %1025 = vmatpush.msra.mxu0 %v85
    %1026 = vmatpush.msra.mxu0 %v81
    %1027 = vmatpush.msra.mxu0 %v77
    %1028 = vmatpush.msra.mxu0 %v73
    %1029 = vmatpush.msra.mxu0 %v69
    %1030 = vmatpush.msra.mxu0 %v65
    %1031 = vmatpush.msra.mxu0 %v61
    %1032 = vmatpush.msra.mxu0 %v57
    %1033 = vmatpush.msra.mxu0 %v53
    %1034 = vmatpush.msra.mxu0 %v49
    %1035 = vmatpush.msra.mxu0 %v45
    %1036 = vmatpush.msra.mxu0 %v41
    %1037 = vmatpush.msra.mxu0 %v37
    %1038 = vmatpush.msra.mxu0 %v33
    %1039 = vmatpush.msra.mxu0 %v29
    %1040 = vmatpush.msra.mxu0 %v25
    %1041 = vmatmul.f32.gmra.mxu0 %v914
    %v1042 = vpop.f32.mrf.mxu0
    %v1043 = vadd.f32 %v979, %v1042
    %1044 = vdwg.mxu0
    %1045 = vmatpush.msra.mxu0 %v86
    %1046 = vmatpush.msra.mxu0 %v82
    %1047 = vmatpush.msra.mxu0 %v78
    %1048 = vmatpush.msra.mxu0 %v74
    %1049 = vmatpush.msra.mxu0 %v70
    %1050 = vmatpush.msra.mxu0 %v66
    %1051 = vmatpush.msra.mxu0 %v62
    %1052 = vmatpush.msra.mxu0 %v58
    %1053 = vmatpush.msra.mxu0 %v54
    %1054 = vmatpush.msra.mxu0 %v50
    %1055 = vmatpush.msra.mxu0 %v46
    %1056 = vmatpush.msra.mxu0 %v42
    %1057 = vmatpush.msra.mxu0 %v38
    %1058 = vmatpush.msra.mxu0 %v34
    %1059 = vmatpush.msra.mxu0 %v30
    %1060 = vmatpush.msra.mxu0 %v26
    %1061 = vmatmul.f32.gmra.mxu0 %v914
    %v1062 = vpop.f32.mrf.mxu0
    %v1063 = vadd.f32 %v980, %v1062
    %1064 = vdwg.mxu0
    %v1065 = vxor.u32 %v1003, 2147483648
    %v1066 = vxor.u32 %v1023, 2147483648
    %v1067 = vxor.u32 %v1043, 2147483648
    %v1068 = vmul.f32 %v1065, 1.442695
    %v1069 = vpow.pop %v1068
    %v1070 = vmul.f32 %v1066, 1.442695
    %v1071 = vpow.pop %v1070
    %v1072 = vmul.f32 %v1067, 1.442695
    %v1073 = vpow.pop %v1072
    %v1074 = vadd.f32 %v1069, 1.0
    %v1075 = vadd.f32 %v1071, 1.0
    %v1076 = vadd.f32 %v1073, 1.0
    %v1077 = vrcp.pop %v1074
    %v1078 = vmul.f32 %v1074, %v1077
    %v1079 = vsub.f32 1.0, %v1078
    %v1080 = vmul.f32 %v1077, %v1079
    %v1081 = vadd.f32 %v1077, %v1080
    %vm1082 = vweird.f32 %v1074
    %vm1083 = vweird.f32 %v1077
    %vm1084 = vmor %vm1082, %vm1083
    %v1085 = vsel %vm1084, %v1077, %v1081
    %v1086 = vand.u32 2147483647, %v1074
    %vm1087 = vcmp.eq.f32.partialorder %v1086, 8.507059e+37
    %v1088 = vand.u32 %v1074, 2147483648
    %v1089 = vor.u32 1.1754944e-38, %v1088
    %v1090 = vsel %vm1087, %v1089, %v1085
    %v1091 = vmul.f32 1.0, %v1090
    %v1092 = vrcp.pop %v1075
    %v1093 = vmul.f32 %v1075, %v1092
    %v1094 = vsub.f32 1.0, %v1093
    %v1095 = vmul.f32 %v1092, %v1094
    %v1096 = vadd.f32 %v1092, %v1095
    %vm1097 = vweird.f32 %v1075
    %vm1098 = vweird.f32 %v1092
    %vm1099 = vmor %vm1097, %vm1098
    %v1100 = vsel %vm1099, %v1092, %v1096
    %v1101 = vand.u32 2147483647, %v1075
    %vm1102 = vcmp.eq.f32.partialorder %v1101, 8.507059e+37
    %v1103 = vand.u32 %v1075, 2147483648
    %v1104 = vor.u32 1.1754944e-38, %v1103
    %v1105 = vsel %vm1102, %v1104, %v1100
    %v1106 = vmul.f32 1.0, %v1105
    %v1107 = vrcp.pop %v1076
    %v1108 = vmul.f32 %v1076, %v1107
    %v1109 = vsub.f32 1.0, %v1108
    %v1110 = vmul.f32 %v1107, %v1109
    %v1111 = vadd.f32 %v1107, %v1110
    %vm1112 = vweird.f32 %v1076
    %vm1113 = vweird.f32 %v1107
    %vm1114 = vmor %vm1112, %vm1113
    %v1115 = vsel %vm1114, %v1107, %v1111
    %v1116 = vand.u32 2147483647, %v1076
    %vm1117 = vcmp.eq.f32.partialorder %v1116, 8.507059e+37
    %v1118 = vand.u32 %v1076, 2147483648
    %v1119 = vor.u32 1.1754944e-38, %v1118
    %v1120 = vsel %vm1117, %v1119, %v1115
    %v1121 = vmul.f32 1.0, %v1120
    %v1122 = vtanh.pop %v1063
    %v1123 = vmul.f32 %v1106, %v912
    %v1124 = vmul.f32 %v1091, %v1122
    %v1125 = vadd.f32 %v1123, %v1124
    %v1126 = vtanh.pop %v1125
    %v1127 = vmul.f32 %v1121, %v1126
    %v1129 = vrot.slane %v1127, 1
    %v1130 = vrot.slane %v1127, 2
    %v1131 = vrot.slane %v1127, 3
    %v1132 = vrot.slane %v1127, 4
    %v1133 = vrot.slane %v1127, 5
    %v1134 = vrot.slane %v1127, 6
    %v1135 = vrot.slane %v1127, 7
    %1143 = vst [vmem:[#allocation4 + $0x4] sm:$0x1] %v1127
    %1144 = vst [vmem:[#allocation4 + $0x14] sm:$0x1] %v1129
    %1145 = vst [vmem:[#allocation4 + $0x24] sm:$0x1] %v1130
    %1146 = vst [vmem:[#allocation4 + $0x34] sm:$0x1] %v1131
    %1147 = vst [vmem:[#allocation4 + $0x44] sm:$0x1] %v1132
    %1148 = vst [vmem:[#allocation4 + $0x54] sm:$0x1] %v1133
    %1149 = vst [vmem:[#allocation4 + $0x64] sm:$0x1] %v1134
    %1150 = vst [vmem:[#allocation4 + $0x74] sm:$0x1] %v1135
    %s1151 = scalar_lea.vmem %s0, 5
    %v1152 = vld [vmem:[%s1151] ss:$8 sm:$0xf]
    %s1153 = scalar_lea.vmem %s0, 69
    %v1154 = vld [vmem:[%s1153] ss:$8 sm:$0xf]
    %s1155 = scalar_lea.vmem %s0, 133
    %v1156 = vld [vmem:[%s1155] ss:$8 sm:$0xf]
    %s1157 = scalar_lea.vmem %s0, 197
    %v1158 = vld [vmem:[%s1157] ss:$8 sm:$0xf]
    %s1159 = scalar_lea.vmem %s0, 261
    %v1160 = vld [vmem:[%s1159] ss:$8 sm:$0xf]
    %s1161 = scalar_lea.vmem %s0, 325
    %v1162 = vld [vmem:[%s1161] ss:$8 sm:$0xf]
    %s1163 = scalar_lea.vmem %s0, 389
    %v1164 = vld [vmem:[%s1163] ss:$8 sm:$0xf]
    %s1165 = scalar_lea.vmem %s0, 453
    %v1166 = vld [vmem:[%s1165] ss:$8 sm:$0xf]
    %1175 = vst [vmem:[#allocation1] ss:$9 sm:$0xff] %v1152
    %s1176 = scalar_lea.vmem [#allocation1], 1
    %1177 = vst [vmem:[%s1176] ss:$9 sm:$0xff] %v1154
    %s1178 = scalar_lea.vmem [#allocation1], 2
    %1179 = vst [vmem:[%s1178] ss:$9 sm:$0xff] %v1156
    %s1180 = scalar_lea.vmem [#allocation1], 3
    %1181 = vst [vmem:[%s1180] ss:$9 sm:$0xff] %v1158
    %s1182 = scalar_lea.vmem [#allocation1], 4
    %1183 = vst [vmem:[%s1182] ss:$9 sm:$0xff] %v1160
    %s1184 = scalar_lea.vmem [#allocation1], 5
    %1185 = vst [vmem:[%s1184] ss:$9 sm:$0xff] %v1162
    %s1186 = scalar_lea.vmem [#allocation1], 6
    %1187 = vst [vmem:[%s1186] ss:$9 sm:$0xff] %v1164
    %s1188 = scalar_lea.vmem [#allocation1], 7
    %1189 = vst [vmem:[%s1188] ss:$9 sm:$0xff] %v1166
    %v1190 = vld [vmem:[#allocation1] sm:$0xff]
    %v1191 = vld [vmem:[#allocation1 + $0x9] sm:$0xff]
    %v1192 = vld [vmem:[#allocation1 + $0x12] sm:$0xff]
    %v1193 = vld [vmem:[#allocation1 + $0x1b] sm:$0xff]
    %1198 = vmatpush.msra.mxu0 %v83
    %1199 = vmatpush.msra.mxu0 %v79
    %1200 = vmatpush.msra.mxu0 %v75
    %1201 = vmatpush.msra.mxu0 %v71
    %1202 = vmatpush.msra.mxu0 %v67
    %1203 = vmatpush.msra.mxu0 %v63
    %1204 = vmatpush.msra.mxu0 %v59
    %1205 = vmatpush.msra.mxu0 %v55
    %1206 = vmatpush.msra.mxu0 %v51
    %1207 = vmatpush.msra.mxu0 %v47
    %1208 = vmatpush.msra.mxu0 %v43
    %1209 = vmatpush.msra.mxu0 %v39
    %1210 = vmatpush.msra.mxu0 %v35
    %1211 = vmatpush.msra.mxu0 %v31
    %1212 = vmatpush.msra.mxu0 %v27
    %1213 = vmatpush.msra.mxu0 %v23
    %1214 = vmatmul.f32.gmra.mxu0 %v1127
    %v1215 = vpop.f32.mrf.mxu0
    %v1216 = vadd.f32 %v1190, %v1215
    %1217 = vdwg.mxu0
    %1218 = vmatpush.msra.mxu0 %v84
    %1219 = vmatpush.msra.mxu0 %v80
    %1220 = vmatpush.msra.mxu0 %v76
    %1221 = vmatpush.msra.mxu0 %v72
    %1222 = vmatpush.msra.mxu0 %v68
    %1223 = vmatpush.msra.mxu0 %v64
    %1224 = vmatpush.msra.mxu0 %v60
    %1225 = vmatpush.msra.mxu0 %v56
    %1226 = vmatpush.msra.mxu0 %v52
    %1227 = vmatpush.msra.mxu0 %v48
    %1228 = vmatpush.msra.mxu0 %v44
    %1229 = vmatpush.msra.mxu0 %v40
    %1230 = vmatpush.msra.mxu0 %v36
    %1231 = vmatpush.msra.mxu0 %v32
    %1232 = vmatpush.msra.mxu0 %v28
    %1233 = vmatpush.msra.mxu0 %v24
    %1234 = vmatmul.f32.gmra.mxu0 %v1127
    %v1235 = vpop.f32.mrf.mxu0
    %v1236 = vadd.f32 %v1191, %v1235
    %1237 = vdwg.mxu0
    %1238 = vmatpush.msra.mxu0 %v85
    %1239 = vmatpush.msra.mxu0 %v81
    %1240 = vmatpush.msra.mxu0 %v77
    %1241 = vmatpush.msra.mxu0 %v73
    %1242 = vmatpush.msra.mxu0 %v69
    %1243 = vmatpush.msra.mxu0 %v65
    %1244 = vmatpush.msra.mxu0 %v61
    %1245 = vmatpush.msra.mxu0 %v57
    %1246 = vmatpush.msra.mxu0 %v53
    %1247 = vmatpush.msra.mxu0 %v49
    %1248 = vmatpush.msra.mxu0 %v45
    %1249 = vmatpush.msra.mxu0 %v41
    %1250 = vmatpush.msra.mxu0 %v37
    %1251 = vmatpush.msra.mxu0 %v33
    %1252 = vmatpush.msra.mxu0 %v29
    %1253 = vmatpush.msra.mxu0 %v25
    %1254 = vmatmul.f32.gmra.mxu0 %v1127
    %v1255 = vpop.f32.mrf.mxu0
    %v1256 = vadd.f32 %v1192, %v1255
    %1257 = vdwg.mxu0
    %1258 = vmatpush.msra.mxu0 %v86
    %1259 = vmatpush.msra.mxu0 %v82
    %1260 = vmatpush.msra.mxu0 %v78
    %1261 = vmatpush.msra.mxu0 %v74
    %1262 = vmatpush.msra.mxu0 %v70
    %1263 = vmatpush.msra.mxu0 %v66
    %1264 = vmatpush.msra.mxu0 %v62
    %1265 = vmatpush.msra.mxu0 %v58
    %1266 = vmatpush.msra.mxu0 %v54
    %1267 = vmatpush.msra.mxu0 %v50
    %1268 = vmatpush.msra.mxu0 %v46
    %1269 = vmatpush.msra.mxu0 %v42
    %1270 = vmatpush.msra.mxu0 %v38
    %1271 = vmatpush.msra.mxu0 %v34
    %1272 = vmatpush.msra.mxu0 %v30
    %1273 = vmatpush.msra.mxu0 %v26
    %1274 = vmatmul.f32.gmra.mxu0 %v1127
    %v1275 = vpop.f32.mrf.mxu0
    %v1276 = vadd.f32 %v1193, %v1275
    %1277 = vdwg.mxu0
    %v1278 = vxor.u32 %v1216, 2147483648
    %v1279 = vxor.u32 %v1236, 2147483648
    %v1280 = vxor.u32 %v1256, 2147483648
    %v1281 = vmul.f32 %v1278, 1.442695
    %v1282 = vpow.pop %v1281
    %v1283 = vmul.f32 %v1279, 1.442695
    %v1284 = vpow.pop %v1283
    %v1285 = vmul.f32 %v1280, 1.442695
    %v1286 = vpow.pop %v1285
    %v1287 = vadd.f32 %v1282, 1.0
    %v1288 = vadd.f32 %v1284, 1.0
    %v1289 = vadd.f32 %v1286, 1.0
    %v1290 = vrcp.pop %v1287
    %v1291 = vmul.f32 %v1287, %v1290
    %v1292 = vsub.f32 1.0, %v1291
    %v1293 = vmul.f32 %v1290, %v1292
    %v1294 = vadd.f32 %v1290, %v1293
    %vm1295 = vweird.f32 %v1287
    %vm1296 = vweird.f32 %v1290
    %vm1297 = vmor %vm1295, %vm1296
    %v1298 = vsel %vm1297, %v1290, %v1294
    %v1299 = vand.u32 2147483647, %v1287
    %vm1300 = vcmp.eq.f32.partialorder %v1299, 8.507059e+37
    %v1301 = vand.u32 %v1287, 2147483648
    %v1302 = vor.u32 1.1754944e-38, %v1301
    %v1303 = vsel %vm1300, %v1302, %v1298
    %v1304 = vmul.f32 1.0, %v1303
    %v1305 = vrcp.pop %v1288
    %v1306 = vmul.f32 %v1288, %v1305
    %v1307 = vsub.f32 1.0, %v1306
    %v1308 = vmul.f32 %v1305, %v1307
    %v1309 = vadd.f32 %v1305, %v1308
    %vm1310 = vweird.f32 %v1288
    %vm1311 = vweird.f32 %v1305
    %vm1312 = vmor %vm1310, %vm1311
    %v1313 = vsel %vm1312, %v1305, %v1309
    %v1314 = vand.u32 2147483647, %v1288
    %vm1315 = vcmp.eq.f32.partialorder %v1314, 8.507059e+37
    %v1316 = vand.u32 %v1288, 2147483648
    %v1317 = vor.u32 1.1754944e-38, %v1316
    %v1318 = vsel %vm1315, %v1317, %v1313
    %v1319 = vmul.f32 1.0, %v1318
    %v1320 = vrcp.pop %v1289
    %v1321 = vmul.f32 %v1289, %v1320
    %v1322 = vsub.f32 1.0, %v1321
    %v1323 = vmul.f32 %v1320, %v1322
    %v1324 = vadd.f32 %v1320, %v1323
    %vm1325 = vweird.f32 %v1289
    %vm1326 = vweird.f32 %v1320
    %vm1327 = vmor %vm1325, %vm1326
    %v1328 = vsel %vm1327, %v1320, %v1324
    %v1329 = vand.u32 2147483647, %v1289
    %vm1330 = vcmp.eq.f32.partialorder %v1329, 8.507059e+37
    %v1331 = vand.u32 %v1289, 2147483648
    %v1332 = vor.u32 1.1754944e-38, %v1331
    %v1333 = vsel %vm1330, %v1332, %v1328
    %v1334 = vmul.f32 1.0, %v1333
    %v1335 = vtanh.pop %v1276
    %v1336 = vmul.f32 %v1319, %v1125
    %v1337 = vmul.f32 %v1304, %v1335
    %v1338 = vadd.f32 %v1336, %v1337
    %v1339 = vtanh.pop %v1338
    %v1340 = vmul.f32 %v1334, %v1339
    %v1342 = vrot.slane %v1340, 1
    %v1343 = vrot.slane %v1340, 2
    %v1344 = vrot.slane %v1340, 3
    %v1345 = vrot.slane %v1340, 4
    %v1346 = vrot.slane %v1340, 5
    %v1347 = vrot.slane %v1340, 6
    %v1348 = vrot.slane %v1340, 7
    %1356 = vst [vmem:[#allocation4 + $0x5] sm:$0x1] %v1340
    %1357 = vst [vmem:[#allocation4 + $0x15] sm:$0x1] %v1342
    %1358 = vst [vmem:[#allocation4 + $0x25] sm:$0x1] %v1343
    %1359 = vst [vmem:[#allocation4 + $0x35] sm:$0x1] %v1344
    %1360 = vst [vmem:[#allocation4 + $0x45] sm:$0x1] %v1345
    %1361 = vst [vmem:[#allocation4 + $0x55] sm:$0x1] %v1346
    %1362 = vst [vmem:[#allocation4 + $0x65] sm:$0x1] %v1347
    %1363 = vst [vmem:[#allocation4 + $0x75] sm:$0x1] %v1348
    %s1364 = scalar_lea.vmem %s0, 6
    %v1365 = vld [vmem:[%s1364] ss:$8 sm:$0xf]
    %s1366 = scalar_lea.vmem %s0, 70
    %v1367 = vld [vmem:[%s1366] ss:$8 sm:$0xf]
    %s1368 = scalar_lea.vmem %s0, 134
    %v1369 = vld [vmem:[%s1368] ss:$8 sm:$0xf]
    %s1370 = scalar_lea.vmem %s0, 198
    %v1371 = vld [vmem:[%s1370] ss:$8 sm:$0xf]
    %s1372 = scalar_lea.vmem %s0, 262
    %v1373 = vld [vmem:[%s1372] ss:$8 sm:$0xf]
    %s1374 = scalar_lea.vmem %s0, 326
    %v1375 = vld [vmem:[%s1374] ss:$8 sm:$0xf]
    %s1376 = scalar_lea.vmem %s0, 390
    %v1377 = vld [vmem:[%s1376] ss:$8 sm:$0xf]
    %s1378 = scalar_lea.vmem %s0, 454
    %v1379 = vld [vmem:[%s1378] ss:$8 sm:$0xf]
    %1388 = vst [vmem:[#allocation1] ss:$9 sm:$0xff] %v1365
    %s1389 = scalar_lea.vmem [#allocation1], 1
    %1390 = vst [vmem:[%s1389] ss:$9 sm:$0xff] %v1367
    %s1391 = scalar_lea.vmem [#allocation1], 2
    %1392 = vst [vmem:[%s1391] ss:$9 sm:$0xff] %v1369
    %s1393 = scalar_lea.vmem [#allocation1], 3
    %1394 = vst [vmem:[%s1393] ss:$9 sm:$0xff] %v1371
    %s1395 = scalar_lea.vmem [#allocation1], 4
    %1396 = vst [vmem:[%s1395] ss:$9 sm:$0xff] %v1373
    %s1397 = scalar_lea.vmem [#allocation1], 5
    %1398 = vst [vmem:[%s1397] ss:$9 sm:$0xff] %v1375
    %s1399 = scalar_lea.vmem [#allocation1], 6
    %1400 = vst [vmem:[%s1399] ss:$9 sm:$0xff] %v1377
    %s1401 = scalar_lea.vmem [#allocation1], 7
    %1402 = vst [vmem:[%s1401] ss:$9 sm:$0xff] %v1379
    %v1403 = vld [vmem:[#allocation1] sm:$0xff]
    %v1404 = vld [vmem:[#allocation1 + $0x9] sm:$0xff]
    %v1405 = vld [vmem:[#allocation1 + $0x12] sm:$0xff]
    %v1406 = vld [vmem:[#allocation1 + $0x1b] sm:$0xff]
    %1411 = vmatpush.msra.mxu0 %v83
    %1412 = vmatpush.msra.mxu0 %v79
    %1413 = vmatpush.msra.mxu0 %v75
    %1414 = vmatpush.msra.mxu0 %v71
    %1415 = vmatpush.msra.mxu0 %v67
    %1416 = vmatpush.msra.mxu0 %v63
    %1417 = vmatpush.msra.mxu0 %v59
    %1418 = vmatpush.msra.mxu0 %v55
    %1419 = vmatpush.msra.mxu0 %v51
    %1420 = vmatpush.msra.mxu0 %v47
    %1421 = vmatpush.msra.mxu0 %v43
    %1422 = vmatpush.msra.mxu0 %v39
    %1423 = vmatpush.msra.mxu0 %v35
    %1424 = vmatpush.msra.mxu0 %v31
    %1425 = vmatpush.msra.mxu0 %v27
    %1426 = vmatpush.msra.mxu0 %v23
    %1427 = vmatmul.f32.gmra.mxu0 %v1340
    %v1428 = vpop.f32.mrf.mxu0
    %v1429 = vadd.f32 %v1403, %v1428
    %1430 = vdwg.mxu0
    %1431 = vmatpush.msra.mxu0 %v84
    %1432 = vmatpush.msra.mxu0 %v80
    %1433 = vmatpush.msra.mxu0 %v76
    %1434 = vmatpush.msra.mxu0 %v72
    %1435 = vmatpush.msra.mxu0 %v68
    %1436 = vmatpush.msra.mxu0 %v64
    %1437 = vmatpush.msra.mxu0 %v60
    %1438 = vmatpush.msra.mxu0 %v56
    %1439 = vmatpush.msra.mxu0 %v52
    %1440 = vmatpush.msra.mxu0 %v48
    %1441 = vmatpush.msra.mxu0 %v44
    %1442 = vmatpush.msra.mxu0 %v40
    %1443 = vmatpush.msra.mxu0 %v36
    %1444 = vmatpush.msra.mxu0 %v32
    %1445 = vmatpush.msra.mxu0 %v28
    %1446 = vmatpush.msra.mxu0 %v24
    %1447 = vmatmul.f32.gmra.mxu0 %v1340
    %v1448 = vpop.f32.mrf.mxu0
    %v1449 = vadd.f32 %v1404, %v1448
    %1450 = vdwg.mxu0
    %1451 = vmatpush.msra.mxu0 %v85
    %1452 = vmatpush.msra.mxu0 %v81
    %1453 = vmatpush.msra.mxu0 %v77
    %1454 = vmatpush.msra.mxu0 %v73
    %1455 = vmatpush.msra.mxu0 %v69
    %1456 = vmatpush.msra.mxu0 %v65
    %1457 = vmatpush.msra.mxu0 %v61
    %1458 = vmatpush.msra.mxu0 %v57
    %1459 = vmatpush.msra.mxu0 %v53
    %1460 = vmatpush.msra.mxu0 %v49
    %1461 = vmatpush.msra.mxu0 %v45
    %1462 = vmatpush.msra.mxu0 %v41
    %1463 = vmatpush.msra.mxu0 %v37
    %1464 = vmatpush.msra.mxu0 %v33
    %1465 = vmatpush.msra.mxu0 %v29
    %1466 = vmatpush.msra.mxu0 %v25
    %1467 = vmatmul.f32.gmra.mxu0 %v1340
    %v1468 = vpop.f32.mrf.mxu0
    %v1469 = vadd.f32 %v1405, %v1468
    %1470 = vdwg.mxu0
    %1471 = vmatpush.msra.mxu0 %v86
    %1472 = vmatpush.msra.mxu0 %v82
    %1473 = vmatpush.msra.mxu0 %v78
    %1474 = vmatpush.msra.mxu0 %v74
    %1475 = vmatpush.msra.mxu0 %v70
    %1476 = vmatpush.msra.mxu0 %v66
    %1477 = vmatpush.msra.mxu0 %v62
    %1478 = vmatpush.msra.mxu0 %v58
    %1479 = vmatpush.msra.mxu0 %v54
    %1480 = vmatpush.msra.mxu0 %v50
    %1481 = vmatpush.msra.mxu0 %v46
    %1482 = vmatpush.msra.mxu0 %v42
    %1483 = vmatpush.msra.mxu0 %v38
    %1484 = vmatpush.msra.mxu0 %v34
    %1485 = vmatpush.msra.mxu0 %v30
    %1486 = vmatpush.msra.mxu0 %v26
    %1487 = vmatmul.f32.gmra.mxu0 %v1340
    %v1488 = vpop.f32.mrf.mxu0
    %v1489 = vadd.f32 %v1406, %v1488
    %1490 = vdwg.mxu0
    %v1491 = vxor.u32 %v1429, 2147483648
    %v1492 = vxor.u32 %v1449, 2147483648
    %v1493 = vxor.u32 %v1469, 2147483648
    %v1494 = vmul.f32 %v1491, 1.442695
    %v1495 = vpow.pop %v1494
    %v1496 = vmul.f32 %v1492, 1.442695
    %v1497 = vpow.pop %v1496
    %v1498 = vmul.f32 %v1493, 1.442695
    %v1499 = vpow.pop %v1498
    %v1500 = vadd.f32 %v1495, 1.0
    %v1501 = vadd.f32 %v1497, 1.0
    %v1502 = vadd.f32 %v1499, 1.0
    %v1503 = vrcp.pop %v1500
    %v1504 = vmul.f32 %v1500, %v1503
    %v1505 = vsub.f32 1.0, %v1504
    %v1506 = vmul.f32 %v1503, %v1505
    %v1507 = vadd.f32 %v1503, %v1506
    %vm1508 = vweird.f32 %v1500
    %vm1509 = vweird.f32 %v1503
    %vm1510 = vmor %vm1508, %vm1509
    %v1511 = vsel %vm1510, %v1503, %v1507
    %v1512 = vand.u32 2147483647, %v1500
    %vm1513 = vcmp.eq.f32.partialorder %v1512, 8.507059e+37
    %v1514 = vand.u32 %v1500, 2147483648
    %v1515 = vor.u32 1.1754944e-38, %v1514
    %v1516 = vsel %vm1513, %v1515, %v1511
    %v1517 = vmul.f32 1.0, %v1516
    %v1518 = vrcp.pop %v1501
    %v1519 = vmul.f32 %v1501, %v1518
    %v1520 = vsub.f32 1.0, %v1519
    %v1521 = vmul.f32 %v1518, %v1520
    %v1522 = vadd.f32 %v1518, %v1521
    %vm1523 = vweird.f32 %v1501
    %vm1524 = vweird.f32 %v1518
    %vm1525 = vmor %vm1523, %vm1524
    %v1526 = vsel %vm1525, %v1518, %v1522
    %v1527 = vand.u32 2147483647, %v1501
    %vm1528 = vcmp.eq.f32.partialorder %v1527, 8.507059e+37
    %v1529 = vand.u32 %v1501, 2147483648
    %v1530 = vor.u32 1.1754944e-38, %v1529
    %v1531 = vsel %vm1528, %v1530, %v1526
    %v1532 = vmul.f32 1.0, %v1531
    %v1533 = vrcp.pop %v1502
    %v1534 = vmul.f32 %v1502, %v1533
    %v1535 = vsub.f32 1.0, %v1534
    %v1536 = vmul.f32 %v1533, %v1535
    %v1537 = vadd.f32 %v1533, %v1536
    %vm1538 = vweird.f32 %v1502
    %vm1539 = vweird.f32 %v1533
    %vm1540 = vmor %vm1538, %vm1539
    %v1541 = vsel %vm1540, %v1533, %v1537
    %v1542 = vand.u32 2147483647, %v1502
    %vm1543 = vcmp.eq.f32.partialorder %v1542, 8.507059e+37
    %v1544 = vand.u32 %v1502, 2147483648
    %v1545 = vor.u32 1.1754944e-38, %v1544
    %v1546 = vsel %vm1543, %v1545, %v1541
    %v1547 = vmul.f32 1.0, %v1546
    %v1548 = vtanh.pop %v1489
    %v1549 = vmul.f32 %v1532, %v1338
    %v1550 = vmul.f32 %v1517, %v1548
    %v1551 = vadd.f32 %v1549, %v1550
    %v1552 = vtanh.pop %v1551
    %v1553 = vmul.f32 %v1547, %v1552
    %v1555 = vrot.slane %v1553, 1
    %v1556 = vrot.slane %v1553, 2
    %v1557 = vrot.slane %v1553, 3
    %v1558 = vrot.slane %v1553, 4
    %v1559 = vrot.slane %v1553, 5
    %v1560 = vrot.slane %v1553, 6
    %v1561 = vrot.slane %v1553, 7
    %1569 = vst [vmem:[#allocation4 + $0x6] sm:$0x1] %v1553
    %1570 = vst [vmem:[#allocation4 + $0x16] sm:$0x1] %v1555
    %1571 = vst [vmem:[#allocation4 + $0x26] sm:$0x1] %v1556
    %1572 = vst [vmem:[#allocation4 + $0x36] sm:$0x1] %v1557
    %1573 = vst [vmem:[#allocation4 + $0x46] sm:$0x1] %v1558
    %1574 = vst [vmem:[#allocation4 + $0x56] sm:$0x1] %v1559
    %1575 = vst [vmem:[#allocation4 + $0x66] sm:$0x1] %v1560
    %1576 = vst [vmem:[#allocation4 + $0x76] sm:$0x1] %v1561
    %s1577 = scalar_lea.vmem %s0, 7
    %v1578 = vld [vmem:[%s1577] ss:$8 sm:$0xf]
    %s1579 = scalar_lea.vmem %s0, 71
    %v1580 = vld [vmem:[%s1579] ss:$8 sm:$0xf]
    %s1581 = scalar_lea.vmem %s0, 135
    %v1582 = vld [vmem:[%s1581] ss:$8 sm:$0xf]
    %s1583 = scalar_lea.vmem %s0, 199
    %v1584 = vld [vmem:[%s1583] ss:$8 sm:$0xf]
    %s1585 = scalar_lea.vmem %s0, 263
    %v1586 = vld [vmem:[%s1585] ss:$8 sm:$0xf]
    %s1587 = scalar_lea.vmem %s0, 327
    %v1588 = vld [vmem:[%s1587] ss:$8 sm:$0xf]
    %s1589 = scalar_lea.vmem %s0, 391
    %v1590 = vld [vmem:[%s1589] ss:$8 sm:$0xf]
    %s1591 = scalar_lea.vmem %s0, 455
    %v1592 = vld [vmem:[%s1591] ss:$8 sm:$0xf]
    %1601 = vst [vmem:[#allocation1] ss:$9 sm:$0xff] %v1578
    %s1602 = scalar_lea.vmem [#allocation1], 1
    %1603 = vst [vmem:[%s1602] ss:$9 sm:$0xff] %v1580
    %s1604 = scalar_lea.vmem [#allocation1], 2
    %1605 = vst [vmem:[%s1604] ss:$9 sm:$0xff] %v1582
    %s1606 = scalar_lea.vmem [#allocation1], 3
    %1607 = vst [vmem:[%s1606] ss:$9 sm:$0xff] %v1584
    %s1608 = scalar_lea.vmem [#allocation1], 4
    %1609 = vst [vmem:[%s1608] ss:$9 sm:$0xff] %v1586
    %s1610 = scalar_lea.vmem [#allocation1], 5
    %1611 = vst [vmem:[%s1610] ss:$9 sm:$0xff] %v1588
    %s1612 = scalar_lea.vmem [#allocation1], 6
    %1613 = vst [vmem:[%s1612] ss:$9 sm:$0xff] %v1590
    %s1614 = scalar_lea.vmem [#allocation1], 7
    %1615 = vst [vmem:[%s1614] ss:$9 sm:$0xff] %v1592
    %v1616 = vld [vmem:[#allocation1] sm:$0xff]
    %v1617 = vld [vmem:[#allocation1 + $0x9] sm:$0xff]
    %v1618 = vld [vmem:[#allocation1 + $0x12] sm:$0xff]
    %v1619 = vld [vmem:[#allocation1 + $0x1b] sm:$0xff]
    %1624 = vmatpush.msra.mxu0 %v83
    %1625 = vmatpush.msra.mxu0 %v79
    %1626 = vmatpush.msra.mxu0 %v75
    %1627 = vmatpush.msra.mxu0 %v71
    %1628 = vmatpush.msra.mxu0 %v67
    %1629 = vmatpush.msra.mxu0 %v63
    %1630 = vmatpush.msra.mxu0 %v59
    %1631 = vmatpush.msra.mxu0 %v55
    %1632 = vmatpush.msra.mxu0 %v51
    %1633 = vmatpush.msra.mxu0 %v47
    %1634 = vmatpush.msra.mxu0 %v43
    %1635 = vmatpush.msra.mxu0 %v39
    %1636 = vmatpush.msra.mxu0 %v35
    %1637 = vmatpush.msra.mxu0 %v31
    %1638 = vmatpush.msra.mxu0 %v27
    %1639 = vmatpush.msra.mxu0 %v23
    %1640 = vmatmul.f32.gmra.mxu0 %v1553
    %v1641 = vpop.f32.mrf.mxu0
    %v1642 = vadd.f32 %v1616, %v1641
    %1643 = vdwg.mxu0
    %1644 = vmatpush.msra.mxu0 %v84
    %1645 = vmatpush.msra.mxu0 %v80
    %1646 = vmatpush.msra.mxu0 %v76
    %1647 = vmatpush.msra.mxu0 %v72
    %1648 = vmatpush.msra.mxu0 %v68
    %1649 = vmatpush.msra.mxu0 %v64
    %1650 = vmatpush.msra.mxu0 %v60
    %1651 = vmatpush.msra.mxu0 %v56
    %1652 = vmatpush.msra.mxu0 %v52
    %1653 = vmatpush.msra.mxu0 %v48
    %1654 = vmatpush.msra.mxu0 %v44
    %1655 = vmatpush.msra.mxu0 %v40
    %1656 = vmatpush.msra.mxu0 %v36
    %1657 = vmatpush.msra.mxu0 %v32
    %1658 = vmatpush.msra.mxu0 %v28
    %1659 = vmatpush.msra.mxu0 %v24
    %1660 = vmatmul.f32.gmra.mxu0 %v1553
    %v1661 = vpop.f32.mrf.mxu0
    %v1662 = vadd.f32 %v1617, %v1661
    %1663 = vdwg.mxu0
    %1664 = vmatpush.msra.mxu0 %v85
    %1665 = vmatpush.msra.mxu0 %v81
    %1666 = vmatpush.msra.mxu0 %v77
    %1667 = vmatpush.msra.mxu0 %v73
    %1668 = vmatpush.msra.mxu0 %v69
    %1669 = vmatpush.msra.mxu0 %v65
    %1670 = vmatpush.msra.mxu0 %v61
    %1671 = vmatpush.msra.mxu0 %v57
    %1672 = vmatpush.msra.mxu0 %v53
    %1673 = vmatpush.msra.mxu0 %v49
    %1674 = vmatpush.msra.mxu0 %v45
    %1675 = vmatpush.msra.mxu0 %v41
    %1676 = vmatpush.msra.mxu0 %v37
    %1677 = vmatpush.msra.mxu0 %v33
    %1678 = vmatpush.msra.mxu0 %v29
    %1679 = vmatpush.msra.mxu0 %v25
    %1680 = vmatmul.f32.gmra.mxu0 %v1553
    %v1681 = vpop.f32.mrf.mxu0
    %v1682 = vadd.f32 %v1618, %v1681
    %1683 = vdwg.mxu0
    %1684 = vmatpush.msra.mxu0 %v86
    %1685 = vmatpush.msra.mxu0 %v82
    %1686 = vmatpush.msra.mxu0 %v78
    %1687 = vmatpush.msra.mxu0 %v74
    %1688 = vmatpush.msra.mxu0 %v70
    %1689 = vmatpush.msra.mxu0 %v66
    %1690 = vmatpush.msra.mxu0 %v62
    %1691 = vmatpush.msra.mxu0 %v58
    %1692 = vmatpush.msra.mxu0 %v54
    %1693 = vmatpush.msra.mxu0 %v50
    %1694 = vmatpush.msra.mxu0 %v46
    %1695 = vmatpush.msra.mxu0 %v42
    %1696 = vmatpush.msra.mxu0 %v38
    %1697 = vmatpush.msra.mxu0 %v34
    %1698 = vmatpush.msra.mxu0 %v30
    %1699 = vmatpush.msra.mxu0 %v26
    %1700 = vmatmul.f32.gmra.mxu0 %v1553
    %v1701 = vpop.f32.mrf.mxu0
    %v1702 = vadd.f32 %v1619, %v1701
    %1703 = vdwg.mxu0
    %v1704 = vxor.u32 %v1642, 2147483648
    %v1705 = vxor.u32 %v1662, 2147483648
    %v1706 = vxor.u32 %v1682, 2147483648
    %v1707 = vmul.f32 %v1704, 1.442695
    %v1708 = vpow.pop %v1707
    %v1709 = vmul.f32 %v1705, 1.442695
    %v1710 = vpow.pop %v1709
    %v1711 = vmul.f32 %v1706, 1.442695
    %v1712 = vpow.pop %v1711
    %v1713 = vadd.f32 %v1708, 1.0
    %v1714 = vadd.f32 %v1710, 1.0
    %v1715 = vadd.f32 %v1712, 1.0
    %v1716 = vrcp.pop %v1713
    %v1717 = vmul.f32 %v1713, %v1716
    %v1718 = vsub.f32 1.0, %v1717
    %v1719 = vmul.f32 %v1716, %v1718
    %v1720 = vadd.f32 %v1716, %v1719
    %vm1721 = vweird.f32 %v1713
    %vm1722 = vweird.f32 %v1716
    %vm1723 = vmor %vm1721, %vm1722
    %v1724 = vsel %vm1723, %v1716, %v1720
    %v1725 = vand.u32 2147483647, %v1713
    %vm1726 = vcmp.eq.f32.partialorder %v1725, 8.507059e+37
    %v1727 = vand.u32 %v1713, 2147483648
    %v1728 = vor.u32 1.1754944e-38, %v1727
    %v1729 = vsel %vm1726, %v1728, %v1724
    %v1730 = vmul.f32 1.0, %v1729
    %v1731 = vrcp.pop %v1714
    %v1732 = vmul.f32 %v1714, %v1731
    %v1733 = vsub.f32 1.0, %v1732
    %v1734 = vmul.f32 %v1731, %v1733
    %v1735 = vadd.f32 %v1731, %v1734
    %vm1736 = vweird.f32 %v1714
    %vm1737 = vweird.f32 %v1731
    %vm1738 = vmor %vm1736, %vm1737
    %v1739 = vsel %vm1738, %v1731, %v1735
    %v1740 = vand.u32 2147483647, %v1714
    %vm1741 = vcmp.eq.f32.partialorder %v1740, 8.507059e+37
    %v1742 = vand.u32 %v1714, 2147483648
    %v1743 = vor.u32 1.1754944e-38, %v1742
    %v1744 = vsel %vm1741, %v1743, %v1739
    %v1745 = vmul.f32 1.0, %v1744
    %v1746 = vrcp.pop %v1715
    %v1747 = vmul.f32 %v1715, %v1746
    %v1748 = vsub.f32 1.0, %v1747
    %v1749 = vmul.f32 %v1746, %v1748
    %v1750 = vadd.f32 %v1746, %v1749
    %vm1751 = vweird.f32 %v1715
    %vm1752 = vweird.f32 %v1746
    %vm1753 = vmor %vm1751, %vm1752
    %v1754 = vsel %vm1753, %v1746, %v1750
    %v1755 = vand.u32 2147483647, %v1715
    %vm1756 = vcmp.eq.f32.partialorder %v1755, 8.507059e+37
    %v1757 = vand.u32 %v1715, 2147483648
    %v1758 = vor.u32 1.1754944e-38, %v1757
    %v1759 = vsel %vm1756, %v1758, %v1754
    %v1760 = vmul.f32 1.0, %v1759
    %v1761 = vtanh.pop %v1702
    %v1762 = vmul.f32 %v1745, %v1551
    %v1763 = vmul.f32 %v1730, %v1761
    %v1764 = vadd.f32 %v1762, %v1763
    %v1765 = vtanh.pop %v1764
    %v1766 = vmul.f32 %v1760, %v1765
    %v1768 = vrot.slane %v1766, 1
    %v1769 = vrot.slane %v1766, 2
    %v1770 = vrot.slane %v1766, 3
    %v1771 = vrot.slane %v1766, 4
    %v1772 = vrot.slane %v1766, 5
    %v1773 = vrot.slane %v1766, 6
    %v1774 = vrot.slane %v1766, 7
    %1782 = vst [vmem:[#allocation4 + $0x7] sm:$0x1] %v1766
    %1783 = vst [vmem:[#allocation4 + $0x17] sm:$0x1] %v1768
    %1784 = vst [vmem:[#allocation4 + $0x27] sm:$0x1] %v1769
    %1785 = vst [vmem:[#allocation4 + $0x37] sm:$0x1] %v1770
    %1786 = vst [vmem:[#allocation4 + $0x47] sm:$0x1] %v1771
    %1787 = vst [vmem:[#allocation4 + $0x57] sm:$0x1] %v1772
    %1788 = vst [vmem:[#allocation4 + $0x67] sm:$0x1] %v1773
    %1789 = vst [vmem:[#allocation4 + $0x77] sm:$0x1] %v1774
    %s1790 = scalar_lea.vmem %s0, 32
    %v1791 = vld [vmem:[%s1790] ss:$8 sm:$0xf]
    %s1792 = scalar_lea.vmem %s0, 96
    %v1793 = vld [vmem:[%s1792] ss:$8 sm:$0xf]
    %s1794 = scalar_lea.vmem %s0, 160
    %v1795 = vld [vmem:[%s1794] ss:$8 sm:$0xf]
    %s1796 = scalar_lea.vmem %s0, 224
    %v1797 = vld [vmem:[%s1796] ss:$8 sm:$0xf]
    %s1798 = scalar_lea.vmem %s0, 288
    %v1799 = vld [vmem:[%s1798] ss:$8 sm:$0xf]
    %s1800 = scalar_lea.vmem %s0, 352
    %v1801 = vld [vmem:[%s1800] ss:$8 sm:$0xf]
    %s1802 = scalar_lea.vmem %s0, 416
    %v1803 = vld [vmem:[%s1802] ss:$8 sm:$0xf]
    %s1804 = scalar_lea.vmem %s0, 480
    %v1805 = vld [vmem:[%s1804] ss:$8 sm:$0xf]
    %1814 = vst [vmem:[#allocation1] ss:$9 sm:$0xff] %v1791
    %s1815 = scalar_lea.vmem [#allocation1], 1
    %1816 = vst [vmem:[%s1815] ss:$9 sm:$0xff] %v1793
    %s1817 = scalar_lea.vmem [#allocation1], 2
    %1818 = vst [vmem:[%s1817] ss:$9 sm:$0xff] %v1795
    %s1819 = scalar_lea.vmem [#allocation1], 3
    %1820 = vst [vmem:[%s1819] ss:$9 sm:$0xff] %v1797
    %s1821 = scalar_lea.vmem [#allocation1], 4
    %1822 = vst [vmem:[%s1821] ss:$9 sm:$0xff] %v1799
    %s1823 = scalar_lea.vmem [#allocation1], 5
    %1824 = vst [vmem:[%s1823] ss:$9 sm:$0xff] %v1801
    %s1825 = scalar_lea.vmem [#allocation1], 6
    %1826 = vst [vmem:[%s1825] ss:$9 sm:$0xff] %v1803
    %s1827 = scalar_lea.vmem [#allocation1], 7
    %1828 = vst [vmem:[%s1827] ss:$9 sm:$0xff] %v1805
    %v1829 = vld [vmem:[#allocation1] sm:$0xff]
    %v1830 = vld [vmem:[#allocation1 + $0x9] sm:$0xff]
    %v1831 = vld [vmem:[#allocation1 + $0x12] sm:$0xff]
    %v1832 = vld [vmem:[#allocation1 + $0x1b] sm:$0xff]
    %1837 = vmatpush.msra.mxu0 %v83
    %1838 = vmatpush.msra.mxu0 %v79
    %1839 = vmatpush.msra.mxu0 %v75
    %1840 = vmatpush.msra.mxu0 %v71
    %1841 = vmatpush.msra.mxu0 %v67
    %1842 = vmatpush.msra.mxu0 %v63
    %1843 = vmatpush.msra.mxu0 %v59
    %1844 = vmatpush.msra.mxu0 %v55
    %1845 = vmatpush.msra.mxu0 %v51
    %1846 = vmatpush.msra.mxu0 %v47
    %1847 = vmatpush.msra.mxu0 %v43
    %1848 = vmatpush.msra.mxu0 %v39
    %1849 = vmatpush.msra.mxu0 %v35
    %1850 = vmatpush.msra.mxu0 %v31
    %1851 = vmatpush.msra.mxu0 %v27
    %1852 = vmatpush.msra.mxu0 %v23
    %1853 = vmatmul.f32.gmra.mxu0 %v1766
    %v1854 = vpop.f32.mrf.mxu0
    %v1855 = vadd.f32 %v1829, %v1854
    %1856 = vdwg.mxu0
    %1857 = vmatpush.msra.mxu0 %v84
    %1858 = vmatpush.msra.mxu0 %v80
    %1859 = vmatpush.msra.mxu0 %v76
    %1860 = vmatpush.msra.mxu0 %v72
    %1861 = vmatpush.msra.mxu0 %v68
    %1862 = vmatpush.msra.mxu0 %v64
    %1863 = vmatpush.msra.mxu0 %v60
    %1864 = vmatpush.msra.mxu0 %v56
    %1865 = vmatpush.msra.mxu0 %v52
    %1866 = vmatpush.msra.mxu0 %v48
    %1867 = vmatpush.msra.mxu0 %v44
    %1868 = vmatpush.msra.mxu0 %v40
    %1869 = vmatpush.msra.mxu0 %v36
    %1870 = vmatpush.msra.mxu0 %v32
    %1871 = vmatpush.msra.mxu0 %v28
    %1872 = vmatpush.msra.mxu0 %v24
    %1873 = vmatmul.f32.gmra.mxu0 %v1766
    %v1874 = vpop.f32.mrf.mxu0
    %v1875 = vadd.f32 %v1830, %v1874
    %1876 = vdwg.mxu0
    %1877 = vmatpush.msra.mxu0 %v85
    %1878 = vmatpush.msra.mxu0 %v81
    %1879 = vmatpush.msra.mxu0 %v77
    %1880 = vmatpush.msra.mxu0 %v73
    %1881 = vmatpush.msra.mxu0 %v69
    %1882 = vmatpush.msra.mxu0 %v65
    %1883 = vmatpush.msra.mxu0 %v61
    %1884 = vmatpush.msra.mxu0 %v57
    %1885 = vmatpush.msra.mxu0 %v53
    %1886 = vmatpush.msra.mxu0 %v49
    %1887 = vmatpush.msra.mxu0 %v45
    %1888 = vmatpush.msra.mxu0 %v41
    %1889 = vmatpush.msra.mxu0 %v37
    %1890 = vmatpush.msra.mxu0 %v33
    %1891 = vmatpush.msra.mxu0 %v29
    %1892 = vmatpush.msra.mxu0 %v25
    %1893 = vmatmul.f32.gmra.mxu0 %v1766
    %v1894 = vpop.f32.mrf.mxu0
    %v1895 = vadd.f32 %v1831, %v1894
    %1896 = vdwg.mxu0
    %1897 = vmatpush.msra.mxu0 %v86
    %1898 = vmatpush.msra.mxu0 %v82
    %1899 = vmatpush.msra.mxu0 %v78
    %1900 = vmatpush.msra.mxu0 %v74
    %1901 = vmatpush.msra.mxu0 %v70
    %1902 = vmatpush.msra.mxu0 %v66
    %1903 = vmatpush.msra.mxu0 %v62
    %1904 = vmatpush.msra.mxu0 %v58
    %1905 = vmatpush.msra.mxu0 %v54
    %1906 = vmatpush.msra.mxu0 %v50
    %1907 = vmatpush.msra.mxu0 %v46
    %1908 = vmatpush.msra.mxu0 %v42
    %1909 = vmatpush.msra.mxu0 %v38
    %1910 = vmatpush.msra.mxu0 %v34
    %1911 = vmatpush.msra.mxu0 %v30
    %1912 = vmatpush.msra.mxu0 %v26
    %1913 = vmatmul.f32.gmra.mxu0 %v1766
    %v1914 = vpop.f32.mrf.mxu0
    %v1915 = vadd.f32 %v1832, %v1914
    %1916 = vdwg.mxu0
    %v1917 = vxor.u32 %v1855, 2147483648
    %v1918 = vxor.u32 %v1875, 2147483648
    %v1919 = vxor.u32 %v1895, 2147483648
    %v1920 = vmul.f32 %v1917, 1.442695
    %v1921 = vpow.pop %v1920
    %v1922 = vmul.f32 %v1918, 1.442695
    %v1923 = vpow.pop %v1922
    %v1924 = vmul.f32 %v1919, 1.442695
    %v1925 = vpow.pop %v1924
    %v1926 = vadd.f32 %v1921, 1.0
    %v1927 = vadd.f32 %v1923, 1.0
    %v1928 = vadd.f32 %v1925, 1.0
    %v1929 = vrcp.pop %v1926
    %v1930 = vmul.f32 %v1926, %v1929
    %v1931 = vsub.f32 1.0, %v1930
    %v1932 = vmul.f32 %v1929, %v1931
    %v1933 = vadd.f32 %v1929, %v1932
    %vm1934 = vweird.f32 %v1926
    %vm1935 = vweird.f32 %v1929
    %vm1936 = vmor %vm1934, %vm1935
    %v1937 = vsel %vm1936, %v1929, %v1933
    %v1938 = vand.u32 2147483647, %v1926
    %vm1939 = vcmp.eq.f32.partialorder %v1938, 8.507059e+37
    %v1940 = vand.u32 %v1926, 2147483648
    %v1941 = vor.u32 1.1754944e-38, %v1940
    %v1942 = vsel %vm1939, %v1941, %v1937
    %v1943 = vmul.f32 1.0, %v1942
    %v1944 = vrcp.pop %v1927
    %v1945 = vmul.f32 %v1927, %v1944
    %v1946 = vsub.f32 1.0, %v1945
    %v1947 = vmul.f32 %v1944, %v1946
    %v1948 = vadd.f32 %v1944, %v1947
    %vm1949 = vweird.f32 %v1927
    %vm1950 = vweird.f32 %v1944
    %vm1951 = vmor %vm1949, %vm1950
    %v1952 = vsel %vm1951, %v1944, %v1948
    %v1953 = vand.u32 2147483647, %v1927
    %vm1954 = vcmp.eq.f32.partialorder %v1953, 8.507059e+37
    %v1955 = vand.u32 %v1927, 2147483648
    %v1956 = vor.u32 1.1754944e-38, %v1955
    %v1957 = vsel %vm1954, %v1956, %v1952
    %v1958 = vmul.f32 1.0, %v1957
    %v1959 = vrcp.pop %v1928
    %v1960 = vmul.f32 %v1928, %v1959
    %v1961 = vsub.f32 1.0, %v1960
    %v1962 = vmul.f32 %v1959, %v1961
    %v1963 = vadd.f32 %v1959, %v1962
    %vm1964 = vweird.f32 %v1928
    %vm1965 = vweird.f32 %v1959
    %vm1966 = vmor %vm1964, %vm1965
    %v1967 = vsel %vm1966, %v1959, %v1963
    %v1968 = vand.u32 2147483647, %v1928
    %vm1969 = vcmp.eq.f32.partialorder %v1968, 8.507059e+37
    %v1970 = vand.u32 %v1928, 2147483648
    %v1971 = vor.u32 1.1754944e-38, %v1970
    %v1972 = vsel %vm1969, %v1971, %v1967
    %v1973 = vmul.f32 1.0, %v1972
    %v1974 = vtanh.pop %v1915
    %v1975 = vmul.f32 %v1958, %v1764
    %v1976 = vmul.f32 %v1943, %v1974
    %v1977 = vadd.f32 %v1975, %v1976
    %v1978 = vtanh.pop %v1977
    %v1979 = vmul.f32 %v1973, %v1978
    %v1981 = vrot.slane %v1979, 1
    %v1982 = vrot.slane %v1979, 2
    %v1983 = vrot.slane %v1979, 3
    %v1984 = vrot.slane %v1979, 4
    %v1985 = vrot.slane %v1979, 5
    %v1986 = vrot.slane %v1979, 6
    %v1987 = vrot.slane %v1979, 7
    %1995 = vst [vmem:[#allocation4 + $0x8] sm:$0x1] %v1979
    %1996 = vst [vmem:[#allocation4 + $0x18] sm:$0x1] %v1981
    %1997 = vst [vmem:[#allocation4 + $0x28] sm:$0x1] %v1982
    %1998 = vst [vmem:[#allocation4 + $0x38] sm:$0x1] %v1983
    %1999 = vst [vmem:[#allocation4 + $0x48] sm:$0x1] %v1984
    %2000 = vst [vmem:[#allocation4 + $0x58] sm:$0x1] %v1985
    %2001 = vst [vmem:[#allocation4 + $0x68] sm:$0x1] %v1986
    %2002 = vst [vmem:[#allocation4 + $0x78] sm:$0x1] %v1987
    %s2003 = scalar_lea.vmem %s0, 33
    %v2004 = vld [vmem:[%s2003] ss:$8 sm:$0xf]
    %s2005 = scalar_lea.vmem %s0, 97
    %v2006 = vld [vmem:[%s2005] ss:$8 sm:$0xf]
    %s2007 = scalar_lea.vmem %s0, 161
    %v2008 = vld [vmem:[%s2007] ss:$8 sm:$0xf]
    %s2009 = scalar_lea.vmem %s0, 225
    %v2010 = vld [vmem:[%s2009] ss:$8 sm:$0xf]
    %s2011 = scalar_lea.vmem %s0, 289
    %v2012 = vld [vmem:[%s2011] ss:$8 sm:$0xf]
    %s2013 = scalar_lea.vmem %s0, 353
    %v2014 = vld [vmem:[%s2013] ss:$8 sm:$0xf]
    %s2015 = scalar_lea.vmem %s0, 417
    %v2016 = vld [vmem:[%s2015] ss:$8 sm:$0xf]
    %s2017 = scalar_lea.vmem %s0, 481
    %v2018 = vld [vmem:[%s2017] ss:$8 sm:$0xf]
    %2027 = vst [vmem:[#allocation1] ss:$9 sm:$0xff] %v2004
    %s2028 = scalar_lea.vmem [#allocation1], 1
    %2029 = vst [vmem:[%s2028] ss:$9 sm:$0xff] %v2006
    %s2030 = scalar_lea.vmem [#allocation1], 2
    %2031 = vst [vmem:[%s2030] ss:$9 sm:$0xff] %v2008
    %s2032 = scalar_lea.vmem [#allocation1], 3
    %2033 = vst [vmem:[%s2032] ss:$9 sm:$0xff] %v2010
    %s2034 = scalar_lea.vmem [#allocation1], 4
    %2035 = vst [vmem:[%s2034] ss:$9 sm:$0xff] %v2012
    %s2036 = scalar_lea.vmem [#allocation1], 5
    %2037 = vst [vmem:[%s2036] ss:$9 sm:$0xff] %v2014
    %s2038 = scalar_lea.vmem [#allocation1], 6
    %2039 = vst [vmem:[%s2038] ss:$9 sm:$0xff] %v2016
    %s2040 = scalar_lea.vmem [#allocation1], 7
    %2041 = vst [vmem:[%s2040] ss:$9 sm:$0xff] %v2018
    %v2042 = vld [vmem:[#allocation1] sm:$0xff]
    %v2043 = vld [vmem:[#allocation1 + $0x9] sm:$0xff]
    %v2044 = vld [vmem:[#allocation1 + $0x12] sm:$0xff]
    %v2045 = vld [vmem:[#allocation1 + $0x1b] sm:$0xff]
    %2050 = vmatpush.msra.mxu0 %v83
    %2051 = vmatpush.msra.mxu0 %v79
    %2052 = vmatpush.msra.mxu0 %v75
    %2053 = vmatpush.msra.mxu0 %v71
    %2054 = vmatpush.msra.mxu0 %v67
    %2055 = vmatpush.msra.mxu0 %v63
    %2056 = vmatpush.msra.mxu0 %v59
    %2057 = vmatpush.msra.mxu0 %v55
    %2058 = vmatpush.msra.mxu0 %v51
    %2059 = vmatpush.msra.mxu0 %v47
    %2060 = vmatpush.msra.mxu0 %v43
    %2061 = vmatpush.msra.mxu0 %v39
    %2062 = vmatpush.msra.mxu0 %v35
    %2063 = vmatpush.msra.mxu0 %v31
    %2064 = vmatpush.msra.mxu0 %v27
    %2065 = vmatpush.msra.mxu0 %v23
    %2066 = vmatmul.f32.gmra.mxu0 %v1979
    %v2067 = vpop.f32.mrf.mxu0
    %v2068 = vadd.f32 %v2042, %v2067
    %2069 = vdwg.mxu0
    %2070 = vmatpush.msra.mxu0 %v84
    %2071 = vmatpush.msra.mxu0 %v80
    %2072 = vmatpush.msra.mxu0 %v76
    %2073 = vmatpush.msra.mxu0 %v72
    %2074 = vmatpush.msra.mxu0 %v68
    %2075 = vmatpush.msra.mxu0 %v64
    %2076 = vmatpush.msra.mxu0 %v60
    %2077 = vmatpush.msra.mxu0 %v56
    %2078 = vmatpush.msra.mxu0 %v52
    %2079 = vmatpush.msra.mxu0 %v48
    %2080 = vmatpush.msra.mxu0 %v44
    %2081 = vmatpush.msra.mxu0 %v40
    %2082 = vmatpush.msra.mxu0 %v36
    %2083 = vmatpush.msra.mxu0 %v32
    %2084 = vmatpush.msra.mxu0 %v28
    %2085 = vmatpush.msra.mxu0 %v24
    %2086 = vmatmul.f32.gmra.mxu0 %v1979
    %v2087 = vpop.f32.mrf.mxu0
    %v2088 = vadd.f32 %v2043, %v2087
    %2089 = vdwg.mxu0
    %2090 = vmatpush.msra.mxu0 %v85
    %2091 = vmatpush.msra.mxu0 %v81
    %2092 = vmatpush.msra.mxu0 %v77
    %2093 = vmatpush.msra.mxu0 %v73
    %2094 = vmatpush.msra.mxu0 %v69
    %2095 = vmatpush.msra.mxu0 %v65
    %2096 = vmatpush.msra.mxu0 %v61
    %2097 = vmatpush.msra.mxu0 %v57
    %2098 = vmatpush.msra.mxu0 %v53
    %2099 = vmatpush.msra.mxu0 %v49
    %2100 = vmatpush.msra.mxu0 %v45
    %2101 = vmatpush.msra.mxu0 %v41
    %2102 = vmatpush.msra.mxu0 %v37
    %2103 = vmatpush.msra.mxu0 %v33
    %2104 = vmatpush.msra.mxu0 %v29
    %2105 = vmatpush.msra.mxu0 %v25
    %2106 = vmatmul.f32.gmra.mxu0 %v1979
    %v2107 = vpop.f32.mrf.mxu0
    %v2108 = vadd.f32 %v2044, %v2107
    %2109 = vdwg.mxu0
    %2110 = vmatpush.msra.mxu0 %v86
    %2111 = vmatpush.msra.mxu0 %v82
    %2112 = vmatpush.msra.mxu0 %v78
    %2113 = vmatpush.msra.mxu0 %v74
    %2114 = vmatpush.msra.mxu0 %v70
    %2115 = vmatpush.msra.mxu0 %v66
    %2116 = vmatpush.msra.mxu0 %v62
    %2117 = vmatpush.msra.mxu0 %v58
    %2118 = vmatpush.msra.mxu0 %v54
    %2119 = vmatpush.msra.mxu0 %v50
    %2120 = vmatpush.msra.mxu0 %v46
    %2121 = vmatpush.msra.mxu0 %v42
    %2122 = vmatpush.msra.mxu0 %v38
    %2123 = vmatpush.msra.mxu0 %v34
    %2124 = vmatpush.msra.mxu0 %v30
    %2125 = vmatpush.msra.mxu0 %v26
    %2126 = vmatmul.f32.gmra.mxu0 %v1979
    %v2127 = vpop.f32.mrf.mxu0
    %v2128 = vadd.f32 %v2045, %v2127
    %2129 = vdwg.mxu0
    %v2130 = vxor.u32 %v2068, 2147483648
    %v2131 = vxor.u32 %v2088, 2147483648
    %v2132 = vxor.u32 %v2108, 2147483648
    %v2133 = vmul.f32 %v2130, 1.442695
    %v2134 = vpow.pop %v2133
    %v2135 = vmul.f32 %v2131, 1.442695
    %v2136 = vpow.pop %v2135
    %v2137 = vmul.f32 %v2132, 1.442695
    %v2138 = vpow.pop %v2137
    %v2139 = vadd.f32 %v2134, 1.0
    %v2140 = vadd.f32 %v2136, 1.0
    %v2141 = vadd.f32 %v2138, 1.0
    %v2142 = vrcp.pop %v2139
    %v2143 = vmul.f32 %v2139, %v2142
    %v2144 = vsub.f32 1.0, %v2143
    %v2145 = vmul.f32 %v2142, %v2144
    %v2146 = vadd.f32 %v2142, %v2145
    %vm2147 = vweird.f32 %v2139
    %vm2148 = vweird.f32 %v2142
    %vm2149 = vmor %vm2147, %vm2148
    %v2150 = vsel %vm2149, %v2142, %v2146
    %v2151 = vand.u32 2147483647, %v2139
    %vm2152 = vcmp.eq.f32.partialorder %v2151, 8.507059e+37
    %v2153 = vand.u32 %v2139, 2147483648
    %v2154 = vor.u32 1.1754944e-38, %v2153
    %v2155 = vsel %vm2152, %v2154, %v2150
    %v2156 = vmul.f32 1.0, %v2155
    %v2157 = vrcp.pop %v2140
    %v2158 = vmul.f32 %v2140, %v2157
    %v2159 = vsub.f32 1.0, %v2158
    %v2160 = vmul.f32 %v2157, %v2159
    %v2161 = vadd.f32 %v2157, %v2160
    %vm2162 = vweird.f32 %v2140
    %vm2163 = vweird.f32 %v2157
    %vm2164 = vmor %vm2162, %vm2163
    %v2165 = vsel %vm2164, %v2157, %v2161
    %v2166 = vand.u32 2147483647, %v2140
    %vm2167 = vcmp.eq.f32.partialorder %v2166, 8.507059e+37
    %v2168 = vand.u32 %v2140, 2147483648
    %v2169 = vor.u32 1.1754944e-38, %v2168
    %v2170 = vsel %vm2167, %v2169, %v2165
    %v2171 = vmul.f32 1.0, %v2170
    %v2172 = vrcp.pop %v2141
    %v2173 = vmul.f32 %v2141, %v2172
    %v2174 = vsub.f32 1.0, %v2173
    %v2175 = vmul.f32 %v2172, %v2174
    %v2176 = vadd.f32 %v2172, %v2175
    %vm2177 = vweird.f32 %v2141
    %vm2178 = vweird.f32 %v2172
    %vm2179 = vmor %vm2177, %vm2178
    %v2180 = vsel %vm2179, %v2172, %v2176
    %v2181 = vand.u32 2147483647, %v2141
    %vm2182 = vcmp.eq.f32.partialorder %v2181, 8.507059e+37
    %v2183 = vand.u32 %v2141, 2147483648
    %v2184 = vor.u32 1.1754944e-38, %v2183
    %v2185 = vsel %vm2182, %v2184, %v2180
    %v2186 = vmul.f32 1.0, %v2185
    %v2187 = vtanh.pop %v2128
    %v2188 = vmul.f32 %v2171, %v1977
    %v2189 = vmul.f32 %v2156, %v2187
    %v2190 = vadd.f32 %v2188, %v2189
    %v2191 = vtanh.pop %v2190
    %v2192 = vmul.f32 %v2186, %v2191
    %v2194 = vrot.slane %v2192, 1
    %v2195 = vrot.slane %v2192, 2
    %v2196 = vrot.slane %v2192, 3
    %v2197 = vrot.slane %v2192, 4
    %v2198 = vrot.slane %v2192, 5
    %v2199 = vrot.slane %v2192, 6
    %v2200 = vrot.slane %v2192, 7
    %2208 = vst [vmem:[#allocation4 + $0x9] sm:$0x1] %v2192
    %2209 = vst [vmem:[#allocation4 + $0x19] sm:$0x1] %v2194
    %2210 = vst [vmem:[#allocation4 + $0x29] sm:$0x1] %v2195
    %2211 = vst [vmem:[#allocation4 + $0x39] sm:$0x1] %v2196
    %2212 = vst [vmem:[#allocation4 + $0x49] sm:$0x1] %v2197
    %2213 = vst [vmem:[#allocation4 + $0x59] sm:$0x1] %v2198
    %2214 = vst [vmem:[#allocation4 + $0x69] sm:$0x1] %v2199
    %2215 = vst [vmem:[#allocation4 + $0x79] sm:$0x1] %v2200
    %s2216 = scalar_lea.vmem %s0, 34
    %v2217 = vld [vmem:[%s2216] ss:$8 sm:$0xf]
    %s2218 = scalar_lea.vmem %s0, 98
    %v2219 = vld [vmem:[%s2218] ss:$8 sm:$0xf]
    %s2220 = scalar_lea.vmem %s0, 162
    %v2221 = vld [vmem:[%s2220] ss:$8 sm:$0xf]
    %s2222 = scalar_lea.vmem %s0, 226
    %v2223 = vld [vmem:[%s2222] ss:$8 sm:$0xf]
    %s2224 = scalar_lea.vmem %s0, 290
    %v2225 = vld [vmem:[%s2224] ss:$8 sm:$0xf]
    %s2226 = scalar_lea.vmem %s0, 354
    %v2227 = vld [vmem:[%s2226] ss:$8 sm:$0xf]
    %s2228 = scalar_lea.vmem %s0, 418
    %v2229 = vld [vmem:[%s2228] ss:$8 sm:$0xf]
    %s2230 = scalar_lea.vmem %s0, 482
    %v2231 = vld [vmem:[%s2230] ss:$8 sm:$0xf]
    %2240 = vst [vmem:[#allocation1] ss:$9 sm:$0xff] %v2217
    %s2241 = scalar_lea.vmem [#allocation1], 1
    %2242 = vst [vmem:[%s2241] ss:$9 sm:$0xff] %v2219
    %s2243 = scalar_lea.vmem [#allocation1], 2
    %2244 = vst [vmem:[%s2243] ss:$9 sm:$0xff] %v2221
    %s2245 = scalar_lea.vmem [#allocation1], 3
    %2246 = vst [vmem:[%s2245] ss:$9 sm:$0xff] %v2223
    %s2247 = scalar_lea.vmem [#allocation1], 4
    %2248 = vst [vmem:[%s2247] ss:$9 sm:$0xff] %v2225
    %s2249 = scalar_lea.vmem [#allocation1], 5
    %2250 = vst [vmem:[%s2249] ss:$9 sm:$0xff] %v2227
    %s2251 = scalar_lea.vmem [#allocation1], 6
    %2252 = vst [vmem:[%s2251] ss:$9 sm:$0xff] %v2229
    %s2253 = scalar_lea.vmem [#allocation1], 7
    %2254 = vst [vmem:[%s2253] ss:$9 sm:$0xff] %v2231
    %v2255 = vld [vmem:[#allocation1] sm:$0xff]
    %v2256 = vld [vmem:[#allocation1 + $0x9] sm:$0xff]
    %v2257 = vld [vmem:[#allocation1 + $0x12] sm:$0xff]
    %v2258 = vld [vmem:[#allocation1 + $0x1b] sm:$0xff]
    %2263 = vmatpush.msra.mxu0 %v83
    %2264 = vmatpush.msra.mxu0 %v79
    %2265 = vmatpush.msra.mxu0 %v75
    %2266 = vmatpush.msra.mxu0 %v71
    %2267 = vmatpush.msra.mxu0 %v67
    %2268 = vmatpush.msra.mxu0 %v63
    %2269 = vmatpush.msra.mxu0 %v59
    %2270 = vmatpush.msra.mxu0 %v55
    %2271 = vmatpush.msra.mxu0 %v51
    %2272 = vmatpush.msra.mxu0 %v47
    %2273 = vmatpush.msra.mxu0 %v43
    %2274 = vmatpush.msra.mxu0 %v39
    %2275 = vmatpush.msra.mxu0 %v35
    %2276 = vmatpush.msra.mxu0 %v31
    %2277 = vmatpush.msra.mxu0 %v27
    %2278 = vmatpush.msra.mxu0 %v23
    %2279 = vmatmul.f32.gmra.mxu0 %v2192
    %v2280 = vpop.f32.mrf.mxu0
    %v2281 = vadd.f32 %v2255, %v2280
    %2282 = vdwg.mxu0
    %2283 = vmatpush.msra.mxu0 %v84
    %2284 = vmatpush.msra.mxu0 %v80
    %2285 = vmatpush.msra.mxu0 %v76
    %2286 = vmatpush.msra.mxu0 %v72
    %2287 = vmatpush.msra.mxu0 %v68
    %2288 = vmatpush.msra.mxu0 %v64
    %2289 = vmatpush.msra.mxu0 %v60
    %2290 = vmatpush.msra.mxu0 %v56
    %2291 = vmatpush.msra.mxu0 %v52
    %2292 = vmatpush.msra.mxu0 %v48
    %2293 = vmatpush.msra.mxu0 %v44
    %2294 = vmatpush.msra.mxu0 %v40
    %2295 = vmatpush.msra.mxu0 %v36
    %2296 = vmatpush.msra.mxu0 %v32
    %2297 = vmatpush.msra.mxu0 %v28
    %2298 = vmatpush.msra.mxu0 %v24
    %2299 = vmatmul.f32.gmra.mxu0 %v2192
    %v2300 = vpop.f32.mrf.mxu0
    %v2301 = vadd.f32 %v2256, %v2300
    %2302 = vdwg.mxu0
    %2303 = vmatpush.msra.mxu0 %v85
    %2304 = vmatpush.msra.mxu0 %v81
    %2305 = vmatpush.msra.mxu0 %v77
    %2306 = vmatpush.msra.mxu0 %v73
    %2307 = vmatpush.msra.mxu0 %v69
    %2308 = vmatpush.msra.mxu0 %v65
    %2309 = vmatpush.msra.mxu0 %v61
    %2310 = vmatpush.msra.mxu0 %v57
    %2311 = vmatpush.msra.mxu0 %v53
    %2312 = vmatpush.msra.mxu0 %v49
    %2313 = vmatpush.msra.mxu0 %v45
    %2314 = vmatpush.msra.mxu0 %v41
    %2315 = vmatpush.msra.mxu0 %v37
    %2316 = vmatpush.msra.mxu0 %v33
    %2317 = vmatpush.msra.mxu0 %v29
    %2318 = vmatpush.msra.mxu0 %v25
    %2319 = vmatmul.f32.gmra.mxu0 %v2192
    %v2320 = vpop.f32.mrf.mxu0
    %v2321 = vadd.f32 %v2257, %v2320
    %2322 = vdwg.mxu0
    %2323 = vmatpush.msra.mxu0 %v86
    %2324 = vmatpush.msra.mxu0 %v82
    %2325 = vmatpush.msra.mxu0 %v78
    %2326 = vmatpush.msra.mxu0 %v74
    %2327 = vmatpush.msra.mxu0 %v70
    %2328 = vmatpush.msra.mxu0 %v66
    %2329 = vmatpush.msra.mxu0 %v62
    %2330 = vmatpush.msra.mxu0 %v58
    %2331 = vmatpush.msra.mxu0 %v54
    %2332 = vmatpush.msra.mxu0 %v50
    %2333 = vmatpush.msra.mxu0 %v46
    %2334 = vmatpush.msra.mxu0 %v42
    %2335 = vmatpush.msra.mxu0 %v38
    %2336 = vmatpush.msra.mxu0 %v34
    %2337 = vmatpush.msra.mxu0 %v30
    %2338 = vmatpush.msra.mxu0 %v26
    %2339 = vmatmul.f32.gmra.mxu0 %v2192
    %v2340 = vpop.f32.mrf.mxu0
    %v2341 = vadd.f32 %v2258, %v2340
    %2342 = vdwg.mxu0
    %v2343 = vxor.u32 %v2281, 2147483648
    %v2344 = vxor.u32 %v2301, 2147483648
    %v2345 = vxor.u32 %v2321, 2147483648
    %v2346 = vmul.f32 %v2343, 1.442695
    %v2347 = vpow.pop %v2346
    %v2348 = vmul.f32 %v2344, 1.442695
    %v2349 = vpow.pop %v2348
    %v2350 = vmul.f32 %v2345, 1.442695
    %v2351 = vpow.pop %v2350
    %v2352 = vadd.f32 %v2347, 1.0
    %v2353 = vadd.f32 %v2349, 1.0
    %v2354 = vadd.f32 %v2351, 1.0
    %v2355 = vrcp.pop %v2352
    %v2356 = vmul.f32 %v2352, %v2355
    %v2357 = vsub.f32 1.0, %v2356
    %v2358 = vmul.f32 %v2355, %v2357
    %v2359 = vadd.f32 %v2355, %v2358
    %vm2360 = vweird.f32 %v2352
    %vm2361 = vweird.f32 %v2355
    %vm2362 = vmor %vm2360, %vm2361
    %v2363 = vsel %vm2362, %v2355, %v2359
    %v2364 = vand.u32 2147483647, %v2352
    %vm2365 = vcmp.eq.f32.partialorder %v2364, 8.507059e+37
    %v2366 = vand.u32 %v2352, 2147483648
    %v2367 = vor.u32 1.1754944e-38, %v2366
    %v2368 = vsel %vm2365, %v2367, %v2363
    %v2369 = vmul.f32 1.0, %v2368
    %v2370 = vrcp.pop %v2353
    %v2371 = vmul.f32 %v2353, %v2370
    %v2372 = vsub.f32 1.0, %v2371
    %v2373 = vmul.f32 %v2370, %v2372
    %v2374 = vadd.f32 %v2370, %v2373
    %vm2375 = vweird.f32 %v2353
    %vm2376 = vweird.f32 %v2370
    %vm2377 = vmor %vm2375, %vm2376
    %v2378 = vsel %vm2377, %v2370, %v2374
    %v2379 = vand.u32 2147483647, %v2353
    %vm2380 = vcmp.eq.f32.partialorder %v2379, 8.507059e+37
    %v2381 = vand.u32 %v2353, 2147483648
    %v2382 = vor.u32 1.1754944e-38, %v2381
    %v2383 = vsel %vm2380, %v2382, %v2378
    %v2384 = vmul.f32 1.0, %v2383
    %v2385 = vrcp.pop %v2354
    %v2386 = vmul.f32 %v2354, %v2385
    %v2387 = vsub.f32 1.0, %v2386
    %v2388 = vmul.f32 %v2385, %v2387
    %v2389 = vadd.f32 %v2385, %v2388
    %vm2390 = vweird.f32 %v2354
    %vm2391 = vweird.f32 %v2385
    %vm2392 = vmor %vm2390, %vm2391
    %v2393 = vsel %vm2392, %v2385, %v2389
    %v2394 = vand.u32 2147483647, %v2354
    %vm2395 = vcmp.eq.f32.partialorder %v2394, 8.507059e+37
    %v2396 = vand.u32 %v2354, 2147483648
    %v2397 = vor.u32 1.1754944e-38, %v2396
    %v2398 = vsel %vm2395, %v2397, %v2393
    %v2399 = vmul.f32 1.0, %v2398
    %v2400 = vtanh.pop %v2341
    %v2401 = vmul.f32 %v2384, %v2190
    %v2402 = vmul.f32 %v2369, %v2400
    %v2403 = vadd.f32 %v2401, %v2402
    %v2404 = vtanh.pop %v2403
    %v2405 = vmul.f32 %v2399, %v2404
    %v2407 = vrot.slane %v2405, 1
    %v2408 = vrot.slane %v2405, 2
    %v2409 = vrot.slane %v2405, 3
    %v2410 = vrot.slane %v2405, 4
    %v2411 = vrot.slane %v2405, 5
    %v2412 = vrot.slane %v2405, 6
    %v2413 = vrot.slane %v2405, 7
    %2421 = vst [vmem:[#allocation4 + $0xa] sm:$0x1] %v2405
    %2422 = vst [vmem:[#allocation4 + $0x1a] sm:$0x1] %v2407
    %2423 = vst [vmem:[#allocation4 + $0x2a] sm:$0x1] %v2408
    %2424 = vst [vmem:[#allocation4 + $0x3a] sm:$0x1] %v2409
    %2425 = vst [vmem:[#allocation4 + $0x4a] sm:$0x1] %v2410
    %2426 = vst [vmem:[#allocation4 + $0x5a] sm:$0x1] %v2411
    %2427 = vst [vmem:[#allocation4 + $0x6a] sm:$0x1] %v2412
    %2428 = vst [vmem:[#allocation4 + $0x7a] sm:$0x1] %v2413
    %s2429 = scalar_lea.vmem %s0, 35
    %v2430 = vld [vmem:[%s2429] ss:$8 sm:$0xf]
    %s2431 = scalar_lea.vmem %s0, 99
    %v2432 = vld [vmem:[%s2431] ss:$8 sm:$0xf]
    %s2433 = scalar_lea.vmem %s0, 163
    %v2434 = vld [vmem:[%s2433] ss:$8 sm:$0xf]
    %s2435 = scalar_lea.vmem %s0, 227
    %v2436 = vld [vmem:[%s2435] ss:$8 sm:$0xf]
    %s2437 = scalar_lea.vmem %s0, 291
    %v2438 = vld [vmem:[%s2437] ss:$8 sm:$0xf]
    %s2439 = scalar_lea.vmem %s0, 355
    %v2440 = vld [vmem:[%s2439] ss:$8 sm:$0xf]
    %s2441 = scalar_lea.vmem %s0, 419
    %v2442 = vld [vmem:[%s2441] ss:$8 sm:$0xf]
    %s2443 = scalar_lea.vmem %s0, 483
    %v2444 = vld [vmem:[%s2443] ss:$8 sm:$0xf]
    %2453 = vst [vmem:[#allocation1] ss:$9 sm:$0xff] %v2430
    %s2454 = scalar_lea.vmem [#allocation1], 1
    %2455 = vst [vmem:[%s2454] ss:$9 sm:$0xff] %v2432
    %s2456 = scalar_lea.vmem [#allocation1], 2
    %2457 = vst [vmem:[%s2456] ss:$9 sm:$0xff] %v2434
    %s2458 = scalar_lea.vmem [#allocation1], 3
    %2459 = vst [vmem:[%s2458] ss:$9 sm:$0xff] %v2436
    %s2460 = scalar_lea.vmem [#allocation1], 4
    %2461 = vst [vmem:[%s2460] ss:$9 sm:$0xff] %v2438
    %s2462 = scalar_lea.vmem [#allocation1], 5
    %2463 = vst [vmem:[%s2462] ss:$9 sm:$0xff] %v2440
    %s2464 = scalar_lea.vmem [#allocation1], 6
    %2465 = vst [vmem:[%s2464] ss:$9 sm:$0xff] %v2442
    %s2466 = scalar_lea.vmem [#allocation1], 7
    %2467 = vst [vmem:[%s2466] ss:$9 sm:$0xff] %v2444
    %v2468 = vld [vmem:[#allocation1] sm:$0xff]
    %v2469 = vld [vmem:[#allocation1 + $0x9] sm:$0xff]
    %v2470 = vld [vmem:[#allocation1 + $0x12] sm:$0xff]
    %v2471 = vld [vmem:[#allocation1 + $0x1b] sm:$0xff]
    %2476 = vmatpush.msra.mxu0 %v83
    %2477 = vmatpush.msra.mxu0 %v79
    %2478 = vmatpush.msra.mxu0 %v75
    %2479 = vmatpush.msra.mxu0 %v71
    %2480 = vmatpush.msra.mxu0 %v67
    %2481 = vmatpush.msra.mxu0 %v63
    %2482 = vmatpush.msra.mxu0 %v59
    %2483 = vmatpush.msra.mxu0 %v55
    %2484 = vmatpush.msra.mxu0 %v51
    %2485 = vmatpush.msra.mxu0 %v47
    %2486 = vmatpush.msra.mxu0 %v43
    %2487 = vmatpush.msra.mxu0 %v39
    %2488 = vmatpush.msra.mxu0 %v35
    %2489 = vmatpush.msra.mxu0 %v31
    %2490 = vmatpush.msra.mxu0 %v27
    %2491 = vmatpush.msra.mxu0 %v23
    %2492 = vmatmul.f32.gmra.mxu0 %v2405
    %v2493 = vpop.f32.mrf.mxu0
    %v2494 = vadd.f32 %v2468, %v2493
    %2495 = vdwg.mxu0
    %2496 = vmatpush.msra.mxu0 %v84
    %2497 = vmatpush.msra.mxu0 %v80
    %2498 = vmatpush.msra.mxu0 %v76
    %2499 = vmatpush.msra.mxu0 %v72
    %2500 = vmatpush.msra.mxu0 %v68
    %2501 = vmatpush.msra.mxu0 %v64
    %2502 = vmatpush.msra.mxu0 %v60
    %2503 = vmatpush.msra.mxu0 %v56
    %2504 = vmatpush.msra.mxu0 %v52
    %2505 = vmatpush.msra.mxu0 %v48
    %2506 = vmatpush.msra.mxu0 %v44
    %2507 = vmatpush.msra.mxu0 %v40
    %2508 = vmatpush.msra.mxu0 %v36
    %2509 = vmatpush.msra.mxu0 %v32
    %2510 = vmatpush.msra.mxu0 %v28
    %2511 = vmatpush.msra.mxu0 %v24
    %2512 = vmatmul.f32.gmra.mxu0 %v2405
    %v2513 = vpop.f32.mrf.mxu0
    %v2514 = vadd.f32 %v2469, %v2513
    %2515 = vdwg.mxu0
    %2516 = vmatpush.msra.mxu0 %v85
    %2517 = vmatpush.msra.mxu0 %v81
    %2518 = vmatpush.msra.mxu0 %v77
    %2519 = vmatpush.msra.mxu0 %v73
    %2520 = vmatpush.msra.mxu0 %v69
    %2521 = vmatpush.msra.mxu0 %v65
    %2522 = vmatpush.msra.mxu0 %v61
    %2523 = vmatpush.msra.mxu0 %v57
    %2524 = vmatpush.msra.mxu0 %v53
    %2525 = vmatpush.msra.mxu0 %v49
    %2526 = vmatpush.msra.mxu0 %v45
    %2527 = vmatpush.msra.mxu0 %v41
    %2528 = vmatpush.msra.mxu0 %v37
    %2529 = vmatpush.msra.mxu0 %v33
    %2530 = vmatpush.msra.mxu0 %v29
    %2531 = vmatpush.msra.mxu0 %v25
    %2532 = vmatmul.f32.gmra.mxu0 %v2405
    %v2533 = vpop.f32.mrf.mxu0
    %v2534 = vadd.f32 %v2470, %v2533
    %2535 = vdwg.mxu0
    %2536 = vmatpush.msra.mxu0 %v86
    %2537 = vmatpush.msra.mxu0 %v82
    %2538 = vmatpush.msra.mxu0 %v78
    %2539 = vmatpush.msra.mxu0 %v74
    %2540 = vmatpush.msra.mxu0 %v70
    %2541 = vmatpush.msra.mxu0 %v66
    %2542 = vmatpush.msra.mxu0 %v62
    %2543 = vmatpush.msra.mxu0 %v58
    %2544 = vmatpush.msra.mxu0 %v54
    %2545 = vmatpush.msra.mxu0 %v50
    %2546 = vmatpush.msra.mxu0 %v46
    %2547 = vmatpush.msra.mxu0 %v42
    %2548 = vmatpush.msra.mxu0 %v38
    %2549 = vmatpush.msra.mxu0 %v34
    %2550 = vmatpush.msra.mxu0 %v30
    %2551 = vmatpush.msra.mxu0 %v26
    %2552 = vmatmul.f32.gmra.mxu0 %v2405
    %v2553 = vpop.f32.mrf.mxu0
    %v2554 = vadd.f32 %v2471, %v2553
    %2555 = vdwg.mxu0
    %v2556 = vxor.u32 %v2494, 2147483648
    %v2557 = vxor.u32 %v2514, 2147483648
    %v2558 = vxor.u32 %v2534, 2147483648
    %v2559 = vmul.f32 %v2556, 1.442695
    %v2560 = vpow.pop %v2559
    %v2561 = vmul.f32 %v2557, 1.442695
    %v2562 = vpow.pop %v2561
    %v2563 = vmul.f32 %v2558, 1.442695
    %v2564 = vpow.pop %v2563
    %v2565 = vadd.f32 %v2560, 1.0
    %v2566 = vadd.f32 %v2562, 1.0
    %v2567 = vadd.f32 %v2564, 1.0
    %v2568 = vrcp.pop %v2565
    %v2569 = vmul.f32 %v2565, %v2568
    %v2570 = vsub.f32 1.0, %v2569
    %v2571 = vmul.f32 %v2568, %v2570
    %v2572 = vadd.f32 %v2568, %v2571
    %vm2573 = vweird.f32 %v2565
    %vm2574 = vweird.f32 %v2568
    %vm2575 = vmor %vm2573, %vm2574
    %v2576 = vsel %vm2575, %v2568, %v2572
    %v2577 = vand.u32 2147483647, %v2565
    %vm2578 = vcmp.eq.f32.partialorder %v2577, 8.507059e+37
    %v2579 = vand.u32 %v2565, 2147483648
    %v2580 = vor.u32 1.1754944e-38, %v2579
    %v2581 = vsel %vm2578, %v2580, %v2576
    %v2582 = vmul.f32 1.0, %v2581
    %v2583 = vrcp.pop %v2566
    %v2584 = vmul.f32 %v2566, %v2583
    %v2585 = vsub.f32 1.0, %v2584
    %v2586 = vmul.f32 %v2583, %v2585
    %v2587 = vadd.f32 %v2583, %v2586
    %vm2588 = vweird.f32 %v2566
    %vm2589 = vweird.f32 %v2583
    %vm2590 = vmor %vm2588, %vm2589
    %v2591 = vsel %vm2590, %v2583, %v2587
    %v2592 = vand.u32 2147483647, %v2566
    %vm2593 = vcmp.eq.f32.partialorder %v2592, 8.507059e+37
    %v2594 = vand.u32 %v2566, 2147483648
    %v2595 = vor.u32 1.1754944e-38, %v2594
    %v2596 = vsel %vm2593, %v2595, %v2591
    %v2597 = vmul.f32 1.0, %v2596
    %v2598 = vrcp.pop %v2567
    %v2599 = vmul.f32 %v2567, %v2598
    %v2600 = vsub.f32 1.0, %v2599
    %v2601 = vmul.f32 %v2598, %v2600
    %v2602 = vadd.f32 %v2598, %v2601
    %vm2603 = vweird.f32 %v2567
    %vm2604 = vweird.f32 %v2598
    %vm2605 = vmor %vm2603, %vm2604
    %v2606 = vsel %vm2605, %v2598, %v2602
    %v2607 = vand.u32 2147483647, %v2567
    %vm2608 = vcmp.eq.f32.partialorder %v2607, 8.507059e+37
    %v2609 = vand.u32 %v2567, 2147483648
    %v2610 = vor.u32 1.1754944e-38, %v2609
    %v2611 = vsel %vm2608, %v2610, %v2606
    %v2612 = vmul.f32 1.0, %v2611
    %v2613 = vtanh.pop %v2554
    %v2614 = vmul.f32 %v2597, %v2403
    %v2615 = vmul.f32 %v2582, %v2613
    %v2616 = vadd.f32 %v2614, %v2615
    %v2617 = vtanh.pop %v2616
    %v2618 = vmul.f32 %v2612, %v2617
    %v2620 = vrot.slane %v2618, 1
    %v2621 = vrot.slane %v2618, 2
    %v2622 = vrot.slane %v2618, 3
    %v2623 = vrot.slane %v2618, 4
    %v2624 = vrot.slane %v2618, 5
    %v2625 = vrot.slane %v2618, 6
    %v2626 = vrot.slane %v2618, 7
    %2634 = vst [vmem:[#allocation4 + $0xb] sm:$0x1] %v2618
    %2635 = vst [vmem:[#allocation4 + $0x1b] sm:$0x1] %v2620
    %2636 = vst [vmem:[#allocation4 + $0x2b] sm:$0x1] %v2621
    %2637 = vst [vmem:[#allocation4 + $0x3b] sm:$0x1] %v2622
    %2638 = vst [vmem:[#allocation4 + $0x4b] sm:$0x1] %v2623
    %2639 = vst [vmem:[#allocation4 + $0x5b] sm:$0x1] %v2624
    %2640 = vst [vmem:[#allocation4 + $0x6b] sm:$0x1] %v2625
    %2641 = vst [vmem:[#allocation4 + $0x7b] sm:$0x1] %v2626
    %s2642 = scalar_lea.vmem %s0, 36
    %v2643 = vld [vmem:[%s2642] ss:$8 sm:$0xf]
    %s2644 = scalar_lea.vmem %s0, 100
    %v2645 = vld [vmem:[%s2644] ss:$8 sm:$0xf]
    %s2646 = scalar_lea.vmem %s0, 164
    %v2647 = vld [vmem:[%s2646] ss:$8 sm:$0xf]
    %s2648 = scalar_lea.vmem %s0, 228
    %v2649 = vld [vmem:[%s2648] ss:$8 sm:$0xf]
    %s2650 = scalar_lea.vmem %s0, 292
    %v2651 = vld [vmem:[%s2650] ss:$8 sm:$0xf]
    %s2652 = scalar_lea.vmem %s0, 356
    %v2653 = vld [vmem:[%s2652] ss:$8 sm:$0xf]
    %s2654 = scalar_lea.vmem %s0, 420
    %v2655 = vld [vmem:[%s2654] ss:$8 sm:$0xf]
    %s2656 = scalar_lea.vmem %s0, 484
    %v2657 = vld [vmem:[%s2656] ss:$8 sm:$0xf]
    %2666 = vst [vmem:[#allocation1] ss:$9 sm:$0xff] %v2643
    %s2667 = scalar_lea.vmem [#allocation1], 1
    %2668 = vst [vmem:[%s2667] ss:$9 sm:$0xff] %v2645
    %s2669 = scalar_lea.vmem [#allocation1], 2
    %2670 = vst [vmem:[%s2669] ss:$9 sm:$0xff] %v2647
    %s2671 = scalar_lea.vmem [#allocation1], 3
    %2672 = vst [vmem:[%s2671] ss:$9 sm:$0xff] %v2649
    %s2673 = scalar_lea.vmem [#allocation1], 4
    %2674 = vst [vmem:[%s2673] ss:$9 sm:$0xff] %v2651
    %s2675 = scalar_lea.vmem [#allocation1], 5
    %2676 = vst [vmem:[%s2675] ss:$9 sm:$0xff] %v2653
    %s2677 = scalar_lea.vmem [#allocation1], 6
    %2678 = vst [vmem:[%s2677] ss:$9 sm:$0xff] %v2655
    %s2679 = scalar_lea.vmem [#allocation1], 7
    %2680 = vst [vmem:[%s2679] ss:$9 sm:$0xff] %v2657
    %v2681 = vld [vmem:[#allocation1] sm:$0xff]
    %v2682 = vld [vmem:[#allocation1 + $0x9] sm:$0xff]
    %v2683 = vld [vmem:[#allocation1 + $0x12] sm:$0xff]
    %v2684 = vld [vmem:[#allocation1 + $0x1b] sm:$0xff]
    %2689 = vmatpush.msra.mxu0 %v83
    %2690 = vmatpush.msra.mxu0 %v79
    %2691 = vmatpush.msra.mxu0 %v75
    %2692 = vmatpush.msra.mxu0 %v71
    %2693 = vmatpush.msra.mxu0 %v67
    %2694 = vmatpush.msra.mxu0 %v63
    %2695 = vmatpush.msra.mxu0 %v59
    %2696 = vmatpush.msra.mxu0 %v55
    %2697 = vmatpush.msra.mxu0 %v51
    %2698 = vmatpush.msra.mxu0 %v47
    %2699 = vmatpush.msra.mxu0 %v43
    %2700 = vmatpush.msra.mxu0 %v39
    %2701 = vmatpush.msra.mxu0 %v35
    %2702 = vmatpush.msra.mxu0 %v31
    %2703 = vmatpush.msra.mxu0 %v27
    %2704 = vmatpush.msra.mxu0 %v23
    %2705 = vmatmul.f32.gmra.mxu0 %v2618
    %v2706 = vpop.f32.mrf.mxu0
    %v2707 = vadd.f32 %v2681, %v2706
    %2708 = vdwg.mxu0
    %2709 = vmatpush.msra.mxu0 %v84
    %2710 = vmatpush.msra.mxu0 %v80
    %2711 = vmatpush.msra.mxu0 %v76
    %2712 = vmatpush.msra.mxu0 %v72
    %2713 = vmatpush.msra.mxu0 %v68
    %2714 = vmatpush.msra.mxu0 %v64
    %2715 = vmatpush.msra.mxu0 %v60
    %2716 = vmatpush.msra.mxu0 %v56
    %2717 = vmatpush.msra.mxu0 %v52
    %2718 = vmatpush.msra.mxu0 %v48
    %2719 = vmatpush.msra.mxu0 %v44
    %2720 = vmatpush.msra.mxu0 %v40
    %2721 = vmatpush.msra.mxu0 %v36
    %2722 = vmatpush.msra.mxu0 %v32
    %2723 = vmatpush.msra.mxu0 %v28
    %2724 = vmatpush.msra.mxu0 %v24
    %2725 = vmatmul.f32.gmra.mxu0 %v2618
    %v2726 = vpop.f32.mrf.mxu0
    %v2727 = vadd.f32 %v2682, %v2726
    %2728 = vdwg.mxu0
    %2729 = vmatpush.msra.mxu0 %v85
    %2730 = vmatpush.msra.mxu0 %v81
    %2731 = vmatpush.msra.mxu0 %v77
    %2732 = vmatpush.msra.mxu0 %v73
    %2733 = vmatpush.msra.mxu0 %v69
    %2734 = vmatpush.msra.mxu0 %v65
    %2735 = vmatpush.msra.mxu0 %v61
    %2736 = vmatpush.msra.mxu0 %v57
    %2737 = vmatpush.msra.mxu0 %v53
    %2738 = vmatpush.msra.mxu0 %v49
    %2739 = vmatpush.msra.mxu0 %v45
    %2740 = vmatpush.msra.mxu0 %v41
    %2741 = vmatpush.msra.mxu0 %v37
    %2742 = vmatpush.msra.mxu0 %v33
    %2743 = vmatpush.msra.mxu0 %v29
    %2744 = vmatpush.msra.mxu0 %v25
    %2745 = vmatmul.f32.gmra.mxu0 %v2618
    %v2746 = vpop.f32.mrf.mxu0
    %v2747 = vadd.f32 %v2683, %v2746
    %2748 = vdwg.mxu0
    %2749 = vmatpush.msra.mxu0 %v86
    %2750 = vmatpush.msra.mxu0 %v82
    %2751 = vmatpush.msra.mxu0 %v78
    %2752 = vmatpush.msra.mxu0 %v74
    %2753 = vmatpush.msra.mxu0 %v70
    %2754 = vmatpush.msra.mxu0 %v66
    %2755 = vmatpush.msra.mxu0 %v62
    %2756 = vmatpush.msra.mxu0 %v58
    %2757 = vmatpush.msra.mxu0 %v54
    %2758 = vmatpush.msra.mxu0 %v50
    %2759 = vmatpush.msra.mxu0 %v46
    %2760 = vmatpush.msra.mxu0 %v42
    %2761 = vmatpush.msra.mxu0 %v38
    %2762 = vmatpush.msra.mxu0 %v34
    %2763 = vmatpush.msra.mxu0 %v30
    %2764 = vmatpush.msra.mxu0 %v26
    %2765 = vmatmul.f32.gmra.mxu0 %v2618
    %v2766 = vpop.f32.mrf.mxu0
    %v2767 = vadd.f32 %v2684, %v2766
    %2768 = vdwg.mxu0
    %v2769 = vxor.u32 %v2707, 2147483648
    %v2770 = vxor.u32 %v2727, 2147483648
    %v2771 = vxor.u32 %v2747, 2147483648
    %v2772 = vmul.f32 %v2769, 1.442695
    %v2773 = vpow.pop %v2772
    %v2774 = vmul.f32 %v2770, 1.442695
    %v2775 = vpow.pop %v2774
    %v2776 = vmul.f32 %v2771, 1.442695
    %v2777 = vpow.pop %v2776
    %v2778 = vadd.f32 %v2773, 1.0
    %v2779 = vadd.f32 %v2775, 1.0
    %v2780 = vadd.f32 %v2777, 1.0
    %v2781 = vrcp.pop %v2778
    %v2782 = vmul.f32 %v2778, %v2781
    %v2783 = vsub.f32 1.0, %v2782
    %v2784 = vmul.f32 %v2781, %v2783
    %v2785 = vadd.f32 %v2781, %v2784
    %vm2786 = vweird.f32 %v2778
    %vm2787 = vweird.f32 %v2781
    %vm2788 = vmor %vm2786, %vm2787
    %v2789 = vsel %vm2788, %v2781, %v2785
    %v2790 = vand.u32 2147483647, %v2778
    %vm2791 = vcmp.eq.f32.partialorder %v2790, 8.507059e+37
    %v2792 = vand.u32 %v2778, 2147483648
    %v2793 = vor.u32 1.1754944e-38, %v2792
    %v2794 = vsel %vm2791, %v2793, %v2789
    %v2795 = vmul.f32 1.0, %v2794
    %v2796 = vrcp.pop %v2779
    %v2797 = vmul.f32 %v2779, %v2796
    %v2798 = vsub.f32 1.0, %v2797
    %v2799 = vmul.f32 %v2796, %v2798
    %v2800 = vadd.f32 %v2796, %v2799
    %vm2801 = vweird.f32 %v2779
    %vm2802 = vweird.f32 %v2796
    %vm2803 = vmor %vm2801, %vm2802
    %v2804 = vsel %vm2803, %v2796, %v2800
    %v2805 = vand.u32 2147483647, %v2779
    %vm2806 = vcmp.eq.f32.partialorder %v2805, 8.507059e+37
    %v2807 = vand.u32 %v2779, 2147483648
    %v2808 = vor.u32 1.1754944e-38, %v2807
    %v2809 = vsel %vm2806, %v2808, %v2804
    %v2810 = vmul.f32 1.0, %v2809
    %v2811 = vrcp.pop %v2780
    %v2812 = vmul.f32 %v2780, %v2811
    %v2813 = vsub.f32 1.0, %v2812
    %v2814 = vmul.f32 %v2811, %v2813
    %v2815 = vadd.f32 %v2811, %v2814
    %vm2816 = vweird.f32 %v2780
    %vm2817 = vweird.f32 %v2811
    %vm2818 = vmor %vm2816, %vm2817
    %v2819 = vsel %vm2818, %v2811, %v2815
    %v2820 = vand.u32 2147483647, %v2780
    %vm2821 = vcmp.eq.f32.partialorder %v2820, 8.507059e+37
    %v2822 = vand.u32 %v2780, 2147483648
    %v2823 = vor.u32 1.1754944e-38, %v2822
    %v2824 = vsel %vm2821, %v2823, %v2819
    %v2825 = vmul.f32 1.0, %v2824
    %v2826 = vtanh.pop %v2767
    %v2827 = vmul.f32 %v2810, %v2616
    %v2828 = vmul.f32 %v2795, %v2826
    %v2829 = vadd.f32 %v2827, %v2828
    %v2830 = vtanh.pop %v2829
    %v2831 = vmul.f32 %v2825, %v2830
    %v2833 = vrot.slane %v2831, 1
    %v2834 = vrot.slane %v2831, 2
    %v2835 = vrot.slane %v2831, 3
    %v2836 = vrot.slane %v2831, 4
    %v2837 = vrot.slane %v2831, 5
    %v2838 = vrot.slane %v2831, 6
    %v2839 = vrot.slane %v2831, 7
    %2847 = vst [vmem:[#allocation4 + $0xc] sm:$0x1] %v2831
    %2848 = vst [vmem:[#allocation4 + $0x1c] sm:$0x1] %v2833
    %2849 = vst [vmem:[#allocation4 + $0x2c] sm:$0x1] %v2834
    %2850 = vst [vmem:[#allocation4 + $0x3c] sm:$0x1] %v2835
    %2851 = vst [vmem:[#allocation4 + $0x4c] sm:$0x1] %v2836
    %2852 = vst [vmem:[#allocation4 + $0x5c] sm:$0x1] %v2837
    %2853 = vst [vmem:[#allocation4 + $0x6c] sm:$0x1] %v2838
    %2854 = vst [vmem:[#allocation4 + $0x7c] sm:$0x1] %v2839
    %s2855 = scalar_lea.vmem %s0, 37
    %v2856 = vld [vmem:[%s2855] ss:$8 sm:$0xf]
    %s2857 = scalar_lea.vmem %s0, 101
    %v2858 = vld [vmem:[%s2857] ss:$8 sm:$0xf]
    %s2859 = scalar_lea.vmem %s0, 165
    %v2860 = vld [vmem:[%s2859] ss:$8 sm:$0xf]
    %s2861 = scalar_lea.vmem %s0, 229
    %v2862 = vld [vmem:[%s2861] ss:$8 sm:$0xf]
    %s2863 = scalar_lea.vmem %s0, 293
    %v2864 = vld [vmem:[%s2863] ss:$8 sm:$0xf]
    %s2865 = scalar_lea.vmem %s0, 357
    %v2866 = vld [vmem:[%s2865] ss:$8 sm:$0xf]
    %s2867 = scalar_lea.vmem %s0, 421
    %v2868 = vld [vmem:[%s2867] ss:$8 sm:$0xf]
    %s2869 = scalar_lea.vmem %s0, 485
    %v2870 = vld [vmem:[%s2869] ss:$8 sm:$0xf]
    %2879 = vst [vmem:[#allocation1] ss:$9 sm:$0xff] %v2856
    %s2880 = scalar_lea.vmem [#allocation1], 1
    %2881 = vst [vmem:[%s2880] ss:$9 sm:$0xff] %v2858
    %s2882 = scalar_lea.vmem [#allocation1], 2
    %2883 = vst [vmem:[%s2882] ss:$9 sm:$0xff] %v2860
    %s2884 = scalar_lea.vmem [#allocation1], 3
    %2885 = vst [vmem:[%s2884] ss:$9 sm:$0xff] %v2862
    %s2886 = scalar_lea.vmem [#allocation1], 4
    %2887 = vst [vmem:[%s2886] ss:$9 sm:$0xff] %v2864
    %s2888 = scalar_lea.vmem [#allocation1], 5
    %2889 = vst [vmem:[%s2888] ss:$9 sm:$0xff] %v2866
    %s2890 = scalar_lea.vmem [#allocation1], 6
    %2891 = vst [vmem:[%s2890] ss:$9 sm:$0xff] %v2868
    %s2892 = scalar_lea.vmem [#allocation1], 7
    %2893 = vst [vmem:[%s2892] ss:$9 sm:$0xff] %v2870
    %v2894 = vld [vmem:[#allocation1] sm:$0xff]
    %v2895 = vld [vmem:[#allocation1 + $0x9] sm:$0xff]
    %v2896 = vld [vmem:[#allocation1 + $0x12] sm:$0xff]
    %v2897 = vld [vmem:[#allocation1 + $0x1b] sm:$0xff]
    %2902 = vmatpush.msra.mxu0 %v83
    %2903 = vmatpush.msra.mxu0 %v79
    %2904 = vmatpush.msra.mxu0 %v75
    %2905 = vmatpush.msra.mxu0 %v71
    %2906 = vmatpush.msra.mxu0 %v67
    %2907 = vmatpush.msra.mxu0 %v63
    %2908 = vmatpush.msra.mxu0 %v59
    %2909 = vmatpush.msra.mxu0 %v55
    %2910 = vmatpush.msra.mxu0 %v51
    %2911 = vmatpush.msra.mxu0 %v47
    %2912 = vmatpush.msra.mxu0 %v43
    %2913 = vmatpush.msra.mxu0 %v39
    %2914 = vmatpush.msra.mxu0 %v35
    %2915 = vmatpush.msra.mxu0 %v31
    %2916 = vmatpush.msra.mxu0 %v27
    %2917 = vmatpush.msra.mxu0 %v23
    %2918 = vmatmul.f32.gmra.mxu0 %v2831
    %v2919 = vpop.f32.mrf.mxu0
    %v2920 = vadd.f32 %v2894, %v2919
    %2921 = vdwg.mxu0
    %2922 = vmatpush.msra.mxu0 %v84
    %2923 = vmatpush.msra.mxu0 %v80
    %2924 = vmatpush.msra.mxu0 %v76
    %2925 = vmatpush.msra.mxu0 %v72
    %2926 = vmatpush.msra.mxu0 %v68
    %2927 = vmatpush.msra.mxu0 %v64
    %2928 = vmatpush.msra.mxu0 %v60
    %2929 = vmatpush.msra.mxu0 %v56
    %2930 = vmatpush.msra.mxu0 %v52
    %2931 = vmatpush.msra.mxu0 %v48
    %2932 = vmatpush.msra.mxu0 %v44
    %2933 = vmatpush.msra.mxu0 %v40
    %2934 = vmatpush.msra.mxu0 %v36
    %2935 = vmatpush.msra.mxu0 %v32
    %2936 = vmatpush.msra.mxu0 %v28
    %2937 = vmatpush.msra.mxu0 %v24
    %2938 = vmatmul.f32.gmra.mxu0 %v2831
    %v2939 = vpop.f32.mrf.mxu0
    %v2940 = vadd.f32 %v2895, %v2939
    %2941 = vdwg.mxu0
    %2942 = vmatpush.msra.mxu0 %v85
    %2943 = vmatpush.msra.mxu0 %v81
    %2944 = vmatpush.msra.mxu0 %v77
    %2945 = vmatpush.msra.mxu0 %v73
    %2946 = vmatpush.msra.mxu0 %v69
    %2947 = vmatpush.msra.mxu0 %v65
    %2948 = vmatpush.msra.mxu0 %v61
    %2949 = vmatpush.msra.mxu0 %v57
    %2950 = vmatpush.msra.mxu0 %v53
    %2951 = vmatpush.msra.mxu0 %v49
    %2952 = vmatpush.msra.mxu0 %v45
    %2953 = vmatpush.msra.mxu0 %v41
    %2954 = vmatpush.msra.mxu0 %v37
    %2955 = vmatpush.msra.mxu0 %v33
    %2956 = vmatpush.msra.mxu0 %v29
    %2957 = vmatpush.msra.mxu0 %v25
    %2958 = vmatmul.f32.gmra.mxu0 %v2831
    %v2959 = vpop.f32.mrf.mxu0
    %v2960 = vadd.f32 %v2896, %v2959
    %2961 = vdwg.mxu0
    %2962 = vmatpush.msra.mxu0 %v86
    %2963 = vmatpush.msra.mxu0 %v82
    %2964 = vmatpush.msra.mxu0 %v78
    %2965 = vmatpush.msra.mxu0 %v74
    %2966 = vmatpush.msra.mxu0 %v70
    %2967 = vmatpush.msra.mxu0 %v66
    %2968 = vmatpush.msra.mxu0 %v62
    %2969 = vmatpush.msra.mxu0 %v58
    %2970 = vmatpush.msra.mxu0 %v54
    %2971 = vmatpush.msra.mxu0 %v50
    %2972 = vmatpush.msra.mxu0 %v46
    %2973 = vmatpush.msra.mxu0 %v42
    %2974 = vmatpush.msra.mxu0 %v38
    %2975 = vmatpush.msra.mxu0 %v34
    %2976 = vmatpush.msra.mxu0 %v30
    %2977 = vmatpush.msra.mxu0 %v26
    %2978 = vmatmul.f32.gmra.mxu0 %v2831
    %v2979 = vpop.f32.mrf.mxu0
    %v2980 = vadd.f32 %v2897, %v2979
    %2981 = vdwg.mxu0
    %v2982 = vxor.u32 %v2920, 2147483648
    %v2983 = vxor.u32 %v2940, 2147483648
    %v2984 = vxor.u32 %v2960, 2147483648
    %v2985 = vmul.f32 %v2982, 1.442695
    %v2986 = vpow.pop %v2985
    %v2987 = vmul.f32 %v2983, 1.442695
    %v2988 = vpow.pop %v2987
    %v2989 = vmul.f32 %v2984, 1.442695
    %v2990 = vpow.pop %v2989
    %v2991 = vadd.f32 %v2986, 1.0
    %v2992 = vadd.f32 %v2988, 1.0
    %v2993 = vadd.f32 %v2990, 1.0
    %v2994 = vrcp.pop %v2991
    %v2995 = vmul.f32 %v2991, %v2994
    %v2996 = vsub.f32 1.0, %v2995
    %v2997 = vmul.f32 %v2994, %v2996
    %v2998 = vadd.f32 %v2994, %v2997
    %vm2999 = vweird.f32 %v2991
    %vm3000 = vweird.f32 %v2994
    %vm3001 = vmor %vm2999, %vm3000
    %v3002 = vsel %vm3001, %v2994, %v2998
    %v3003 = vand.u32 2147483647, %v2991
    %vm3004 = vcmp.eq.f32.partialorder %v3003, 8.507059e+37
    %v3005 = vand.u32 %v2991, 2147483648
    %v3006 = vor.u32 1.1754944e-38, %v3005
    %v3007 = vsel %vm3004, %v3006, %v3002
    %v3008 = vmul.f32 1.0, %v3007
    %v3009 = vrcp.pop %v2992
    %v3010 = vmul.f32 %v2992, %v3009
    %v3011 = vsub.f32 1.0, %v3010
    %v3012 = vmul.f32 %v3009, %v3011
    %v3013 = vadd.f32 %v3009, %v3012
    %vm3014 = vweird.f32 %v2992
    %vm3015 = vweird.f32 %v3009
    %vm3016 = vmor %vm3014, %vm3015
    %v3017 = vsel %vm3016, %v3009, %v3013
    %v3018 = vand.u32 2147483647, %v2992
    %vm3019 = vcmp.eq.f32.partialorder %v3018, 8.507059e+37
    %v3020 = vand.u32 %v2992, 2147483648
    %v3021 = vor.u32 1.1754944e-38, %v3020
    %v3022 = vsel %vm3019, %v3021, %v3017
    %v3023 = vmul.f32 1.0, %v3022
    %v3024 = vrcp.pop %v2993
    %v3025 = vmul.f32 %v2993, %v3024
    %v3026 = vsub.f32 1.0, %v3025
    %v3027 = vmul.f32 %v3024, %v3026
    %v3028 = vadd.f32 %v3024, %v3027
    %vm3029 = vweird.f32 %v2993
    %vm3030 = vweird.f32 %v3024
    %vm3031 = vmor %vm3029, %vm3030
    %v3032 = vsel %vm3031, %v3024, %v3028
    %v3033 = vand.u32 2147483647, %v2993
    %vm3034 = vcmp.eq.f32.partialorder %v3033, 8.507059e+37
    %v3035 = vand.u32 %v2993, 2147483648
    %v3036 = vor.u32 1.1754944e-38, %v3035
    %v3037 = vsel %vm3034, %v3036, %v3032
    %v3038 = vmul.f32 1.0, %v3037
    %v3039 = vtanh.pop %v2980
    %v3040 = vmul.f32 %v3023, %v2829
    %v3041 = vmul.f32 %v3008, %v3039
    %v3042 = vadd.f32 %v3040, %v3041
    %v3043 = vtanh.pop %v3042
    %v3044 = vmul.f32 %v3038, %v3043
    %v3046 = vrot.slane %v3044, 1
    %v3047 = vrot.slane %v3044, 2
    %v3048 = vrot.slane %v3044, 3
    %v3049 = vrot.slane %v3044, 4
    %v3050 = vrot.slane %v3044, 5
    %v3051 = vrot.slane %v3044, 6
    %v3052 = vrot.slane %v3044, 7
    %3060 = vst [vmem:[#allocation4 + $0xd] sm:$0x1] %v3044
    %3061 = vst [vmem:[#allocation4 + $0x1d] sm:$0x1] %v3046
    %3062 = vst [vmem:[#allocation4 + $0x2d] sm:$0x1] %v3047
    %3063 = vst [vmem:[#allocation4 + $0x3d] sm:$0x1] %v3048
    %3064 = vst [vmem:[#allocation4 + $0x4d] sm:$0x1] %v3049
    %3065 = vst [vmem:[#allocation4 + $0x5d] sm:$0x1] %v3050
    %3066 = vst [vmem:[#allocation4 + $0x6d] sm:$0x1] %v3051
    %3067 = vst [vmem:[#allocation4 + $0x7d] sm:$0x1] %v3052
    %s3068 = scalar_lea.vmem %s0, 38
    %v3069 = vld [vmem:[%s3068] ss:$8 sm:$0xf]
    %s3070 = scalar_lea.vmem %s0, 102
    %v3071 = vld [vmem:[%s3070] ss:$8 sm:$0xf]
    %s3072 = scalar_lea.vmem %s0, 166
    %v3073 = vld [vmem:[%s3072] ss:$8 sm:$0xf]
    %s3074 = scalar_lea.vmem %s0, 230
    %v3075 = vld [vmem:[%s3074] ss:$8 sm:$0xf]
    %s3076 = scalar_lea.vmem %s0, 294
    %v3077 = vld [vmem:[%s3076] ss:$8 sm:$0xf]
    %s3078 = scalar_lea.vmem %s0, 358
    %v3079 = vld [vmem:[%s3078] ss:$8 sm:$0xf]
    %s3080 = scalar_lea.vmem %s0, 422
    %v3081 = vld [vmem:[%s3080] ss:$8 sm:$0xf]
    %s3082 = scalar_lea.vmem %s0, 486
    %v3083 = vld [vmem:[%s3082] ss:$8 sm:$0xf]
    %3092 = vst [vmem:[#allocation1] ss:$9 sm:$0xff] %v3069
    %s3093 = scalar_lea.vmem [#allocation1], 1
    %3094 = vst [vmem:[%s3093] ss:$9 sm:$0xff] %v3071
    %s3095 = scalar_lea.vmem [#allocation1], 2
    %3096 = vst [vmem:[%s3095] ss:$9 sm:$0xff] %v3073
    %s3097 = scalar_lea.vmem [#allocation1], 3
    %3098 = vst [vmem:[%s3097] ss:$9 sm:$0xff] %v3075
    %s3099 = scalar_lea.vmem [#allocation1], 4
    %3100 = vst [vmem:[%s3099] ss:$9 sm:$0xff] %v3077
    %s3101 = scalar_lea.vmem [#allocation1], 5
    %3102 = vst [vmem:[%s3101] ss:$9 sm:$0xff] %v3079
    %s3103 = scalar_lea.vmem [#allocation1], 6
    %3104 = vst [vmem:[%s3103] ss:$9 sm:$0xff] %v3081
    %s3105 = scalar_lea.vmem [#allocation1], 7
    %3106 = vst [vmem:[%s3105] ss:$9 sm:$0xff] %v3083
    %v3107 = vld [vmem:[#allocation1] sm:$0xff]
    %v3108 = vld [vmem:[#allocation1 + $0x9] sm:$0xff]
    %v3109 = vld [vmem:[#allocation1 + $0x12] sm:$0xff]
    %v3110 = vld [vmem:[#allocation1 + $0x1b] sm:$0xff]
    %3115 = vmatpush.msra.mxu0 %v83
    %3116 = vmatpush.msra.mxu0 %v79
    %3117 = vmatpush.msra.mxu0 %v75
    %3118 = vmatpush.msra.mxu0 %v71
    %3119 = vmatpush.msra.mxu0 %v67
    %3120 = vmatpush.msra.mxu0 %v63
    %3121 = vmatpush.msra.mxu0 %v59
    %3122 = vmatpush.msra.mxu0 %v55
    %3123 = vmatpush.msra.mxu0 %v51
    %3124 = vmatpush.msra.mxu0 %v47
    %3125 = vmatpush.msra.mxu0 %v43
    %3126 = vmatpush.msra.mxu0 %v39
    %3127 = vmatpush.msra.mxu0 %v35
    %3128 = vmatpush.msra.mxu0 %v31
    %3129 = vmatpush.msra.mxu0 %v27
    %3130 = vmatpush.msra.mxu0 %v23
    %3131 = vmatmul.f32.gmra.mxu0 %v3044
    %v3132 = vpop.f32.mrf.mxu0
    %v3133 = vadd.f32 %v3107, %v3132
    %3134 = vdwg.mxu0
    %3135 = vmatpush.msra.mxu0 %v84
    %3136 = vmatpush.msra.mxu0 %v80
    %3137 = vmatpush.msra.mxu0 %v76
    %3138 = vmatpush.msra.mxu0 %v72
    %3139 = vmatpush.msra.mxu0 %v68
    %3140 = vmatpush.msra.mxu0 %v64
    %3141 = vmatpush.msra.mxu0 %v60
    %3142 = vmatpush.msra.mxu0 %v56
    %3143 = vmatpush.msra.mxu0 %v52
    %3144 = vmatpush.msra.mxu0 %v48
    %3145 = vmatpush.msra.mxu0 %v44
    %3146 = vmatpush.msra.mxu0 %v40
    %3147 = vmatpush.msra.mxu0 %v36
    %3148 = vmatpush.msra.mxu0 %v32
    %3149 = vmatpush.msra.mxu0 %v28
    %3150 = vmatpush.msra.mxu0 %v24
    %3151 = vmatmul.f32.gmra.mxu0 %v3044
    %v3152 = vpop.f32.mrf.mxu0
    %v3153 = vadd.f32 %v3108, %v3152
    %3154 = vdwg.mxu0
    %3155 = vmatpush.msra.mxu0 %v85
    %3156 = vmatpush.msra.mxu0 %v81
    %3157 = vmatpush.msra.mxu0 %v77
    %3158 = vmatpush.msra.mxu0 %v73
    %3159 = vmatpush.msra.mxu0 %v69
    %3160 = vmatpush.msra.mxu0 %v65
    %3161 = vmatpush.msra.mxu0 %v61
    %3162 = vmatpush.msra.mxu0 %v57
    %3163 = vmatpush.msra.mxu0 %v53
    %3164 = vmatpush.msra.mxu0 %v49
    %3165 = vmatpush.msra.mxu0 %v45
    %3166 = vmatpush.msra.mxu0 %v41
    %3167 = vmatpush.msra.mxu0 %v37
    %3168 = vmatpush.msra.mxu0 %v33
    %3169 = vmatpush.msra.mxu0 %v29
    %3170 = vmatpush.msra.mxu0 %v25
    %3171 = vmatmul.f32.gmra.mxu0 %v3044
    %v3172 = vpop.f32.mrf.mxu0
    %v3173 = vadd.f32 %v3109, %v3172
    %3174 = vdwg.mxu0
    %3175 = vmatpush.msra.mxu0 %v86
    %3176 = vmatpush.msra.mxu0 %v82
    %3177 = vmatpush.msra.mxu0 %v78
    %3178 = vmatpush.msra.mxu0 %v74
    %3179 = vmatpush.msra.mxu0 %v70
    %3180 = vmatpush.msra.mxu0 %v66
    %3181 = vmatpush.msra.mxu0 %v62
    %3182 = vmatpush.msra.mxu0 %v58
    %3183 = vmatpush.msra.mxu0 %v54
    %3184 = vmatpush.msra.mxu0 %v50
    %3185 = vmatpush.msra.mxu0 %v46
    %3186 = vmatpush.msra.mxu0 %v42
    %3187 = vmatpush.msra.mxu0 %v38
    %3188 = vmatpush.msra.mxu0 %v34
    %3189 = vmatpush.msra.mxu0 %v30
    %3190 = vmatpush.msra.mxu0 %v26
    %3191 = vmatmul.f32.gmra.mxu0 %v3044
    %v3192 = vpop.f32.mrf.mxu0
    %v3193 = vadd.f32 %v3110, %v3192
    %3194 = vdwg.mxu0
    %v3195 = vxor.u32 %v3133, 2147483648
    %v3196 = vxor.u32 %v3153, 2147483648
    %v3197 = vxor.u32 %v3173, 2147483648
    %v3198 = vmul.f32 %v3195, 1.442695
    %v3199 = vpow.pop %v3198
    %v3200 = vmul.f32 %v3196, 1.442695
    %v3201 = vpow.pop %v3200
    %v3202 = vmul.f32 %v3197, 1.442695
    %v3203 = vpow.pop %v3202
    %v3204 = vadd.f32 %v3199, 1.0
    %v3205 = vadd.f32 %v3201, 1.0
    %v3206 = vadd.f32 %v3203, 1.0
    %v3207 = vrcp.pop %v3204
    %v3208 = vmul.f32 %v3204, %v3207
    %v3209 = vsub.f32 1.0, %v3208
    %v3210 = vmul.f32 %v3207, %v3209
    %v3211 = vadd.f32 %v3207, %v3210
    %vm3212 = vweird.f32 %v3204
    %vm3213 = vweird.f32 %v3207
    %vm3214 = vmor %vm3212, %vm3213
    %v3215 = vsel %vm3214, %v3207, %v3211
    %v3216 = vand.u32 2147483647, %v3204
    %vm3217 = vcmp.eq.f32.partialorder %v3216, 8.507059e+37
    %v3218 = vand.u32 %v3204, 2147483648
    %v3219 = vor.u32 1.1754944e-38, %v3218
    %v3220 = vsel %vm3217, %v3219, %v3215
    %v3221 = vmul.f32 1.0, %v3220
    %v3222 = vrcp.pop %v3205
    %v3223 = vmul.f32 %v3205, %v3222
    %v3224 = vsub.f32 1.0, %v3223
    %v3225 = vmul.f32 %v3222, %v3224
    %v3226 = vadd.f32 %v3222, %v3225
    %vm3227 = vweird.f32 %v3205
    %vm3228 = vweird.f32 %v3222
    %vm3229 = vmor %vm3227, %vm3228
    %v3230 = vsel %vm3229, %v3222, %v3226
    %v3231 = vand.u32 2147483647, %v3205
    %vm3232 = vcmp.eq.f32.partialorder %v3231, 8.507059e+37
    %v3233 = vand.u32 %v3205, 2147483648
    %v3234 = vor.u32 1.1754944e-38, %v3233
    %v3235 = vsel %vm3232, %v3234, %v3230
    %v3236 = vmul.f32 1.0, %v3235
    %v3237 = vrcp.pop %v3206
    %v3238 = vmul.f32 %v3206, %v3237
    %v3239 = vsub.f32 1.0, %v3238
    %v3240 = vmul.f32 %v3237, %v3239
    %v3241 = vadd.f32 %v3237, %v3240
    %vm3242 = vweird.f32 %v3206
    %vm3243 = vweird.f32 %v3237
    %vm3244 = vmor %vm3242, %vm3243
    %v3245 = vsel %vm3244, %v3237, %v3241
    %v3246 = vand.u32 2147483647, %v3206
    %vm3247 = vcmp.eq.f32.partialorder %v3246, 8.507059e+37
    %v3248 = vand.u32 %v3206, 2147483648
    %v3249 = vor.u32 1.1754944e-38, %v3248
    %v3250 = vsel %vm3247, %v3249, %v3245
    %v3251 = vmul.f32 1.0, %v3250
    %v3252 = vtanh.pop %v3193
    %v3253 = vmul.f32 %v3236, %v3042
    %v3254 = vmul.f32 %v3221, %v3252
    %v3255 = vadd.f32 %v3253, %v3254
    %v3256 = vtanh.pop %v3255
    %v3257 = vmul.f32 %v3251, %v3256
    %v3259 = vrot.slane %v3257, 1
    %v3260 = vrot.slane %v3257, 2
    %v3261 = vrot.slane %v3257, 3
    %v3262 = vrot.slane %v3257, 4
    %v3263 = vrot.slane %v3257, 5
    %v3264 = vrot.slane %v3257, 6
    %v3265 = vrot.slane %v3257, 7
    %3273 = vst [vmem:[#allocation4 + $0xe] sm:$0x1] %v3257
    %3274 = vst [vmem:[#allocation4 + $0x1e] sm:$0x1] %v3259
    %3275 = vst [vmem:[#allocation4 + $0x2e] sm:$0x1] %v3260
    %3276 = vst [vmem:[#allocation4 + $0x3e] sm:$0x1] %v3261
    %3277 = vst [vmem:[#allocation4 + $0x4e] sm:$0x1] %v3262
    %3278 = vst [vmem:[#allocation4 + $0x5e] sm:$0x1] %v3263
    %3279 = vst [vmem:[#allocation4 + $0x6e] sm:$0x1] %v3264
    %3280 = vst [vmem:[#allocation4 + $0x7e] sm:$0x1] %v3265
    %s3281 = scalar_lea.vmem %s0, 39
    %v3282 = vld [vmem:[%s3281] ss:$8 sm:$0xf]
    %s3283 = scalar_lea.vmem %s0, 103
    %v3284 = vld [vmem:[%s3283] ss:$8 sm:$0xf]
    %s3285 = scalar_lea.vmem %s0, 167
    %v3286 = vld [vmem:[%s3285] ss:$8 sm:$0xf]
    %s3287 = scalar_lea.vmem %s0, 231
    %v3288 = vld [vmem:[%s3287] ss:$8 sm:$0xf]
    %s3289 = scalar_lea.vmem %s0, 295
    %v3290 = vld [vmem:[%s3289] ss:$8 sm:$0xf]
    %s3291 = scalar_lea.vmem %s0, 359
    %v3292 = vld [vmem:[%s3291] ss:$8 sm:$0xf]
    %s3293 = scalar_lea.vmem %s0, 423
    %v3294 = vld [vmem:[%s3293] ss:$8 sm:$0xf]
    %s3295 = scalar_lea.vmem %s0, 487
    %v3296 = vld [vmem:[%s3295] ss:$8 sm:$0xf]
    %3305 = vst [vmem:[#allocation1] ss:$9 sm:$0xff] %v3282
    %s3306 = scalar_lea.vmem [#allocation1], 1
    %3307 = vst [vmem:[%s3306] ss:$9 sm:$0xff] %v3284
    %s3308 = scalar_lea.vmem [#allocation1], 2
    %3309 = vst [vmem:[%s3308] ss:$9 sm:$0xff] %v3286
    %s3310 = scalar_lea.vmem [#allocation1], 3
    %3311 = vst [vmem:[%s3310] ss:$9 sm:$0xff] %v3288
    %s3312 = scalar_lea.vmem [#allocation1], 4
    %3313 = vst [vmem:[%s3312] ss:$9 sm:$0xff] %v3290
    %s3314 = scalar_lea.vmem [#allocation1], 5
    %3315 = vst [vmem:[%s3314] ss:$9 sm:$0xff] %v3292
    %s3316 = scalar_lea.vmem [#allocation1], 6
    %3317 = vst [vmem:[%s3316] ss:$9 sm:$0xff] %v3294
    %s3318 = scalar_lea.vmem [#allocation1], 7
    %3319 = vst [vmem:[%s3318] ss:$9 sm:$0xff] %v3296
    %v3320 = vld [vmem:[#allocation1] sm:$0xff]
    %v3321 = vld [vmem:[#allocation1 + $0x9] sm:$0xff]
    %v3322 = vld [vmem:[#allocation1 + $0x12] sm:$0xff]
    %v3323 = vld [vmem:[#allocation1 + $0x1b] sm:$0xff]
    %3328 = vmatpush.msra.mxu0 %v83
    %3329 = vmatpush.msra.mxu0 %v79
    %3330 = vmatpush.msra.mxu0 %v75
    %3331 = vmatpush.msra.mxu0 %v71
    %3332 = vmatpush.msra.mxu0 %v67
    %3333 = vmatpush.msra.mxu0 %v63
    %3334 = vmatpush.msra.mxu0 %v59
    %3335 = vmatpush.msra.mxu0 %v55
    %3336 = vmatpush.msra.mxu0 %v51
    %3337 = vmatpush.msra.mxu0 %v47
    %3338 = vmatpush.msra.mxu0 %v43
    %3339 = vmatpush.msra.mxu0 %v39
    %3340 = vmatpush.msra.mxu0 %v35
    %3341 = vmatpush.msra.mxu0 %v31
    %3342 = vmatpush.msra.mxu0 %v27
    %3343 = vmatpush.msra.mxu0 %v23
    %3344 = vmatmul.f32.gmra.mxu0 %v3257
    %v3345 = vpop.f32.mrf.mxu0
    %v3346 = vadd.f32 %v3320, %v3345
    %3347 = vdwg.mxu0
    %3348 = vmatpush.msra.mxu0 %v84
    %3349 = vmatpush.msra.mxu0 %v80
    %3350 = vmatpush.msra.mxu0 %v76
    %3351 = vmatpush.msra.mxu0 %v72
    %3352 = vmatpush.msra.mxu0 %v68
    %3353 = vmatpush.msra.mxu0 %v64
    %3354 = vmatpush.msra.mxu0 %v60
    %3355 = vmatpush.msra.mxu0 %v56
    %3356 = vmatpush.msra.mxu0 %v52
    %3357 = vmatpush.msra.mxu0 %v48
    %3358 = vmatpush.msra.mxu0 %v44
    %3359 = vmatpush.msra.mxu0 %v40
    %3360 = vmatpush.msra.mxu0 %v36
    %3361 = vmatpush.msra.mxu0 %v32
    %3362 = vmatpush.msra.mxu0 %v28
    %3363 = vmatpush.msra.mxu0 %v24
    %3364 = vmatmul.f32.gmra.mxu0 %v3257
    %v3365 = vpop.f32.mrf.mxu0
    %v3366 = vadd.f32 %v3321, %v3365
    %3367 = vdwg.mxu0
    %3368 = vmatpush.msra.mxu0 %v85
    %3369 = vmatpush.msra.mxu0 %v81
    %3370 = vmatpush.msra.mxu0 %v77
    %3371 = vmatpush.msra.mxu0 %v73
    %3372 = vmatpush.msra.mxu0 %v69
    %3373 = vmatpush.msra.mxu0 %v65
    %3374 = vmatpush.msra.mxu0 %v61
    %3375 = vmatpush.msra.mxu0 %v57
    %3376 = vmatpush.msra.mxu0 %v53
    %3377 = vmatpush.msra.mxu0 %v49
    %3378 = vmatpush.msra.mxu0 %v45
    %3379 = vmatpush.msra.mxu0 %v41
    %3380 = vmatpush.msra.mxu0 %v37
    %3381 = vmatpush.msra.mxu0 %v33
    %3382 = vmatpush.msra.mxu0 %v29
    %3383 = vmatpush.msra.mxu0 %v25
    %3384 = vmatmul.f32.gmra.mxu0 %v3257
    %v3385 = vpop.f32.mrf.mxu0
    %v3386 = vadd.f32 %v3322, %v3385
    %3387 = vdwg.mxu0
    %3388 = vmatpush.msra.mxu0 %v86
    %3389 = vmatpush.msra.mxu0 %v82
    %3390 = vmatpush.msra.mxu0 %v78
    %3391 = vmatpush.msra.mxu0 %v74
    %3392 = vmatpush.msra.mxu0 %v70
    %3393 = vmatpush.msra.mxu0 %v66
    %3394 = vmatpush.msra.mxu0 %v62
    %3395 = vmatpush.msra.mxu0 %v58
    %3396 = vmatpush.msra.mxu0 %v54
    %3397 = vmatpush.msra.mxu0 %v50
    %3398 = vmatpush.msra.mxu0 %v46
    %3399 = vmatpush.msra.mxu0 %v42
    %3400 = vmatpush.msra.mxu0 %v38
    %3401 = vmatpush.msra.mxu0 %v34
    %3402 = vmatpush.msra.mxu0 %v30
    %3403 = vmatpush.msra.mxu0 %v26
    %3404 = vmatmul.f32.gmra.mxu0 %v3257
    %v3405 = vpop.f32.mrf.mxu0
    %v3406 = vadd.f32 %v3323, %v3405
    %3407 = vdwg.mxu0
    %v3408 = vxor.u32 %v3346, 2147483648
    %v3409 = vxor.u32 %v3366, 2147483648
    %v3410 = vxor.u32 %v3386, 2147483648
    %v3411 = vmul.f32 %v3408, 1.442695
    %v3412 = vpow.pop %v3411
    %v3413 = vmul.f32 %v3409, 1.442695
    %v3414 = vpow.pop %v3413
    %v3415 = vmul.f32 %v3410, 1.442695
    %v3416 = vpow.pop %v3415
    %v3417 = vadd.f32 %v3412, 1.0
    %v3418 = vadd.f32 %v3414, 1.0
    %v3419 = vadd.f32 %v3416, 1.0
    %v3420 = vrcp.pop %v3417
    %v3421 = vmul.f32 %v3417, %v3420
    %v3422 = vsub.f32 1.0, %v3421
    %v3423 = vmul.f32 %v3420, %v3422
    %v3424 = vadd.f32 %v3420, %v3423
    %vm3425 = vweird.f32 %v3417
    %vm3426 = vweird.f32 %v3420
    %vm3427 = vmor %vm3425, %vm3426
    %v3428 = vsel %vm3427, %v3420, %v3424
    %v3429 = vand.u32 2147483647, %v3417
    %vm3430 = vcmp.eq.f32.partialorder %v3429, 8.507059e+37
    %v3431 = vand.u32 %v3417, 2147483648
    %v3432 = vor.u32 1.1754944e-38, %v3431
    %v3433 = vsel %vm3430, %v3432, %v3428
    %v3434 = vmul.f32 1.0, %v3433
    %v3435 = vrcp.pop %v3418
    %v3436 = vmul.f32 %v3418, %v3435
    %v3437 = vsub.f32 1.0, %v3436
    %v3438 = vmul.f32 %v3435, %v3437
    %v3439 = vadd.f32 %v3435, %v3438
    %vm3440 = vweird.f32 %v3418
    %vm3441 = vweird.f32 %v3435
    %vm3442 = vmor %vm3440, %vm3441
    %v3443 = vsel %vm3442, %v3435, %v3439
    %v3444 = vand.u32 2147483647, %v3418
    %vm3445 = vcmp.eq.f32.partialorder %v3444, 8.507059e+37
    %v3446 = vand.u32 %v3418, 2147483648
    %v3447 = vor.u32 1.1754944e-38, %v3446
    %v3448 = vsel %vm3445, %v3447, %v3443
    %v3449 = vmul.f32 1.0, %v3448
    %v3450 = vrcp.pop %v3419
    %v3451 = vmul.f32 %v3419, %v3450
    %v3452 = vsub.f32 1.0, %v3451
    %v3453 = vmul.f32 %v3450, %v3452
    %v3454 = vadd.f32 %v3450, %v3453
    %vm3455 = vweird.f32 %v3419
    %vm3456 = vweird.f32 %v3450
    %vm3457 = vmor %vm3455, %vm3456
    %v3458 = vsel %vm3457, %v3450, %v3454
    %v3459 = vand.u32 2147483647, %v3419
    %vm3460 = vcmp.eq.f32.partialorder %v3459, 8.507059e+37
    %v3461 = vand.u32 %v3419, 2147483648
    %v3462 = vor.u32 1.1754944e-38, %v3461
    %v3463 = vsel %vm3460, %v3462, %v3458
    %v3464 = vmul.f32 1.0, %v3463
    %v3465 = vtanh.pop %v3406
    %v3466 = vmul.f32 %v3449, %v3255
    %v3467 = vmul.f32 %v3434, %v3465
    %v3468 = vadd.f32 %v3466, %v3467
    %v3469 = vtanh.pop %v3468
    %v3470 = vmul.f32 %v3464, %v3469
    %v3472 = vrot.slane %v3470, 1
    %v3473 = vrot.slane %v3470, 2
    %v3474 = vrot.slane %v3470, 3
    %v3475 = vrot.slane %v3470, 4
    %v3476 = vrot.slane %v3470, 5
    %v3477 = vrot.slane %v3470, 6
    %v3478 = vrot.slane %v3470, 7
    %3486 = vst [vmem:[#allocation4 + $0xf] sm:$0x1] %v3470
    %3487 = vst [vmem:[#allocation4 + $0x1f] sm:$0x1] %v3472
    %3488 = vst [vmem:[#allocation4 + $0x2f] sm:$0x1] %v3473
    %3489 = vst [vmem:[#allocation4 + $0x3f] sm:$0x1] %v3474
    %3490 = vst [vmem:[#allocation4 + $0x4f] sm:$0x1] %v3475
    %3491 = vst [vmem:[#allocation4 + $0x5f] sm:$0x1] %v3476
    %3492 = vst [vmem:[#allocation4 + $0x6f] sm:$0x1] %v3477
    %3493 = vst [vmem:[#allocation4 + $0x7f] sm:$0x1] %v3478
    %3494 = vst [vmem:[#allocation2] sm:$0xff] %v3470
    %3495 = vst [vmem:[#allocation3] sm:$0xff] %v3468
    // Predicated region
    $region14: #{lstm_forward.1} parent=1 // pred_check
      %p3496 = pneg %p15
    $region15: #{lstm_forward.1} parent=1 // pred_check_branch
      %3498 = sbr.rel (%p3496) target = $region17
    $region16: #{lstm_forward.1} parent=1 // pred_region
      %3499 = vst [vmem:[%s3] sm:$0xff] %v3470
      %3500 = vst [vmem:[%s4] sm:$0xff] %v3468
    $region17: #{lstm_forward.1} parent=1 // pred_fallthru
      _
    // Predicated region
    $region18: #{lstm_forward.1} parent=1 // pred_check
      _
    $region19: #{lstm_forward.1} parent=1 // pred_check_branch
      %3502 = sbr.rel (0) target = $region21
    $region20: #{lstm_forward.1} parent=1 // pred_region
      %3504 = vsyncadd [#allocation5], 0
      %s3505 = sshll.u32 [#allocation4], 4
      %s3506 = int_to_ptr.vmem [resolvable:$true] %s3505
      %s3507 = sshll.u32 %s2, 4
      %s3508 = int_to_ptr.hbm [resolvable:$true] %s3507
      %3513 = dma.vmem_to_hbm [thread:$0]  %s3506, 2048, %s3508, [#allocation5], 128, 128, 8
    $region21: #{lstm_forward.1} parent=1 // pred_fallthru
      _
    // Predicated region
    $region22: #{lstm_forward.1} parent=1 // pred_check
      _
    $region23: #{lstm_forward.1} parent=1 // pred_check_branch
      %3515 = sbr.rel (0) target = $region25
    $region24: #{lstm_forward.1} parent=1 // pred_region
      _
    $region25: #{lstm_forward.1} parent=1 // pred_fallthru
      _
    // Predicated region
    $region26: #{lstm_forward.1} parent=1 // pred_check
      _
    $region27: #{lstm_forward.1} parent=1 // pred_check_branch
      %3517 = sbr.rel (0) target = $region29
    $region28: #{lstm_forward.1} parent=1 // pred_region
      _
    $region29: #{lstm_forward.1} parent=1 // pred_fallthru
      _
    // Predicated region
    $region30: #{lstm_forward.1} parent=1 // pred_check
      _
    $region31: #{lstm_forward.1} parent=1 // pred_check_branch
      %3519 = sbr.rel (0) target = $region33
    $region32: #{lstm_forward.1} parent=1 // pred_region
      %3521 = dma.done [#allocation5], 2048
    $region33: #{lstm_forward.1} parent=1 // pred_fallthru
      _
    // Predicated region
    $region34: #{lstm_forward.1} parent=1 // pred_check
      _
    $region35: #{lstm_forward.1} parent=1 // pred_check_branch
      %3523 = sbr.rel (0) target = $region37
    $region36: #{lstm_forward.1} parent=1 // pred_region
      _
    $region37: #{lstm_forward.1} parent=1 // pred_fallthru
      _
    // Predicated region
    $region38: #{lstm_forward.1} parent=1 // pred_check
      _
    $region39: #{lstm_forward.1} parent=1 // pred_check_branch
      %3525 = sbr.rel (0) target = $region41
    $region40: #{lstm_forward.1} parent=1 // pred_region
      _
    $region41: #{lstm_forward.1} parent=1 // pred_fallthru
      _
    %3526 = vsyncpa [#allocation5], 1

</llo_original>
